<compile_context>
chip_gen: v6e
topology: v6e:2x2x1
jax: 0.10.0
libtpu: 0.0.40
codegen_flags: <defaults>
</compile_context>

<pallas_src>
import functools

import jax
import jax.numpy as jnp
from jax.experimental import pallas as pl
from jax.experimental.pallas import tpu as pltpu

EPS = 1e-5
C_IN = 1024
C_OUT = 256


def _fused_kernel(x1_ref, x2_ref, w_ref, bn1_ref, bn2_ref, o_ref):
    # Channels-major tile: x refs are (1, C_IN, tm); params are (C, 2) [scale|bias].
    x1 = x1_ref[0].astype(jnp.float32)          # (C_IN, tm)
    x2 = x2_ref[0].astype(jnp.float32)          # (C_IN, tm)
    s1 = bn1_ref[:, 0:1]                        # (C_IN, 1)
    b1 = bn1_ref[:, 1:2]                        # (C_IN, 1)
    # BN1 (folded) + residual add + ReLU on the VPU (f32).
    h = jnp.maximum(x1 * s1 + b1 + x2, 0.0)
    # 1x1 conv == (C_OUT, C_IN) @ (C_IN, tm) on the MXU; bf16 operands, f32 acc.
    y = jnp.dot(w_ref[...], h.astype(jnp.bfloat16),
                preferred_element_type=jnp.float32)      # (C_OUT, tm)
    # BN2 epilogue in f32 (scale NOT folded into the bf16 weight).
    s2 = bn2_ref[:, 0:1]                        # (C_OUT, 1)
    b2 = bn2_ref[:, 1:2]                        # (C_OUT, 1)
    o_ref[0] = (y * s2 + b2).astype(o_ref.dtype)


def _pick_hw_tile(hw, tm_max=512, target_steps=4):
    """Lane tile: a multiple of 128, <= tm_max, aiming for >= target_steps grid steps.

    hw need not be a multiple of the tile: the grid uses cdiv and only the last
    block is partial (masked store on its tail lanes only).
    """
    tm_max = max(128, (tm_max // 128) * 128)
    n_vregs = (hw + 127) // 128
    tm = 128 * max(1, (n_vregs + target_steps - 1) // target_steps)
    return min(tm, tm_max)


@functools.partial(jax.jit, static_argnames=("tm_max",))
def fused_bn_add_relu_conv_bn(x219, x212, w, bn1, bn2, *, tm_max=512):
    """Fused eval-mode BN(1024) + add + ReLU + 1x1 Conv(1024->256) + BN(256).

    x219, x212 : (N, 1024, H, W), f32 or bf16 (bf16 recommended: halves HBM input traffic).
    w          : (256, 1024) (or (256, 1024, 1, 1)) conv weight; used as bf16 on the MXU.
    bn1        : (1024, 2) folded BN1 [scale, bias] columns, f32.
    bn2        : (256, 2)  folded BN2 [scale, bias] columns, f32.
    Returns (N, 256, H, W) float32.
    """
    n, c, h, w_sp = x219.shape
    assert c == C_IN and x212.shape == x219.shape
    hw = h * w_sp
    tm = _pick_hw_tile(hw, tm_max)
    steps = pl.cdiv(hw, tm)

    # Free reshapes (contiguous), no transpose: channels-major (N, C, H*W).
    x1 = x219.reshape(n, C_IN, hw)
    x2 = x212.reshape(n, C_IN, hw)
    w_bf16 = w.reshape(C_OUT, C_IN).astype(jnp.bfloat16)
    bn1 = bn1.astype(jnp.float32)
    bn2 = bn2.astype(jnp.float32)

    out_dtype = jnp.float32
    flops = 2 * n * C_OUT * C_IN * hw + 5 * n * C_IN * hw
    bytes_accessed = (
        x1.size * x1.dtype.itemsize + x2.size * x2.dtype.itemsize
        + w_bf16.size * 2 + bn1.size * 4 + bn2.size * 4
        + n * C_OUT * hw * jnp.dtype(out_dtype).itemsize)

    out = pl.pallas_call(
        _fused_kernel,
        out_shape=jax.ShapeDtypeStruct((n, C_OUT, hw), out_dtype),
        grid_spec=pltpu.PrefetchScalarGridSpec(
            num_scalar_prefetch=0,
            grid=(n, steps),
            in_specs=[
                pl.BlockSpec((1, C_IN, tm), lambda b, i: (b, 0, i)),   # x219 tile
                pl.BlockSpec((1, C_IN, tm), lambda b, i: (b, 0, i)),   # x212 tile
                pl.BlockSpec((C_OUT, C_IN), lambda b, i: (0, 0)),      # conv weight (resident, bf16)
                pl.BlockSpec((C_IN, 2), lambda b, i: (0, 0)),          # BN1 [scale|bias]
                pl.BlockSpec((C_OUT, 2), lambda b, i: (0, 0)),         # BN2 [scale|bias]
            ],
            out_specs=pl.BlockSpec((1, C_OUT, tm), lambda b, i: (b, 0, i)),
        ),
        compiler_params=pltpu.CompilerParams(
            dimension_semantics=("parallel", "parallel"),
            vmem_limit_bytes=32 * 1024 * 1024,
        ),
        cost_estimate=pl.CostEstimate(
            flops=flops, transcendentals=0, bytes_accessed=bytes_accessed),
    )(x1, x2, w_bf16, bn1, bn2)

    return out.reshape(n, C_OUT, h, w_sp)


def _fold_bn(gamma, beta, mean, var, eps=EPS):
    scale = gamma / jnp.sqrt(var + eps)
    bias = beta - mean * scale
    return scale, bias


def _reference(x219, x212, conv_w, g1, be1, m1, v1, g2, be2, m2, v2):
    """Plain-JAX f32 reference of the same eval-mode forward."""
    s1, b1 = _fold_bn(g1, be1, m1, v1)
    s2, b2 = _fold_bn(g2, be2, m2, v2)
    x = x219 * s1[None, :, None, None] + b1[None, :, None, None] + x212
    x = jnp.maximum(x, 0.0)
    y = jnp.einsum("nchw,oc->nohw", x, conv_w[:, :, 0, 0])
    return y * s2[None, :, None, None] + b2[None, :, None, None]


if __name__ == "__main__":
    key = jax.random.PRNGKey(0)
    keys = jax.random.split(key, 12)

    # Module-consistent shapes: channels fixed by the module (1024 -> 256),
    # spatial 28x28 as in the original graph (hw=784 = 3*256 + 16 -> exercises
    # the partial last tile of the cdiv grid).
    N, H, W = 1, 28, 28
    x219_f32 = jax.random.normal(keys[0], (N, C_IN, H, W), dtype=jnp.float32)
    x212_f32 = jax.random.normal(keys[1], (N, C_IN, H, W), dtype=jnp.float32)
    # Feed activations in bf16 (the kernel casts to bf16 for the MXU anyway);
    # the reference uses the same bf16-rounded values for a fair comparison.
    x219 = x219_f32.astype(jnp.bfloat16)
    x212 = x212_f32.astype(jnp.bfloat16)

    # Deterministic synthetic parameters.
    # BatchNorm2d(1024)
    gamma1 = 1.0 + 0.1 * jax.random.normal(keys[2], (C_IN,), dtype=jnp.float32)
    beta1 = 0.1 * jax.random.normal(keys[3], (C_IN,), dtype=jnp.float32)
    rmean1 = 0.1 * jax.random.normal(keys[4], (C_IN,), dtype=jnp.float32)
    rvar1 = jnp.abs(jax.random.normal(keys[5], (C_IN,), dtype=jnp.float32)) + 0.5
    # Conv2d(1024, 256, kernel_size=1, bias=False): weight (256, 1024, 1, 1)
    conv_w = jax.random.normal(keys[6], (C_OUT, C_IN, 1, 1), dtype=jnp.float32) * 0.02
    # BatchNorm2d(256)
    gamma2 = 1.0 + 0.1 * jax.random.normal(keys[7], (C_OUT,), dtype=jnp.float32)
    beta2 = 0.1 * jax.random.normal(keys[8], (C_OUT,), dtype=jnp.float32)
    rmean2 = 0.1 * jax.random.normal(keys[9], (C_OUT,), dtype=jnp.float32)
    rvar2 = jnp.abs(jax.random.normal(keys[10], (C_OUT,), dtype=jnp.float32)) + 0.5

    # Fold both BNs into per-channel (scale, bias) and pack them column-wise.
    scale1, bias1 = _fold_bn(gamma1, beta1, rmean1, rvar1)
    scale2, bias2 = _fold_bn(gamma2, beta2, rmean2, rvar2)
    bn1 = jnp.stack([scale1, bias1], axis=1)            # (1024, 2)
    bn2 = jnp.stack([scale2, bias2], axis=1)            # (256, 2)
    w_bf16 = conv_w[:, :, 0, 0].astype(jnp.bfloat16)    # (256, 1024), raw weight (no scale folded)

    out = fused_bn_add_relu_conv_bn(x219, x212, w_bf16, bn1, bn2)
    out = jax.block_until_ready(out)

    ref = _reference(x219.astype(jnp.float32), x212.astype(jnp.float32),
                     conv_w, gamma1, beta1, rmean1, rvar1,
                     gamma2, beta2, rmean2, rvar2)
    assert out.shape == (N, C_OUT, H, W), out.shape
    # bf16 matmul operands (f32 accumulation) -> bf16-level tolerance.
    max_err = float(jnp.max(jnp.abs(out - ref)))
    assert jnp.allclose(out, ref, atol=3e-2, rtol=3e-2), (
        f"mismatch vs JAX reference; max abs diff = {max_err}")

    print("KERNEL_OK")
</pallas_src>

<mosaic_0001>
module attributes {stable_mosaic.version = 11 : i64} {
  func.func @_fused_kernel(%arg0: i32, %arg1: i32, %arg2: memref<1x1024x256xbf16, #tpu.memory_space<vmem>>, %arg3: memref<1x1024x256xbf16, #tpu.memory_space<vmem>>, %arg4: memref<256x1024xbf16, #tpu.memory_space<vmem>>, %arg5: memref<1024x2xf32, #tpu.memory_space<vmem>>, %arg6: memref<256x2xf32, #tpu.memory_space<vmem>>, %arg7: memref<1x256x256xf32, #tpu.memory_space<vmem>>) attributes {dimension_semantics = [#tpu.dimension_semantics<parallel>, #tpu.dimension_semantics<parallel>], iteration_bounds = array<i64: 1, 4>, scalar_prefetch = 0 : i64, scratch_operands = 0 : i64, tpu.core_type = #tpu.core_type<tc>, window_params = [{transform_indices = @transform_0, window_bounds = array<i64: 1, 1024, 256>}, {transform_indices = @transform_1, window_bounds = array<i64: 1, 1024, 256>}, {pipeline_mode = #tpu.pipeline_mode<synchronous>, transform_indices = @transform_2, window_bounds = array<i64: 256, 1024>}, {pipeline_mode = #tpu.pipeline_mode<synchronous>, transform_indices = @transform_3, window_bounds = array<i64: 1024, 2>}, {pipeline_mode = #tpu.pipeline_mode<synchronous>, transform_indices = @transform_4, window_bounds = array<i64: 256, 2>}, {transform_indices = @transform_5, window_bounds = array<i64: 1, 256, 256>}]} {
    %c0 = arith.constant 0 : index
    %c0_0 = arith.constant 0 : index
    %c0_1 = arith.constant 0 : index
    %0 = vector.load %arg2[%c0, %c0_0, %c0_1] : memref<1x1024x256xbf16, #tpu.memory_space<vmem>>, vector<1x1024x256xbf16>
    %1 = vector.shape_cast %0 : vector<1x1024x256xbf16> to vector<1024x256xbf16>
    %2 = arith.extf %1 : vector<1024x256xbf16> to vector<1024x256xf32>
    %c0_2 = arith.constant 0 : index
    %c0_3 = arith.constant 0 : index
    %c0_4 = arith.constant 0 : index
    %3 = vector.load %arg3[%c0_2, %c0_3, %c0_4] : memref<1x1024x256xbf16, #tpu.memory_space<vmem>>, vector<1x1024x256xbf16>
    %4 = vector.shape_cast %3 : vector<1x1024x256xbf16> to vector<1024x256xbf16>
    %5 = arith.extf %4 : vector<1024x256xbf16> to vector<1024x256xf32>
    %c0_5 = arith.constant 0 : index
    %c0_6 = arith.constant 0 : index
    %6 = vector.load %arg5[%c0_5, %c0_6] : memref<1024x2xf32, #tpu.memory_space<vmem>>, vector<1024x1xf32>
    %c0_7 = arith.constant 0 : index
    %c1 = arith.constant 1 : index
    %7 = vector.load %arg5[%c0_7, %c1] : memref<1024x2xf32, #tpu.memory_space<vmem>>, vector<1024x1xf32>
    %8 = vector.broadcast %6 : vector<1024x1xf32> to vector<1024x256xf32>
    %9 = arith.mulf %2, %8 : vector<1024x256xf32>
    %10 = vector.broadcast %7 : vector<1024x1xf32> to vector<1024x256xf32>
    %11 = arith.addf %9, %10 : vector<1024x256xf32>
    %12 = arith.addf %11, %5 : vector<1024x256xf32>
    %cst = arith.constant 0.000000e+00 : f32
    %13 = vector.broadcast %cst : f32 to vector<1024x256xf32>
    %14 = arith.maximumf %12, %13 : vector<1024x256xf32>
    %c0_8 = arith.constant 0 : index
    %c0_9 = arith.constant 0 : index
    %15 = vector.load %arg4[%c0_8, %c0_9] : memref<256x1024xbf16, #tpu.memory_space<vmem>>, vector<256x1024xbf16>
    %16 = arith.truncf %14 : vector<1024x256xf32> to vector<1024x256xbf16>
    %cst_10 = arith.constant dense<0.000000e+00> : vector<256x256xf32>
    %17 = tpu.matmul %15, %16, %cst_10 {dimension_numbers = #tpu.dot_dimension_numbers<[1], [0], [0], [1], [0, 0, 1, 1], [], []>} : vector<256x1024xbf16>, vector<1024x256xbf16>, vector<256x256xf32> -> vector<256x256xf32>
    %c0_11 = arith.constant 0 : index
    %c0_12 = arith.constant 0 : index
    %18 = vector.load %arg6[%c0_11, %c0_12] : memref<256x2xf32, #tpu.memory_space<vmem>>, vector<256x1xf32>
    %c0_13 = arith.constant 0 : index
    %c1_14 = arith.constant 1 : index
    %19 = vector.load %arg6[%c0_13, %c1_14] : memref<256x2xf32, #tpu.memory_space<vmem>>, vector<256x1xf32>
    %20 = vector.broadcast %18 : vector<256x1xf32> to vector<256x256xf32>
    %21 = arith.mulf %17, %20 : vector<256x256xf32>
    %22 = vector.broadcast %19 : vector<256x1xf32> to vector<256x256xf32>
    %23 = arith.addf %21, %22 : vector<256x256xf32>
    %c0_15 = arith.constant 0 : index
    %c0_16 = arith.constant 0 : index
    %c0_17 = arith.constant 0 : index
    %24 = vector.load %arg7[%c0_15, %c0_16, %c0_17] : memref<1x256x256xf32, #tpu.memory_space<vmem>>, vector<1x256x256xf32>
    %25 = vector.shape_cast %24 : vector<1x256x256xf32> to vector<256x256xf32>
    %26 = vector.shape_cast %23 : vector<256x256xf32> to vector<1x256x256xf32>
    tpu.vector_store %arg7[%c0_15, %c0_16, %c0_17], %26 {strides = array<i32>} : memref<1x256x256xf32, #tpu.memory_space<vmem>>, vector<1x256x256xf32>,
    return
  }
  func.func @transform_0(%arg0: i32, %arg1: i32) -> (i32, i32, i32) {
    %c0_i32 = arith.constant 0 : i32
    %c0_i32_0 = arith.constant 0 : i32
    return %arg0, %c0_i32, %arg1 : i32, i32, i32
  }
  func.func @transform_1(%arg0: i32, %arg1: i32) -> (i32, i32, i32) {
    %c0_i32 = arith.constant 0 : i32
    %c0_i32_0 = arith.constant 0 : i32
    return %arg0, %c0_i32, %arg1 : i32, i32, i32
  }
  func.func @transform_2(%arg0: i32, %arg1: i32) -> (i32, i32) {
    %c0_i32 = arith.constant 0 : i32
    %c0_i32_0 = arith.constant 0 : i32
    %c0_i32_1 = arith.constant 0 : i32
    return %c0_i32, %c0_i32_0 : i32, i32
  }
  func.func @transform_3(%arg0: i32, %arg1: i32) -> (i32, i32) {
    %c0_i32 = arith.constant 0 : i32
    %c0_i32_0 = arith.constant 0 : i32
    %c0_i32_1 = arith.constant 0 : i32
    return %c0_i32, %c0_i32_0 : i32, i32
  }
  func.func @transform_4(%arg0: i32, %arg1: i32) -> (i32, i32) {
    %c0_i32 = arith.constant 0 : i32
    %c0_i32_0 = arith.constant 0 : i32
    %c0_i32_1 = arith.constant 0 : i32
    return %c0_i32, %c0_i32_0 : i32, i32
  }
  func.func @transform_5(%arg0: i32, %arg1: i32) -> (i32, i32, i32) {
    %c0_i32 = arith.constant 0 : i32
    %c0_i32_0 = arith.constant 0 : i32
    return %arg0, %c0_i32, %arg1 : i32, i32, i32
  }
}

</mosaic_0001>

<llo_original>
// kernel: fused_bn_add_relu_conv_bn.1
$region0: #{fused_bn_add_relu_conv_bn.1}
  #allocation0 [shape = 'u32[]', space=smem, size = 0x4, offset = 0x4, fixed_abs, tag = 'smem constant byte address 0x4 - core index']
  #allocation1 [shape = 'u32[144,128]{1,0:T(1,128)}', space=vmem, size = 0x12000, scoped, tag = 'internal scratch']
  %s0 = inlined_call_operand.vmem [shape: bf16[1,1024,784], index: 0, kind: input, shape index: {}]
  %s1 = inlined_call_operand.vmem [shape: bf16[1,1024,784], index: 1, kind: input, shape index: {}]
  %s2 = inlined_call_operand.vmem [shape: bf16[256,1024], index: 2, kind: input, shape index: {}]
  %s3 = inlined_call_operand.vmem [shape: f32[1024,2], index: 3, kind: input, shape index: {}]
  %s4 = inlined_call_operand.vmem [shape: f32[256,2], index: 4, kind: input, shape index: {}]
  %s5 = inlined_call_operand.vmem [shape: f32[1,256,784], index: 5, kind: output, shape index: {}]
  %s6 = sld [smem:[#allocation0]]
  $region219: #{fused_bn_add_relu_conv_bn.1} parent=0
    _
  %s8 = ssub.s32 1, %s6
  %s9 = scalar_select 0, %s8, %s6
  $region1: #{fused_bn_add_relu_conv_bn.1} parent=0
    #allocation2 [shape = 'u8[1048576]{0}', space=vmem, size = 0x100000, scoped, tag = 'input window, operand 0']
    #allocation3 [shape = 'u8[1048576]{0}', space=vmem, size = 0x100000, scoped, tag = 'input window, operand 1']
    #allocation4 [shape = 'u8[524288]{0}', space=vmem, size = 0x80000, scoped, tag = 'output window, operand 0']
    loop: start=0, step=1, limit=6
    $region2: #{fused_bn_add_relu_conv_bn.1} parent=1 // loop_pre_header
      _
    $region3: #{fused_bn_add_relu_conv_bn.1} parent=1 // loop_header
      %s11 = sphi 0, %s15
      %p12 = scmp.ge.s32.totalorder %s11, 6
      %s18 = sphi 0, %s30
      %s19 = sphi 0, %s26
      %s20 = sphi 0, %s18
      %s21 = sphi 0, %s19
      %s22 = sphi 0, %s20
      %s23 = sphi 0, %s21
      %s35 = sphi 0, %s37
      %s38 = sphi 0, %s35
      %s39 = sphi 0, %s38
      %s55 = sphi 0, %s39
      %s63 = sphi 0, %s65
      %s66 = sphi 0, %s63
      %s67 = sphi 0, %s66
      %s83 = sphi 0, %s67
      %s87 = sphi 0, %s87
      %s89 = sphi 0, %s87
      %s90 = sphi 0, %s89
      %s104 = sphi 0, %s90
      %s108 = sphi 0, %s108
      %s110 = sphi 0, %s108
      %s111 = sphi 0, %s110
      %s125 = sphi 0, %s111
      %s129 = sphi 0, %s129
      %s131 = sphi 0, %s129
      %s132 = sphi 0, %s131
      %s146 = sphi 0, %s132
      %s154 = sphi 0, %s156
      %s157 = sphi 0, %s154
      %s158 = sphi 0, %s157
      %s174 = sphi 0, %s158
    $region4: #{fused_bn_add_relu_conv_bn.1} parent=1 // loop_header_branch
      %14 = sbr.rel (%p12) target = $region8
    $region5: #{fused_bn_add_relu_conv_bn.1} parent=1 // loop_body
      %s16 = ssub.s32 %s11, 1
      %s17 = ssub.s32 %s11, 2
      %s24 = sadd.s32 1, %s19
      %p25 = scmp.ge.s32.totalorder %s24, 4
      %s26 = scalar_select %p25, 0, %s24
      %s27 = sadd.s32 1, %s18
      %s28 = scalar_select %p25, %s27, %s18
      %p29 = scmp.ge.s32.totalorder %s28, 1
      %s30 = scalar_select %p29, 0, %s28
      %s31 = ssub.s32 %s18, %s30
      %s32 = ssub.s32 %s19, %s26
      %s33 = sor.u32 %s31, %s32
      %p34 = scmp.eq.s32.totalorder %s33, 0
      %s36 = sadd.s32 %s35, 1
      %s37 = scalar_select %p34, %s35, %s36
      %p40 = pneg %p34
      %p41 = scmp.eq.s32.totalorder %s11, 3
      %p42 = por %p40, %p41
      %p43 = scmp.ne.s32.totalorder %s35, %s38
      %p44 = scmp.eq.s32.totalorder %s11, 0
      %p45 = por %p43, %p44
      %p46 = scmp.ne.s32.totalorder %s35, %s38
      %p47 = scmp.eq.s32.totalorder %s16, 3
      %p48 = por %p46, %p47
      %p49 = scmp.ne.s32.totalorder %s38, %s39
      %p50 = scmp.eq.s32.totalorder %s16, 0
      %p51 = por %p49, %p50
      %p52 = scmp.ne.s32.totalorder %s38, %s39
      %p53 = scmp.eq.s32.totalorder %s17, 3
      %p54 = por %p52, %p53
      %p56 = scmp.ne.s32.totalorder %s39, %s55
      %p57 = scmp.eq.s32.totalorder %s17, 0
      %p58 = por %p56, %p57
      %s59 = ssub.s32 %s18, %s30
      %s60 = ssub.s32 %s19, %s26
      %s61 = sor.u32 %s59, %s60
      %p62 = scmp.eq.s32.totalorder %s61, 0
      %s64 = sadd.s32 %s63, 1
      %s65 = scalar_select %p62, %s63, %s64
      %p68 = pneg %p62
      %p69 = scmp.eq.s32.totalorder %s11, 3
      %p70 = por %p68, %p69
      %p71 = scmp.ne.s32.totalorder %s63, %s66
      %p72 = scmp.eq.s32.totalorder %s11, 0
      %p73 = por %p71, %p72
      %p74 = scmp.ne.s32.totalorder %s63, %s66
      %p75 = scmp.eq.s32.totalorder %s16, 3
      %p76 = por %p74, %p75
      %p77 = scmp.ne.s32.totalorder %s66, %s67
      %p78 = scmp.eq.s32.totalorder %s16, 0
      %p79 = por %p77, %p78
      %p80 = scmp.ne.s32.totalorder %s66, %s67
      %p81 = scmp.eq.s32.totalorder %s17, 3
      %p82 = por %p80, %p81
      %p84 = scmp.ne.s32.totalorder %s67, %s83
      %p85 = scmp.eq.s32.totalorder %s17, 0
      %p86 = por %p84, %p85
      %s88 = sadd.s32 %s87, 1
      %p91 = scmp.eq.s32.totalorder %s11, 3
      %p92 = scmp.ne.s32.totalorder %s87, %s89
      %p93 = scmp.eq.s32.totalorder %s11, 0
      %p94 = por %p92, %p93
      %p95 = scmp.ne.s32.totalorder %s87, %s89
      %p96 = scmp.eq.s32.totalorder %s16, 3
      %p97 = por %p95, %p96
      %p98 = scmp.ne.s32.totalorder %s89, %s90
      %p99 = scmp.eq.s32.totalorder %s16, 0
      %p100 = por %p98, %p99
      %p101 = scmp.ne.s32.totalorder %s89, %s90
      %p102 = scmp.eq.s32.totalorder %s17, 3
      %p103 = por %p101, %p102
      %p105 = scmp.ne.s32.totalorder %s90, %s104
      %p106 = scmp.eq.s32.totalorder %s17, 0
      %p107 = por %p105, %p106
      %s109 = sadd.s32 %s108, 1
      %p112 = scmp.eq.s32.totalorder %s11, 3
      %p113 = scmp.ne.s32.totalorder %s108, %s110
      %p114 = scmp.eq.s32.totalorder %s11, 0
      %p115 = por %p113, %p114
      %p116 = scmp.ne.s32.totalorder %s108, %s110
      %p117 = scmp.eq.s32.totalorder %s16, 3
      %p118 = por %p116, %p117
      %p119 = scmp.ne.s32.totalorder %s110, %s111
      %p120 = scmp.eq.s32.totalorder %s16, 0
      %p121 = por %p119, %p120
      %p122 = scmp.ne.s32.totalorder %s110, %s111
      %p123 = scmp.eq.s32.totalorder %s17, 3
      %p124 = por %p122, %p123
      %p126 = scmp.ne.s32.totalorder %s111, %s125
      %p127 = scmp.eq.s32.totalorder %s17, 0
      %p128 = por %p126, %p127
      %s130 = sadd.s32 %s129, 1
      %p133 = scmp.eq.s32.totalorder %s11, 3
      %p134 = scmp.ne.s32.totalorder %s129, %s131
      %p135 = scmp.eq.s32.totalorder %s11, 0
      %p136 = por %p134, %p135
      %p137 = scmp.ne.s32.totalorder %s129, %s131
      %p138 = scmp.eq.s32.totalorder %s16, 3
      %p139 = por %p137, %p138
      %p140 = scmp.ne.s32.totalorder %s131, %s132
      %p141 = scmp.eq.s32.totalorder %s16, 0
      %p142 = por %p140, %p141
      %p143 = scmp.ne.s32.totalorder %s131, %s132
      %p144 = scmp.eq.s32.totalorder %s17, 3
      %p145 = por %p143, %p144
      %p147 = scmp.ne.s32.totalorder %s132, %s146
      %p148 = scmp.eq.s32.totalorder %s17, 0
      %p149 = por %p147, %p148
      %s150 = ssub.s32 %s18, %s30
      %s151 = ssub.s32 %s19, %s26
      %s152 = sor.u32 %s150, %s151
      %p153 = scmp.eq.s32.totalorder %s152, 0
      %s155 = sadd.s32 %s154, 1
      %s156 = scalar_select %p153, %s154, %s155
      %p159 = pneg %p153
      %p160 = scmp.eq.s32.totalorder %s11, 3
      %p161 = por %p159, %p160
      %p162 = scmp.ne.s32.totalorder %s154, %s157
      %p163 = scmp.eq.s32.totalorder %s11, 0
      %p164 = por %p162, %p163
      %p165 = scmp.ne.s32.totalorder %s154, %s157
      %p166 = scmp.eq.s32.totalorder %s16, 3
      %p167 = por %p165, %p166
      %p168 = scmp.ne.s32.totalorder %s157, %s158
      %p169 = scmp.eq.s32.totalorder %s16, 0
      %p170 = por %p168, %p169
      %p171 = scmp.ne.s32.totalorder %s157, %s158
      %p172 = scmp.eq.s32.totalorder %s17, 3
      %p173 = por %p171, %p172
      %p175 = scmp.ne.s32.totalorder %s158, %s174
      %p176 = scmp.eq.s32.totalorder %s17, 0
      %p177 = por %p175, %p176
      %p178 = scmp.le.s32.totalorder 1, %s11
      %p179 = scmp.lt.s32.totalorder %s11, 5
      %p180 = pnand %p178, %p179
      %p181 = pneg %p180
      // Predicated region
      $region9: #{fused_bn_add_relu_conv_bn.1} parent=5 // pred_check
        _
      $region10: #{fused_bn_add_relu_conv_bn.1} parent=5 // pred_check_branch
        %183 = sbr.rel (%p180) target = $region12
      $region11: #{fused_bn_add_relu_conv_bn.1} parent=5 // pred_region
        %s184 = ssub.s32 %s11, 1
        // Predicated region
        $region13: #{fused_bn_add_relu_conv_bn.1} parent=11 // pred_check
          %p185 = pneg %p100
        $region14: #{fused_bn_add_relu_conv_bn.1} parent=11 // pred_check_branch
          %187 = sbr.rel (%p185) target = $region16
        $region15: #{fused_bn_add_relu_conv_bn.1} parent=11 // pred_region
          _
        $region16: #{fused_bn_add_relu_conv_bn.1} parent=11 // pred_fallthru
          _
        // Predicated region
        $region17: #{fused_bn_add_relu_conv_bn.1} parent=11 // pred_check
          %p188 = pneg %p121
        $region18: #{fused_bn_add_relu_conv_bn.1} parent=11 // pred_check_branch
          %190 = sbr.rel (%p188) target = $region20
        $region19: #{fused_bn_add_relu_conv_bn.1} parent=11 // pred_region
          _
        $region20: #{fused_bn_add_relu_conv_bn.1} parent=11 // pred_fallthru
          _
        // Predicated region
        $region21: #{fused_bn_add_relu_conv_bn.1} parent=11 // pred_check
          %p191 = pneg %p142
        $region22: #{fused_bn_add_relu_conv_bn.1} parent=11 // pred_check_branch
          %193 = sbr.rel (%p191) target = $region24
        $region23: #{fused_bn_add_relu_conv_bn.1} parent=11 // pred_region
          _
        $region24: #{fused_bn_add_relu_conv_bn.1} parent=11 // pred_fallthru
          _
      $region12: #{fused_bn_add_relu_conv_bn.1} parent=5 // pred_fallthru
        _
      %p194 = scmp.lt.s32.totalorder %s11, 4
      // Predicated region
      $region25: #{fused_bn_add_relu_conv_bn.1} parent=5 // pred_check
        %p195 = pneg %p194
      $region26: #{fused_bn_add_relu_conv_bn.1} parent=5 // pred_check_branch
        %197 = sbr.rel (%p195) target = $region28
      $region27: #{fused_bn_add_relu_conv_bn.1} parent=5 // pred_region
        // Predicated region
        $region29: #{fused_bn_add_relu_conv_bn.1} parent=27 // pred_check
          %p198 = pneg %p45
        $region30: #{fused_bn_add_relu_conv_bn.1} parent=27 // pred_check_branch
          %200 = sbr.rel (%p198) target = $region32
        $region31: #{fused_bn_add_relu_conv_bn.1} parent=27 // pred_region
          %s201 = sand.u32 %s35, 1
          %s202 = sand.u32 %s35, 1
          %s203 = smul.addr %s202, 1024
          %s204 = scalar_lea.vmem [#allocation2], %s203
          %s205 = smul.u32 2, %s19
          %s206 = ssub.s32 7, %s205
          %p207 = scmp.lt.s32.totalorder %s206, 2
          %s208 = scalar_select %p207, %s206, 2
          %s209 = smul.u32 8192, %s208
          %p210 = scmp.ne.s32.totalorder 0, %s209
          %s211 = smul.addr %s18, 896
          %s212 = sadd.s32 %s205, %s211
          %s213 = smul.addr %s212, 4
          %s214 = scalar_lea.vmem %s0, %s213
          %s215 = smul.u32 %s208, 4
          // Predicated region
          $region33: #{fused_bn_add_relu_conv_bn.1} parent=31 // pred_check
            %p216 = pneg %p210
          $region34: #{fused_bn_add_relu_conv_bn.1} parent=31 // pred_check_branch
            %218 = sbr.rel (%p216) target = $region36
          $region35: #{fused_bn_add_relu_conv_bn.1} parent=31 // pred_region
            %p219 = scmp.lt.u32.totalorder %s215, 8
            %p220 = pneg %p219
            // Predicated region
            $region37: #{fused_bn_add_relu_conv_bn.1} parent=35 // pred_check
              _
            $region38: #{fused_bn_add_relu_conv_bn.1} parent=35 // pred_check_branch
              %222 = sbr.rel (%p219) target = $region40
            $region39: #{fused_bn_add_relu_conv_bn.1} parent=35 // pred_region
              %s492 = sand.u32 %s215, 7
              %p493 = scmp.eq.s32.totalorder %s492, 0
              // Predicated region
              $region52: #{fused_bn_add_relu_conv_bn.1} parent=39 // pred_check
                %p494 = pneg %p493
              $region53: #{fused_bn_add_relu_conv_bn.1} parent=39 // pred_check_branch
                %496 = sbr.rel (%p494) target = $region55
              $region54: #{fused_bn_add_relu_conv_bn.1} parent=39 // pred_region
                %s497 = sshrl.u32 %s215, 3
                // While loop
                $region56: #{fused_bn_add_relu_conv_bn.1} parent=54 // loop_pre_header
                  _
                $region57: #{fused_bn_add_relu_conv_bn.1} parent=54 // loop_header
                  %s501 = sphi 0, %s503
                  %p502 = scmp.ge.s32.totalorder %s501, %s497
                  %s506 = sphi 0, %s767
                  %s507 = sphi %s214, %s770
                  %s508 = sphi %s204, %s771
                $region58: #{fused_bn_add_relu_conv_bn.1} parent=54 // loop_header_branch
                  %505 = sbr.rel (%p502) target = $region62
                $region59: #{fused_bn_add_relu_conv_bn.1} parent=54 // loop_body
                  %v509 = vld [vmem:[%s507] sm:$0xff]
                  %510 = vst [vmem:[%s508] sm:$0xff] %v509
                  %v511 = vld [vmem:[%s507 + $0x1c] sm:$0xff]
                  %512 = vst [vmem:[%s508 + $0x8] sm:$0xff] %v511
                  %v513 = vld [vmem:[%s507 + $0x38] sm:$0xff]
                  %514 = vst [vmem:[%s508 + $0x10] sm:$0xff] %v513
                  %v515 = vld [vmem:[%s507 + $0x54] sm:$0xff]
                  %516 = vst [vmem:[%s508 + $0x18] sm:$0xff] %v515
                  %v517 = vld [vmem:[%s507 + $0x70] sm:$0xff]
                  %518 = vst [vmem:[%s508 + $0x20] sm:$0xff] %v517
                  %v519 = vld [vmem:[%s507 + $0x8c] sm:$0xff]
                  %520 = vst [vmem:[%s508 + $0x28] sm:$0xff] %v519
                  %v521 = vld [vmem:[%s507 + $0xa8] sm:$0xff]
                  %522 = vst [vmem:[%s508 + $0x30] sm:$0xff] %v521
                  %v523 = vld [vmem:[%s507 + $0xc4] sm:$0xff]
                  %524 = vst [vmem:[%s508 + $0x38] sm:$0xff] %v523
                  %v525 = vld [vmem:[%s507 + $0xe0] sm:$0xff]
                  %526 = vst [vmem:[%s508 + $0x40] sm:$0xff] %v525
                  %v527 = vld [vmem:[%s507 + $0xfc] sm:$0xff]
                  %528 = vst [vmem:[%s508 + $0x48] sm:$0xff] %v527
                  %v529 = vld [vmem:[%s507 + $0x118] sm:$0xff]
                  %530 = vst [vmem:[%s508 + $0x50] sm:$0xff] %v529
                  %v531 = vld [vmem:[%s507 + $0x134] sm:$0xff]
                  %532 = vst [vmem:[%s508 + $0x58] sm:$0xff] %v531
                  %v533 = vld [vmem:[%s507 + $0x150] sm:$0xff]
                  %534 = vst [vmem:[%s508 + $0x60] sm:$0xff] %v533
                  %v535 = vld [vmem:[%s507 + $0x16c] sm:$0xff]
                  %536 = vst [vmem:[%s508 + $0x68] sm:$0xff] %v535
                  %v537 = vld [vmem:[%s507 + $0x188] sm:$0xff]
                  %538 = vst [vmem:[%s508 + $0x70] sm:$0xff] %v537
                  %v539 = vld [vmem:[%s507 + $0x1a4] sm:$0xff]
                  %540 = vst [vmem:[%s508 + $0x78] sm:$0xff] %v539
                  %v541 = vld [vmem:[%s507 + $0x1c0] sm:$0xff]
                  %542 = vst [vmem:[%s508 + $0x80] sm:$0xff] %v541
                  %v543 = vld [vmem:[%s507 + $0x1dc] sm:$0xff]
                  %544 = vst [vmem:[%s508 + $0x88] sm:$0xff] %v543
                  %v545 = vld [vmem:[%s507 + $0x1f8] sm:$0xff]
                  %546 = vst [vmem:[%s508 + $0x90] sm:$0xff] %v545
                  %v547 = vld [vmem:[%s507 + $0x214] sm:$0xff]
                  %548 = vst [vmem:[%s508 + $0x98] sm:$0xff] %v547
                  %v549 = vld [vmem:[%s507 + $0x230] sm:$0xff]
                  %550 = vst [vmem:[%s508 + $0xa0] sm:$0xff] %v549
                  %v551 = vld [vmem:[%s507 + $0x24c] sm:$0xff]
                  %552 = vst [vmem:[%s508 + $0xa8] sm:$0xff] %v551
                  %v553 = vld [vmem:[%s507 + $0x268] sm:$0xff]
                  %554 = vst [vmem:[%s508 + $0xb0] sm:$0xff] %v553
                  %v555 = vld [vmem:[%s507 + $0x284] sm:$0xff]
                  %556 = vst [vmem:[%s508 + $0xb8] sm:$0xff] %v555
                  %v557 = vld [vmem:[%s507 + $0x2a0] sm:$0xff]
                  %558 = vst [vmem:[%s508 + $0xc0] sm:$0xff] %v557
                  %v559 = vld [vmem:[%s507 + $0x2bc] sm:$0xff]
                  %560 = vst [vmem:[%s508 + $0xc8] sm:$0xff] %v559
                  %v561 = vld [vmem:[%s507 + $0x2d8] sm:$0xff]
                  %562 = vst [vmem:[%s508 + $0xd0] sm:$0xff] %v561
                  %v563 = vld [vmem:[%s507 + $0x2f4] sm:$0xff]
                  %564 = vst [vmem:[%s508 + $0xd8] sm:$0xff] %v563
                  %v565 = vld [vmem:[%s507 + $0x310] sm:$0xff]
                  %566 = vst [vmem:[%s508 + $0xe0] sm:$0xff] %v565
                  %v567 = vld [vmem:[%s507 + $0x32c] sm:$0xff]
                  %568 = vst [vmem:[%s508 + $0xe8] sm:$0xff] %v567
                  %v569 = vld [vmem:[%s507 + $0x348] sm:$0xff]
                  %570 = vst [vmem:[%s508 + $0xf0] sm:$0xff] %v569
                  %v571 = vld [vmem:[%s507 + $0x364] sm:$0xff]
                  %572 = vst [vmem:[%s508 + $0xf8] sm:$0xff] %v571
                  %v573 = vld [vmem:[%s507 + $0x380] sm:$0xff]
                  %574 = vst [vmem:[%s508 + $0x100] sm:$0xff] %v573
                  %v575 = vld [vmem:[%s507 + $0x39c] sm:$0xff]
                  %576 = vst [vmem:[%s508 + $0x108] sm:$0xff] %v575
                  %v577 = vld [vmem:[%s507 + $0x3b8] sm:$0xff]
                  %578 = vst [vmem:[%s508 + $0x110] sm:$0xff] %v577
                  %v579 = vld [vmem:[%s507 + $0x3d4] sm:$0xff]
                  %580 = vst [vmem:[%s508 + $0x118] sm:$0xff] %v579
                  %v581 = vld [vmem:[%s507 + $0x3f0] sm:$0xff]
                  %582 = vst [vmem:[%s508 + $0x120] sm:$0xff] %v581
                  %v583 = vld [vmem:[%s507 + $0x40c] sm:$0xff]
                  %584 = vst [vmem:[%s508 + $0x128] sm:$0xff] %v583
                  %v585 = vld [vmem:[%s507 + $0x428] sm:$0xff]
                  %586 = vst [vmem:[%s508 + $0x130] sm:$0xff] %v585
                  %v587 = vld [vmem:[%s507 + $0x444] sm:$0xff]
                  %588 = vst [vmem:[%s508 + $0x138] sm:$0xff] %v587
                  %v589 = vld [vmem:[%s507 + $0x460] sm:$0xff]
                  %590 = vst [vmem:[%s508 + $0x140] sm:$0xff] %v589
                  %v591 = vld [vmem:[%s507 + $0x47c] sm:$0xff]
                  %592 = vst [vmem:[%s508 + $0x148] sm:$0xff] %v591
                  %v593 = vld [vmem:[%s507 + $0x498] sm:$0xff]
                  %594 = vst [vmem:[%s508 + $0x150] sm:$0xff] %v593
                  %v595 = vld [vmem:[%s507 + $0x4b4] sm:$0xff]
                  %596 = vst [vmem:[%s508 + $0x158] sm:$0xff] %v595
                  %v597 = vld [vmem:[%s507 + $0x4d0] sm:$0xff]
                  %598 = vst [vmem:[%s508 + $0x160] sm:$0xff] %v597
                  %v599 = vld [vmem:[%s507 + $0x4ec] sm:$0xff]
                  %600 = vst [vmem:[%s508 + $0x168] sm:$0xff] %v599
                  %v601 = vld [vmem:[%s507 + $0x508] sm:$0xff]
                  %602 = vst [vmem:[%s508 + $0x170] sm:$0xff] %v601
                  %v603 = vld [vmem:[%s507 + $0x524] sm:$0xff]
                  %604 = vst [vmem:[%s508 + $0x178] sm:$0xff] %v603
                  %v605 = vld [vmem:[%s507 + $0x540] sm:$0xff]
                  %606 = vst [vmem:[%s508 + $0x180] sm:$0xff] %v605
                  %v607 = vld [vmem:[%s507 + $0x55c] sm:$0xff]
                  %608 = vst [vmem:[%s508 + $0x188] sm:$0xff] %v607
                  %v609 = vld [vmem:[%s507 + $0x578] sm:$0xff]
                  %610 = vst [vmem:[%s508 + $0x190] sm:$0xff] %v609
                  %v611 = vld [vmem:[%s507 + $0x594] sm:$0xff]
                  %612 = vst [vmem:[%s508 + $0x198] sm:$0xff] %v611
                  %v613 = vld [vmem:[%s507 + $0x5b0] sm:$0xff]
                  %614 = vst [vmem:[%s508 + $0x1a0] sm:$0xff] %v613
                  %v615 = vld [vmem:[%s507 + $0x5cc] sm:$0xff]
                  %616 = vst [vmem:[%s508 + $0x1a8] sm:$0xff] %v615
                  %v617 = vld [vmem:[%s507 + $0x5e8] sm:$0xff]
                  %618 = vst [vmem:[%s508 + $0x1b0] sm:$0xff] %v617
                  %v619 = vld [vmem:[%s507 + $0x604] sm:$0xff]
                  %620 = vst [vmem:[%s508 + $0x1b8] sm:$0xff] %v619
                  %v621 = vld [vmem:[%s507 + $0x620] sm:$0xff]
                  %622 = vst [vmem:[%s508 + $0x1c0] sm:$0xff] %v621
                  %v623 = vld [vmem:[%s507 + $0x63c] sm:$0xff]
                  %624 = vst [vmem:[%s508 + $0x1c8] sm:$0xff] %v623
                  %v625 = vld [vmem:[%s507 + $0x658] sm:$0xff]
                  %626 = vst [vmem:[%s508 + $0x1d0] sm:$0xff] %v625
                  %v627 = vld [vmem:[%s507 + $0x674] sm:$0xff]
                  %628 = vst [vmem:[%s508 + $0x1d8] sm:$0xff] %v627
                  %v629 = vld [vmem:[%s507 + $0x690] sm:$0xff]
                  %630 = vst [vmem:[%s508 + $0x1e0] sm:$0xff] %v629
                  %v631 = vld [vmem:[%s507 + $0x6ac] sm:$0xff]
                  %632 = vst [vmem:[%s508 + $0x1e8] sm:$0xff] %v631
                  %v633 = vld [vmem:[%s507 + $0x6c8] sm:$0xff]
                  %634 = vst [vmem:[%s508 + $0x1f0] sm:$0xff] %v633
                  %v635 = vld [vmem:[%s507 + $0x6e4] sm:$0xff]
                  %636 = vst [vmem:[%s508 + $0x1f8] sm:$0xff] %v635
                  %v637 = vld [vmem:[%s507 + $0x700] sm:$0xff]
                  %638 = vst [vmem:[%s508 + $0x200] sm:$0xff] %v637
                  %v639 = vld [vmem:[%s507 + $0x71c] sm:$0xff]
                  %640 = vst [vmem:[%s508 + $0x208] sm:$0xff] %v639
                  %v641 = vld [vmem:[%s507 + $0x738] sm:$0xff]
                  %642 = vst [vmem:[%s508 + $0x210] sm:$0xff] %v641
                  %v643 = vld [vmem:[%s507 + $0x754] sm:$0xff]
                  %644 = vst [vmem:[%s508 + $0x218] sm:$0xff] %v643
                  %v645 = vld [vmem:[%s507 + $0x770] sm:$0xff]
                  %646 = vst [vmem:[%s508 + $0x220] sm:$0xff] %v645
                  %v647 = vld [vmem:[%s507 + $0x78c] sm:$0xff]
                  %648 = vst [vmem:[%s508 + $0x228] sm:$0xff] %v647
                  %v649 = vld [vmem:[%s507 + $0x7a8] sm:$0xff]
                  %650 = vst [vmem:[%s508 + $0x230] sm:$0xff] %v649
                  %v651 = vld [vmem:[%s507 + $0x7c4] sm:$0xff]
                  %652 = vst [vmem:[%s508 + $0x238] sm:$0xff] %v651
                  %v653 = vld [vmem:[%s507 + $0x7e0] sm:$0xff]
                  %654 = vst [vmem:[%s508 + $0x240] sm:$0xff] %v653
                  %v655 = vld [vmem:[%s507 + $0x7fc] sm:$0xff]
                  %656 = vst [vmem:[%s508 + $0x248] sm:$0xff] %v655
                  %v657 = vld [vmem:[%s507 + $0x818] sm:$0xff]
                  %658 = vst [vmem:[%s508 + $0x250] sm:$0xff] %v657
                  %v659 = vld [vmem:[%s507 + $0x834] sm:$0xff]
                  %660 = vst [vmem:[%s508 + $0x258] sm:$0xff] %v659
                  %v661 = vld [vmem:[%s507 + $0x850] sm:$0xff]
                  %662 = vst [vmem:[%s508 + $0x260] sm:$0xff] %v661
                  %v663 = vld [vmem:[%s507 + $0x86c] sm:$0xff]
                  %664 = vst [vmem:[%s508 + $0x268] sm:$0xff] %v663
                  %v665 = vld [vmem:[%s507 + $0x888] sm:$0xff]
                  %666 = vst [vmem:[%s508 + $0x270] sm:$0xff] %v665
                  %v667 = vld [vmem:[%s507 + $0x8a4] sm:$0xff]
                  %668 = vst [vmem:[%s508 + $0x278] sm:$0xff] %v667
                  %v669 = vld [vmem:[%s507 + $0x8c0] sm:$0xff]
                  %670 = vst [vmem:[%s508 + $0x280] sm:$0xff] %v669
                  %v671 = vld [vmem:[%s507 + $0x8dc] sm:$0xff]
                  %672 = vst [vmem:[%s508 + $0x288] sm:$0xff] %v671
                  %v673 = vld [vmem:[%s507 + $0x8f8] sm:$0xff]
                  %674 = vst [vmem:[%s508 + $0x290] sm:$0xff] %v673
                  %v675 = vld [vmem:[%s507 + $0x914] sm:$0xff]
                  %676 = vst [vmem:[%s508 + $0x298] sm:$0xff] %v675
                  %v677 = vld [vmem:[%s507 + $0x930] sm:$0xff]
                  %678 = vst [vmem:[%s508 + $0x2a0] sm:$0xff] %v677
                  %v679 = vld [vmem:[%s507 + $0x94c] sm:$0xff]
                  %680 = vst [vmem:[%s508 + $0x2a8] sm:$0xff] %v679
                  %v681 = vld [vmem:[%s507 + $0x968] sm:$0xff]
                  %682 = vst [vmem:[%s508 + $0x2b0] sm:$0xff] %v681
                  %v683 = vld [vmem:[%s507 + $0x984] sm:$0xff]
                  %684 = vst [vmem:[%s508 + $0x2b8] sm:$0xff] %v683
                  %v685 = vld [vmem:[%s507 + $0x9a0] sm:$0xff]
                  %686 = vst [vmem:[%s508 + $0x2c0] sm:$0xff] %v685
                  %v687 = vld [vmem:[%s507 + $0x9bc] sm:$0xff]
                  %688 = vst [vmem:[%s508 + $0x2c8] sm:$0xff] %v687
                  %v689 = vld [vmem:[%s507 + $0x9d8] sm:$0xff]
                  %690 = vst [vmem:[%s508 + $0x2d0] sm:$0xff] %v689
                  %v691 = vld [vmem:[%s507 + $0x9f4] sm:$0xff]
                  %692 = vst [vmem:[%s508 + $0x2d8] sm:$0xff] %v691
                  %v693 = vld [vmem:[%s507 + $0xa10] sm:$0xff]
                  %694 = vst [vmem:[%s508 + $0x2e0] sm:$0xff] %v693
                  %v695 = vld [vmem:[%s507 + $0xa2c] sm:$0xff]
                  %696 = vst [vmem:[%s508 + $0x2e8] sm:$0xff] %v695
                  %v697 = vld [vmem:[%s507 + $0xa48] sm:$0xff]
                  %698 = vst [vmem:[%s508 + $0x2f0] sm:$0xff] %v697
                  %v699 = vld [vmem:[%s507 + $0xa64] sm:$0xff]
                  %700 = vst [vmem:[%s508 + $0x2f8] sm:$0xff] %v699
                  %v701 = vld [vmem:[%s507 + $0xa80] sm:$0xff]
                  %702 = vst [vmem:[%s508 + $0x300] sm:$0xff] %v701
                  %v703 = vld [vmem:[%s507 + $0xa9c] sm:$0xff]
                  %704 = vst [vmem:[%s508 + $0x308] sm:$0xff] %v703
                  %v705 = vld [vmem:[%s507 + $0xab8] sm:$0xff]
                  %706 = vst [vmem:[%s508 + $0x310] sm:$0xff] %v705
                  %v707 = vld [vmem:[%s507 + $0xad4] sm:$0xff]
                  %708 = vst [vmem:[%s508 + $0x318] sm:$0xff] %v707
                  %v709 = vld [vmem:[%s507 + $0xaf0] sm:$0xff]
                  %710 = vst [vmem:[%s508 + $0x320] sm:$0xff] %v709
                  %v711 = vld [vmem:[%s507 + $0xb0c] sm:$0xff]
                  %712 = vst [vmem:[%s508 + $0x328] sm:$0xff] %v711
                  %v713 = vld [vmem:[%s507 + $0xb28] sm:$0xff]
                  %714 = vst [vmem:[%s508 + $0x330] sm:$0xff] %v713
                  %v715 = vld [vmem:[%s507 + $0xb44] sm:$0xff]
                  %716 = vst [vmem:[%s508 + $0x338] sm:$0xff] %v715
                  %v717 = vld [vmem:[%s507 + $0xb60] sm:$0xff]
                  %718 = vst [vmem:[%s508 + $0x340] sm:$0xff] %v717
                  %v719 = vld [vmem:[%s507 + $0xb7c] sm:$0xff]
                  %720 = vst [vmem:[%s508 + $0x348] sm:$0xff] %v719
                  %v721 = vld [vmem:[%s507 + $0xb98] sm:$0xff]
                  %722 = vst [vmem:[%s508 + $0x350] sm:$0xff] %v721
                  %v723 = vld [vmem:[%s507 + $0xbb4] sm:$0xff]
                  %724 = vst [vmem:[%s508 + $0x358] sm:$0xff] %v723
                  %v725 = vld [vmem:[%s507 + $0xbd0] sm:$0xff]
                  %726 = vst [vmem:[%s508 + $0x360] sm:$0xff] %v725
                  %v727 = vld [vmem:[%s507 + $0xbec] sm:$0xff]
                  %728 = vst [vmem:[%s508 + $0x368] sm:$0xff] %v727
                  %v729 = vld [vmem:[%s507 + $0xc08] sm:$0xff]
                  %730 = vst [vmem:[%s508 + $0x370] sm:$0xff] %v729
                  %v731 = vld [vmem:[%s507 + $0xc24] sm:$0xff]
                  %732 = vst [vmem:[%s508 + $0x378] sm:$0xff] %v731
                  %v733 = vld [vmem:[%s507 + $0xc40] sm:$0xff]
                  %734 = vst [vmem:[%s508 + $0x380] sm:$0xff] %v733
                  %v735 = vld [vmem:[%s507 + $0xc5c] sm:$0xff]
                  %736 = vst [vmem:[%s508 + $0x388] sm:$0xff] %v735
                  %v737 = vld [vmem:[%s507 + $0xc78] sm:$0xff]
                  %738 = vst [vmem:[%s508 + $0x390] sm:$0xff] %v737
                  %v739 = vld [vmem:[%s507 + $0xc94] sm:$0xff]
                  %740 = vst [vmem:[%s508 + $0x398] sm:$0xff] %v739
                  %v741 = vld [vmem:[%s507 + $0xcb0] sm:$0xff]
                  %742 = vst [vmem:[%s508 + $0x3a0] sm:$0xff] %v741
                  %v743 = vld [vmem:[%s507 + $0xccc] sm:$0xff]
                  %744 = vst [vmem:[%s508 + $0x3a8] sm:$0xff] %v743
                  %v745 = vld [vmem:[%s507 + $0xce8] sm:$0xff]
                  %746 = vst [vmem:[%s508 + $0x3b0] sm:$0xff] %v745
                  %v747 = vld [vmem:[%s507 + $0xd04] sm:$0xff]
                  %748 = vst [vmem:[%s508 + $0x3b8] sm:$0xff] %v747
                  %v749 = vld [vmem:[%s507 + $0xd20] sm:$0xff]
                  %750 = vst [vmem:[%s508 + $0x3c0] sm:$0xff] %v749
                  %v751 = vld [vmem:[%s507 + $0xd3c] sm:$0xff]
                  %752 = vst [vmem:[%s508 + $0x3c8] sm:$0xff] %v751
                  %v753 = vld [vmem:[%s507 + $0xd58] sm:$0xff]
                  %754 = vst [vmem:[%s508 + $0x3d0] sm:$0xff] %v753
                  %v755 = vld [vmem:[%s507 + $0xd74] sm:$0xff]
                  %756 = vst [vmem:[%s508 + $0x3d8] sm:$0xff] %v755
                  %v757 = vld [vmem:[%s507 + $0xd90] sm:$0xff]
                  %758 = vst [vmem:[%s508 + $0x3e0] sm:$0xff] %v757
                  %v759 = vld [vmem:[%s507 + $0xdac] sm:$0xff]
                  %760 = vst [vmem:[%s508 + $0x3e8] sm:$0xff] %v759
                  %v761 = vld [vmem:[%s507 + $0xdc8] sm:$0xff]
                  %762 = vst [vmem:[%s508 + $0x3f0] sm:$0xff] %v761
                  %v763 = vld [vmem:[%s507 + $0xde4] sm:$0xff]
                  %764 = vst [vmem:[%s508 + $0x3f8] sm:$0xff] %v763
                  %s765 = sadd.s32 1, %s506
                  %p766 = scmp.ge.s32.totalorder %s765, %s497
                  %s767 = scalar_select %p766, 0, %s765
                  %s768 = smul.u32 %s767, 8
                  %s769 = smul.u32 %s767, 8
                  %s770 = scalar_lea.vmem %s214, %s768
                  %s771 = scalar_lea.vmem %s204, %s769 [#allocation2]
                $region60: #{fused_bn_add_relu_conv_bn.1} parent=54 // loop_footer
                  %s503 = sadd.s32 %s501, 1
                $region61: #{fused_bn_add_relu_conv_bn.1} parent=54 // loop_footer_branch
                  %500 = sbr.rel target = $region57
                $region62: #{fused_bn_add_relu_conv_bn.1} parent=54 // loop_exit
                  _
              $region55: #{fused_bn_add_relu_conv_bn.1} parent=39 // pred_fallthru
                _
              %p772 = pneg %p493
              // Predicated region
              $region63: #{fused_bn_add_relu_conv_bn.1} parent=39 // pred_check
                _
              $region64: #{fused_bn_add_relu_conv_bn.1} parent=39 // pred_check_branch
                %774 = sbr.rel (%p493) target = $region66
              $region65: #{fused_bn_add_relu_conv_bn.1} parent=39 // pred_region
                %s775 = sand.u32 %s215, 7
                %s776 = ssub.s32 %s215, %s775
                %s777 = scalar_lea.vmem %s214, %s776
                %s778 = ssub.s32 %s215, %s775
                %s779 = scalar_lea.vmem %s204, %s778 [#allocation2]
                %s780 = sshrl.u32 %s215, 3
                // While loop
                $region67: #{fused_bn_add_relu_conv_bn.1} parent=65 // loop_pre_header
                  _
                $region68: #{fused_bn_add_relu_conv_bn.1} parent=65 // loop_header
                  %s784 = sphi 0, %s786
                  %p785 = scmp.ge.s32.totalorder %s784, %s780
                  %s789 = sphi 0, %s1050
                  %s790 = sphi %s214, %s1053
                  %s791 = sphi %s204, %s1054
                $region69: #{fused_bn_add_relu_conv_bn.1} parent=65 // loop_header_branch
                  %788 = sbr.rel (%p785) target = $region73
                $region70: #{fused_bn_add_relu_conv_bn.1} parent=65 // loop_body
                  %v792 = vld [vmem:[%s790] sm:$0xff]
                  %793 = vst [vmem:[%s791] sm:$0xff] %v792
                  %v794 = vld [vmem:[%s790 + $0x1c] sm:$0xff]
                  %795 = vst [vmem:[%s791 + $0x8] sm:$0xff] %v794
                  %v796 = vld [vmem:[%s790 + $0x38] sm:$0xff]
                  %797 = vst [vmem:[%s791 + $0x10] sm:$0xff] %v796
                  %v798 = vld [vmem:[%s790 + $0x54] sm:$0xff]
                  %799 = vst [vmem:[%s791 + $0x18] sm:$0xff] %v798
                  %v800 = vld [vmem:[%s790 + $0x70] sm:$0xff]
                  %801 = vst [vmem:[%s791 + $0x20] sm:$0xff] %v800
                  %v802 = vld [vmem:[%s790 + $0x8c] sm:$0xff]
                  %803 = vst [vmem:[%s791 + $0x28] sm:$0xff] %v802
                  %v804 = vld [vmem:[%s790 + $0xa8] sm:$0xff]
                  %805 = vst [vmem:[%s791 + $0x30] sm:$0xff] %v804
                  %v806 = vld [vmem:[%s790 + $0xc4] sm:$0xff]
                  %807 = vst [vmem:[%s791 + $0x38] sm:$0xff] %v806
                  %v808 = vld [vmem:[%s790 + $0xe0] sm:$0xff]
                  %809 = vst [vmem:[%s791 + $0x40] sm:$0xff] %v808
                  %v810 = vld [vmem:[%s790 + $0xfc] sm:$0xff]
                  %811 = vst [vmem:[%s791 + $0x48] sm:$0xff] %v810
                  %v812 = vld [vmem:[%s790 + $0x118] sm:$0xff]
                  %813 = vst [vmem:[%s791 + $0x50] sm:$0xff] %v812
                  %v814 = vld [vmem:[%s790 + $0x134] sm:$0xff]
                  %815 = vst [vmem:[%s791 + $0x58] sm:$0xff] %v814
                  %v816 = vld [vmem:[%s790 + $0x150] sm:$0xff]
                  %817 = vst [vmem:[%s791 + $0x60] sm:$0xff] %v816
                  %v818 = vld [vmem:[%s790 + $0x16c] sm:$0xff]
                  %819 = vst [vmem:[%s791 + $0x68] sm:$0xff] %v818
                  %v820 = vld [vmem:[%s790 + $0x188] sm:$0xff]
                  %821 = vst [vmem:[%s791 + $0x70] sm:$0xff] %v820
                  %v822 = vld [vmem:[%s790 + $0x1a4] sm:$0xff]
                  %823 = vst [vmem:[%s791 + $0x78] sm:$0xff] %v822
                  %v824 = vld [vmem:[%s790 + $0x1c0] sm:$0xff]
                  %825 = vst [vmem:[%s791 + $0x80] sm:$0xff] %v824
                  %v826 = vld [vmem:[%s790 + $0x1dc] sm:$0xff]
                  %827 = vst [vmem:[%s791 + $0x88] sm:$0xff] %v826
                  %v828 = vld [vmem:[%s790 + $0x1f8] sm:$0xff]
                  %829 = vst [vmem:[%s791 + $0x90] sm:$0xff] %v828
                  %v830 = vld [vmem:[%s790 + $0x214] sm:$0xff]
                  %831 = vst [vmem:[%s791 + $0x98] sm:$0xff] %v830
                  %v832 = vld [vmem:[%s790 + $0x230] sm:$0xff]
                  %833 = vst [vmem:[%s791 + $0xa0] sm:$0xff] %v832
                  %v834 = vld [vmem:[%s790 + $0x24c] sm:$0xff]
                  %835 = vst [vmem:[%s791 + $0xa8] sm:$0xff] %v834
                  %v836 = vld [vmem:[%s790 + $0x268] sm:$0xff]
                  %837 = vst [vmem:[%s791 + $0xb0] sm:$0xff] %v836
                  %v838 = vld [vmem:[%s790 + $0x284] sm:$0xff]
                  %839 = vst [vmem:[%s791 + $0xb8] sm:$0xff] %v838
                  %v840 = vld [vmem:[%s790 + $0x2a0] sm:$0xff]
                  %841 = vst [vmem:[%s791 + $0xc0] sm:$0xff] %v840
                  %v842 = vld [vmem:[%s790 + $0x2bc] sm:$0xff]
                  %843 = vst [vmem:[%s791 + $0xc8] sm:$0xff] %v842
                  %v844 = vld [vmem:[%s790 + $0x2d8] sm:$0xff]
                  %845 = vst [vmem:[%s791 + $0xd0] sm:$0xff] %v844
                  %v846 = vld [vmem:[%s790 + $0x2f4] sm:$0xff]
                  %847 = vst [vmem:[%s791 + $0xd8] sm:$0xff] %v846
                  %v848 = vld [vmem:[%s790 + $0x310] sm:$0xff]
                  %849 = vst [vmem:[%s791 + $0xe0] sm:$0xff] %v848
                  %v850 = vld [vmem:[%s790 + $0x32c] sm:$0xff]
                  %851 = vst [vmem:[%s791 + $0xe8] sm:$0xff] %v850
                  %v852 = vld [vmem:[%s790 + $0x348] sm:$0xff]
                  %853 = vst [vmem:[%s791 + $0xf0] sm:$0xff] %v852
                  %v854 = vld [vmem:[%s790 + $0x364] sm:$0xff]
                  %855 = vst [vmem:[%s791 + $0xf8] sm:$0xff] %v854
                  %v856 = vld [vmem:[%s790 + $0x380] sm:$0xff]
                  %857 = vst [vmem:[%s791 + $0x100] sm:$0xff] %v856
                  %v858 = vld [vmem:[%s790 + $0x39c] sm:$0xff]
                  %859 = vst [vmem:[%s791 + $0x108] sm:$0xff] %v858
                  %v860 = vld [vmem:[%s790 + $0x3b8] sm:$0xff]
                  %861 = vst [vmem:[%s791 + $0x110] sm:$0xff] %v860
                  %v862 = vld [vmem:[%s790 + $0x3d4] sm:$0xff]
                  %863 = vst [vmem:[%s791 + $0x118] sm:$0xff] %v862
                  %v864 = vld [vmem:[%s790 + $0x3f0] sm:$0xff]
                  %865 = vst [vmem:[%s791 + $0x120] sm:$0xff] %v864
                  %v866 = vld [vmem:[%s790 + $0x40c] sm:$0xff]
                  %867 = vst [vmem:[%s791 + $0x128] sm:$0xff] %v866
                  %v868 = vld [vmem:[%s790 + $0x428] sm:$0xff]
                  %869 = vst [vmem:[%s791 + $0x130] sm:$0xff] %v868
                  %v870 = vld [vmem:[%s790 + $0x444] sm:$0xff]
                  %871 = vst [vmem:[%s791 + $0x138] sm:$0xff] %v870
                  %v872 = vld [vmem:[%s790 + $0x460] sm:$0xff]
                  %873 = vst [vmem:[%s791 + $0x140] sm:$0xff] %v872
                  %v874 = vld [vmem:[%s790 + $0x47c] sm:$0xff]
                  %875 = vst [vmem:[%s791 + $0x148] sm:$0xff] %v874
                  %v876 = vld [vmem:[%s790 + $0x498] sm:$0xff]
                  %877 = vst [vmem:[%s791 + $0x150] sm:$0xff] %v876
                  %v878 = vld [vmem:[%s790 + $0x4b4] sm:$0xff]
                  %879 = vst [vmem:[%s791 + $0x158] sm:$0xff] %v878
                  %v880 = vld [vmem:[%s790 + $0x4d0] sm:$0xff]
                  %881 = vst [vmem:[%s791 + $0x160] sm:$0xff] %v880
                  %v882 = vld [vmem:[%s790 + $0x4ec] sm:$0xff]
                  %883 = vst [vmem:[%s791 + $0x168] sm:$0xff] %v882
                  %v884 = vld [vmem:[%s790 + $0x508] sm:$0xff]
                  %885 = vst [vmem:[%s791 + $0x170] sm:$0xff] %v884
                  %v886 = vld [vmem:[%s790 + $0x524] sm:$0xff]
                  %887 = vst [vmem:[%s791 + $0x178] sm:$0xff] %v886
                  %v888 = vld [vmem:[%s790 + $0x540] sm:$0xff]
                  %889 = vst [vmem:[%s791 + $0x180] sm:$0xff] %v888
                  %v890 = vld [vmem:[%s790 + $0x55c] sm:$0xff]
                  %891 = vst [vmem:[%s791 + $0x188] sm:$0xff] %v890
                  %v892 = vld [vmem:[%s790 + $0x578] sm:$0xff]
                  %893 = vst [vmem:[%s791 + $0x190] sm:$0xff] %v892
                  %v894 = vld [vmem:[%s790 + $0x594] sm:$0xff]
                  %895 = vst [vmem:[%s791 + $0x198] sm:$0xff] %v894
                  %v896 = vld [vmem:[%s790 + $0x5b0] sm:$0xff]
                  %897 = vst [vmem:[%s791 + $0x1a0] sm:$0xff] %v896
                  %v898 = vld [vmem:[%s790 + $0x5cc] sm:$0xff]
                  %899 = vst [vmem:[%s791 + $0x1a8] sm:$0xff] %v898
                  %v900 = vld [vmem:[%s790 + $0x5e8] sm:$0xff]
                  %901 = vst [vmem:[%s791 + $0x1b0] sm:$0xff] %v900
                  %v902 = vld [vmem:[%s790 + $0x604] sm:$0xff]
                  %903 = vst [vmem:[%s791 + $0x1b8] sm:$0xff] %v902
                  %v904 = vld [vmem:[%s790 + $0x620] sm:$0xff]
                  %905 = vst [vmem:[%s791 + $0x1c0] sm:$0xff] %v904
                  %v906 = vld [vmem:[%s790 + $0x63c] sm:$0xff]
                  %907 = vst [vmem:[%s791 + $0x1c8] sm:$0xff] %v906
                  %v908 = vld [vmem:[%s790 + $0x658] sm:$0xff]
                  %909 = vst [vmem:[%s791 + $0x1d0] sm:$0xff] %v908
                  %v910 = vld [vmem:[%s790 + $0x674] sm:$0xff]
                  %911 = vst [vmem:[%s791 + $0x1d8] sm:$0xff] %v910
                  %v912 = vld [vmem:[%s790 + $0x690] sm:$0xff]
                  %913 = vst [vmem:[%s791 + $0x1e0] sm:$0xff] %v912
                  %v914 = vld [vmem:[%s790 + $0x6ac] sm:$0xff]
                  %915 = vst [vmem:[%s791 + $0x1e8] sm:$0xff] %v914
                  %v916 = vld [vmem:[%s790 + $0x6c8] sm:$0xff]
                  %917 = vst [vmem:[%s791 + $0x1f0] sm:$0xff] %v916
                  %v918 = vld [vmem:[%s790 + $0x6e4] sm:$0xff]
                  %919 = vst [vmem:[%s791 + $0x1f8] sm:$0xff] %v918
                  %v920 = vld [vmem:[%s790 + $0x700] sm:$0xff]
                  %921 = vst [vmem:[%s791 + $0x200] sm:$0xff] %v920
                  %v922 = vld [vmem:[%s790 + $0x71c] sm:$0xff]
                  %923 = vst [vmem:[%s791 + $0x208] sm:$0xff] %v922
                  %v924 = vld [vmem:[%s790 + $0x738] sm:$0xff]
                  %925 = vst [vmem:[%s791 + $0x210] sm:$0xff] %v924
                  %v926 = vld [vmem:[%s790 + $0x754] sm:$0xff]
                  %927 = vst [vmem:[%s791 + $0x218] sm:$0xff] %v926
                  %v928 = vld [vmem:[%s790 + $0x770] sm:$0xff]
                  %929 = vst [vmem:[%s791 + $0x220] sm:$0xff] %v928
                  %v930 = vld [vmem:[%s790 + $0x78c] sm:$0xff]
                  %931 = vst [vmem:[%s791 + $0x228] sm:$0xff] %v930
                  %v932 = vld [vmem:[%s790 + $0x7a8] sm:$0xff]
                  %933 = vst [vmem:[%s791 + $0x230] sm:$0xff] %v932
                  %v934 = vld [vmem:[%s790 + $0x7c4] sm:$0xff]
                  %935 = vst [vmem:[%s791 + $0x238] sm:$0xff] %v934
                  %v936 = vld [vmem:[%s790 + $0x7e0] sm:$0xff]
                  %937 = vst [vmem:[%s791 + $0x240] sm:$0xff] %v936
                  %v938 = vld [vmem:[%s790 + $0x7fc] sm:$0xff]
                  %939 = vst [vmem:[%s791 + $0x248] sm:$0xff] %v938
                  %v940 = vld [vmem:[%s790 + $0x818] sm:$0xff]
                  %941 = vst [vmem:[%s791 + $0x250] sm:$0xff] %v940
                  %v942 = vld [vmem:[%s790 + $0x834] sm:$0xff]
                  %943 = vst [vmem:[%s791 + $0x258] sm:$0xff] %v942
                  %v944 = vld [vmem:[%s790 + $0x850] sm:$0xff]
                  %945 = vst [vmem:[%s791 + $0x260] sm:$0xff] %v944
                  %v946 = vld [vmem:[%s790 + $0x86c] sm:$0xff]
                  %947 = vst [vmem:[%s791 + $0x268] sm:$0xff] %v946
                  %v948 = vld [vmem:[%s790 + $0x888] sm:$0xff]
                  %949 = vst [vmem:[%s791 + $0x270] sm:$0xff] %v948
                  %v950 = vld [vmem:[%s790 + $0x8a4] sm:$0xff]
                  %951 = vst [vmem:[%s791 + $0x278] sm:$0xff] %v950
                  %v952 = vld [vmem:[%s790 + $0x8c0] sm:$0xff]
                  %953 = vst [vmem:[%s791 + $0x280] sm:$0xff] %v952
                  %v954 = vld [vmem:[%s790 + $0x8dc] sm:$0xff]
                  %955 = vst [vmem:[%s791 + $0x288] sm:$0xff] %v954
                  %v956 = vld [vmem:[%s790 + $0x8f8] sm:$0xff]
                  %957 = vst [vmem:[%s791 + $0x290] sm:$0xff] %v956
                  %v958 = vld [vmem:[%s790 + $0x914] sm:$0xff]
                  %959 = vst [vmem:[%s791 + $0x298] sm:$0xff] %v958
                  %v960 = vld [vmem:[%s790 + $0x930] sm:$0xff]
                  %961 = vst [vmem:[%s791 + $0x2a0] sm:$0xff] %v960
                  %v962 = vld [vmem:[%s790 + $0x94c] sm:$0xff]
                  %963 = vst [vmem:[%s791 + $0x2a8] sm:$0xff] %v962
                  %v964 = vld [vmem:[%s790 + $0x968] sm:$0xff]
                  %965 = vst [vmem:[%s791 + $0x2b0] sm:$0xff] %v964
                  %v966 = vld [vmem:[%s790 + $0x984] sm:$0xff]
                  %967 = vst [vmem:[%s791 + $0x2b8] sm:$0xff] %v966
                  %v968 = vld [vmem:[%s790 + $0x9a0] sm:$0xff]
                  %969 = vst [vmem:[%s791 + $0x2c0] sm:$0xff] %v968
                  %v970 = vld [vmem:[%s790 + $0x9bc] sm:$0xff]
                  %971 = vst [vmem:[%s791 + $0x2c8] sm:$0xff] %v970
                  %v972 = vld [vmem:[%s790 + $0x9d8] sm:$0xff]
                  %973 = vst [vmem:[%s791 + $0x2d0] sm:$0xff] %v972
                  %v974 = vld [vmem:[%s790 + $0x9f4] sm:$0xff]
                  %975 = vst [vmem:[%s791 + $0x2d8] sm:$0xff] %v974
                  %v976 = vld [vmem:[%s790 + $0xa10] sm:$0xff]
                  %977 = vst [vmem:[%s791 + $0x2e0] sm:$0xff] %v976
                  %v978 = vld [vmem:[%s790 + $0xa2c] sm:$0xff]
                  %979 = vst [vmem:[%s791 + $0x2e8] sm:$0xff] %v978
                  %v980 = vld [vmem:[%s790 + $0xa48] sm:$0xff]
                  %981 = vst [vmem:[%s791 + $0x2f0] sm:$0xff] %v980
                  %v982 = vld [vmem:[%s790 + $0xa64] sm:$0xff]
                  %983 = vst [vmem:[%s791 + $0x2f8] sm:$0xff] %v982
                  %v984 = vld [vmem:[%s790 + $0xa80] sm:$0xff]
                  %985 = vst [vmem:[%s791 + $0x300] sm:$0xff] %v984
                  %v986 = vld [vmem:[%s790 + $0xa9c] sm:$0xff]
                  %987 = vst [vmem:[%s791 + $0x308] sm:$0xff] %v986
                  %v988 = vld [vmem:[%s790 + $0xab8] sm:$0xff]
                  %989 = vst [vmem:[%s791 + $0x310] sm:$0xff] %v988
                  %v990 = vld [vmem:[%s790 + $0xad4] sm:$0xff]
                  %991 = vst [vmem:[%s791 + $0x318] sm:$0xff] %v990
                  %v992 = vld [vmem:[%s790 + $0xaf0] sm:$0xff]
                  %993 = vst [vmem:[%s791 + $0x320] sm:$0xff] %v992
                  %v994 = vld [vmem:[%s790 + $0xb0c] sm:$0xff]
                  %995 = vst [vmem:[%s791 + $0x328] sm:$0xff] %v994
                  %v996 = vld [vmem:[%s790 + $0xb28] sm:$0xff]
                  %997 = vst [vmem:[%s791 + $0x330] sm:$0xff] %v996
                  %v998 = vld [vmem:[%s790 + $0xb44] sm:$0xff]
                  %999 = vst [vmem:[%s791 + $0x338] sm:$0xff] %v998
                  %v1000 = vld [vmem:[%s790 + $0xb60] sm:$0xff]
                  %1001 = vst [vmem:[%s791 + $0x340] sm:$0xff] %v1000
                  %v1002 = vld [vmem:[%s790 + $0xb7c] sm:$0xff]
                  %1003 = vst [vmem:[%s791 + $0x348] sm:$0xff] %v1002
                  %v1004 = vld [vmem:[%s790 + $0xb98] sm:$0xff]
                  %1005 = vst [vmem:[%s791 + $0x350] sm:$0xff] %v1004
                  %v1006 = vld [vmem:[%s790 + $0xbb4] sm:$0xff]
                  %1007 = vst [vmem:[%s791 + $0x358] sm:$0xff] %v1006
                  %v1008 = vld [vmem:[%s790 + $0xbd0] sm:$0xff]
                  %1009 = vst [vmem:[%s791 + $0x360] sm:$0xff] %v1008
                  %v1010 = vld [vmem:[%s790 + $0xbec] sm:$0xff]
                  %1011 = vst [vmem:[%s791 + $0x368] sm:$0xff] %v1010
                  %v1012 = vld [vmem:[%s790 + $0xc08] sm:$0xff]
                  %1013 = vst [vmem:[%s791 + $0x370] sm:$0xff] %v1012
                  %v1014 = vld [vmem:[%s790 + $0xc24] sm:$0xff]
                  %1015 = vst [vmem:[%s791 + $0x378] sm:$0xff] %v1014
                  %v1016 = vld [vmem:[%s790 + $0xc40] sm:$0xff]
                  %1017 = vst [vmem:[%s791 + $0x380] sm:$0xff] %v1016
                  %v1018 = vld [vmem:[%s790 + $0xc5c] sm:$0xff]
                  %1019 = vst [vmem:[%s791 + $0x388] sm:$0xff] %v1018
                  %v1020 = vld [vmem:[%s790 + $0xc78] sm:$0xff]
                  %1021 = vst [vmem:[%s791 + $0x390] sm:$0xff] %v1020
                  %v1022 = vld [vmem:[%s790 + $0xc94] sm:$0xff]
                  %1023 = vst [vmem:[%s791 + $0x398] sm:$0xff] %v1022
                  %v1024 = vld [vmem:[%s790 + $0xcb0] sm:$0xff]
                  %1025 = vst [vmem:[%s791 + $0x3a0] sm:$0xff] %v1024
                  %v1026 = vld [vmem:[%s790 + $0xccc] sm:$0xff]
                  %1027 = vst [vmem:[%s791 + $0x3a8] sm:$0xff] %v1026
                  %v1028 = vld [vmem:[%s790 + $0xce8] sm:$0xff]
                  %1029 = vst [vmem:[%s791 + $0x3b0] sm:$0xff] %v1028
                  %v1030 = vld [vmem:[%s790 + $0xd04] sm:$0xff]
                  %1031 = vst [vmem:[%s791 + $0x3b8] sm:$0xff] %v1030
                  %v1032 = vld [vmem:[%s790 + $0xd20] sm:$0xff]
                  %1033 = vst [vmem:[%s791 + $0x3c0] sm:$0xff] %v1032
                  %v1034 = vld [vmem:[%s790 + $0xd3c] sm:$0xff]
                  %1035 = vst [vmem:[%s791 + $0x3c8] sm:$0xff] %v1034
                  %v1036 = vld [vmem:[%s790 + $0xd58] sm:$0xff]
                  %1037 = vst [vmem:[%s791 + $0x3d0] sm:$0xff] %v1036
                  %v1038 = vld [vmem:[%s790 + $0xd74] sm:$0xff]
                  %1039 = vst [vmem:[%s791 + $0x3d8] sm:$0xff] %v1038
                  %v1040 = vld [vmem:[%s790 + $0xd90] sm:$0xff]
                  %1041 = vst [vmem:[%s791 + $0x3e0] sm:$0xff] %v1040
                  %v1042 = vld [vmem:[%s790 + $0xdac] sm:$0xff]
                  %1043 = vst [vmem:[%s791 + $0x3e8] sm:$0xff] %v1042
                  %v1044 = vld [vmem:[%s790 + $0xdc8] sm:$0xff]
                  %1045 = vst [vmem:[%s791 + $0x3f0] sm:$0xff] %v1044
                  %v1046 = vld [vmem:[%s790 + $0xde4] sm:$0xff]
                  %1047 = vst [vmem:[%s791 + $0x3f8] sm:$0xff] %v1046
                  %s1048 = sadd.s32 1, %s789
                  %p1049 = scmp.ge.s32.totalorder %s1048, %s780
                  %s1050 = scalar_select %p1049, 0, %s1048
                  %s1051 = smul.u32 %s1050, 8
                  %s1052 = smul.u32 %s1050, 8
                  %s1053 = scalar_lea.vmem %s214, %s1051
                  %s1054 = scalar_lea.vmem %s204, %s1052 [#allocation2]
                $region71: #{fused_bn_add_relu_conv_bn.1} parent=65 // loop_footer
                  %s786 = sadd.s32 %s784, 1
                $region72: #{fused_bn_add_relu_conv_bn.1} parent=65 // loop_footer_branch
                  %783 = sbr.rel target = $region68
                $region73: #{fused_bn_add_relu_conv_bn.1} parent=65 // loop_exit
                  _
                %s1055 = sshll.u32 1, %s775
                %s1056 = ssub.s32 %s1055, 1
                loop: start=0, step=1, limit=1
                $region74: #{fused_bn_add_relu_conv_bn.1} parent=65 // loop_pre_header
                  _
                $region75: #{fused_bn_add_relu_conv_bn.1} parent=65 // loop_header
                  %s1058 = sphi 0, %s1062
                  %p1059 = scmp.ge.s32.totalorder %s1058, 1
                  %s1063 = sphi %s777, %s777
                  %s1064 = sphi %s779, %s779
                $region76: #{fused_bn_add_relu_conv_bn.1} parent=65 // loop_header_branch
                  %1061 = sbr.rel (%p1059) target = $region80
                $region77: #{fused_bn_add_relu_conv_bn.1} parent=65 // loop_body
                  %v1065 = vld [vmem:[%s1063] sm:%s1056]
                  %1066 = vst [vmem:[%s1064] sm:%s1056] %v1065
                  %v1067 = vld [vmem:[%s1063 + $0x1c] sm:%s1056]
                  %1068 = vst [vmem:[%s1064 + $0x8] sm:%s1056] %v1067
                  %v1069 = vld [vmem:[%s1063 + $0x38] sm:%s1056]
                  %1070 = vst [vmem:[%s1064 + $0x10] sm:%s1056] %v1069
                  %v1071 = vld [vmem:[%s1063 + $0x54] sm:%s1056]
                  %1072 = vst [vmem:[%s1064 + $0x18] sm:%s1056] %v1071
                  %v1073 = vld [vmem:[%s1063 + $0x70] sm:%s1056]
                  %1074 = vst [vmem:[%s1064 + $0x20] sm:%s1056] %v1073
                  %v1075 = vld [vmem:[%s1063 + $0x8c] sm:%s1056]
                  %1076 = vst [vmem:[%s1064 + $0x28] sm:%s1056] %v1075
                  %v1077 = vld [vmem:[%s1063 + $0xa8] sm:%s1056]
                  %1078 = vst [vmem:[%s1064 + $0x30] sm:%s1056] %v1077
                  %v1079 = vld [vmem:[%s1063 + $0xc4] sm:%s1056]
                  %1080 = vst [vmem:[%s1064 + $0x38] sm:%s1056] %v1079
                  %v1081 = vld [vmem:[%s1063 + $0xe0] sm:%s1056]
                  %1082 = vst [vmem:[%s1064 + $0x40] sm:%s1056] %v1081
                  %v1083 = vld [vmem:[%s1063 + $0xfc] sm:%s1056]
                  %1084 = vst [vmem:[%s1064 + $0x48] sm:%s1056] %v1083
                  %v1085 = vld [vmem:[%s1063 + $0x118] sm:%s1056]
                  %1086 = vst [vmem:[%s1064 + $0x50] sm:%s1056] %v1085
                  %v1087 = vld [vmem:[%s1063 + $0x134] sm:%s1056]
                  %1088 = vst [vmem:[%s1064 + $0x58] sm:%s1056] %v1087
                  %v1089 = vld [vmem:[%s1063 + $0x150] sm:%s1056]
                  %1090 = vst [vmem:[%s1064 + $0x60] sm:%s1056] %v1089
                  %v1091 = vld [vmem:[%s1063 + $0x16c] sm:%s1056]
                  %1092 = vst [vmem:[%s1064 + $0x68] sm:%s1056] %v1091
                  %v1093 = vld [vmem:[%s1063 + $0x188] sm:%s1056]
                  %1094 = vst [vmem:[%s1064 + $0x70] sm:%s1056] %v1093
                  %v1095 = vld [vmem:[%s1063 + $0x1a4] sm:%s1056]
                  %1096 = vst [vmem:[%s1064 + $0x78] sm:%s1056] %v1095
                  %v1097 = vld [vmem:[%s1063 + $0x1c0] sm:%s1056]
                  %1098 = vst [vmem:[%s1064 + $0x80] sm:%s1056] %v1097
                  %v1099 = vld [vmem:[%s1063 + $0x1dc] sm:%s1056]
                  %1100 = vst [vmem:[%s1064 + $0x88] sm:%s1056] %v1099
                  %v1101 = vld [vmem:[%s1063 + $0x1f8] sm:%s1056]
                  %1102 = vst [vmem:[%s1064 + $0x90] sm:%s1056] %v1101
                  %v1103 = vld [vmem:[%s1063 + $0x214] sm:%s1056]
                  %1104 = vst [vmem:[%s1064 + $0x98] sm:%s1056] %v1103
                  %v1105 = vld [vmem:[%s1063 + $0x230] sm:%s1056]
                  %1106 = vst [vmem:[%s1064 + $0xa0] sm:%s1056] %v1105
                  %v1107 = vld [vmem:[%s1063 + $0x24c] sm:%s1056]
                  %1108 = vst [vmem:[%s1064 + $0xa8] sm:%s1056] %v1107
                  %v1109 = vld [vmem:[%s1063 + $0x268] sm:%s1056]
                  %1110 = vst [vmem:[%s1064 + $0xb0] sm:%s1056] %v1109
                  %v1111 = vld [vmem:[%s1063 + $0x284] sm:%s1056]
                  %1112 = vst [vmem:[%s1064 + $0xb8] sm:%s1056] %v1111
                  %v1113 = vld [vmem:[%s1063 + $0x2a0] sm:%s1056]
                  %1114 = vst [vmem:[%s1064 + $0xc0] sm:%s1056] %v1113
                  %v1115 = vld [vmem:[%s1063 + $0x2bc] sm:%s1056]
                  %1116 = vst [vmem:[%s1064 + $0xc8] sm:%s1056] %v1115
                  %v1117 = vld [vmem:[%s1063 + $0x2d8] sm:%s1056]
                  %1118 = vst [vmem:[%s1064 + $0xd0] sm:%s1056] %v1117
                  %v1119 = vld [vmem:[%s1063 + $0x2f4] sm:%s1056]
                  %1120 = vst [vmem:[%s1064 + $0xd8] sm:%s1056] %v1119
                  %v1121 = vld [vmem:[%s1063 + $0x310] sm:%s1056]
                  %1122 = vst [vmem:[%s1064 + $0xe0] sm:%s1056] %v1121
                  %v1123 = vld [vmem:[%s1063 + $0x32c] sm:%s1056]
                  %1124 = vst [vmem:[%s1064 + $0xe8] sm:%s1056] %v1123
                  %v1125 = vld [vmem:[%s1063 + $0x348] sm:%s1056]
                  %1126 = vst [vmem:[%s1064 + $0xf0] sm:%s1056] %v1125
                  %v1127 = vld [vmem:[%s1063 + $0x364] sm:%s1056]
                  %1128 = vst [vmem:[%s1064 + $0xf8] sm:%s1056] %v1127
                  %v1129 = vld [vmem:[%s1063 + $0x380] sm:%s1056]
                  %1130 = vst [vmem:[%s1064 + $0x100] sm:%s1056] %v1129
                  %v1131 = vld [vmem:[%s1063 + $0x39c] sm:%s1056]
                  %1132 = vst [vmem:[%s1064 + $0x108] sm:%s1056] %v1131
                  %v1133 = vld [vmem:[%s1063 + $0x3b8] sm:%s1056]
                  %1134 = vst [vmem:[%s1064 + $0x110] sm:%s1056] %v1133
                  %v1135 = vld [vmem:[%s1063 + $0x3d4] sm:%s1056]
                  %1136 = vst [vmem:[%s1064 + $0x118] sm:%s1056] %v1135
                  %v1137 = vld [vmem:[%s1063 + $0x3f0] sm:%s1056]
                  %1138 = vst [vmem:[%s1064 + $0x120] sm:%s1056] %v1137
                  %v1139 = vld [vmem:[%s1063 + $0x40c] sm:%s1056]
                  %1140 = vst [vmem:[%s1064 + $0x128] sm:%s1056] %v1139
                  %v1141 = vld [vmem:[%s1063 + $0x428] sm:%s1056]
                  %1142 = vst [vmem:[%s1064 + $0x130] sm:%s1056] %v1141
                  %v1143 = vld [vmem:[%s1063 + $0x444] sm:%s1056]
                  %1144 = vst [vmem:[%s1064 + $0x138] sm:%s1056] %v1143
                  %v1145 = vld [vmem:[%s1063 + $0x460] sm:%s1056]
                  %1146 = vst [vmem:[%s1064 + $0x140] sm:%s1056] %v1145
                  %v1147 = vld [vmem:[%s1063 + $0x47c] sm:%s1056]
                  %1148 = vst [vmem:[%s1064 + $0x148] sm:%s1056] %v1147
                  %v1149 = vld [vmem:[%s1063 + $0x498] sm:%s1056]
                  %1150 = vst [vmem:[%s1064 + $0x150] sm:%s1056] %v1149
                  %v1151 = vld [vmem:[%s1063 + $0x4b4] sm:%s1056]
                  %1152 = vst [vmem:[%s1064 + $0x158] sm:%s1056] %v1151
                  %v1153 = vld [vmem:[%s1063 + $0x4d0] sm:%s1056]
                  %1154 = vst [vmem:[%s1064 + $0x160] sm:%s1056] %v1153
                  %v1155 = vld [vmem:[%s1063 + $0x4ec] sm:%s1056]
                  %1156 = vst [vmem:[%s1064 + $0x168] sm:%s1056] %v1155
                  %v1157 = vld [vmem:[%s1063 + $0x508] sm:%s1056]
                  %1158 = vst [vmem:[%s1064 + $0x170] sm:%s1056] %v1157
                  %v1159 = vld [vmem:[%s1063 + $0x524] sm:%s1056]
                  %1160 = vst [vmem:[%s1064 + $0x178] sm:%s1056] %v1159
                  %v1161 = vld [vmem:[%s1063 + $0x540] sm:%s1056]
                  %1162 = vst [vmem:[%s1064 + $0x180] sm:%s1056] %v1161
                  %v1163 = vld [vmem:[%s1063 + $0x55c] sm:%s1056]
                  %1164 = vst [vmem:[%s1064 + $0x188] sm:%s1056] %v1163
                  %v1165 = vld [vmem:[%s1063 + $0x578] sm:%s1056]
                  %1166 = vst [vmem:[%s1064 + $0x190] sm:%s1056] %v1165
                  %v1167 = vld [vmem:[%s1063 + $0x594] sm:%s1056]
                  %1168 = vst [vmem:[%s1064 + $0x198] sm:%s1056] %v1167
                  %v1169 = vld [vmem:[%s1063 + $0x5b0] sm:%s1056]
                  %1170 = vst [vmem:[%s1064 + $0x1a0] sm:%s1056] %v1169
                  %v1171 = vld [vmem:[%s1063 + $0x5cc] sm:%s1056]
                  %1172 = vst [vmem:[%s1064 + $0x1a8] sm:%s1056] %v1171
                  %v1173 = vld [vmem:[%s1063 + $0x5e8] sm:%s1056]
                  %1174 = vst [vmem:[%s1064 + $0x1b0] sm:%s1056] %v1173
                  %v1175 = vld [vmem:[%s1063 + $0x604] sm:%s1056]
                  %1176 = vst [vmem:[%s1064 + $0x1b8] sm:%s1056] %v1175
                  %v1177 = vld [vmem:[%s1063 + $0x620] sm:%s1056]
                  %1178 = vst [vmem:[%s1064 + $0x1c0] sm:%s1056] %v1177
                  %v1179 = vld [vmem:[%s1063 + $0x63c] sm:%s1056]
                  %1180 = vst [vmem:[%s1064 + $0x1c8] sm:%s1056] %v1179
                  %v1181 = vld [vmem:[%s1063 + $0x658] sm:%s1056]
                  %1182 = vst [vmem:[%s1064 + $0x1d0] sm:%s1056] %v1181
                  %v1183 = vld [vmem:[%s1063 + $0x674] sm:%s1056]
                  %1184 = vst [vmem:[%s1064 + $0x1d8] sm:%s1056] %v1183
                  %v1185 = vld [vmem:[%s1063 + $0x690] sm:%s1056]
                  %1186 = vst [vmem:[%s1064 + $0x1e0] sm:%s1056] %v1185
                  %v1187 = vld [vmem:[%s1063 + $0x6ac] sm:%s1056]
                  %1188 = vst [vmem:[%s1064 + $0x1e8] sm:%s1056] %v1187
                  %v1189 = vld [vmem:[%s1063 + $0x6c8] sm:%s1056]
                  %1190 = vst [vmem:[%s1064 + $0x1f0] sm:%s1056] %v1189
                  %v1191 = vld [vmem:[%s1063 + $0x6e4] sm:%s1056]
                  %1192 = vst [vmem:[%s1064 + $0x1f8] sm:%s1056] %v1191
                  %v1193 = vld [vmem:[%s1063 + $0x700] sm:%s1056]
                  %1194 = vst [vmem:[%s1064 + $0x200] sm:%s1056] %v1193
                  %v1195 = vld [vmem:[%s1063 + $0x71c] sm:%s1056]
                  %1196 = vst [vmem:[%s1064 + $0x208] sm:%s1056] %v1195
                  %v1197 = vld [vmem:[%s1063 + $0x738] sm:%s1056]
                  %1198 = vst [vmem:[%s1064 + $0x210] sm:%s1056] %v1197
                  %v1199 = vld [vmem:[%s1063 + $0x754] sm:%s1056]
                  %1200 = vst [vmem:[%s1064 + $0x218] sm:%s1056] %v1199
                  %v1201 = vld [vmem:[%s1063 + $0x770] sm:%s1056]
                  %1202 = vst [vmem:[%s1064 + $0x220] sm:%s1056] %v1201
                  %v1203 = vld [vmem:[%s1063 + $0x78c] sm:%s1056]
                  %1204 = vst [vmem:[%s1064 + $0x228] sm:%s1056] %v1203
                  %v1205 = vld [vmem:[%s1063 + $0x7a8] sm:%s1056]
                  %1206 = vst [vmem:[%s1064 + $0x230] sm:%s1056] %v1205
                  %v1207 = vld [vmem:[%s1063 + $0x7c4] sm:%s1056]
                  %1208 = vst [vmem:[%s1064 + $0x238] sm:%s1056] %v1207
                  %v1209 = vld [vmem:[%s1063 + $0x7e0] sm:%s1056]
                  %1210 = vst [vmem:[%s1064 + $0x240] sm:%s1056] %v1209
                  %v1211 = vld [vmem:[%s1063 + $0x7fc] sm:%s1056]
                  %1212 = vst [vmem:[%s1064 + $0x248] sm:%s1056] %v1211
                  %v1213 = vld [vmem:[%s1063 + $0x818] sm:%s1056]
                  %1214 = vst [vmem:[%s1064 + $0x250] sm:%s1056] %v1213
                  %v1215 = vld [vmem:[%s1063 + $0x834] sm:%s1056]
                  %1216 = vst [vmem:[%s1064 + $0x258] sm:%s1056] %v1215
                  %v1217 = vld [vmem:[%s1063 + $0x850] sm:%s1056]
                  %1218 = vst [vmem:[%s1064 + $0x260] sm:%s1056] %v1217
                  %v1219 = vld [vmem:[%s1063 + $0x86c] sm:%s1056]
                  %1220 = vst [vmem:[%s1064 + $0x268] sm:%s1056] %v1219
                  %v1221 = vld [vmem:[%s1063 + $0x888] sm:%s1056]
                  %1222 = vst [vmem:[%s1064 + $0x270] sm:%s1056] %v1221
                  %v1223 = vld [vmem:[%s1063 + $0x8a4] sm:%s1056]
                  %1224 = vst [vmem:[%s1064 + $0x278] sm:%s1056] %v1223
                  %v1225 = vld [vmem:[%s1063 + $0x8c0] sm:%s1056]
                  %1226 = vst [vmem:[%s1064 + $0x280] sm:%s1056] %v1225
                  %v1227 = vld [vmem:[%s1063 + $0x8dc] sm:%s1056]
                  %1228 = vst [vmem:[%s1064 + $0x288] sm:%s1056] %v1227
                  %v1229 = vld [vmem:[%s1063 + $0x8f8] sm:%s1056]
                  %1230 = vst [vmem:[%s1064 + $0x290] sm:%s1056] %v1229
                  %v1231 = vld [vmem:[%s1063 + $0x914] sm:%s1056]
                  %1232 = vst [vmem:[%s1064 + $0x298] sm:%s1056] %v1231
                  %v1233 = vld [vmem:[%s1063 + $0x930] sm:%s1056]
                  %1234 = vst [vmem:[%s1064 + $0x2a0] sm:%s1056] %v1233
                  %v1235 = vld [vmem:[%s1063 + $0x94c] sm:%s1056]
                  %1236 = vst [vmem:[%s1064 + $0x2a8] sm:%s1056] %v1235
                  %v1237 = vld [vmem:[%s1063 + $0x968] sm:%s1056]
                  %1238 = vst [vmem:[%s1064 + $0x2b0] sm:%s1056] %v1237
                  %v1239 = vld [vmem:[%s1063 + $0x984] sm:%s1056]
                  %1240 = vst [vmem:[%s1064 + $0x2b8] sm:%s1056] %v1239
                  %v1241 = vld [vmem:[%s1063 + $0x9a0] sm:%s1056]
                  %1242 = vst [vmem:[%s1064 + $0x2c0] sm:%s1056] %v1241
                  %v1243 = vld [vmem:[%s1063 + $0x9bc] sm:%s1056]
                  %1244 = vst [vmem:[%s1064 + $0x2c8] sm:%s1056] %v1243
                  %v1245 = vld [vmem:[%s1063 + $0x9d8] sm:%s1056]
                  %1246 = vst [vmem:[%s1064 + $0x2d0] sm:%s1056] %v1245
                  %v1247 = vld [vmem:[%s1063 + $0x9f4] sm:%s1056]
                  %1248 = vst [vmem:[%s1064 + $0x2d8] sm:%s1056] %v1247
                  %v1249 = vld [vmem:[%s1063 + $0xa10] sm:%s1056]
                  %1250 = vst [vmem:[%s1064 + $0x2e0] sm:%s1056] %v1249
                  %v1251 = vld [vmem:[%s1063 + $0xa2c] sm:%s1056]
                  %1252 = vst [vmem:[%s1064 + $0x2e8] sm:%s1056] %v1251
                  %v1253 = vld [vmem:[%s1063 + $0xa48] sm:%s1056]
                  %1254 = vst [vmem:[%s1064 + $0x2f0] sm:%s1056] %v1253
                  %v1255 = vld [vmem:[%s1063 + $0xa64] sm:%s1056]
                  %1256 = vst [vmem:[%s1064 + $0x2f8] sm:%s1056] %v1255
                  %v1257 = vld [vmem:[%s1063 + $0xa80] sm:%s1056]
                  %1258 = vst [vmem:[%s1064 + $0x300] sm:%s1056] %v1257
                  %v1259 = vld [vmem:[%s1063 + $0xa9c] sm:%s1056]
                  %1260 = vst [vmem:[%s1064 + $0x308] sm:%s1056] %v1259
                  %v1261 = vld [vmem:[%s1063 + $0xab8] sm:%s1056]
                  %1262 = vst [vmem:[%s1064 + $0x310] sm:%s1056] %v1261
                  %v1263 = vld [vmem:[%s1063 + $0xad4] sm:%s1056]
                  %1264 = vst [vmem:[%s1064 + $0x318] sm:%s1056] %v1263
                  %v1265 = vld [vmem:[%s1063 + $0xaf0] sm:%s1056]
                  %1266 = vst [vmem:[%s1064 + $0x320] sm:%s1056] %v1265
                  %v1267 = vld [vmem:[%s1063 + $0xb0c] sm:%s1056]
                  %1268 = vst [vmem:[%s1064 + $0x328] sm:%s1056] %v1267
                  %v1269 = vld [vmem:[%s1063 + $0xb28] sm:%s1056]
                  %1270 = vst [vmem:[%s1064 + $0x330] sm:%s1056] %v1269
                  %v1271 = vld [vmem:[%s1063 + $0xb44] sm:%s1056]
                  %1272 = vst [vmem:[%s1064 + $0x338] sm:%s1056] %v1271
                  %v1273 = vld [vmem:[%s1063 + $0xb60] sm:%s1056]
                  %1274 = vst [vmem:[%s1064 + $0x340] sm:%s1056] %v1273
                  %v1275 = vld [vmem:[%s1063 + $0xb7c] sm:%s1056]
                  %1276 = vst [vmem:[%s1064 + $0x348] sm:%s1056] %v1275
                  %v1277 = vld [vmem:[%s1063 + $0xb98] sm:%s1056]
                  %1278 = vst [vmem:[%s1064 + $0x350] sm:%s1056] %v1277
                  %v1279 = vld [vmem:[%s1063 + $0xbb4] sm:%s1056]
                  %1280 = vst [vmem:[%s1064 + $0x358] sm:%s1056] %v1279
                  %v1281 = vld [vmem:[%s1063 + $0xbd0] sm:%s1056]
                  %1282 = vst [vmem:[%s1064 + $0x360] sm:%s1056] %v1281
                  %v1283 = vld [vmem:[%s1063 + $0xbec] sm:%s1056]
                  %1284 = vst [vmem:[%s1064 + $0x368] sm:%s1056] %v1283
                  %v1285 = vld [vmem:[%s1063 + $0xc08] sm:%s1056]
                  %1286 = vst [vmem:[%s1064 + $0x370] sm:%s1056] %v1285
                  %v1287 = vld [vmem:[%s1063 + $0xc24] sm:%s1056]
                  %1288 = vst [vmem:[%s1064 + $0x378] sm:%s1056] %v1287
                  %v1289 = vld [vmem:[%s1063 + $0xc40] sm:%s1056]
                  %1290 = vst [vmem:[%s1064 + $0x380] sm:%s1056] %v1289
                  %v1291 = vld [vmem:[%s1063 + $0xc5c] sm:%s1056]
                  %1292 = vst [vmem:[%s1064 + $0x388] sm:%s1056] %v1291
                  %v1293 = vld [vmem:[%s1063 + $0xc78] sm:%s1056]
                  %1294 = vst [vmem:[%s1064 + $0x390] sm:%s1056] %v1293
                  %v1295 = vld [vmem:[%s1063 + $0xc94] sm:%s1056]
                  %1296 = vst [vmem:[%s1064 + $0x398] sm:%s1056] %v1295
                  %v1297 = vld [vmem:[%s1063 + $0xcb0] sm:%s1056]
                  %1298 = vst [vmem:[%s1064 + $0x3a0] sm:%s1056] %v1297
                  %v1299 = vld [vmem:[%s1063 + $0xccc] sm:%s1056]
                  %1300 = vst [vmem:[%s1064 + $0x3a8] sm:%s1056] %v1299
                  %v1301 = vld [vmem:[%s1063 + $0xce8] sm:%s1056]
                  %1302 = vst [vmem:[%s1064 + $0x3b0] sm:%s1056] %v1301
                  %v1303 = vld [vmem:[%s1063 + $0xd04] sm:%s1056]
                  %1304 = vst [vmem:[%s1064 + $0x3b8] sm:%s1056] %v1303
                  %v1305 = vld [vmem:[%s1063 + $0xd20] sm:%s1056]
                  %1306 = vst [vmem:[%s1064 + $0x3c0] sm:%s1056] %v1305
                  %v1307 = vld [vmem:[%s1063 + $0xd3c] sm:%s1056]
                  %1308 = vst [vmem:[%s1064 + $0x3c8] sm:%s1056] %v1307
                  %v1309 = vld [vmem:[%s1063 + $0xd58] sm:%s1056]
                  %1310 = vst [vmem:[%s1064 + $0x3d0] sm:%s1056] %v1309
                  %v1311 = vld [vmem:[%s1063 + $0xd74] sm:%s1056]
                  %1312 = vst [vmem:[%s1064 + $0x3d8] sm:%s1056] %v1311
                  %v1313 = vld [vmem:[%s1063 + $0xd90] sm:%s1056]
                  %1314 = vst [vmem:[%s1064 + $0x3e0] sm:%s1056] %v1313
                  %v1315 = vld [vmem:[%s1063 + $0xdac] sm:%s1056]
                  %1316 = vst [vmem:[%s1064 + $0x3e8] sm:%s1056] %v1315
                  %v1317 = vld [vmem:[%s1063 + $0xdc8] sm:%s1056]
                  %1318 = vst [vmem:[%s1064 + $0x3f0] sm:%s1056] %v1317
                  %v1319 = vld [vmem:[%s1063 + $0xde4] sm:%s1056]
                  %1320 = vst [vmem:[%s1064 + $0x3f8] sm:%s1056] %v1319
                $region78: #{fused_bn_add_relu_conv_bn.1} parent=65 // loop_footer
                  %s1062 = sadd.s32 1, %s1058
                $region79: #{fused_bn_add_relu_conv_bn.1} parent=65 // loop_footer_branch
                  %1057 = sbr.rel target = $region75
                $region80: #{fused_bn_add_relu_conv_bn.1} parent=65 // loop_exit
                  _
              $region66: #{fused_bn_add_relu_conv_bn.1} parent=39 // pred_fallthru
                _
            $region40: #{fused_bn_add_relu_conv_bn.1} parent=35 // pred_fallthru
              _
            // Predicated region
            $region41: #{fused_bn_add_relu_conv_bn.1} parent=35 // pred_check
              %p223 = pneg %p219
            $region42: #{fused_bn_add_relu_conv_bn.1} parent=35 // pred_check_branch
              %225 = sbr.rel (%p223) target = $region44
            $region43: #{fused_bn_add_relu_conv_bn.1} parent=35 // pred_region
              %s226 = sshll.u32 1, %s215
              %s227 = ssub.s32 %s226, 1
              loop: start=0, step=1, limit=1
              $region45: #{fused_bn_add_relu_conv_bn.1} parent=43 // loop_pre_header
                _
              $region46: #{fused_bn_add_relu_conv_bn.1} parent=43 // loop_header
                %s229 = sphi 0, %s233
                %p230 = scmp.ge.s32.totalorder %s229, 1
                %s234 = sphi %s214, %s214
                %s235 = sphi %s204, %s204
              $region47: #{fused_bn_add_relu_conv_bn.1} parent=43 // loop_header_branch
                %232 = sbr.rel (%p230) target = $region51
              $region48: #{fused_bn_add_relu_conv_bn.1} parent=43 // loop_body
                %v236 = vld [vmem:[%s234] sm:%s227]
                %237 = vst [vmem:[%s235] sm:%s227] %v236
                %v238 = vld [vmem:[%s234 + $0x1c] sm:%s227]
                %239 = vst [vmem:[%s235 + $0x8] sm:%s227] %v238
                %v240 = vld [vmem:[%s234 + $0x38] sm:%s227]
                %241 = vst [vmem:[%s235 + $0x10] sm:%s227] %v240
                %v242 = vld [vmem:[%s234 + $0x54] sm:%s227]
                %243 = vst [vmem:[%s235 + $0x18] sm:%s227] %v242
                %v244 = vld [vmem:[%s234 + $0x70] sm:%s227]
                %245 = vst [vmem:[%s235 + $0x20] sm:%s227] %v244
                %v246 = vld [vmem:[%s234 + $0x8c] sm:%s227]
                %247 = vst [vmem:[%s235 + $0x28] sm:%s227] %v246
                %v248 = vld [vmem:[%s234 + $0xa8] sm:%s227]
                %249 = vst [vmem:[%s235 + $0x30] sm:%s227] %v248
                %v250 = vld [vmem:[%s234 + $0xc4] sm:%s227]
                %251 = vst [vmem:[%s235 + $0x38] sm:%s227] %v250
                %v252 = vld [vmem:[%s234 + $0xe0] sm:%s227]
                %253 = vst [vmem:[%s235 + $0x40] sm:%s227] %v252
                %v254 = vld [vmem:[%s234 + $0xfc] sm:%s227]
                %255 = vst [vmem:[%s235 + $0x48] sm:%s227] %v254
                %v256 = vld [vmem:[%s234 + $0x118] sm:%s227]
                %257 = vst [vmem:[%s235 + $0x50] sm:%s227] %v256
                %v258 = vld [vmem:[%s234 + $0x134] sm:%s227]
                %259 = vst [vmem:[%s235 + $0x58] sm:%s227] %v258
                %v260 = vld [vmem:[%s234 + $0x150] sm:%s227]
                %261 = vst [vmem:[%s235 + $0x60] sm:%s227] %v260
                %v262 = vld [vmem:[%s234 + $0x16c] sm:%s227]
                %263 = vst [vmem:[%s235 + $0x68] sm:%s227] %v262
                %v264 = vld [vmem:[%s234 + $0x188] sm:%s227]
                %265 = vst [vmem:[%s235 + $0x70] sm:%s227] %v264
                %v266 = vld [vmem:[%s234 + $0x1a4] sm:%s227]
                %267 = vst [vmem:[%s235 + $0x78] sm:%s227] %v266
                %v268 = vld [vmem:[%s234 + $0x1c0] sm:%s227]
                %269 = vst [vmem:[%s235 + $0x80] sm:%s227] %v268
                %v270 = vld [vmem:[%s234 + $0x1dc] sm:%s227]
                %271 = vst [vmem:[%s235 + $0x88] sm:%s227] %v270
                %v272 = vld [vmem:[%s234 + $0x1f8] sm:%s227]
                %273 = vst [vmem:[%s235 + $0x90] sm:%s227] %v272
                %v274 = vld [vmem:[%s234 + $0x214] sm:%s227]
                %275 = vst [vmem:[%s235 + $0x98] sm:%s227] %v274
                %v276 = vld [vmem:[%s234 + $0x230] sm:%s227]
                %277 = vst [vmem:[%s235 + $0xa0] sm:%s227] %v276
                %v278 = vld [vmem:[%s234 + $0x24c] sm:%s227]
                %279 = vst [vmem:[%s235 + $0xa8] sm:%s227] %v278
                %v280 = vld [vmem:[%s234 + $0x268] sm:%s227]
                %281 = vst [vmem:[%s235 + $0xb0] sm:%s227] %v280
                %v282 = vld [vmem:[%s234 + $0x284] sm:%s227]
                %283 = vst [vmem:[%s235 + $0xb8] sm:%s227] %v282
                %v284 = vld [vmem:[%s234 + $0x2a0] sm:%s227]
                %285 = vst [vmem:[%s235 + $0xc0] sm:%s227] %v284
                %v286 = vld [vmem:[%s234 + $0x2bc] sm:%s227]
                %287 = vst [vmem:[%s235 + $0xc8] sm:%s227] %v286
                %v288 = vld [vmem:[%s234 + $0x2d8] sm:%s227]
                %289 = vst [vmem:[%s235 + $0xd0] sm:%s227] %v288
                %v290 = vld [vmem:[%s234 + $0x2f4] sm:%s227]
                %291 = vst [vmem:[%s235 + $0xd8] sm:%s227] %v290
                %v292 = vld [vmem:[%s234 + $0x310] sm:%s227]
                %293 = vst [vmem:[%s235 + $0xe0] sm:%s227] %v292
                %v294 = vld [vmem:[%s234 + $0x32c] sm:%s227]
                %295 = vst [vmem:[%s235 + $0xe8] sm:%s227] %v294
                %v296 = vld [vmem:[%s234 + $0x348] sm:%s227]
                %297 = vst [vmem:[%s235 + $0xf0] sm:%s227] %v296
                %v298 = vld [vmem:[%s234 + $0x364] sm:%s227]
                %299 = vst [vmem:[%s235 + $0xf8] sm:%s227] %v298
                %v300 = vld [vmem:[%s234 + $0x380] sm:%s227]
                %301 = vst [vmem:[%s235 + $0x100] sm:%s227] %v300
                %v302 = vld [vmem:[%s234 + $0x39c] sm:%s227]
                %303 = vst [vmem:[%s235 + $0x108] sm:%s227] %v302
                %v304 = vld [vmem:[%s234 + $0x3b8] sm:%s227]
                %305 = vst [vmem:[%s235 + $0x110] sm:%s227] %v304
                %v306 = vld [vmem:[%s234 + $0x3d4] sm:%s227]
                %307 = vst [vmem:[%s235 + $0x118] sm:%s227] %v306
                %v308 = vld [vmem:[%s234 + $0x3f0] sm:%s227]
                %309 = vst [vmem:[%s235 + $0x120] sm:%s227] %v308
                %v310 = vld [vmem:[%s234 + $0x40c] sm:%s227]
                %311 = vst [vmem:[%s235 + $0x128] sm:%s227] %v310
                %v312 = vld [vmem:[%s234 + $0x428] sm:%s227]
                %313 = vst [vmem:[%s235 + $0x130] sm:%s227] %v312
                %v314 = vld [vmem:[%s234 + $0x444] sm:%s227]
                %315 = vst [vmem:[%s235 + $0x138] sm:%s227] %v314
                %v316 = vld [vmem:[%s234 + $0x460] sm:%s227]
                %317 = vst [vmem:[%s235 + $0x140] sm:%s227] %v316
                %v318 = vld [vmem:[%s234 + $0x47c] sm:%s227]
                %319 = vst [vmem:[%s235 + $0x148] sm:%s227] %v318
                %v320 = vld [vmem:[%s234 + $0x498] sm:%s227]
                %321 = vst [vmem:[%s235 + $0x150] sm:%s227] %v320
                %v322 = vld [vmem:[%s234 + $0x4b4] sm:%s227]
                %323 = vst [vmem:[%s235 + $0x158] sm:%s227] %v322
                %v324 = vld [vmem:[%s234 + $0x4d0] sm:%s227]
                %325 = vst [vmem:[%s235 + $0x160] sm:%s227] %v324
                %v326 = vld [vmem:[%s234 + $0x4ec] sm:%s227]
                %327 = vst [vmem:[%s235 + $0x168] sm:%s227] %v326
                %v328 = vld [vmem:[%s234 + $0x508] sm:%s227]
                %329 = vst [vmem:[%s235 + $0x170] sm:%s227] %v328
                %v330 = vld [vmem:[%s234 + $0x524] sm:%s227]
                %331 = vst [vmem:[%s235 + $0x178] sm:%s227] %v330
                %v332 = vld [vmem:[%s234 + $0x540] sm:%s227]
                %333 = vst [vmem:[%s235 + $0x180] sm:%s227] %v332
                %v334 = vld [vmem:[%s234 + $0x55c] sm:%s227]
                %335 = vst [vmem:[%s235 + $0x188] sm:%s227] %v334
                %v336 = vld [vmem:[%s234 + $0x578] sm:%s227]
                %337 = vst [vmem:[%s235 + $0x190] sm:%s227] %v336
                %v338 = vld [vmem:[%s234 + $0x594] sm:%s227]
                %339 = vst [vmem:[%s235 + $0x198] sm:%s227] %v338
                %v340 = vld [vmem:[%s234 + $0x5b0] sm:%s227]
                %341 = vst [vmem:[%s235 + $0x1a0] sm:%s227] %v340
                %v342 = vld [vmem:[%s234 + $0x5cc] sm:%s227]
                %343 = vst [vmem:[%s235 + $0x1a8] sm:%s227] %v342
                %v344 = vld [vmem:[%s234 + $0x5e8] sm:%s227]
                %345 = vst [vmem:[%s235 + $0x1b0] sm:%s227] %v344
                %v346 = vld [vmem:[%s234 + $0x604] sm:%s227]
                %347 = vst [vmem:[%s235 + $0x1b8] sm:%s227] %v346
                %v348 = vld [vmem:[%s234 + $0x620] sm:%s227]
                %349 = vst [vmem:[%s235 + $0x1c0] sm:%s227] %v348
                %v350 = vld [vmem:[%s234 + $0x63c] sm:%s227]
                %351 = vst [vmem:[%s235 + $0x1c8] sm:%s227] %v350
                %v352 = vld [vmem:[%s234 + $0x658] sm:%s227]
                %353 = vst [vmem:[%s235 + $0x1d0] sm:%s227] %v352
                %v354 = vld [vmem:[%s234 + $0x674] sm:%s227]
                %355 = vst [vmem:[%s235 + $0x1d8] sm:%s227] %v354
                %v356 = vld [vmem:[%s234 + $0x690] sm:%s227]
                %357 = vst [vmem:[%s235 + $0x1e0] sm:%s227] %v356
                %v358 = vld [vmem:[%s234 + $0x6ac] sm:%s227]
                %359 = vst [vmem:[%s235 + $0x1e8] sm:%s227] %v358
                %v360 = vld [vmem:[%s234 + $0x6c8] sm:%s227]
                %361 = vst [vmem:[%s235 + $0x1f0] sm:%s227] %v360
                %v362 = vld [vmem:[%s234 + $0x6e4] sm:%s227]
                %363 = vst [vmem:[%s235 + $0x1f8] sm:%s227] %v362
                %v364 = vld [vmem:[%s234 + $0x700] sm:%s227]
                %365 = vst [vmem:[%s235 + $0x200] sm:%s227] %v364
                %v366 = vld [vmem:[%s234 + $0x71c] sm:%s227]
                %367 = vst [vmem:[%s235 + $0x208] sm:%s227] %v366
                %v368 = vld [vmem:[%s234 + $0x738] sm:%s227]
                %369 = vst [vmem:[%s235 + $0x210] sm:%s227] %v368
                %v370 = vld [vmem:[%s234 + $0x754] sm:%s227]
                %371 = vst [vmem:[%s235 + $0x218] sm:%s227] %v370
                %v372 = vld [vmem:[%s234 + $0x770] sm:%s227]
                %373 = vst [vmem:[%s235 + $0x220] sm:%s227] %v372
                %v374 = vld [vmem:[%s234 + $0x78c] sm:%s227]
                %375 = vst [vmem:[%s235 + $0x228] sm:%s227] %v374
                %v376 = vld [vmem:[%s234 + $0x7a8] sm:%s227]
                %377 = vst [vmem:[%s235 + $0x230] sm:%s227] %v376
                %v378 = vld [vmem:[%s234 + $0x7c4] sm:%s227]
                %379 = vst [vmem:[%s235 + $0x238] sm:%s227] %v378
                %v380 = vld [vmem:[%s234 + $0x7e0] sm:%s227]
                %381 = vst [vmem:[%s235 + $0x240] sm:%s227] %v380
                %v382 = vld [vmem:[%s234 + $0x7fc] sm:%s227]
                %383 = vst [vmem:[%s235 + $0x248] sm:%s227] %v382
                %v384 = vld [vmem:[%s234 + $0x818] sm:%s227]
                %385 = vst [vmem:[%s235 + $0x250] sm:%s227] %v384
                %v386 = vld [vmem:[%s234 + $0x834] sm:%s227]
                %387 = vst [vmem:[%s235 + $0x258] sm:%s227] %v386
                %v388 = vld [vmem:[%s234 + $0x850] sm:%s227]
                %389 = vst [vmem:[%s235 + $0x260] sm:%s227] %v388
                %v390 = vld [vmem:[%s234 + $0x86c] sm:%s227]
                %391 = vst [vmem:[%s235 + $0x268] sm:%s227] %v390
                %v392 = vld [vmem:[%s234 + $0x888] sm:%s227]
                %393 = vst [vmem:[%s235 + $0x270] sm:%s227] %v392
                %v394 = vld [vmem:[%s234 + $0x8a4] sm:%s227]
                %395 = vst [vmem:[%s235 + $0x278] sm:%s227] %v394
                %v396 = vld [vmem:[%s234 + $0x8c0] sm:%s227]
                %397 = vst [vmem:[%s235 + $0x280] sm:%s227] %v396
                %v398 = vld [vmem:[%s234 + $0x8dc] sm:%s227]
                %399 = vst [vmem:[%s235 + $0x288] sm:%s227] %v398
                %v400 = vld [vmem:[%s234 + $0x8f8] sm:%s227]
                %401 = vst [vmem:[%s235 + $0x290] sm:%s227] %v400
                %v402 = vld [vmem:[%s234 + $0x914] sm:%s227]
                %403 = vst [vmem:[%s235 + $0x298] sm:%s227] %v402
                %v404 = vld [vmem:[%s234 + $0x930] sm:%s227]
                %405 = vst [vmem:[%s235 + $0x2a0] sm:%s227] %v404
                %v406 = vld [vmem:[%s234 + $0x94c] sm:%s227]
                %407 = vst [vmem:[%s235 + $0x2a8] sm:%s227] %v406
                %v408 = vld [vmem:[%s234 + $0x968] sm:%s227]
                %409 = vst [vmem:[%s235 + $0x2b0] sm:%s227] %v408
                %v410 = vld [vmem:[%s234 + $0x984] sm:%s227]
                %411 = vst [vmem:[%s235 + $0x2b8] sm:%s227] %v410
                %v412 = vld [vmem:[%s234 + $0x9a0] sm:%s227]
                %413 = vst [vmem:[%s235 + $0x2c0] sm:%s227] %v412
                %v414 = vld [vmem:[%s234 + $0x9bc] sm:%s227]
                %415 = vst [vmem:[%s235 + $0x2c8] sm:%s227] %v414
                %v416 = vld [vmem:[%s234 + $0x9d8] sm:%s227]
                %417 = vst [vmem:[%s235 + $0x2d0] sm:%s227] %v416
                %v418 = vld [vmem:[%s234 + $0x9f4] sm:%s227]
                %419 = vst [vmem:[%s235 + $0x2d8] sm:%s227] %v418
                %v420 = vld [vmem:[%s234 + $0xa10] sm:%s227]
                %421 = vst [vmem:[%s235 + $0x2e0] sm:%s227] %v420
                %v422 = vld [vmem:[%s234 + $0xa2c] sm:%s227]
                %423 = vst [vmem:[%s235 + $0x2e8] sm:%s227] %v422
                %v424 = vld [vmem:[%s234 + $0xa48] sm:%s227]
                %425 = vst [vmem:[%s235 + $0x2f0] sm:%s227] %v424
                %v426 = vld [vmem:[%s234 + $0xa64] sm:%s227]
                %427 = vst [vmem:[%s235 + $0x2f8] sm:%s227] %v426
                %v428 = vld [vmem:[%s234 + $0xa80] sm:%s227]
                %429 = vst [vmem:[%s235 + $0x300] sm:%s227] %v428
                %v430 = vld [vmem:[%s234 + $0xa9c] sm:%s227]
                %431 = vst [vmem:[%s235 + $0x308] sm:%s227] %v430
                %v432 = vld [vmem:[%s234 + $0xab8] sm:%s227]
                %433 = vst [vmem:[%s235 + $0x310] sm:%s227] %v432
                %v434 = vld [vmem:[%s234 + $0xad4] sm:%s227]
                %435 = vst [vmem:[%s235 + $0x318] sm:%s227] %v434
                %v436 = vld [vmem:[%s234 + $0xaf0] sm:%s227]
                %437 = vst [vmem:[%s235 + $0x320] sm:%s227] %v436
                %v438 = vld [vmem:[%s234 + $0xb0c] sm:%s227]
                %439 = vst [vmem:[%s235 + $0x328] sm:%s227] %v438
                %v440 = vld [vmem:[%s234 + $0xb28] sm:%s227]
                %441 = vst [vmem:[%s235 + $0x330] sm:%s227] %v440
                %v442 = vld [vmem:[%s234 + $0xb44] sm:%s227]
                %443 = vst [vmem:[%s235 + $0x338] sm:%s227] %v442
                %v444 = vld [vmem:[%s234 + $0xb60] sm:%s227]
                %445 = vst [vmem:[%s235 + $0x340] sm:%s227] %v444
                %v446 = vld [vmem:[%s234 + $0xb7c] sm:%s227]
                %447 = vst [vmem:[%s235 + $0x348] sm:%s227] %v446
                %v448 = vld [vmem:[%s234 + $0xb98] sm:%s227]
                %449 = vst [vmem:[%s235 + $0x350] sm:%s227] %v448
                %v450 = vld [vmem:[%s234 + $0xbb4] sm:%s227]
                %451 = vst [vmem:[%s235 + $0x358] sm:%s227] %v450
                %v452 = vld [vmem:[%s234 + $0xbd0] sm:%s227]
                %453 = vst [vmem:[%s235 + $0x360] sm:%s227] %v452
                %v454 = vld [vmem:[%s234 + $0xbec] sm:%s227]
                %455 = vst [vmem:[%s235 + $0x368] sm:%s227] %v454
                %v456 = vld [vmem:[%s234 + $0xc08] sm:%s227]
                %457 = vst [vmem:[%s235 + $0x370] sm:%s227] %v456
                %v458 = vld [vmem:[%s234 + $0xc24] sm:%s227]
                %459 = vst [vmem:[%s235 + $0x378] sm:%s227] %v458
                %v460 = vld [vmem:[%s234 + $0xc40] sm:%s227]
                %461 = vst [vmem:[%s235 + $0x380] sm:%s227] %v460
                %v462 = vld [vmem:[%s234 + $0xc5c] sm:%s227]
                %463 = vst [vmem:[%s235 + $0x388] sm:%s227] %v462
                %v464 = vld [vmem:[%s234 + $0xc78] sm:%s227]
                %465 = vst [vmem:[%s235 + $0x390] sm:%s227] %v464
                %v466 = vld [vmem:[%s234 + $0xc94] sm:%s227]
                %467 = vst [vmem:[%s235 + $0x398] sm:%s227] %v466
                %v468 = vld [vmem:[%s234 + $0xcb0] sm:%s227]
                %469 = vst [vmem:[%s235 + $0x3a0] sm:%s227] %v468
                %v470 = vld [vmem:[%s234 + $0xccc] sm:%s227]
                %471 = vst [vmem:[%s235 + $0x3a8] sm:%s227] %v470
                %v472 = vld [vmem:[%s234 + $0xce8] sm:%s227]
                %473 = vst [vmem:[%s235 + $0x3b0] sm:%s227] %v472
                %v474 = vld [vmem:[%s234 + $0xd04] sm:%s227]
                %475 = vst [vmem:[%s235 + $0x3b8] sm:%s227] %v474
                %v476 = vld [vmem:[%s234 + $0xd20] sm:%s227]
                %477 = vst [vmem:[%s235 + $0x3c0] sm:%s227] %v476
                %v478 = vld [vmem:[%s234 + $0xd3c] sm:%s227]
                %479 = vst [vmem:[%s235 + $0x3c8] sm:%s227] %v478
                %v480 = vld [vmem:[%s234 + $0xd58] sm:%s227]
                %481 = vst [vmem:[%s235 + $0x3d0] sm:%s227] %v480
                %v482 = vld [vmem:[%s234 + $0xd74] sm:%s227]
                %483 = vst [vmem:[%s235 + $0x3d8] sm:%s227] %v482
                %v484 = vld [vmem:[%s234 + $0xd90] sm:%s227]
                %485 = vst [vmem:[%s235 + $0x3e0] sm:%s227] %v484
                %v486 = vld [vmem:[%s234 + $0xdac] sm:%s227]
                %487 = vst [vmem:[%s235 + $0x3e8] sm:%s227] %v486
                %v488 = vld [vmem:[%s234 + $0xdc8] sm:%s227]
                %489 = vst [vmem:[%s235 + $0x3f0] sm:%s227] %v488
                %v490 = vld [vmem:[%s234 + $0xde4] sm:%s227]
                %491 = vst [vmem:[%s235 + $0x3f8] sm:%s227] %v490
              $region49: #{fused_bn_add_relu_conv_bn.1} parent=43 // loop_footer
                %s233 = sadd.s32 1, %s229
              $region50: #{fused_bn_add_relu_conv_bn.1} parent=43 // loop_footer_branch
                %228 = sbr.rel target = $region46
              $region51: #{fused_bn_add_relu_conv_bn.1} parent=43 // loop_exit
                _
            $region44: #{fused_bn_add_relu_conv_bn.1} parent=35 // pred_fallthru
              _
          $region36: #{fused_bn_add_relu_conv_bn.1} parent=31 // pred_fallthru
            _
          %1321 = vnop
        $region32: #{fused_bn_add_relu_conv_bn.1} parent=27 // pred_fallthru
          _
        // Predicated region
        $region81: #{fused_bn_add_relu_conv_bn.1} parent=27 // pred_check
          %p1322 = pneg %p73
        $region82: #{fused_bn_add_relu_conv_bn.1} parent=27 // pred_check_branch
          %1324 = sbr.rel (%p1322) target = $region84
        $region83: #{fused_bn_add_relu_conv_bn.1} parent=27 // pred_region
          %s1325 = sand.u32 %s63, 1
          %s1326 = sand.u32 %s63, 1
          %s1327 = smul.addr %s1326, 1024
          %s1328 = scalar_lea.vmem [#allocation3], %s1327
          %s1329 = smul.u32 2, %s19
          %s1330 = ssub.s32 7, %s1329
          %p1331 = scmp.lt.s32.totalorder %s1330, 2
          %s1332 = scalar_select %p1331, %s1330, 2
          %s1333 = smul.u32 8192, %s1332
          %p1334 = scmp.ne.s32.totalorder 0, %s1333
          %s1335 = smul.addr %s18, 896
          %s1336 = sadd.s32 %s1329, %s1335
          %s1337 = smul.addr %s1336, 4
          %s1338 = scalar_lea.vmem %s1, %s1337
          %s1339 = smul.u32 %s1332, 4
          // Predicated region
          $region85: #{fused_bn_add_relu_conv_bn.1} parent=83 // pred_check
            %p1340 = pneg %p1334
          $region86: #{fused_bn_add_relu_conv_bn.1} parent=83 // pred_check_branch
            %1342 = sbr.rel (%p1340) target = $region88
          $region87: #{fused_bn_add_relu_conv_bn.1} parent=83 // pred_region
            %p1343 = scmp.lt.u32.totalorder %s1339, 8
            %p1344 = pneg %p1343
            // Predicated region
            $region89: #{fused_bn_add_relu_conv_bn.1} parent=87 // pred_check
              _
            $region90: #{fused_bn_add_relu_conv_bn.1} parent=87 // pred_check_branch
              %1346 = sbr.rel (%p1343) target = $region92
            $region91: #{fused_bn_add_relu_conv_bn.1} parent=87 // pred_region
              %s1616 = sand.u32 %s1339, 7
              %p1617 = scmp.eq.s32.totalorder %s1616, 0
              // Predicated region
              $region104: #{fused_bn_add_relu_conv_bn.1} parent=91 // pred_check
                %p1618 = pneg %p1617
              $region105: #{fused_bn_add_relu_conv_bn.1} parent=91 // pred_check_branch
                %1620 = sbr.rel (%p1618) target = $region107
              $region106: #{fused_bn_add_relu_conv_bn.1} parent=91 // pred_region
                %s1621 = sshrl.u32 %s1339, 3
                // While loop
                $region108: #{fused_bn_add_relu_conv_bn.1} parent=106 // loop_pre_header
                  _
                $region109: #{fused_bn_add_relu_conv_bn.1} parent=106 // loop_header
                  %s1625 = sphi 0, %s1627
                  %p1626 = scmp.ge.s32.totalorder %s1625, %s1621
                  %s1630 = sphi 0, %s1891
                  %s1631 = sphi %s1338, %s1894
                  %s1632 = sphi %s1328, %s1895
                $region110: #{fused_bn_add_relu_conv_bn.1} parent=106 // loop_header_branch
                  %1629 = sbr.rel (%p1626) target = $region114
                $region111: #{fused_bn_add_relu_conv_bn.1} parent=106 // loop_body
                  %v1633 = vld [vmem:[%s1631] sm:$0xff]
                  %1634 = vst [vmem:[%s1632] sm:$0xff] %v1633
                  %v1635 = vld [vmem:[%s1631 + $0x1c] sm:$0xff]
                  %1636 = vst [vmem:[%s1632 + $0x8] sm:$0xff] %v1635
                  %v1637 = vld [vmem:[%s1631 + $0x38] sm:$0xff]
                  %1638 = vst [vmem:[%s1632 + $0x10] sm:$0xff] %v1637
                  %v1639 = vld [vmem:[%s1631 + $0x54] sm:$0xff]
                  %1640 = vst [vmem:[%s1632 + $0x18] sm:$0xff] %v1639
                  %v1641 = vld [vmem:[%s1631 + $0x70] sm:$0xff]
                  %1642 = vst [vmem:[%s1632 + $0x20] sm:$0xff] %v1641
                  %v1643 = vld [vmem:[%s1631 + $0x8c] sm:$0xff]
                  %1644 = vst [vmem:[%s1632 + $0x28] sm:$0xff] %v1643
                  %v1645 = vld [vmem:[%s1631 + $0xa8] sm:$0xff]
                  %1646 = vst [vmem:[%s1632 + $0x30] sm:$0xff] %v1645
                  %v1647 = vld [vmem:[%s1631 + $0xc4] sm:$0xff]
                  %1648 = vst [vmem:[%s1632 + $0x38] sm:$0xff] %v1647
                  %v1649 = vld [vmem:[%s1631 + $0xe0] sm:$0xff]
                  %1650 = vst [vmem:[%s1632 + $0x40] sm:$0xff] %v1649
                  %v1651 = vld [vmem:[%s1631 + $0xfc] sm:$0xff]
                  %1652 = vst [vmem:[%s1632 + $0x48] sm:$0xff] %v1651
                  %v1653 = vld [vmem:[%s1631 + $0x118] sm:$0xff]
                  %1654 = vst [vmem:[%s1632 + $0x50] sm:$0xff] %v1653
                  %v1655 = vld [vmem:[%s1631 + $0x134] sm:$0xff]
                  %1656 = vst [vmem:[%s1632 + $0x58] sm:$0xff] %v1655
                  %v1657 = vld [vmem:[%s1631 + $0x150] sm:$0xff]
                  %1658 = vst [vmem:[%s1632 + $0x60] sm:$0xff] %v1657
                  %v1659 = vld [vmem:[%s1631 + $0x16c] sm:$0xff]
                  %1660 = vst [vmem:[%s1632 + $0x68] sm:$0xff] %v1659
                  %v1661 = vld [vmem:[%s1631 + $0x188] sm:$0xff]
                  %1662 = vst [vmem:[%s1632 + $0x70] sm:$0xff] %v1661
                  %v1663 = vld [vmem:[%s1631 + $0x1a4] sm:$0xff]
                  %1664 = vst [vmem:[%s1632 + $0x78] sm:$0xff] %v1663
                  %v1665 = vld [vmem:[%s1631 + $0x1c0] sm:$0xff]
                  %1666 = vst [vmem:[%s1632 + $0x80] sm:$0xff] %v1665
                  %v1667 = vld [vmem:[%s1631 + $0x1dc] sm:$0xff]
                  %1668 = vst [vmem:[%s1632 + $0x88] sm:$0xff] %v1667
                  %v1669 = vld [vmem:[%s1631 + $0x1f8] sm:$0xff]
                  %1670 = vst [vmem:[%s1632 + $0x90] sm:$0xff] %v1669
                  %v1671 = vld [vmem:[%s1631 + $0x214] sm:$0xff]
                  %1672 = vst [vmem:[%s1632 + $0x98] sm:$0xff] %v1671
                  %v1673 = vld [vmem:[%s1631 + $0x230] sm:$0xff]
                  %1674 = vst [vmem:[%s1632 + $0xa0] sm:$0xff] %v1673
                  %v1675 = vld [vmem:[%s1631 + $0x24c] sm:$0xff]
                  %1676 = vst [vmem:[%s1632 + $0xa8] sm:$0xff] %v1675
                  %v1677 = vld [vmem:[%s1631 + $0x268] sm:$0xff]
                  %1678 = vst [vmem:[%s1632 + $0xb0] sm:$0xff] %v1677
                  %v1679 = vld [vmem:[%s1631 + $0x284] sm:$0xff]
                  %1680 = vst [vmem:[%s1632 + $0xb8] sm:$0xff] %v1679
                  %v1681 = vld [vmem:[%s1631 + $0x2a0] sm:$0xff]
                  %1682 = vst [vmem:[%s1632 + $0xc0] sm:$0xff] %v1681
                  %v1683 = vld [vmem:[%s1631 + $0x2bc] sm:$0xff]
                  %1684 = vst [vmem:[%s1632 + $0xc8] sm:$0xff] %v1683
                  %v1685 = vld [vmem:[%s1631 + $0x2d8] sm:$0xff]
                  %1686 = vst [vmem:[%s1632 + $0xd0] sm:$0xff] %v1685
                  %v1687 = vld [vmem:[%s1631 + $0x2f4] sm:$0xff]
                  %1688 = vst [vmem:[%s1632 + $0xd8] sm:$0xff] %v1687
                  %v1689 = vld [vmem:[%s1631 + $0x310] sm:$0xff]
                  %1690 = vst [vmem:[%s1632 + $0xe0] sm:$0xff] %v1689
                  %v1691 = vld [vmem:[%s1631 + $0x32c] sm:$0xff]
                  %1692 = vst [vmem:[%s1632 + $0xe8] sm:$0xff] %v1691
                  %v1693 = vld [vmem:[%s1631 + $0x348] sm:$0xff]
                  %1694 = vst [vmem:[%s1632 + $0xf0] sm:$0xff] %v1693
                  %v1695 = vld [vmem:[%s1631 + $0x364] sm:$0xff]
                  %1696 = vst [vmem:[%s1632 + $0xf8] sm:$0xff] %v1695
                  %v1697 = vld [vmem:[%s1631 + $0x380] sm:$0xff]
                  %1698 = vst [vmem:[%s1632 + $0x100] sm:$0xff] %v1697
                  %v1699 = vld [vmem:[%s1631 + $0x39c] sm:$0xff]
                  %1700 = vst [vmem:[%s1632 + $0x108] sm:$0xff] %v1699
                  %v1701 = vld [vmem:[%s1631 + $0x3b8] sm:$0xff]
                  %1702 = vst [vmem:[%s1632 + $0x110] sm:$0xff] %v1701
                  %v1703 = vld [vmem:[%s1631 + $0x3d4] sm:$0xff]
                  %1704 = vst [vmem:[%s1632 + $0x118] sm:$0xff] %v1703
                  %v1705 = vld [vmem:[%s1631 + $0x3f0] sm:$0xff]
                  %1706 = vst [vmem:[%s1632 + $0x120] sm:$0xff] %v1705
                  %v1707 = vld [vmem:[%s1631 + $0x40c] sm:$0xff]
                  %1708 = vst [vmem:[%s1632 + $0x128] sm:$0xff] %v1707
                  %v1709 = vld [vmem:[%s1631 + $0x428] sm:$0xff]
                  %1710 = vst [vmem:[%s1632 + $0x130] sm:$0xff] %v1709
                  %v1711 = vld [vmem:[%s1631 + $0x444] sm:$0xff]
                  %1712 = vst [vmem:[%s1632 + $0x138] sm:$0xff] %v1711
                  %v1713 = vld [vmem:[%s1631 + $0x460] sm:$0xff]
                  %1714 = vst [vmem:[%s1632 + $0x140] sm:$0xff] %v1713
                  %v1715 = vld [vmem:[%s1631 + $0x47c] sm:$0xff]
                  %1716 = vst [vmem:[%s1632 + $0x148] sm:$0xff] %v1715
                  %v1717 = vld [vmem:[%s1631 + $0x498] sm:$0xff]
                  %1718 = vst [vmem:[%s1632 + $0x150] sm:$0xff] %v1717
                  %v1719 = vld [vmem:[%s1631 + $0x4b4] sm:$0xff]
                  %1720 = vst [vmem:[%s1632 + $0x158] sm:$0xff] %v1719
                  %v1721 = vld [vmem:[%s1631 + $0x4d0] sm:$0xff]
                  %1722 = vst [vmem:[%s1632 + $0x160] sm:$0xff] %v1721
                  %v1723 = vld [vmem:[%s1631 + $0x4ec] sm:$0xff]
                  %1724 = vst [vmem:[%s1632 + $0x168] sm:$0xff] %v1723
                  %v1725 = vld [vmem:[%s1631 + $0x508] sm:$0xff]
                  %1726 = vst [vmem:[%s1632 + $0x170] sm:$0xff] %v1725
                  %v1727 = vld [vmem:[%s1631 + $0x524] sm:$0xff]
                  %1728 = vst [vmem:[%s1632 + $0x178] sm:$0xff] %v1727
                  %v1729 = vld [vmem:[%s1631 + $0x540] sm:$0xff]
                  %1730 = vst [vmem:[%s1632 + $0x180] sm:$0xff] %v1729
                  %v1731 = vld [vmem:[%s1631 + $0x55c] sm:$0xff]
                  %1732 = vst [vmem:[%s1632 + $0x188] sm:$0xff] %v1731
                  %v1733 = vld [vmem:[%s1631 + $0x578] sm:$0xff]
                  %1734 = vst [vmem:[%s1632 + $0x190] sm:$0xff] %v1733
                  %v1735 = vld [vmem:[%s1631 + $0x594] sm:$0xff]
                  %1736 = vst [vmem:[%s1632 + $0x198] sm:$0xff] %v1735
                  %v1737 = vld [vmem:[%s1631 + $0x5b0] sm:$0xff]
                  %1738 = vst [vmem:[%s1632 + $0x1a0] sm:$0xff] %v1737
                  %v1739 = vld [vmem:[%s1631 + $0x5cc] sm:$0xff]
                  %1740 = vst [vmem:[%s1632 + $0x1a8] sm:$0xff] %v1739
                  %v1741 = vld [vmem:[%s1631 + $0x5e8] sm:$0xff]
                  %1742 = vst [vmem:[%s1632 + $0x1b0] sm:$0xff] %v1741
                  %v1743 = vld [vmem:[%s1631 + $0x604] sm:$0xff]
                  %1744 = vst [vmem:[%s1632 + $0x1b8] sm:$0xff] %v1743
                  %v1745 = vld [vmem:[%s1631 + $0x620] sm:$0xff]
                  %1746 = vst [vmem:[%s1632 + $0x1c0] sm:$0xff] %v1745
                  %v1747 = vld [vmem:[%s1631 + $0x63c] sm:$0xff]
                  %1748 = vst [vmem:[%s1632 + $0x1c8] sm:$0xff] %v1747
                  %v1749 = vld [vmem:[%s1631 + $0x658] sm:$0xff]
                  %1750 = vst [vmem:[%s1632 + $0x1d0] sm:$0xff] %v1749
                  %v1751 = vld [vmem:[%s1631 + $0x674] sm:$0xff]
                  %1752 = vst [vmem:[%s1632 + $0x1d8] sm:$0xff] %v1751
                  %v1753 = vld [vmem:[%s1631 + $0x690] sm:$0xff]
                  %1754 = vst [vmem:[%s1632 + $0x1e0] sm:$0xff] %v1753
                  %v1755 = vld [vmem:[%s1631 + $0x6ac] sm:$0xff]
                  %1756 = vst [vmem:[%s1632 + $0x1e8] sm:$0xff] %v1755
                  %v1757 = vld [vmem:[%s1631 + $0x6c8] sm:$0xff]
                  %1758 = vst [vmem:[%s1632 + $0x1f0] sm:$0xff] %v1757
                  %v1759 = vld [vmem:[%s1631 + $0x6e4] sm:$0xff]
                  %1760 = vst [vmem:[%s1632 + $0x1f8] sm:$0xff] %v1759
                  %v1761 = vld [vmem:[%s1631 + $0x700] sm:$0xff]
                  %1762 = vst [vmem:[%s1632 + $0x200] sm:$0xff] %v1761
                  %v1763 = vld [vmem:[%s1631 + $0x71c] sm:$0xff]
                  %1764 = vst [vmem:[%s1632 + $0x208] sm:$0xff] %v1763
                  %v1765 = vld [vmem:[%s1631 + $0x738] sm:$0xff]
                  %1766 = vst [vmem:[%s1632 + $0x210] sm:$0xff] %v1765
                  %v1767 = vld [vmem:[%s1631 + $0x754] sm:$0xff]
                  %1768 = vst [vmem:[%s1632 + $0x218] sm:$0xff] %v1767
                  %v1769 = vld [vmem:[%s1631 + $0x770] sm:$0xff]
                  %1770 = vst [vmem:[%s1632 + $0x220] sm:$0xff] %v1769
                  %v1771 = vld [vmem:[%s1631 + $0x78c] sm:$0xff]
                  %1772 = vst [vmem:[%s1632 + $0x228] sm:$0xff] %v1771
                  %v1773 = vld [vmem:[%s1631 + $0x7a8] sm:$0xff]
                  %1774 = vst [vmem:[%s1632 + $0x230] sm:$0xff] %v1773
                  %v1775 = vld [vmem:[%s1631 + $0x7c4] sm:$0xff]
                  %1776 = vst [vmem:[%s1632 + $0x238] sm:$0xff] %v1775
                  %v1777 = vld [vmem:[%s1631 + $0x7e0] sm:$0xff]
                  %1778 = vst [vmem:[%s1632 + $0x240] sm:$0xff] %v1777
                  %v1779 = vld [vmem:[%s1631 + $0x7fc] sm:$0xff]
                  %1780 = vst [vmem:[%s1632 + $0x248] sm:$0xff] %v1779
                  %v1781 = vld [vmem:[%s1631 + $0x818] sm:$0xff]
                  %1782 = vst [vmem:[%s1632 + $0x250] sm:$0xff] %v1781
                  %v1783 = vld [vmem:[%s1631 + $0x834] sm:$0xff]
                  %1784 = vst [vmem:[%s1632 + $0x258] sm:$0xff] %v1783
                  %v1785 = vld [vmem:[%s1631 + $0x850] sm:$0xff]
                  %1786 = vst [vmem:[%s1632 + $0x260] sm:$0xff] %v1785
                  %v1787 = vld [vmem:[%s1631 + $0x86c] sm:$0xff]
                  %1788 = vst [vmem:[%s1632 + $0x268] sm:$0xff] %v1787
                  %v1789 = vld [vmem:[%s1631 + $0x888] sm:$0xff]
                  %1790 = vst [vmem:[%s1632 + $0x270] sm:$0xff] %v1789
                  %v1791 = vld [vmem:[%s1631 + $0x8a4] sm:$0xff]
                  %1792 = vst [vmem:[%s1632 + $0x278] sm:$0xff] %v1791
                  %v1793 = vld [vmem:[%s1631 + $0x8c0] sm:$0xff]
                  %1794 = vst [vmem:[%s1632 + $0x280] sm:$0xff] %v1793
                  %v1795 = vld [vmem:[%s1631 + $0x8dc] sm:$0xff]
                  %1796 = vst [vmem:[%s1632 + $0x288] sm:$0xff] %v1795
                  %v1797 = vld [vmem:[%s1631 + $0x8f8] sm:$0xff]
                  %1798 = vst [vmem:[%s1632 + $0x290] sm:$0xff] %v1797
                  %v1799 = vld [vmem:[%s1631 + $0x914] sm:$0xff]
                  %1800 = vst [vmem:[%s1632 + $0x298] sm:$0xff] %v1799
                  %v1801 = vld [vmem:[%s1631 + $0x930] sm:$0xff]
                  %1802 = vst [vmem:[%s1632 + $0x2a0] sm:$0xff] %v1801
                  %v1803 = vld [vmem:[%s1631 + $0x94c] sm:$0xff]
                  %1804 = vst [vmem:[%s1632 + $0x2a8] sm:$0xff] %v1803
                  %v1805 = vld [vmem:[%s1631 + $0x968] sm:$0xff]
                  %1806 = vst [vmem:[%s1632 + $0x2b0] sm:$0xff] %v1805
                  %v1807 = vld [vmem:[%s1631 + $0x984] sm:$0xff]
                  %1808 = vst [vmem:[%s1632 + $0x2b8] sm:$0xff] %v1807
                  %v1809 = vld [vmem:[%s1631 + $0x9a0] sm:$0xff]
                  %1810 = vst [vmem:[%s1632 + $0x2c0] sm:$0xff] %v1809
                  %v1811 = vld [vmem:[%s1631 + $0x9bc] sm:$0xff]
                  %1812 = vst [vmem:[%s1632 + $0x2c8] sm:$0xff] %v1811
                  %v1813 = vld [vmem:[%s1631 + $0x9d8] sm:$0xff]
                  %1814 = vst [vmem:[%s1632 + $0x2d0] sm:$0xff] %v1813
                  %v1815 = vld [vmem:[%s1631 + $0x9f4] sm:$0xff]
                  %1816 = vst [vmem:[%s1632 + $0x2d8] sm:$0xff] %v1815
                  %v1817 = vld [vmem:[%s1631 + $0xa10] sm:$0xff]
                  %1818 = vst [vmem:[%s1632 + $0x2e0] sm:$0xff] %v1817
                  %v1819 = vld [vmem:[%s1631 + $0xa2c] sm:$0xff]
                  %1820 = vst [vmem:[%s1632 + $0x2e8] sm:$0xff] %v1819
                  %v1821 = vld [vmem:[%s1631 + $0xa48] sm:$0xff]
                  %1822 = vst [vmem:[%s1632 + $0x2f0] sm:$0xff] %v1821
                  %v1823 = vld [vmem:[%s1631 + $0xa64] sm:$0xff]
                  %1824 = vst [vmem:[%s1632 + $0x2f8] sm:$0xff] %v1823
                  %v1825 = vld [vmem:[%s1631 + $0xa80] sm:$0xff]
                  %1826 = vst [vmem:[%s1632 + $0x300] sm:$0xff] %v1825
                  %v1827 = vld [vmem:[%s1631 + $0xa9c] sm:$0xff]
                  %1828 = vst [vmem:[%s1632 + $0x308] sm:$0xff] %v1827
                  %v1829 = vld [vmem:[%s1631 + $0xab8] sm:$0xff]
                  %1830 = vst [vmem:[%s1632 + $0x310] sm:$0xff] %v1829
                  %v1831 = vld [vmem:[%s1631 + $0xad4] sm:$0xff]
                  %1832 = vst [vmem:[%s1632 + $0x318] sm:$0xff] %v1831
                  %v1833 = vld [vmem:[%s1631 + $0xaf0] sm:$0xff]
                  %1834 = vst [vmem:[%s1632 + $0x320] sm:$0xff] %v1833
                  %v1835 = vld [vmem:[%s1631 + $0xb0c] sm:$0xff]
                  %1836 = vst [vmem:[%s1632 + $0x328] sm:$0xff] %v1835
                  %v1837 = vld [vmem:[%s1631 + $0xb28] sm:$0xff]
                  %1838 = vst [vmem:[%s1632 + $0x330] sm:$0xff] %v1837
                  %v1839 = vld [vmem:[%s1631 + $0xb44] sm:$0xff]
                  %1840 = vst [vmem:[%s1632 + $0x338] sm:$0xff] %v1839
                  %v1841 = vld [vmem:[%s1631 + $0xb60] sm:$0xff]
                  %1842 = vst [vmem:[%s1632 + $0x340] sm:$0xff] %v1841
                  %v1843 = vld [vmem:[%s1631 + $0xb7c] sm:$0xff]
                  %1844 = vst [vmem:[%s1632 + $0x348] sm:$0xff] %v1843
                  %v1845 = vld [vmem:[%s1631 + $0xb98] sm:$0xff]
                  %1846 = vst [vmem:[%s1632 + $0x350] sm:$0xff] %v1845
                  %v1847 = vld [vmem:[%s1631 + $0xbb4] sm:$0xff]
                  %1848 = vst [vmem:[%s1632 + $0x358] sm:$0xff] %v1847
                  %v1849 = vld [vmem:[%s1631 + $0xbd0] sm:$0xff]
                  %1850 = vst [vmem:[%s1632 + $0x360] sm:$0xff] %v1849
                  %v1851 = vld [vmem:[%s1631 + $0xbec] sm:$0xff]
                  %1852 = vst [vmem:[%s1632 + $0x368] sm:$0xff] %v1851
                  %v1853 = vld [vmem:[%s1631 + $0xc08] sm:$0xff]
                  %1854 = vst [vmem:[%s1632 + $0x370] sm:$0xff] %v1853
                  %v1855 = vld [vmem:[%s1631 + $0xc24] sm:$0xff]
                  %1856 = vst [vmem:[%s1632 + $0x378] sm:$0xff] %v1855
                  %v1857 = vld [vmem:[%s1631 + $0xc40] sm:$0xff]
                  %1858 = vst [vmem:[%s1632 + $0x380] sm:$0xff] %v1857
                  %v1859 = vld [vmem:[%s1631 + $0xc5c] sm:$0xff]
                  %1860 = vst [vmem:[%s1632 + $0x388] sm:$0xff] %v1859
                  %v1861 = vld [vmem:[%s1631 + $0xc78] sm:$0xff]
                  %1862 = vst [vmem:[%s1632 + $0x390] sm:$0xff] %v1861
                  %v1863 = vld [vmem:[%s1631 + $0xc94] sm:$0xff]
                  %1864 = vst [vmem:[%s1632 + $0x398] sm:$0xff] %v1863
                  %v1865 = vld [vmem:[%s1631 + $0xcb0] sm:$0xff]
                  %1866 = vst [vmem:[%s1632 + $0x3a0] sm:$0xff] %v1865
                  %v1867 = vld [vmem:[%s1631 + $0xccc] sm:$0xff]
                  %1868 = vst [vmem:[%s1632 + $0x3a8] sm:$0xff] %v1867
                  %v1869 = vld [vmem:[%s1631 + $0xce8] sm:$0xff]
                  %1870 = vst [vmem:[%s1632 + $0x3b0] sm:$0xff] %v1869
                  %v1871 = vld [vmem:[%s1631 + $0xd04] sm:$0xff]
                  %1872 = vst [vmem:[%s1632 + $0x3b8] sm:$0xff] %v1871
                  %v1873 = vld [vmem:[%s1631 + $0xd20] sm:$0xff]
                  %1874 = vst [vmem:[%s1632 + $0x3c0] sm:$0xff] %v1873
                  %v1875 = vld [vmem:[%s1631 + $0xd3c] sm:$0xff]
                  %1876 = vst [vmem:[%s1632 + $0x3c8] sm:$0xff] %v1875
                  %v1877 = vld [vmem:[%s1631 + $0xd58] sm:$0xff]
                  %1878 = vst [vmem:[%s1632 + $0x3d0] sm:$0xff] %v1877
                  %v1879 = vld [vmem:[%s1631 + $0xd74] sm:$0xff]
                  %1880 = vst [vmem:[%s1632 + $0x3d8] sm:$0xff] %v1879
                  %v1881 = vld [vmem:[%s1631 + $0xd90] sm:$0xff]
                  %1882 = vst [vmem:[%s1632 + $0x3e0] sm:$0xff] %v1881
                  %v1883 = vld [vmem:[%s1631 + $0xdac] sm:$0xff]
                  %1884 = vst [vmem:[%s1632 + $0x3e8] sm:$0xff] %v1883
                  %v1885 = vld [vmem:[%s1631 + $0xdc8] sm:$0xff]
                  %1886 = vst [vmem:[%s1632 + $0x3f0] sm:$0xff] %v1885
                  %v1887 = vld [vmem:[%s1631 + $0xde4] sm:$0xff]
                  %1888 = vst [vmem:[%s1632 + $0x3f8] sm:$0xff] %v1887
                  %s1889 = sadd.s32 1, %s1630
                  %p1890 = scmp.ge.s32.totalorder %s1889, %s1621
                  %s1891 = scalar_select %p1890, 0, %s1889
                  %s1892 = smul.u32 %s1891, 8
                  %s1893 = smul.u32 %s1891, 8
                  %s1894 = scalar_lea.vmem %s1338, %s1892
                  %s1895 = scalar_lea.vmem %s1328, %s1893 [#allocation3]
                $region112: #{fused_bn_add_relu_conv_bn.1} parent=106 // loop_footer
                  %s1627 = sadd.s32 %s1625, 1
                $region113: #{fused_bn_add_relu_conv_bn.1} parent=106 // loop_footer_branch
                  %1624 = sbr.rel target = $region109
                $region114: #{fused_bn_add_relu_conv_bn.1} parent=106 // loop_exit
                  _
              $region107: #{fused_bn_add_relu_conv_bn.1} parent=91 // pred_fallthru
                _
              %p1896 = pneg %p1617
              // Predicated region
              $region115: #{fused_bn_add_relu_conv_bn.1} parent=91 // pred_check
                _
              $region116: #{fused_bn_add_relu_conv_bn.1} parent=91 // pred_check_branch
                %1898 = sbr.rel (%p1617) target = $region118
              $region117: #{fused_bn_add_relu_conv_bn.1} parent=91 // pred_region
                %s1899 = sand.u32 %s1339, 7
                %s1900 = ssub.s32 %s1339, %s1899
                %s1901 = scalar_lea.vmem %s1338, %s1900
                %s1902 = ssub.s32 %s1339, %s1899
                %s1903 = scalar_lea.vmem %s1328, %s1902 [#allocation3]
                %s1904 = sshrl.u32 %s1339, 3
                // While loop
                $region119: #{fused_bn_add_relu_conv_bn.1} parent=117 // loop_pre_header
                  _
                $region120: #{fused_bn_add_relu_conv_bn.1} parent=117 // loop_header
                  %s1908 = sphi 0, %s1910
                  %p1909 = scmp.ge.s32.totalorder %s1908, %s1904
                  %s1913 = sphi 0, %s2174
                  %s1914 = sphi %s1338, %s2177
                  %s1915 = sphi %s1328, %s2178
                $region121: #{fused_bn_add_relu_conv_bn.1} parent=117 // loop_header_branch
                  %1912 = sbr.rel (%p1909) target = $region125
                $region122: #{fused_bn_add_relu_conv_bn.1} parent=117 // loop_body
                  %v1916 = vld [vmem:[%s1914] sm:$0xff]
                  %1917 = vst [vmem:[%s1915] sm:$0xff] %v1916
                  %v1918 = vld [vmem:[%s1914 + $0x1c] sm:$0xff]
                  %1919 = vst [vmem:[%s1915 + $0x8] sm:$0xff] %v1918
                  %v1920 = vld [vmem:[%s1914 + $0x38] sm:$0xff]
                  %1921 = vst [vmem:[%s1915 + $0x10] sm:$0xff] %v1920
                  %v1922 = vld [vmem:[%s1914 + $0x54] sm:$0xff]
                  %1923 = vst [vmem:[%s1915 + $0x18] sm:$0xff] %v1922
                  %v1924 = vld [vmem:[%s1914 + $0x70] sm:$0xff]
                  %1925 = vst [vmem:[%s1915 + $0x20] sm:$0xff] %v1924
                  %v1926 = vld [vmem:[%s1914 + $0x8c] sm:$0xff]
                  %1927 = vst [vmem:[%s1915 + $0x28] sm:$0xff] %v1926
                  %v1928 = vld [vmem:[%s1914 + $0xa8] sm:$0xff]
                  %1929 = vst [vmem:[%s1915 + $0x30] sm:$0xff] %v1928
                  %v1930 = vld [vmem:[%s1914 + $0xc4] sm:$0xff]
                  %1931 = vst [vmem:[%s1915 + $0x38] sm:$0xff] %v1930
                  %v1932 = vld [vmem:[%s1914 + $0xe0] sm:$0xff]
                  %1933 = vst [vmem:[%s1915 + $0x40] sm:$0xff] %v1932
                  %v1934 = vld [vmem:[%s1914 + $0xfc] sm:$0xff]
                  %1935 = vst [vmem:[%s1915 + $0x48] sm:$0xff] %v1934
                  %v1936 = vld [vmem:[%s1914 + $0x118] sm:$0xff]
                  %1937 = vst [vmem:[%s1915 + $0x50] sm:$0xff] %v1936
                  %v1938 = vld [vmem:[%s1914 + $0x134] sm:$0xff]
                  %1939 = vst [vmem:[%s1915 + $0x58] sm:$0xff] %v1938
                  %v1940 = vld [vmem:[%s1914 + $0x150] sm:$0xff]
                  %1941 = vst [vmem:[%s1915 + $0x60] sm:$0xff] %v1940
                  %v1942 = vld [vmem:[%s1914 + $0x16c] sm:$0xff]
                  %1943 = vst [vmem:[%s1915 + $0x68] sm:$0xff] %v1942
                  %v1944 = vld [vmem:[%s1914 + $0x188] sm:$0xff]
                  %1945 = vst [vmem:[%s1915 + $0x70] sm:$0xff] %v1944
                  %v1946 = vld [vmem:[%s1914 + $0x1a4] sm:$0xff]
                  %1947 = vst [vmem:[%s1915 + $0x78] sm:$0xff] %v1946
                  %v1948 = vld [vmem:[%s1914 + $0x1c0] sm:$0xff]
                  %1949 = vst [vmem:[%s1915 + $0x80] sm:$0xff] %v1948
                  %v1950 = vld [vmem:[%s1914 + $0x1dc] sm:$0xff]
                  %1951 = vst [vmem:[%s1915 + $0x88] sm:$0xff] %v1950
                  %v1952 = vld [vmem:[%s1914 + $0x1f8] sm:$0xff]
                  %1953 = vst [vmem:[%s1915 + $0x90] sm:$0xff] %v1952
                  %v1954 = vld [vmem:[%s1914 + $0x214] sm:$0xff]
                  %1955 = vst [vmem:[%s1915 + $0x98] sm:$0xff] %v1954
                  %v1956 = vld [vmem:[%s1914 + $0x230] sm:$0xff]
                  %1957 = vst [vmem:[%s1915 + $0xa0] sm:$0xff] %v1956
                  %v1958 = vld [vmem:[%s1914 + $0x24c] sm:$0xff]
                  %1959 = vst [vmem:[%s1915 + $0xa8] sm:$0xff] %v1958
                  %v1960 = vld [vmem:[%s1914 + $0x268] sm:$0xff]
                  %1961 = vst [vmem:[%s1915 + $0xb0] sm:$0xff] %v1960
                  %v1962 = vld [vmem:[%s1914 + $0x284] sm:$0xff]
                  %1963 = vst [vmem:[%s1915 + $0xb8] sm:$0xff] %v1962
                  %v1964 = vld [vmem:[%s1914 + $0x2a0] sm:$0xff]
                  %1965 = vst [vmem:[%s1915 + $0xc0] sm:$0xff] %v1964
                  %v1966 = vld [vmem:[%s1914 + $0x2bc] sm:$0xff]
                  %1967 = vst [vmem:[%s1915 + $0xc8] sm:$0xff] %v1966
                  %v1968 = vld [vmem:[%s1914 + $0x2d8] sm:$0xff]
                  %1969 = vst [vmem:[%s1915 + $0xd0] sm:$0xff] %v1968
                  %v1970 = vld [vmem:[%s1914 + $0x2f4] sm:$0xff]
                  %1971 = vst [vmem:[%s1915 + $0xd8] sm:$0xff] %v1970
                  %v1972 = vld [vmem:[%s1914 + $0x310] sm:$0xff]
                  %1973 = vst [vmem:[%s1915 + $0xe0] sm:$0xff] %v1972
                  %v1974 = vld [vmem:[%s1914 + $0x32c] sm:$0xff]
                  %1975 = vst [vmem:[%s1915 + $0xe8] sm:$0xff] %v1974
                  %v1976 = vld [vmem:[%s1914 + $0x348] sm:$0xff]
                  %1977 = vst [vmem:[%s1915 + $0xf0] sm:$0xff] %v1976
                  %v1978 = vld [vmem:[%s1914 + $0x364] sm:$0xff]
                  %1979 = vst [vmem:[%s1915 + $0xf8] sm:$0xff] %v1978
                  %v1980 = vld [vmem:[%s1914 + $0x380] sm:$0xff]
                  %1981 = vst [vmem:[%s1915 + $0x100] sm:$0xff] %v1980
                  %v1982 = vld [vmem:[%s1914 + $0x39c] sm:$0xff]
                  %1983 = vst [vmem:[%s1915 + $0x108] sm:$0xff] %v1982
                  %v1984 = vld [vmem:[%s1914 + $0x3b8] sm:$0xff]
                  %1985 = vst [vmem:[%s1915 + $0x110] sm:$0xff] %v1984
                  %v1986 = vld [vmem:[%s1914 + $0x3d4] sm:$0xff]
                  %1987 = vst [vmem:[%s1915 + $0x118] sm:$0xff] %v1986
                  %v1988 = vld [vmem:[%s1914 + $0x3f0] sm:$0xff]
                  %1989 = vst [vmem:[%s1915 + $0x120] sm:$0xff] %v1988
                  %v1990 = vld [vmem:[%s1914 + $0x40c] sm:$0xff]
                  %1991 = vst [vmem:[%s1915 + $0x128] sm:$0xff] %v1990
                  %v1992 = vld [vmem:[%s1914 + $0x428] sm:$0xff]
                  %1993 = vst [vmem:[%s1915 + $0x130] sm:$0xff] %v1992
                  %v1994 = vld [vmem:[%s1914 + $0x444] sm:$0xff]
                  %1995 = vst [vmem:[%s1915 + $0x138] sm:$0xff] %v1994
                  %v1996 = vld [vmem:[%s1914 + $0x460] sm:$0xff]
                  %1997 = vst [vmem:[%s1915 + $0x140] sm:$0xff] %v1996
                  %v1998 = vld [vmem:[%s1914 + $0x47c] sm:$0xff]
                  %1999 = vst [vmem:[%s1915 + $0x148] sm:$0xff] %v1998
                  %v2000 = vld [vmem:[%s1914 + $0x498] sm:$0xff]
                  %2001 = vst [vmem:[%s1915 + $0x150] sm:$0xff] %v2000
                  %v2002 = vld [vmem:[%s1914 + $0x4b4] sm:$0xff]
                  %2003 = vst [vmem:[%s1915 + $0x158] sm:$0xff] %v2002
                  %v2004 = vld [vmem:[%s1914 + $0x4d0] sm:$0xff]
                  %2005 = vst [vmem:[%s1915 + $0x160] sm:$0xff] %v2004
                  %v2006 = vld [vmem:[%s1914 + $0x4ec] sm:$0xff]
                  %2007 = vst [vmem:[%s1915 + $0x168] sm:$0xff] %v2006
                  %v2008 = vld [vmem:[%s1914 + $0x508] sm:$0xff]
                  %2009 = vst [vmem:[%s1915 + $0x170] sm:$0xff] %v2008
                  %v2010 = vld [vmem:[%s1914 + $0x524] sm:$0xff]
                  %2011 = vst [vmem:[%s1915 + $0x178] sm:$0xff] %v2010
                  %v2012 = vld [vmem:[%s1914 + $0x540] sm:$0xff]
                  %2013 = vst [vmem:[%s1915 + $0x180] sm:$0xff] %v2012
                  %v2014 = vld [vmem:[%s1914 + $0x55c] sm:$0xff]
                  %2015 = vst [vmem:[%s1915 + $0x188] sm:$0xff] %v2014
                  %v2016 = vld [vmem:[%s1914 + $0x578] sm:$0xff]
                  %2017 = vst [vmem:[%s1915 + $0x190] sm:$0xff] %v2016
                  %v2018 = vld [vmem:[%s1914 + $0x594] sm:$0xff]
                  %2019 = vst [vmem:[%s1915 + $0x198] sm:$0xff] %v2018
                  %v2020 = vld [vmem:[%s1914 + $0x5b0] sm:$0xff]
                  %2021 = vst [vmem:[%s1915 + $0x1a0] sm:$0xff] %v2020
                  %v2022 = vld [vmem:[%s1914 + $0x5cc] sm:$0xff]
                  %2023 = vst [vmem:[%s1915 + $0x1a8] sm:$0xff] %v2022
                  %v2024 = vld [vmem:[%s1914 + $0x5e8] sm:$0xff]
                  %2025 = vst [vmem:[%s1915 + $0x1b0] sm:$0xff] %v2024
                  %v2026 = vld [vmem:[%s1914 + $0x604] sm:$0xff]
                  %2027 = vst [vmem:[%s1915 + $0x1b8] sm:$0xff] %v2026
                  %v2028 = vld [vmem:[%s1914 + $0x620] sm:$0xff]
                  %2029 = vst [vmem:[%s1915 + $0x1c0] sm:$0xff] %v2028
                  %v2030 = vld [vmem:[%s1914 + $0x63c] sm:$0xff]
                  %2031 = vst [vmem:[%s1915 + $0x1c8] sm:$0xff] %v2030
                  %v2032 = vld [vmem:[%s1914 + $0x658] sm:$0xff]
                  %2033 = vst [vmem:[%s1915 + $0x1d0] sm:$0xff] %v2032
                  %v2034 = vld [vmem:[%s1914 + $0x674] sm:$0xff]
                  %2035 = vst [vmem:[%s1915 + $0x1d8] sm:$0xff] %v2034
                  %v2036 = vld [vmem:[%s1914 + $0x690] sm:$0xff]
                  %2037 = vst [vmem:[%s1915 + $0x1e0] sm:$0xff] %v2036
                  %v2038 = vld [vmem:[%s1914 + $0x6ac] sm:$0xff]
                  %2039 = vst [vmem:[%s1915 + $0x1e8] sm:$0xff] %v2038
                  %v2040 = vld [vmem:[%s1914 + $0x6c8] sm:$0xff]
                  %2041 = vst [vmem:[%s1915 + $0x1f0] sm:$0xff] %v2040
                  %v2042 = vld [vmem:[%s1914 + $0x6e4] sm:$0xff]
                  %2043 = vst [vmem:[%s1915 + $0x1f8] sm:$0xff] %v2042
                  %v2044 = vld [vmem:[%s1914 + $0x700] sm:$0xff]
                  %2045 = vst [vmem:[%s1915 + $0x200] sm:$0xff] %v2044
                  %v2046 = vld [vmem:[%s1914 + $0x71c] sm:$0xff]
                  %2047 = vst [vmem:[%s1915 + $0x208] sm:$0xff] %v2046
                  %v2048 = vld [vmem:[%s1914 + $0x738] sm:$0xff]
                  %2049 = vst [vmem:[%s1915 + $0x210] sm:$0xff] %v2048
                  %v2050 = vld [vmem:[%s1914 + $0x754] sm:$0xff]
                  %2051 = vst [vmem:[%s1915 + $0x218] sm:$0xff] %v2050
                  %v2052 = vld [vmem:[%s1914 + $0x770] sm:$0xff]
                  %2053 = vst [vmem:[%s1915 + $0x220] sm:$0xff] %v2052
                  %v2054 = vld [vmem:[%s1914 + $0x78c] sm:$0xff]
                  %2055 = vst [vmem:[%s1915 + $0x228] sm:$0xff] %v2054
                  %v2056 = vld [vmem:[%s1914 + $0x7a8] sm:$0xff]
                  %2057 = vst [vmem:[%s1915 + $0x230] sm:$0xff] %v2056
                  %v2058 = vld [vmem:[%s1914 + $0x7c4] sm:$0xff]
                  %2059 = vst [vmem:[%s1915 + $0x238] sm:$0xff] %v2058
                  %v2060 = vld [vmem:[%s1914 + $0x7e0] sm:$0xff]
                  %2061 = vst [vmem:[%s1915 + $0x240] sm:$0xff] %v2060
                  %v2062 = vld [vmem:[%s1914 + $0x7fc] sm:$0xff]
                  %2063 = vst [vmem:[%s1915 + $0x248] sm:$0xff] %v2062
                  %v2064 = vld [vmem:[%s1914 + $0x818] sm:$0xff]
                  %2065 = vst [vmem:[%s1915 + $0x250] sm:$0xff] %v2064
                  %v2066 = vld [vmem:[%s1914 + $0x834] sm:$0xff]
                  %2067 = vst [vmem:[%s1915 + $0x258] sm:$0xff] %v2066
                  %v2068 = vld [vmem:[%s1914 + $0x850] sm:$0xff]
                  %2069 = vst [vmem:[%s1915 + $0x260] sm:$0xff] %v2068
                  %v2070 = vld [vmem:[%s1914 + $0x86c] sm:$0xff]
                  %2071 = vst [vmem:[%s1915 + $0x268] sm:$0xff] %v2070
                  %v2072 = vld [vmem:[%s1914 + $0x888] sm:$0xff]
                  %2073 = vst [vmem:[%s1915 + $0x270] sm:$0xff] %v2072
                  %v2074 = vld [vmem:[%s1914 + $0x8a4] sm:$0xff]
                  %2075 = vst [vmem:[%s1915 + $0x278] sm:$0xff] %v2074
                  %v2076 = vld [vmem:[%s1914 + $0x8c0] sm:$0xff]
                  %2077 = vst [vmem:[%s1915 + $0x280] sm:$0xff] %v2076
                  %v2078 = vld [vmem:[%s1914 + $0x8dc] sm:$0xff]
                  %2079 = vst [vmem:[%s1915 + $0x288] sm:$0xff] %v2078
                  %v2080 = vld [vmem:[%s1914 + $0x8f8] sm:$0xff]
                  %2081 = vst [vmem:[%s1915 + $0x290] sm:$0xff] %v2080
                  %v2082 = vld [vmem:[%s1914 + $0x914] sm:$0xff]
                  %2083 = vst [vmem:[%s1915 + $0x298] sm:$0xff] %v2082
                  %v2084 = vld [vmem:[%s1914 + $0x930] sm:$0xff]
                  %2085 = vst [vmem:[%s1915 + $0x2a0] sm:$0xff] %v2084
                  %v2086 = vld [vmem:[%s1914 + $0x94c] sm:$0xff]
                  %2087 = vst [vmem:[%s1915 + $0x2a8] sm:$0xff] %v2086
                  %v2088 = vld [vmem:[%s1914 + $0x968] sm:$0xff]
                  %2089 = vst [vmem:[%s1915 + $0x2b0] sm:$0xff] %v2088
                  %v2090 = vld [vmem:[%s1914 + $0x984] sm:$0xff]
                  %2091 = vst [vmem:[%s1915 + $0x2b8] sm:$0xff] %v2090
                  %v2092 = vld [vmem:[%s1914 + $0x9a0] sm:$0xff]
                  %2093 = vst [vmem:[%s1915 + $0x2c0] sm:$0xff] %v2092
                  %v2094 = vld [vmem:[%s1914 + $0x9bc] sm:$0xff]
                  %2095 = vst [vmem:[%s1915 + $0x2c8] sm:$0xff] %v2094
                  %v2096 = vld [vmem:[%s1914 + $0x9d8] sm:$0xff]
                  %2097 = vst [vmem:[%s1915 + $0x2d0] sm:$0xff] %v2096
                  %v2098 = vld [vmem:[%s1914 + $0x9f4] sm:$0xff]
                  %2099 = vst [vmem:[%s1915 + $0x2d8] sm:$0xff] %v2098
                  %v2100 = vld [vmem:[%s1914 + $0xa10] sm:$0xff]
                  %2101 = vst [vmem:[%s1915 + $0x2e0] sm:$0xff] %v2100
                  %v2102 = vld [vmem:[%s1914 + $0xa2c] sm:$0xff]
                  %2103 = vst [vmem:[%s1915 + $0x2e8] sm:$0xff] %v2102
                  %v2104 = vld [vmem:[%s1914 + $0xa48] sm:$0xff]
                  %2105 = vst [vmem:[%s1915 + $0x2f0] sm:$0xff] %v2104
                  %v2106 = vld [vmem:[%s1914 + $0xa64] sm:$0xff]
                  %2107 = vst [vmem:[%s1915 + $0x2f8] sm:$0xff] %v2106
                  %v2108 = vld [vmem:[%s1914 + $0xa80] sm:$0xff]
                  %2109 = vst [vmem:[%s1915 + $0x300] sm:$0xff] %v2108
                  %v2110 = vld [vmem:[%s1914 + $0xa9c] sm:$0xff]
                  %2111 = vst [vmem:[%s1915 + $0x308] sm:$0xff] %v2110
                  %v2112 = vld [vmem:[%s1914 + $0xab8] sm:$0xff]
                  %2113 = vst [vmem:[%s1915 + $0x310] sm:$0xff] %v2112
                  %v2114 = vld [vmem:[%s1914 + $0xad4] sm:$0xff]
                  %2115 = vst [vmem:[%s1915 + $0x318] sm:$0xff] %v2114
                  %v2116 = vld [vmem:[%s1914 + $0xaf0] sm:$0xff]
                  %2117 = vst [vmem:[%s1915 + $0x320] sm:$0xff] %v2116
                  %v2118 = vld [vmem:[%s1914 + $0xb0c] sm:$0xff]
                  %2119 = vst [vmem:[%s1915 + $0x328] sm:$0xff] %v2118
                  %v2120 = vld [vmem:[%s1914 + $0xb28] sm:$0xff]
                  %2121 = vst [vmem:[%s1915 + $0x330] sm:$0xff] %v2120
                  %v2122 = vld [vmem:[%s1914 + $0xb44] sm:$0xff]
                  %2123 = vst [vmem:[%s1915 + $0x338] sm:$0xff] %v2122
                  %v2124 = vld [vmem:[%s1914 + $0xb60] sm:$0xff]
                  %2125 = vst [vmem:[%s1915 + $0x340] sm:$0xff] %v2124
                  %v2126 = vld [vmem:[%s1914 + $0xb7c] sm:$0xff]
                  %2127 = vst [vmem:[%s1915 + $0x348] sm:$0xff] %v2126
                  %v2128 = vld [vmem:[%s1914 + $0xb98] sm:$0xff]
                  %2129 = vst [vmem:[%s1915 + $0x350] sm:$0xff] %v2128
                  %v2130 = vld [vmem:[%s1914 + $0xbb4] sm:$0xff]
                  %2131 = vst [vmem:[%s1915 + $0x358] sm:$0xff] %v2130
                  %v2132 = vld [vmem:[%s1914 + $0xbd0] sm:$0xff]
                  %2133 = vst [vmem:[%s1915 + $0x360] sm:$0xff] %v2132
                  %v2134 = vld [vmem:[%s1914 + $0xbec] sm:$0xff]
                  %2135 = vst [vmem:[%s1915 + $0x368] sm:$0xff] %v2134
                  %v2136 = vld [vmem:[%s1914 + $0xc08] sm:$0xff]
                  %2137 = vst [vmem:[%s1915 + $0x370] sm:$0xff] %v2136
                  %v2138 = vld [vmem:[%s1914 + $0xc24] sm:$0xff]
                  %2139 = vst [vmem:[%s1915 + $0x378] sm:$0xff] %v2138
                  %v2140 = vld [vmem:[%s1914 + $0xc40] sm:$0xff]
                  %2141 = vst [vmem:[%s1915 + $0x380] sm:$0xff] %v2140
                  %v2142 = vld [vmem:[%s1914 + $0xc5c] sm:$0xff]
                  %2143 = vst [vmem:[%s1915 + $0x388] sm:$0xff] %v2142
                  %v2144 = vld [vmem:[%s1914 + $0xc78] sm:$0xff]
                  %2145 = vst [vmem:[%s1915 + $0x390] sm:$0xff] %v2144
                  %v2146 = vld [vmem:[%s1914 + $0xc94] sm:$0xff]
                  %2147 = vst [vmem:[%s1915 + $0x398] sm:$0xff] %v2146
                  %v2148 = vld [vmem:[%s1914 + $0xcb0] sm:$0xff]
                  %2149 = vst [vmem:[%s1915 + $0x3a0] sm:$0xff] %v2148
                  %v2150 = vld [vmem:[%s1914 + $0xccc] sm:$0xff]
                  %2151 = vst [vmem:[%s1915 + $0x3a8] sm:$0xff] %v2150
                  %v2152 = vld [vmem:[%s1914 + $0xce8] sm:$0xff]
                  %2153 = vst [vmem:[%s1915 + $0x3b0] sm:$0xff] %v2152
                  %v2154 = vld [vmem:[%s1914 + $0xd04] sm:$0xff]
                  %2155 = vst [vmem:[%s1915 + $0x3b8] sm:$0xff] %v2154
                  %v2156 = vld [vmem:[%s1914 + $0xd20] sm:$0xff]
                  %2157 = vst [vmem:[%s1915 + $0x3c0] sm:$0xff] %v2156
                  %v2158 = vld [vmem:[%s1914 + $0xd3c] sm:$0xff]
                  %2159 = vst [vmem:[%s1915 + $0x3c8] sm:$0xff] %v2158
                  %v2160 = vld [vmem:[%s1914 + $0xd58] sm:$0xff]
                  %2161 = vst [vmem:[%s1915 + $0x3d0] sm:$0xff] %v2160
                  %v2162 = vld [vmem:[%s1914 + $0xd74] sm:$0xff]
                  %2163 = vst [vmem:[%s1915 + $0x3d8] sm:$0xff] %v2162
                  %v2164 = vld [vmem:[%s1914 + $0xd90] sm:$0xff]
                  %2165 = vst [vmem:[%s1915 + $0x3e0] sm:$0xff] %v2164
                  %v2166 = vld [vmem:[%s1914 + $0xdac] sm:$0xff]
                  %2167 = vst [vmem:[%s1915 + $0x3e8] sm:$0xff] %v2166
                  %v2168 = vld [vmem:[%s1914 + $0xdc8] sm:$0xff]
                  %2169 = vst [vmem:[%s1915 + $0x3f0] sm:$0xff] %v2168
                  %v2170 = vld [vmem:[%s1914 + $0xde4] sm:$0xff]
                  %2171 = vst [vmem:[%s1915 + $0x3f8] sm:$0xff] %v2170
                  %s2172 = sadd.s32 1, %s1913
                  %p2173 = scmp.ge.s32.totalorder %s2172, %s1904
                  %s2174 = scalar_select %p2173, 0, %s2172
                  %s2175 = smul.u32 %s2174, 8
                  %s2176 = smul.u32 %s2174, 8
                  %s2177 = scalar_lea.vmem %s1338, %s2175
                  %s2178 = scalar_lea.vmem %s1328, %s2176 [#allocation3]
                $region123: #{fused_bn_add_relu_conv_bn.1} parent=117 // loop_footer
                  %s1910 = sadd.s32 %s1908, 1
                $region124: #{fused_bn_add_relu_conv_bn.1} parent=117 // loop_footer_branch
                  %1907 = sbr.rel target = $region120
                $region125: #{fused_bn_add_relu_conv_bn.1} parent=117 // loop_exit
                  _
                %s2179 = sshll.u32 1, %s1899
                %s2180 = ssub.s32 %s2179, 1
                loop: start=0, step=1, limit=1
                $region126: #{fused_bn_add_relu_conv_bn.1} parent=117 // loop_pre_header
                  _
                $region127: #{fused_bn_add_relu_conv_bn.1} parent=117 // loop_header
                  %s2182 = sphi 0, %s2186
                  %p2183 = scmp.ge.s32.totalorder %s2182, 1
                  %s2187 = sphi %s1901, %s1901
                  %s2188 = sphi %s1903, %s1903
                $region128: #{fused_bn_add_relu_conv_bn.1} parent=117 // loop_header_branch
                  %2185 = sbr.rel (%p2183) target = $region132
                $region129: #{fused_bn_add_relu_conv_bn.1} parent=117 // loop_body
                  %v2189 = vld [vmem:[%s2187] sm:%s2180]
                  %2190 = vst [vmem:[%s2188] sm:%s2180] %v2189
                  %v2191 = vld [vmem:[%s2187 + $0x1c] sm:%s2180]
                  %2192 = vst [vmem:[%s2188 + $0x8] sm:%s2180] %v2191
                  %v2193 = vld [vmem:[%s2187 + $0x38] sm:%s2180]
                  %2194 = vst [vmem:[%s2188 + $0x10] sm:%s2180] %v2193
                  %v2195 = vld [vmem:[%s2187 + $0x54] sm:%s2180]
                  %2196 = vst [vmem:[%s2188 + $0x18] sm:%s2180] %v2195
                  %v2197 = vld [vmem:[%s2187 + $0x70] sm:%s2180]
                  %2198 = vst [vmem:[%s2188 + $0x20] sm:%s2180] %v2197
                  %v2199 = vld [vmem:[%s2187 + $0x8c] sm:%s2180]
                  %2200 = vst [vmem:[%s2188 + $0x28] sm:%s2180] %v2199
                  %v2201 = vld [vmem:[%s2187 + $0xa8] sm:%s2180]
                  %2202 = vst [vmem:[%s2188 + $0x30] sm:%s2180] %v2201
                  %v2203 = vld [vmem:[%s2187 + $0xc4] sm:%s2180]
                  %2204 = vst [vmem:[%s2188 + $0x38] sm:%s2180] %v2203
                  %v2205 = vld [vmem:[%s2187 + $0xe0] sm:%s2180]
                  %2206 = vst [vmem:[%s2188 + $0x40] sm:%s2180] %v2205
                  %v2207 = vld [vmem:[%s2187 + $0xfc] sm:%s2180]
                  %2208 = vst [vmem:[%s2188 + $0x48] sm:%s2180] %v2207
                  %v2209 = vld [vmem:[%s2187 + $0x118] sm:%s2180]
                  %2210 = vst [vmem:[%s2188 + $0x50] sm:%s2180] %v2209
                  %v2211 = vld [vmem:[%s2187 + $0x134] sm:%s2180]
                  %2212 = vst [vmem:[%s2188 + $0x58] sm:%s2180] %v2211
                  %v2213 = vld [vmem:[%s2187 + $0x150] sm:%s2180]
                  %2214 = vst [vmem:[%s2188 + $0x60] sm:%s2180] %v2213
                  %v2215 = vld [vmem:[%s2187 + $0x16c] sm:%s2180]
                  %2216 = vst [vmem:[%s2188 + $0x68] sm:%s2180] %v2215
                  %v2217 = vld [vmem:[%s2187 + $0x188] sm:%s2180]
                  %2218 = vst [vmem:[%s2188 + $0x70] sm:%s2180] %v2217
                  %v2219 = vld [vmem:[%s2187 + $0x1a4] sm:%s2180]
                  %2220 = vst [vmem:[%s2188 + $0x78] sm:%s2180] %v2219
                  %v2221 = vld [vmem:[%s2187 + $0x1c0] sm:%s2180]
                  %2222 = vst [vmem:[%s2188 + $0x80] sm:%s2180] %v2221
                  %v2223 = vld [vmem:[%s2187 + $0x1dc] sm:%s2180]
                  %2224 = vst [vmem:[%s2188 + $0x88] sm:%s2180] %v2223
                  %v2225 = vld [vmem:[%s2187 + $0x1f8] sm:%s2180]
                  %2226 = vst [vmem:[%s2188 + $0x90] sm:%s2180] %v2225
                  %v2227 = vld [vmem:[%s2187 + $0x214] sm:%s2180]
                  %2228 = vst [vmem:[%s2188 + $0x98] sm:%s2180] %v2227
                  %v2229 = vld [vmem:[%s2187 + $0x230] sm:%s2180]
                  %2230 = vst [vmem:[%s2188 + $0xa0] sm:%s2180] %v2229
                  %v2231 = vld [vmem:[%s2187 + $0x24c] sm:%s2180]
                  %2232 = vst [vmem:[%s2188 + $0xa8] sm:%s2180] %v2231
                  %v2233 = vld [vmem:[%s2187 + $0x268] sm:%s2180]
                  %2234 = vst [vmem:[%s2188 + $0xb0] sm:%s2180] %v2233
                  %v2235 = vld [vmem:[%s2187 + $0x284] sm:%s2180]
                  %2236 = vst [vmem:[%s2188 + $0xb8] sm:%s2180] %v2235
                  %v2237 = vld [vmem:[%s2187 + $0x2a0] sm:%s2180]
                  %2238 = vst [vmem:[%s2188 + $0xc0] sm:%s2180] %v2237
                  %v2239 = vld [vmem:[%s2187 + $0x2bc] sm:%s2180]
                  %2240 = vst [vmem:[%s2188 + $0xc8] sm:%s2180] %v2239
                  %v2241 = vld [vmem:[%s2187 + $0x2d8] sm:%s2180]
                  %2242 = vst [vmem:[%s2188 + $0xd0] sm:%s2180] %v2241
                  %v2243 = vld [vmem:[%s2187 + $0x2f4] sm:%s2180]
                  %2244 = vst [vmem:[%s2188 + $0xd8] sm:%s2180] %v2243
                  %v2245 = vld [vmem:[%s2187 + $0x310] sm:%s2180]
                  %2246 = vst [vmem:[%s2188 + $0xe0] sm:%s2180] %v2245
                  %v2247 = vld [vmem:[%s2187 + $0x32c] sm:%s2180]
                  %2248 = vst [vmem:[%s2188 + $0xe8] sm:%s2180] %v2247
                  %v2249 = vld [vmem:[%s2187 + $0x348] sm:%s2180]
                  %2250 = vst [vmem:[%s2188 + $0xf0] sm:%s2180] %v2249
                  %v2251 = vld [vmem:[%s2187 + $0x364] sm:%s2180]
                  %2252 = vst [vmem:[%s2188 + $0xf8] sm:%s2180] %v2251
                  %v2253 = vld [vmem:[%s2187 + $0x380] sm:%s2180]
                  %2254 = vst [vmem:[%s2188 + $0x100] sm:%s2180] %v2253
                  %v2255 = vld [vmem:[%s2187 + $0x39c] sm:%s2180]
                  %2256 = vst [vmem:[%s2188 + $0x108] sm:%s2180] %v2255
                  %v2257 = vld [vmem:[%s2187 + $0x3b8] sm:%s2180]
                  %2258 = vst [vmem:[%s2188 + $0x110] sm:%s2180] %v2257
                  %v2259 = vld [vmem:[%s2187 + $0x3d4] sm:%s2180]
                  %2260 = vst [vmem:[%s2188 + $0x118] sm:%s2180] %v2259
                  %v2261 = vld [vmem:[%s2187 + $0x3f0] sm:%s2180]
                  %2262 = vst [vmem:[%s2188 + $0x120] sm:%s2180] %v2261
                  %v2263 = vld [vmem:[%s2187 + $0x40c] sm:%s2180]
                  %2264 = vst [vmem:[%s2188 + $0x128] sm:%s2180] %v2263
                  %v2265 = vld [vmem:[%s2187 + $0x428] sm:%s2180]
                  %2266 = vst [vmem:[%s2188 + $0x130] sm:%s2180] %v2265
                  %v2267 = vld [vmem:[%s2187 + $0x444] sm:%s2180]
                  %2268 = vst [vmem:[%s2188 + $0x138] sm:%s2180] %v2267
                  %v2269 = vld [vmem:[%s2187 + $0x460] sm:%s2180]
                  %2270 = vst [vmem:[%s2188 + $0x140] sm:%s2180] %v2269
                  %v2271 = vld [vmem:[%s2187 + $0x47c] sm:%s2180]
                  %2272 = vst [vmem:[%s2188 + $0x148] sm:%s2180] %v2271
                  %v2273 = vld [vmem:[%s2187 + $0x498] sm:%s2180]
                  %2274 = vst [vmem:[%s2188 + $0x150] sm:%s2180] %v2273
                  %v2275 = vld [vmem:[%s2187 + $0x4b4] sm:%s2180]
                  %2276 = vst [vmem:[%s2188 + $0x158] sm:%s2180] %v2275
                  %v2277 = vld [vmem:[%s2187 + $0x4d0] sm:%s2180]
                  %2278 = vst [vmem:[%s2188 + $0x160] sm:%s2180] %v2277
                  %v2279 = vld [vmem:[%s2187 + $0x4ec] sm:%s2180]
                  %2280 = vst [vmem:[%s2188 + $0x168] sm:%s2180] %v2279
                  %v2281 = vld [vmem:[%s2187 + $0x508] sm:%s2180]
                  %2282 = vst [vmem:[%s2188 + $0x170] sm:%s2180] %v2281
                  %v2283 = vld [vmem:[%s2187 + $0x524] sm:%s2180]
                  %2284 = vst [vmem:[%s2188 + $0x178] sm:%s2180] %v2283
                  %v2285 = vld [vmem:[%s2187 + $0x540] sm:%s2180]
                  %2286 = vst [vmem:[%s2188 + $0x180] sm:%s2180] %v2285
                  %v2287 = vld [vmem:[%s2187 + $0x55c] sm:%s2180]
                  %2288 = vst [vmem:[%s2188 + $0x188] sm:%s2180] %v2287
                  %v2289 = vld [vmem:[%s2187 + $0x578] sm:%s2180]
                  %2290 = vst [vmem:[%s2188 + $0x190] sm:%s2180] %v2289
                  %v2291 = vld [vmem:[%s2187 + $0x594] sm:%s2180]
                  %2292 = vst [vmem:[%s2188 + $0x198] sm:%s2180] %v2291
                  %v2293 = vld [vmem:[%s2187 + $0x5b0] sm:%s2180]
                  %2294 = vst [vmem:[%s2188 + $0x1a0] sm:%s2180] %v2293
                  %v2295 = vld [vmem:[%s2187 + $0x5cc] sm:%s2180]
                  %2296 = vst [vmem:[%s2188 + $0x1a8] sm:%s2180] %v2295
                  %v2297 = vld [vmem:[%s2187 + $0x5e8] sm:%s2180]
                  %2298 = vst [vmem:[%s2188 + $0x1b0] sm:%s2180] %v2297
                  %v2299 = vld [vmem:[%s2187 + $0x604] sm:%s2180]
                  %2300 = vst [vmem:[%s2188 + $0x1b8] sm:%s2180] %v2299
                  %v2301 = vld [vmem:[%s2187 + $0x620] sm:%s2180]
                  %2302 = vst [vmem:[%s2188 + $0x1c0] sm:%s2180] %v2301
                  %v2303 = vld [vmem:[%s2187 + $0x63c] sm:%s2180]
                  %2304 = vst [vmem:[%s2188 + $0x1c8] sm:%s2180] %v2303
                  %v2305 = vld [vmem:[%s2187 + $0x658] sm:%s2180]
                  %2306 = vst [vmem:[%s2188 + $0x1d0] sm:%s2180] %v2305
                  %v2307 = vld [vmem:[%s2187 + $0x674] sm:%s2180]
                  %2308 = vst [vmem:[%s2188 + $0x1d8] sm:%s2180] %v2307
                  %v2309 = vld [vmem:[%s2187 + $0x690] sm:%s2180]
                  %2310 = vst [vmem:[%s2188 + $0x1e0] sm:%s2180] %v2309
                  %v2311 = vld [vmem:[%s2187 + $0x6ac] sm:%s2180]
                  %2312 = vst [vmem:[%s2188 + $0x1e8] sm:%s2180] %v2311
                  %v2313 = vld [vmem:[%s2187 + $0x6c8] sm:%s2180]
                  %2314 = vst [vmem:[%s2188 + $0x1f0] sm:%s2180] %v2313
                  %v2315 = vld [vmem:[%s2187 + $0x6e4] sm:%s2180]
                  %2316 = vst [vmem:[%s2188 + $0x1f8] sm:%s2180] %v2315
                  %v2317 = vld [vmem:[%s2187 + $0x700] sm:%s2180]
                  %2318 = vst [vmem:[%s2188 + $0x200] sm:%s2180] %v2317
                  %v2319 = vld [vmem:[%s2187 + $0x71c] sm:%s2180]
                  %2320 = vst [vmem:[%s2188 + $0x208] sm:%s2180] %v2319
                  %v2321 = vld [vmem:[%s2187 + $0x738] sm:%s2180]
                  %2322 = vst [vmem:[%s2188 + $0x210] sm:%s2180] %v2321
                  %v2323 = vld [vmem:[%s2187 + $0x754] sm:%s2180]
                  %2324 = vst [vmem:[%s2188 + $0x218] sm:%s2180] %v2323
                  %v2325 = vld [vmem:[%s2187 + $0x770] sm:%s2180]
                  %2326 = vst [vmem:[%s2188 + $0x220] sm:%s2180] %v2325
                  %v2327 = vld [vmem:[%s2187 + $0x78c] sm:%s2180]
                  %2328 = vst [vmem:[%s2188 + $0x228] sm:%s2180] %v2327
                  %v2329 = vld [vmem:[%s2187 + $0x7a8] sm:%s2180]
                  %2330 = vst [vmem:[%s2188 + $0x230] sm:%s2180] %v2329
                  %v2331 = vld [vmem:[%s2187 + $0x7c4] sm:%s2180]
                  %2332 = vst [vmem:[%s2188 + $0x238] sm:%s2180] %v2331
                  %v2333 = vld [vmem:[%s2187 + $0x7e0] sm:%s2180]
                  %2334 = vst [vmem:[%s2188 + $0x240] sm:%s2180] %v2333
                  %v2335 = vld [vmem:[%s2187 + $0x7fc] sm:%s2180]
                  %2336 = vst [vmem:[%s2188 + $0x248] sm:%s2180] %v2335
                  %v2337 = vld [vmem:[%s2187 + $0x818] sm:%s2180]
                  %2338 = vst [vmem:[%s2188 + $0x250] sm:%s2180] %v2337
                  %v2339 = vld [vmem:[%s2187 + $0x834] sm:%s2180]
                  %2340 = vst [vmem:[%s2188 + $0x258] sm:%s2180] %v2339
                  %v2341 = vld [vmem:[%s2187 + $0x850] sm:%s2180]
                  %2342 = vst [vmem:[%s2188 + $0x260] sm:%s2180] %v2341
                  %v2343 = vld [vmem:[%s2187 + $0x86c] sm:%s2180]
                  %2344 = vst [vmem:[%s2188 + $0x268] sm:%s2180] %v2343
                  %v2345 = vld [vmem:[%s2187 + $0x888] sm:%s2180]
                  %2346 = vst [vmem:[%s2188 + $0x270] sm:%s2180] %v2345
                  %v2347 = vld [vmem:[%s2187 + $0x8a4] sm:%s2180]
                  %2348 = vst [vmem:[%s2188 + $0x278] sm:%s2180] %v2347
                  %v2349 = vld [vmem:[%s2187 + $0x8c0] sm:%s2180]
                  %2350 = vst [vmem:[%s2188 + $0x280] sm:%s2180] %v2349
                  %v2351 = vld [vmem:[%s2187 + $0x8dc] sm:%s2180]
                  %2352 = vst [vmem:[%s2188 + $0x288] sm:%s2180] %v2351
                  %v2353 = vld [vmem:[%s2187 + $0x8f8] sm:%s2180]
                  %2354 = vst [vmem:[%s2188 + $0x290] sm:%s2180] %v2353
                  %v2355 = vld [vmem:[%s2187 + $0x914] sm:%s2180]
                  %2356 = vst [vmem:[%s2188 + $0x298] sm:%s2180] %v2355
                  %v2357 = vld [vmem:[%s2187 + $0x930] sm:%s2180]
                  %2358 = vst [vmem:[%s2188 + $0x2a0] sm:%s2180] %v2357
                  %v2359 = vld [vmem:[%s2187 + $0x94c] sm:%s2180]
                  %2360 = vst [vmem:[%s2188 + $0x2a8] sm:%s2180] %v2359
                  %v2361 = vld [vmem:[%s2187 + $0x968] sm:%s2180]
                  %2362 = vst [vmem:[%s2188 + $0x2b0] sm:%s2180] %v2361
                  %v2363 = vld [vmem:[%s2187 + $0x984] sm:%s2180]
                  %2364 = vst [vmem:[%s2188 + $0x2b8] sm:%s2180] %v2363
                  %v2365 = vld [vmem:[%s2187 + $0x9a0] sm:%s2180]
                  %2366 = vst [vmem:[%s2188 + $0x2c0] sm:%s2180] %v2365
                  %v2367 = vld [vmem:[%s2187 + $0x9bc] sm:%s2180]
                  %2368 = vst [vmem:[%s2188 + $0x2c8] sm:%s2180] %v2367
                  %v2369 = vld [vmem:[%s2187 + $0x9d8] sm:%s2180]
                  %2370 = vst [vmem:[%s2188 + $0x2d0] sm:%s2180] %v2369
                  %v2371 = vld [vmem:[%s2187 + $0x9f4] sm:%s2180]
                  %2372 = vst [vmem:[%s2188 + $0x2d8] sm:%s2180] %v2371
                  %v2373 = vld [vmem:[%s2187 + $0xa10] sm:%s2180]
                  %2374 = vst [vmem:[%s2188 + $0x2e0] sm:%s2180] %v2373
                  %v2375 = vld [vmem:[%s2187 + $0xa2c] sm:%s2180]
                  %2376 = vst [vmem:[%s2188 + $0x2e8] sm:%s2180] %v2375
                  %v2377 = vld [vmem:[%s2187 + $0xa48] sm:%s2180]
                  %2378 = vst [vmem:[%s2188 + $0x2f0] sm:%s2180] %v2377
                  %v2379 = vld [vmem:[%s2187 + $0xa64] sm:%s2180]
                  %2380 = vst [vmem:[%s2188 + $0x2f8] sm:%s2180] %v2379
                  %v2381 = vld [vmem:[%s2187 + $0xa80] sm:%s2180]
                  %2382 = vst [vmem:[%s2188 + $0x300] sm:%s2180] %v2381
                  %v2383 = vld [vmem:[%s2187 + $0xa9c] sm:%s2180]
                  %2384 = vst [vmem:[%s2188 + $0x308] sm:%s2180] %v2383
                  %v2385 = vld [vmem:[%s2187 + $0xab8] sm:%s2180]
                  %2386 = vst [vmem:[%s2188 + $0x310] sm:%s2180] %v2385
                  %v2387 = vld [vmem:[%s2187 + $0xad4] sm:%s2180]
                  %2388 = vst [vmem:[%s2188 + $0x318] sm:%s2180] %v2387
                  %v2389 = vld [vmem:[%s2187 + $0xaf0] sm:%s2180]
                  %2390 = vst [vmem:[%s2188 + $0x320] sm:%s2180] %v2389
                  %v2391 = vld [vmem:[%s2187 + $0xb0c] sm:%s2180]
                  %2392 = vst [vmem:[%s2188 + $0x328] sm:%s2180] %v2391
                  %v2393 = vld [vmem:[%s2187 + $0xb28] sm:%s2180]
                  %2394 = vst [vmem:[%s2188 + $0x330] sm:%s2180] %v2393
                  %v2395 = vld [vmem:[%s2187 + $0xb44] sm:%s2180]
                  %2396 = vst [vmem:[%s2188 + $0x338] sm:%s2180] %v2395
                  %v2397 = vld [vmem:[%s2187 + $0xb60] sm:%s2180]
                  %2398 = vst [vmem:[%s2188 + $0x340] sm:%s2180] %v2397
                  %v2399 = vld [vmem:[%s2187 + $0xb7c] sm:%s2180]
                  %2400 = vst [vmem:[%s2188 + $0x348] sm:%s2180] %v2399
                  %v2401 = vld [vmem:[%s2187 + $0xb98] sm:%s2180]
                  %2402 = vst [vmem:[%s2188 + $0x350] sm:%s2180] %v2401
                  %v2403 = vld [vmem:[%s2187 + $0xbb4] sm:%s2180]
                  %2404 = vst [vmem:[%s2188 + $0x358] sm:%s2180] %v2403
                  %v2405 = vld [vmem:[%s2187 + $0xbd0] sm:%s2180]
                  %2406 = vst [vmem:[%s2188 + $0x360] sm:%s2180] %v2405
                  %v2407 = vld [vmem:[%s2187 + $0xbec] sm:%s2180]
                  %2408 = vst [vmem:[%s2188 + $0x368] sm:%s2180] %v2407
                  %v2409 = vld [vmem:[%s2187 + $0xc08] sm:%s2180]
                  %2410 = vst [vmem:[%s2188 + $0x370] sm:%s2180] %v2409
                  %v2411 = vld [vmem:[%s2187 + $0xc24] sm:%s2180]
                  %2412 = vst [vmem:[%s2188 + $0x378] sm:%s2180] %v2411
                  %v2413 = vld [vmem:[%s2187 + $0xc40] sm:%s2180]
                  %2414 = vst [vmem:[%s2188 + $0x380] sm:%s2180] %v2413
                  %v2415 = vld [vmem:[%s2187 + $0xc5c] sm:%s2180]
                  %2416 = vst [vmem:[%s2188 + $0x388] sm:%s2180] %v2415
                  %v2417 = vld [vmem:[%s2187 + $0xc78] sm:%s2180]
                  %2418 = vst [vmem:[%s2188 + $0x390] sm:%s2180] %v2417
                  %v2419 = vld [vmem:[%s2187 + $0xc94] sm:%s2180]
                  %2420 = vst [vmem:[%s2188 + $0x398] sm:%s2180] %v2419
                  %v2421 = vld [vmem:[%s2187 + $0xcb0] sm:%s2180]
                  %2422 = vst [vmem:[%s2188 + $0x3a0] sm:%s2180] %v2421
                  %v2423 = vld [vmem:[%s2187 + $0xccc] sm:%s2180]
                  %2424 = vst [vmem:[%s2188 + $0x3a8] sm:%s2180] %v2423
                  %v2425 = vld [vmem:[%s2187 + $0xce8] sm:%s2180]
                  %2426 = vst [vmem:[%s2188 + $0x3b0] sm:%s2180] %v2425
                  %v2427 = vld [vmem:[%s2187 + $0xd04] sm:%s2180]
                  %2428 = vst [vmem:[%s2188 + $0x3b8] sm:%s2180] %v2427
                  %v2429 = vld [vmem:[%s2187 + $0xd20] sm:%s2180]
                  %2430 = vst [vmem:[%s2188 + $0x3c0] sm:%s2180] %v2429
                  %v2431 = vld [vmem:[%s2187 + $0xd3c] sm:%s2180]
                  %2432 = vst [vmem:[%s2188 + $0x3c8] sm:%s2180] %v2431
                  %v2433 = vld [vmem:[%s2187 + $0xd58] sm:%s2180]
                  %2434 = vst [vmem:[%s2188 + $0x3d0] sm:%s2180] %v2433
                  %v2435 = vld [vmem:[%s2187 + $0xd74] sm:%s2180]
                  %2436 = vst [vmem:[%s2188 + $0x3d8] sm:%s2180] %v2435
                  %v2437 = vld [vmem:[%s2187 + $0xd90] sm:%s2180]
                  %2438 = vst [vmem:[%s2188 + $0x3e0] sm:%s2180] %v2437
                  %v2439 = vld [vmem:[%s2187 + $0xdac] sm:%s2180]
                  %2440 = vst [vmem:[%s2188 + $0x3e8] sm:%s2180] %v2439
                  %v2441 = vld [vmem:[%s2187 + $0xdc8] sm:%s2180]
                  %2442 = vst [vmem:[%s2188 + $0x3f0] sm:%s2180] %v2441
                  %v2443 = vld [vmem:[%s2187 + $0xde4] sm:%s2180]
                  %2444 = vst [vmem:[%s2188 + $0x3f8] sm:%s2180] %v2443
                $region130: #{fused_bn_add_relu_conv_bn.1} parent=117 // loop_footer
                  %s2186 = sadd.s32 1, %s2182
                $region131: #{fused_bn_add_relu_conv_bn.1} parent=117 // loop_footer_branch
                  %2181 = sbr.rel target = $region127
                $region132: #{fused_bn_add_relu_conv_bn.1} parent=117 // loop_exit
                  _
              $region118: #{fused_bn_add_relu_conv_bn.1} parent=91 // pred_fallthru
                _
            $region92: #{fused_bn_add_relu_conv_bn.1} parent=87 // pred_fallthru
              _
            // Predicated region
            $region93: #{fused_bn_add_relu_conv_bn.1} parent=87 // pred_check
              %p1347 = pneg %p1343
            $region94: #{fused_bn_add_relu_conv_bn.1} parent=87 // pred_check_branch
              %1349 = sbr.rel (%p1347) target = $region96
            $region95: #{fused_bn_add_relu_conv_bn.1} parent=87 // pred_region
              %s1350 = sshll.u32 1, %s1339
              %s1351 = ssub.s32 %s1350, 1
              loop: start=0, step=1, limit=1
              $region97: #{fused_bn_add_relu_conv_bn.1} parent=95 // loop_pre_header
                _
              $region98: #{fused_bn_add_relu_conv_bn.1} parent=95 // loop_header
                %s1353 = sphi 0, %s1357
                %p1354 = scmp.ge.s32.totalorder %s1353, 1
                %s1358 = sphi %s1338, %s1338
                %s1359 = sphi %s1328, %s1328
              $region99: #{fused_bn_add_relu_conv_bn.1} parent=95 // loop_header_branch
                %1356 = sbr.rel (%p1354) target = $region103
              $region100: #{fused_bn_add_relu_conv_bn.1} parent=95 // loop_body
                %v1360 = vld [vmem:[%s1358] sm:%s1351]
                %1361 = vst [vmem:[%s1359] sm:%s1351] %v1360
                %v1362 = vld [vmem:[%s1358 + $0x1c] sm:%s1351]
                %1363 = vst [vmem:[%s1359 + $0x8] sm:%s1351] %v1362
                %v1364 = vld [vmem:[%s1358 + $0x38] sm:%s1351]
                %1365 = vst [vmem:[%s1359 + $0x10] sm:%s1351] %v1364
                %v1366 = vld [vmem:[%s1358 + $0x54] sm:%s1351]
                %1367 = vst [vmem:[%s1359 + $0x18] sm:%s1351] %v1366
                %v1368 = vld [vmem:[%s1358 + $0x70] sm:%s1351]
                %1369 = vst [vmem:[%s1359 + $0x20] sm:%s1351] %v1368
                %v1370 = vld [vmem:[%s1358 + $0x8c] sm:%s1351]
                %1371 = vst [vmem:[%s1359 + $0x28] sm:%s1351] %v1370
                %v1372 = vld [vmem:[%s1358 + $0xa8] sm:%s1351]
                %1373 = vst [vmem:[%s1359 + $0x30] sm:%s1351] %v1372
                %v1374 = vld [vmem:[%s1358 + $0xc4] sm:%s1351]
                %1375 = vst [vmem:[%s1359 + $0x38] sm:%s1351] %v1374
                %v1376 = vld [vmem:[%s1358 + $0xe0] sm:%s1351]
                %1377 = vst [vmem:[%s1359 + $0x40] sm:%s1351] %v1376
                %v1378 = vld [vmem:[%s1358 + $0xfc] sm:%s1351]
                %1379 = vst [vmem:[%s1359 + $0x48] sm:%s1351] %v1378
                %v1380 = vld [vmem:[%s1358 + $0x118] sm:%s1351]
                %1381 = vst [vmem:[%s1359 + $0x50] sm:%s1351] %v1380
                %v1382 = vld [vmem:[%s1358 + $0x134] sm:%s1351]
                %1383 = vst [vmem:[%s1359 + $0x58] sm:%s1351] %v1382
                %v1384 = vld [vmem:[%s1358 + $0x150] sm:%s1351]
                %1385 = vst [vmem:[%s1359 + $0x60] sm:%s1351] %v1384
                %v1386 = vld [vmem:[%s1358 + $0x16c] sm:%s1351]
                %1387 = vst [vmem:[%s1359 + $0x68] sm:%s1351] %v1386
                %v1388 = vld [vmem:[%s1358 + $0x188] sm:%s1351]
                %1389 = vst [vmem:[%s1359 + $0x70] sm:%s1351] %v1388
                %v1390 = vld [vmem:[%s1358 + $0x1a4] sm:%s1351]
                %1391 = vst [vmem:[%s1359 + $0x78] sm:%s1351] %v1390
                %v1392 = vld [vmem:[%s1358 + $0x1c0] sm:%s1351]
                %1393 = vst [vmem:[%s1359 + $0x80] sm:%s1351] %v1392
                %v1394 = vld [vmem:[%s1358 + $0x1dc] sm:%s1351]
                %1395 = vst [vmem:[%s1359 + $0x88] sm:%s1351] %v1394
                %v1396 = vld [vmem:[%s1358 + $0x1f8] sm:%s1351]
                %1397 = vst [vmem:[%s1359 + $0x90] sm:%s1351] %v1396
                %v1398 = vld [vmem:[%s1358 + $0x214] sm:%s1351]
                %1399 = vst [vmem:[%s1359 + $0x98] sm:%s1351] %v1398
                %v1400 = vld [vmem:[%s1358 + $0x230] sm:%s1351]
                %1401 = vst [vmem:[%s1359 + $0xa0] sm:%s1351] %v1400
                %v1402 = vld [vmem:[%s1358 + $0x24c] sm:%s1351]
                %1403 = vst [vmem:[%s1359 + $0xa8] sm:%s1351] %v1402
                %v1404 = vld [vmem:[%s1358 + $0x268] sm:%s1351]
                %1405 = vst [vmem:[%s1359 + $0xb0] sm:%s1351] %v1404
                %v1406 = vld [vmem:[%s1358 + $0x284] sm:%s1351]
                %1407 = vst [vmem:[%s1359 + $0xb8] sm:%s1351] %v1406
                %v1408 = vld [vmem:[%s1358 + $0x2a0] sm:%s1351]
                %1409 = vst [vmem:[%s1359 + $0xc0] sm:%s1351] %v1408
                %v1410 = vld [vmem:[%s1358 + $0x2bc] sm:%s1351]
                %1411 = vst [vmem:[%s1359 + $0xc8] sm:%s1351] %v1410
                %v1412 = vld [vmem:[%s1358 + $0x2d8] sm:%s1351]
                %1413 = vst [vmem:[%s1359 + $0xd0] sm:%s1351] %v1412
                %v1414 = vld [vmem:[%s1358 + $0x2f4] sm:%s1351]
                %1415 = vst [vmem:[%s1359 + $0xd8] sm:%s1351] %v1414
                %v1416 = vld [vmem:[%s1358 + $0x310] sm:%s1351]
                %1417 = vst [vmem:[%s1359 + $0xe0] sm:%s1351] %v1416
                %v1418 = vld [vmem:[%s1358 + $0x32c] sm:%s1351]
                %1419 = vst [vmem:[%s1359 + $0xe8] sm:%s1351] %v1418
                %v1420 = vld [vmem:[%s1358 + $0x348] sm:%s1351]
                %1421 = vst [vmem:[%s1359 + $0xf0] sm:%s1351] %v1420
                %v1422 = vld [vmem:[%s1358 + $0x364] sm:%s1351]
                %1423 = vst [vmem:[%s1359 + $0xf8] sm:%s1351] %v1422
                %v1424 = vld [vmem:[%s1358 + $0x380] sm:%s1351]
                %1425 = vst [vmem:[%s1359 + $0x100] sm:%s1351] %v1424
                %v1426 = vld [vmem:[%s1358 + $0x39c] sm:%s1351]
                %1427 = vst [vmem:[%s1359 + $0x108] sm:%s1351] %v1426
                %v1428 = vld [vmem:[%s1358 + $0x3b8] sm:%s1351]
                %1429 = vst [vmem:[%s1359 + $0x110] sm:%s1351] %v1428
                %v1430 = vld [vmem:[%s1358 + $0x3d4] sm:%s1351]
                %1431 = vst [vmem:[%s1359 + $0x118] sm:%s1351] %v1430
                %v1432 = vld [vmem:[%s1358 + $0x3f0] sm:%s1351]
                %1433 = vst [vmem:[%s1359 + $0x120] sm:%s1351] %v1432
                %v1434 = vld [vmem:[%s1358 + $0x40c] sm:%s1351]
                %1435 = vst [vmem:[%s1359 + $0x128] sm:%s1351] %v1434
                %v1436 = vld [vmem:[%s1358 + $0x428] sm:%s1351]
                %1437 = vst [vmem:[%s1359 + $0x130] sm:%s1351] %v1436
                %v1438 = vld [vmem:[%s1358 + $0x444] sm:%s1351]
                %1439 = vst [vmem:[%s1359 + $0x138] sm:%s1351] %v1438
                %v1440 = vld [vmem:[%s1358 + $0x460] sm:%s1351]
                %1441 = vst [vmem:[%s1359 + $0x140] sm:%s1351] %v1440
                %v1442 = vld [vmem:[%s1358 + $0x47c] sm:%s1351]
                %1443 = vst [vmem:[%s1359 + $0x148] sm:%s1351] %v1442
                %v1444 = vld [vmem:[%s1358 + $0x498] sm:%s1351]
                %1445 = vst [vmem:[%s1359 + $0x150] sm:%s1351] %v1444
                %v1446 = vld [vmem:[%s1358 + $0x4b4] sm:%s1351]
                %1447 = vst [vmem:[%s1359 + $0x158] sm:%s1351] %v1446
                %v1448 = vld [vmem:[%s1358 + $0x4d0] sm:%s1351]
                %1449 = vst [vmem:[%s1359 + $0x160] sm:%s1351] %v1448
                %v1450 = vld [vmem:[%s1358 + $0x4ec] sm:%s1351]
                %1451 = vst [vmem:[%s1359 + $0x168] sm:%s1351] %v1450
                %v1452 = vld [vmem:[%s1358 + $0x508] sm:%s1351]
                %1453 = vst [vmem:[%s1359 + $0x170] sm:%s1351] %v1452
                %v1454 = vld [vmem:[%s1358 + $0x524] sm:%s1351]
                %1455 = vst [vmem:[%s1359 + $0x178] sm:%s1351] %v1454
                %v1456 = vld [vmem:[%s1358 + $0x540] sm:%s1351]
                %1457 = vst [vmem:[%s1359 + $0x180] sm:%s1351] %v1456
                %v1458 = vld [vmem:[%s1358 + $0x55c] sm:%s1351]
                %1459 = vst [vmem:[%s1359 + $0x188] sm:%s1351] %v1458
                %v1460 = vld [vmem:[%s1358 + $0x578] sm:%s1351]
                %1461 = vst [vmem:[%s1359 + $0x190] sm:%s1351] %v1460
                %v1462 = vld [vmem:[%s1358 + $0x594] sm:%s1351]
                %1463 = vst [vmem:[%s1359 + $0x198] sm:%s1351] %v1462
                %v1464 = vld [vmem:[%s1358 + $0x5b0] sm:%s1351]
                %1465 = vst [vmem:[%s1359 + $0x1a0] sm:%s1351] %v1464
                %v1466 = vld [vmem:[%s1358 + $0x5cc] sm:%s1351]
                %1467 = vst [vmem:[%s1359 + $0x1a8] sm:%s1351] %v1466
                %v1468 = vld [vmem:[%s1358 + $0x5e8] sm:%s1351]
                %1469 = vst [vmem:[%s1359 + $0x1b0] sm:%s1351] %v1468
                %v1470 = vld [vmem:[%s1358 + $0x604] sm:%s1351]
                %1471 = vst [vmem:[%s1359 + $0x1b8] sm:%s1351] %v1470
                %v1472 = vld [vmem:[%s1358 + $0x620] sm:%s1351]
                %1473 = vst [vmem:[%s1359 + $0x1c0] sm:%s1351] %v1472
                %v1474 = vld [vmem:[%s1358 + $0x63c] sm:%s1351]
                %1475 = vst [vmem:[%s1359 + $0x1c8] sm:%s1351] %v1474
                %v1476 = vld [vmem:[%s1358 + $0x658] sm:%s1351]
                %1477 = vst [vmem:[%s1359 + $0x1d0] sm:%s1351] %v1476
                %v1478 = vld [vmem:[%s1358 + $0x674] sm:%s1351]
                %1479 = vst [vmem:[%s1359 + $0x1d8] sm:%s1351] %v1478
                %v1480 = vld [vmem:[%s1358 + $0x690] sm:%s1351]
                %1481 = vst [vmem:[%s1359 + $0x1e0] sm:%s1351] %v1480
                %v1482 = vld [vmem:[%s1358 + $0x6ac] sm:%s1351]
                %1483 = vst [vmem:[%s1359 + $0x1e8] sm:%s1351] %v1482
                %v1484 = vld [vmem:[%s1358 + $0x6c8] sm:%s1351]
                %1485 = vst [vmem:[%s1359 + $0x1f0] sm:%s1351] %v1484
                %v1486 = vld [vmem:[%s1358 + $0x6e4] sm:%s1351]
                %1487 = vst [vmem:[%s1359 + $0x1f8] sm:%s1351] %v1486
                %v1488 = vld [vmem:[%s1358 + $0x700] sm:%s1351]
                %1489 = vst [vmem:[%s1359 + $0x200] sm:%s1351] %v1488
                %v1490 = vld [vmem:[%s1358 + $0x71c] sm:%s1351]
                %1491 = vst [vmem:[%s1359 + $0x208] sm:%s1351] %v1490
                %v1492 = vld [vmem:[%s1358 + $0x738] sm:%s1351]
                %1493 = vst [vmem:[%s1359 + $0x210] sm:%s1351] %v1492
                %v1494 = vld [vmem:[%s1358 + $0x754] sm:%s1351]
                %1495 = vst [vmem:[%s1359 + $0x218] sm:%s1351] %v1494
                %v1496 = vld [vmem:[%s1358 + $0x770] sm:%s1351]
                %1497 = vst [vmem:[%s1359 + $0x220] sm:%s1351] %v1496
                %v1498 = vld [vmem:[%s1358 + $0x78c] sm:%s1351]
                %1499 = vst [vmem:[%s1359 + $0x228] sm:%s1351] %v1498
                %v1500 = vld [vmem:[%s1358 + $0x7a8] sm:%s1351]
                %1501 = vst [vmem:[%s1359 + $0x230] sm:%s1351] %v1500
                %v1502 = vld [vmem:[%s1358 + $0x7c4] sm:%s1351]
                %1503 = vst [vmem:[%s1359 + $0x238] sm:%s1351] %v1502
                %v1504 = vld [vmem:[%s1358 + $0x7e0] sm:%s1351]
                %1505 = vst [vmem:[%s1359 + $0x240] sm:%s1351] %v1504
                %v1506 = vld [vmem:[%s1358 + $0x7fc] sm:%s1351]
                %1507 = vst [vmem:[%s1359 + $0x248] sm:%s1351] %v1506
                %v1508 = vld [vmem:[%s1358 + $0x818] sm:%s1351]
                %1509 = vst [vmem:[%s1359 + $0x250] sm:%s1351] %v1508
                %v1510 = vld [vmem:[%s1358 + $0x834] sm:%s1351]
                %1511 = vst [vmem:[%s1359 + $0x258] sm:%s1351] %v1510
                %v1512 = vld [vmem:[%s1358 + $0x850] sm:%s1351]
                %1513 = vst [vmem:[%s1359 + $0x260] sm:%s1351] %v1512
                %v1514 = vld [vmem:[%s1358 + $0x86c] sm:%s1351]
                %1515 = vst [vmem:[%s1359 + $0x268] sm:%s1351] %v1514
                %v1516 = vld [vmem:[%s1358 + $0x888] sm:%s1351]
                %1517 = vst [vmem:[%s1359 + $0x270] sm:%s1351] %v1516
                %v1518 = vld [vmem:[%s1358 + $0x8a4] sm:%s1351]
                %1519 = vst [vmem:[%s1359 + $0x278] sm:%s1351] %v1518
                %v1520 = vld [vmem:[%s1358 + $0x8c0] sm:%s1351]
                %1521 = vst [vmem:[%s1359 + $0x280] sm:%s1351] %v1520
                %v1522 = vld [vmem:[%s1358 + $0x8dc] sm:%s1351]
                %1523 = vst [vmem:[%s1359 + $0x288] sm:%s1351] %v1522
                %v1524 = vld [vmem:[%s1358 + $0x8f8] sm:%s1351]
                %1525 = vst [vmem:[%s1359 + $0x290] sm:%s1351] %v1524
                %v1526 = vld [vmem:[%s1358 + $0x914] sm:%s1351]
                %1527 = vst [vmem:[%s1359 + $0x298] sm:%s1351] %v1526
                %v1528 = vld [vmem:[%s1358 + $0x930] sm:%s1351]
                %1529 = vst [vmem:[%s1359 + $0x2a0] sm:%s1351] %v1528
                %v1530 = vld [vmem:[%s1358 + $0x94c] sm:%s1351]
                %1531 = vst [vmem:[%s1359 + $0x2a8] sm:%s1351] %v1530
                %v1532 = vld [vmem:[%s1358 + $0x968] sm:%s1351]
                %1533 = vst [vmem:[%s1359 + $0x2b0] sm:%s1351] %v1532
                %v1534 = vld [vmem:[%s1358 + $0x984] sm:%s1351]
                %1535 = vst [vmem:[%s1359 + $0x2b8] sm:%s1351] %v1534
                %v1536 = vld [vmem:[%s1358 + $0x9a0] sm:%s1351]
                %1537 = vst [vmem:[%s1359 + $0x2c0] sm:%s1351] %v1536
                %v1538 = vld [vmem:[%s1358 + $0x9bc] sm:%s1351]
                %1539 = vst [vmem:[%s1359 + $0x2c8] sm:%s1351] %v1538
                %v1540 = vld [vmem:[%s1358 + $0x9d8] sm:%s1351]
                %1541 = vst [vmem:[%s1359 + $0x2d0] sm:%s1351] %v1540
                %v1542 = vld [vmem:[%s1358 + $0x9f4] sm:%s1351]
                %1543 = vst [vmem:[%s1359 + $0x2d8] sm:%s1351] %v1542
                %v1544 = vld [vmem:[%s1358 + $0xa10] sm:%s1351]
                %1545 = vst [vmem:[%s1359 + $0x2e0] sm:%s1351] %v1544
                %v1546 = vld [vmem:[%s1358 + $0xa2c] sm:%s1351]
                %1547 = vst [vmem:[%s1359 + $0x2e8] sm:%s1351] %v1546
                %v1548 = vld [vmem:[%s1358 + $0xa48] sm:%s1351]
                %1549 = vst [vmem:[%s1359 + $0x2f0] sm:%s1351] %v1548
                %v1550 = vld [vmem:[%s1358 + $0xa64] sm:%s1351]
                %1551 = vst [vmem:[%s1359 + $0x2f8] sm:%s1351] %v1550
                %v1552 = vld [vmem:[%s1358 + $0xa80] sm:%s1351]
                %1553 = vst [vmem:[%s1359 + $0x300] sm:%s1351] %v1552
                %v1554 = vld [vmem:[%s1358 + $0xa9c] sm:%s1351]
                %1555 = vst [vmem:[%s1359 + $0x308] sm:%s1351] %v1554
                %v1556 = vld [vmem:[%s1358 + $0xab8] sm:%s1351]
                %1557 = vst [vmem:[%s1359 + $0x310] sm:%s1351] %v1556
                %v1558 = vld [vmem:[%s1358 + $0xad4] sm:%s1351]
                %1559 = vst [vmem:[%s1359 + $0x318] sm:%s1351] %v1558
                %v1560 = vld [vmem:[%s1358 + $0xaf0] sm:%s1351]
                %1561 = vst [vmem:[%s1359 + $0x320] sm:%s1351] %v1560
                %v1562 = vld [vmem:[%s1358 + $0xb0c] sm:%s1351]
                %1563 = vst [vmem:[%s1359 + $0x328] sm:%s1351] %v1562
                %v1564 = vld [vmem:[%s1358 + $0xb28] sm:%s1351]
                %1565 = vst [vmem:[%s1359 + $0x330] sm:%s1351] %v1564
                %v1566 = vld [vmem:[%s1358 + $0xb44] sm:%s1351]
                %1567 = vst [vmem:[%s1359 + $0x338] sm:%s1351] %v1566
                %v1568 = vld [vmem:[%s1358 + $0xb60] sm:%s1351]
                %1569 = vst [vmem:[%s1359 + $0x340] sm:%s1351] %v1568
                %v1570 = vld [vmem:[%s1358 + $0xb7c] sm:%s1351]
                %1571 = vst [vmem:[%s1359 + $0x348] sm:%s1351] %v1570
                %v1572 = vld [vmem:[%s1358 + $0xb98] sm:%s1351]
                %1573 = vst [vmem:[%s1359 + $0x350] sm:%s1351] %v1572
                %v1574 = vld [vmem:[%s1358 + $0xbb4] sm:%s1351]
                %1575 = vst [vmem:[%s1359 + $0x358] sm:%s1351] %v1574
                %v1576 = vld [vmem:[%s1358 + $0xbd0] sm:%s1351]
                %1577 = vst [vmem:[%s1359 + $0x360] sm:%s1351] %v1576
                %v1578 = vld [vmem:[%s1358 + $0xbec] sm:%s1351]
                %1579 = vst [vmem:[%s1359 + $0x368] sm:%s1351] %v1578
                %v1580 = vld [vmem:[%s1358 + $0xc08] sm:%s1351]
                %1581 = vst [vmem:[%s1359 + $0x370] sm:%s1351] %v1580
                %v1582 = vld [vmem:[%s1358 + $0xc24] sm:%s1351]
                %1583 = vst [vmem:[%s1359 + $0x378] sm:%s1351] %v1582
                %v1584 = vld [vmem:[%s1358 + $0xc40] sm:%s1351]
                %1585 = vst [vmem:[%s1359 + $0x380] sm:%s1351] %v1584
                %v1586 = vld [vmem:[%s1358 + $0xc5c] sm:%s1351]
                %1587 = vst [vmem:[%s1359 + $0x388] sm:%s1351] %v1586
                %v1588 = vld [vmem:[%s1358 + $0xc78] sm:%s1351]
                %1589 = vst [vmem:[%s1359 + $0x390] sm:%s1351] %v1588
                %v1590 = vld [vmem:[%s1358 + $0xc94] sm:%s1351]
                %1591 = vst [vmem:[%s1359 + $0x398] sm:%s1351] %v1590
                %v1592 = vld [vmem:[%s1358 + $0xcb0] sm:%s1351]
                %1593 = vst [vmem:[%s1359 + $0x3a0] sm:%s1351] %v1592
                %v1594 = vld [vmem:[%s1358 + $0xccc] sm:%s1351]
                %1595 = vst [vmem:[%s1359 + $0x3a8] sm:%s1351] %v1594
                %v1596 = vld [vmem:[%s1358 + $0xce8] sm:%s1351]
                %1597 = vst [vmem:[%s1359 + $0x3b0] sm:%s1351] %v1596
                %v1598 = vld [vmem:[%s1358 + $0xd04] sm:%s1351]
                %1599 = vst [vmem:[%s1359 + $0x3b8] sm:%s1351] %v1598
                %v1600 = vld [vmem:[%s1358 + $0xd20] sm:%s1351]
                %1601 = vst [vmem:[%s1359 + $0x3c0] sm:%s1351] %v1600
                %v1602 = vld [vmem:[%s1358 + $0xd3c] sm:%s1351]
                %1603 = vst [vmem:[%s1359 + $0x3c8] sm:%s1351] %v1602
                %v1604 = vld [vmem:[%s1358 + $0xd58] sm:%s1351]
                %1605 = vst [vmem:[%s1359 + $0x3d0] sm:%s1351] %v1604
                %v1606 = vld [vmem:[%s1358 + $0xd74] sm:%s1351]
                %1607 = vst [vmem:[%s1359 + $0x3d8] sm:%s1351] %v1606
                %v1608 = vld [vmem:[%s1358 + $0xd90] sm:%s1351]
                %1609 = vst [vmem:[%s1359 + $0x3e0] sm:%s1351] %v1608
                %v1610 = vld [vmem:[%s1358 + $0xdac] sm:%s1351]
                %1611 = vst [vmem:[%s1359 + $0x3e8] sm:%s1351] %v1610
                %v1612 = vld [vmem:[%s1358 + $0xdc8] sm:%s1351]
                %1613 = vst [vmem:[%s1359 + $0x3f0] sm:%s1351] %v1612
                %v1614 = vld [vmem:[%s1358 + $0xde4] sm:%s1351]
                %1615 = vst [vmem:[%s1359 + $0x3f8] sm:%s1351] %v1614
              $region101: #{fused_bn_add_relu_conv_bn.1} parent=95 // loop_footer
                %s1357 = sadd.s32 1, %s1353
              $region102: #{fused_bn_add_relu_conv_bn.1} parent=95 // loop_footer_branch
                %1352 = sbr.rel target = $region98
              $region103: #{fused_bn_add_relu_conv_bn.1} parent=95 // loop_exit
                _
            $region96: #{fused_bn_add_relu_conv_bn.1} parent=87 // pred_fallthru
              _
          $region88: #{fused_bn_add_relu_conv_bn.1} parent=83 // pred_fallthru
            _
          %2445 = vnop
        $region84: #{fused_bn_add_relu_conv_bn.1} parent=27 // pred_fallthru
          _
      $region28: #{fused_bn_add_relu_conv_bn.1} parent=5 // pred_fallthru
        _
      %p2446 = scmp.le.s32.totalorder 1, %s11
      %p2447 = scmp.lt.s32.totalorder %s11, 5
      %p2448 = pnand %p2446, %p2447
      %p2449 = pneg %p2448
      // Predicated region
      $region133: #{fused_bn_add_relu_conv_bn.1} parent=5 // pred_check
        _
      $region134: #{fused_bn_add_relu_conv_bn.1} parent=5 // pred_check_branch
        %2451 = sbr.rel (%p2448) target = $region136
      $region135: #{fused_bn_add_relu_conv_bn.1} parent=5 // pred_region
        %s2452 = ssub.s32 %s11, 1
        %s2453 = sand.u32 %s38, 1
        %s2454 = sand.u32 %s38, 1
        %s2455 = smul.addr %s2454, 1024
        %s2456 = scalar_lea.vmem [#allocation2], %s2455
        // Predicated region
        $region137: #{fused_bn_add_relu_conv_bn.1} parent=135 // pred_check
          %p2457 = pneg %p51
        $region138: #{fused_bn_add_relu_conv_bn.1} parent=135 // pred_check_branch
          %2459 = sbr.rel (%p2457) target = $region140
        $region139: #{fused_bn_add_relu_conv_bn.1} parent=135 // pred_region
          _
        $region140: #{fused_bn_add_relu_conv_bn.1} parent=135 // pred_fallthru
          _
        %s2460 = sand.u32 %s66, 1
        %s2461 = sand.u32 %s66, 1
        %s2462 = smul.addr %s2461, 1024
        %s2463 = scalar_lea.vmem [#allocation3], %s2462
        // Predicated region
        $region141: #{fused_bn_add_relu_conv_bn.1} parent=135 // pred_check
          %p2464 = pneg %p79
        $region142: #{fused_bn_add_relu_conv_bn.1} parent=135 // pred_check_branch
          %2466 = sbr.rel (%p2464) target = $region144
        $region143: #{fused_bn_add_relu_conv_bn.1} parent=135 // pred_region
          _
        $region144: #{fused_bn_add_relu_conv_bn.1} parent=135 // pred_fallthru
          _
        %s2467 = sand.u32 %s38, 1
        %s2468 = sand.u32 %s38, 1
        %s2469 = smul.addr %s2468, 1024
        %s2470 = scalar_lea.vmem [#allocation2], %s2469
        %p2471 = pneg %p51
        %p2472 = pneg %p48
        %s2473 = sand.u32 %s66, 1
        %s2474 = sand.u32 %s66, 1
        %s2475 = smul.addr %s2474, 1024
        %s2476 = scalar_lea.vmem [#allocation3], %s2475
        %p2477 = pneg %p79
        %p2478 = pneg %p76
        %p2479 = pneg %p100
        %p2480 = pneg %p97
        %p2481 = pneg %p121
        %p2482 = pneg %p118
        %p2483 = pneg %p142
        %p2484 = pneg %p139
        %p2485 = pneg %p170
        %p2486 = pneg %p167
        %s2487 = sand.u32 %s157, 1
        %s2488 = sand.u32 %s157, 1
        %s2489 = smul.addr %s2488, 512
        %s2490 = scalar_lea.vmem [#allocation4], %s2489
        %s2491 = smul.u32 2, %s21
        %s2492 = ssub.s32 7, %s2491
        %p2493 = scmp.lt.s32.totalorder %s2492, 2
        %s2494 = scalar_select %p2493, %s2492, 2
        %s2495 = smul.u32 8192, %s2494
        %s2496 = smul.u32 2, %s21
        %s2497 = ssub.s32 7, %s2496
        %p2498 = scmp.lt.s32.totalorder %s2497, 2
        %s2499 = scalar_select %p2498, %s2497, 2
        %s2500 = smul.u32 8192, %s2499
        %s2501 = smul.u32 2, %s21
        %s2502 = ssub.s32 7, %s2501
        %p2503 = scmp.lt.s32.totalorder %s2502, 2
        %s2504 = scalar_select %p2503, %s2502, 2
        %s2505 = smul.u32 4096, %s2504
        %v2506 = vld [vmem:[%s2456] sm:$0xff]
        %v2507 = vld [vmem:[%s2456 + $0x8] sm:$0xff]
        %v2508 = vld [vmem:[%s2456 + $0x10] sm:$0xff]
        %v2509 = vld [vmem:[%s2456 + $0x18] sm:$0xff]
        %v2510 = vld [vmem:[%s2456 + $0x20] sm:$0xff]
        %v2511 = vld [vmem:[%s2456 + $0x28] sm:$0xff]
        %v2512 = vld [vmem:[%s2456 + $0x30] sm:$0xff]
        %v2513 = vld [vmem:[%s2456 + $0x38] sm:$0xff]
        %v2514 = vld [vmem:[%s2456 + $0x40] sm:$0xff]
        %v2515 = vld [vmem:[%s2456 + $0x48] sm:$0xff]
        %v2516 = vld [vmem:[%s2456 + $0x50] sm:$0xff]
        %v2517 = vld [vmem:[%s2456 + $0x58] sm:$0xff]
        %v2518 = vld [vmem:[%s2456 + $0x60] sm:$0xff]
        %v2519 = vld [vmem:[%s2456 + $0x68] sm:$0xff]
        %v2520 = vld [vmem:[%s2456 + $0x70] sm:$0xff]
        %v2521 = vld [vmem:[%s2456 + $0x78] sm:$0xff]
        %v2522 = vld [vmem:[%s2456 + $0x80] sm:$0xff]
        %v2523 = vld [vmem:[%s2456 + $0x88] sm:$0xff]
        %v2524 = vld [vmem:[%s2456 + $0x90] sm:$0xff]
        %v2525 = vld [vmem:[%s2456 + $0x98] sm:$0xff]
        %v2526 = vld [vmem:[%s2456 + $0xa0] sm:$0xff]
        %v2527 = vld [vmem:[%s2456 + $0xa8] sm:$0xff]
        %v2528 = vld [vmem:[%s2456 + $0xb0] sm:$0xff]
        %v2529 = vld [vmem:[%s2456 + $0xb8] sm:$0xff]
        %v2530 = vld [vmem:[%s2456 + $0xc0] sm:$0xff]
        %v2531 = vld [vmem:[%s2456 + $0xc8] sm:$0xff]
        %v2532 = vld [vmem:[%s2456 + $0xd0] sm:$0xff]
        %v2533 = vld [vmem:[%s2456 + $0xd8] sm:$0xff]
        %v2534 = vld [vmem:[%s2456 + $0xe0] sm:$0xff]
        %v2535 = vld [vmem:[%s2456 + $0xe8] sm:$0xff]
        %v2536 = vld [vmem:[%s2456 + $0xf0] sm:$0xff]
        %v2537 = vld [vmem:[%s2456 + $0xf8] sm:$0xff]
        %v2538 = vld [vmem:[%s2456 + $0x100] sm:$0xff]
        %v2539 = vld [vmem:[%s2456 + $0x108] sm:$0xff]
        %v2540 = vld [vmem:[%s2456 + $0x110] sm:$0xff]
        %v2541 = vld [vmem:[%s2456 + $0x118] sm:$0xff]
        %v2542 = vld [vmem:[%s2456 + $0x120] sm:$0xff]
        %v2543 = vld [vmem:[%s2456 + $0x128] sm:$0xff]
        %v2544 = vld [vmem:[%s2456 + $0x130] sm:$0xff]
        %v2545 = vld [vmem:[%s2456 + $0x138] sm:$0xff]
        %v2546 = vld [vmem:[%s2456 + $0x140] sm:$0xff]
        %v2547 = vld [vmem:[%s2456 + $0x148] sm:$0xff]
        %v2548 = vld [vmem:[%s2456 + $0x150] sm:$0xff]
        %v2549 = vld [vmem:[%s2456 + $0x158] sm:$0xff]
        %v2550 = vld [vmem:[%s2456 + $0x160] sm:$0xff]
        %v2551 = vld [vmem:[%s2456 + $0x168] sm:$0xff]
        %v2552 = vld [vmem:[%s2456 + $0x170] sm:$0xff]
        %v2553 = vld [vmem:[%s2456 + $0x178] sm:$0xff]
        %v2554 = vld [vmem:[%s2456 + $0x180] sm:$0xff]
        %v2555 = vld [vmem:[%s2456 + $0x188] sm:$0xff]
        %v2556 = vld [vmem:[%s2456 + $0x190] sm:$0xff]
        %v2557 = vld [vmem:[%s2456 + $0x198] sm:$0xff]
        %v2558 = vld [vmem:[%s2456 + $0x1a0] sm:$0xff]
        %v2559 = vld [vmem:[%s2456 + $0x1a8] sm:$0xff]
        %v2560 = vld [vmem:[%s2456 + $0x1b0] sm:$0xff]
        %v2561 = vld [vmem:[%s2456 + $0x1b8] sm:$0xff]
        %v2562 = vld [vmem:[%s2456 + $0x1c0] sm:$0xff]
        %v2563 = vld [vmem:[%s2456 + $0x1c8] sm:$0xff]
        %v2564 = vld [vmem:[%s2456 + $0x1d0] sm:$0xff]
        %v2565 = vld [vmem:[%s2456 + $0x1d8] sm:$0xff]
        %v2566 = vld [vmem:[%s2456 + $0x1e0] sm:$0xff]
        %v2567 = vld [vmem:[%s2456 + $0x1e8] sm:$0xff]
        %v2568 = vld [vmem:[%s2456 + $0x1f0] sm:$0xff]
        %v2569 = vld [vmem:[%s2456 + $0x1f8] sm:$0xff]
        %v2570 = vld [vmem:[%s2456 + $0x200] sm:$0xff]
        %v2571 = vld [vmem:[%s2456 + $0x208] sm:$0xff]
        %v2572 = vld [vmem:[%s2456 + $0x210] sm:$0xff]
        %v2573 = vld [vmem:[%s2456 + $0x218] sm:$0xff]
        %v2574 = vld [vmem:[%s2456 + $0x220] sm:$0xff]
        %v2575 = vld [vmem:[%s2456 + $0x228] sm:$0xff]
        %v2576 = vld [vmem:[%s2456 + $0x230] sm:$0xff]
        %v2577 = vld [vmem:[%s2456 + $0x238] sm:$0xff]
        %v2578 = vld [vmem:[%s2456 + $0x240] sm:$0xff]
        %v2579 = vld [vmem:[%s2456 + $0x248] sm:$0xff]
        %v2580 = vld [vmem:[%s2456 + $0x250] sm:$0xff]
        %v2581 = vld [vmem:[%s2456 + $0x258] sm:$0xff]
        %v2582 = vld [vmem:[%s2456 + $0x260] sm:$0xff]
        %v2583 = vld [vmem:[%s2456 + $0x268] sm:$0xff]
        %v2584 = vld [vmem:[%s2456 + $0x270] sm:$0xff]
        %v2585 = vld [vmem:[%s2456 + $0x278] sm:$0xff]
        %v2586 = vld [vmem:[%s2456 + $0x280] sm:$0xff]
        %v2587 = vld [vmem:[%s2456 + $0x288] sm:$0xff]
        %v2588 = vld [vmem:[%s2456 + $0x290] sm:$0xff]
        %v2589 = vld [vmem:[%s2456 + $0x298] sm:$0xff]
        %v2590 = vld [vmem:[%s2456 + $0x2a0] sm:$0xff]
        %v2591 = vld [vmem:[%s2456 + $0x2a8] sm:$0xff]
        %v2592 = vld [vmem:[%s2456 + $0x2b0] sm:$0xff]
        %v2593 = vld [vmem:[%s2456 + $0x2b8] sm:$0xff]
        %v2594 = vld [vmem:[%s2456 + $0x2c0] sm:$0xff]
        %v2595 = vld [vmem:[%s2456 + $0x2c8] sm:$0xff]
        %v2596 = vld [vmem:[%s2456 + $0x2d0] sm:$0xff]
        %v2597 = vld [vmem:[%s2456 + $0x2d8] sm:$0xff]
        %v2598 = vld [vmem:[%s2456 + $0x2e0] sm:$0xff]
        %v2599 = vld [vmem:[%s2456 + $0x2e8] sm:$0xff]
        %v2600 = vld [vmem:[%s2456 + $0x2f0] sm:$0xff]
        %v2601 = vld [vmem:[%s2456 + $0x2f8] sm:$0xff]
        %v2602 = vld [vmem:[%s2456 + $0x300] sm:$0xff]
        %v2603 = vld [vmem:[%s2456 + $0x308] sm:$0xff]
        %v2604 = vld [vmem:[%s2456 + $0x310] sm:$0xff]
        %v2605 = vld [vmem:[%s2456 + $0x318] sm:$0xff]
        %v2606 = vld [vmem:[%s2456 + $0x320] sm:$0xff]
        %v2607 = vld [vmem:[%s2456 + $0x328] sm:$0xff]
        %v2608 = vld [vmem:[%s2456 + $0x330] sm:$0xff]
        %v2609 = vld [vmem:[%s2456 + $0x338] sm:$0xff]
        %v2610 = vld [vmem:[%s2456 + $0x340] sm:$0xff]
        %v2611 = vld [vmem:[%s2456 + $0x348] sm:$0xff]
        %v2612 = vld [vmem:[%s2456 + $0x350] sm:$0xff]
        %v2613 = vld [vmem:[%s2456 + $0x358] sm:$0xff]
        %v2614 = vld [vmem:[%s2456 + $0x360] sm:$0xff]
        %v2615 = vld [vmem:[%s2456 + $0x368] sm:$0xff]
        %v2616 = vld [vmem:[%s2456 + $0x370] sm:$0xff]
        %v2617 = vld [vmem:[%s2456 + $0x378] sm:$0xff]
        %v2618 = vld [vmem:[%s2456 + $0x380] sm:$0xff]
        %v2619 = vld [vmem:[%s2456 + $0x388] sm:$0xff]
        %v2620 = vld [vmem:[%s2456 + $0x390] sm:$0xff]
        %v2621 = vld [vmem:[%s2456 + $0x398] sm:$0xff]
        %v2622 = vld [vmem:[%s2456 + $0x3a0] sm:$0xff]
        %v2623 = vld [vmem:[%s2456 + $0x3a8] sm:$0xff]
        %v2624 = vld [vmem:[%s2456 + $0x3b0] sm:$0xff]
        %v2625 = vld [vmem:[%s2456 + $0x3b8] sm:$0xff]
        %v2626 = vld [vmem:[%s2456 + $0x3c0] sm:$0xff]
        %v2627 = vld [vmem:[%s2456 + $0x3c8] sm:$0xff]
        %v2628 = vld [vmem:[%s2456 + $0x3d0] sm:$0xff]
        %v2629 = vld [vmem:[%s2456 + $0x3d8] sm:$0xff]
        %v2630 = vld [vmem:[%s2456 + $0x3e0] sm:$0xff]
        %v2631 = vld [vmem:[%s2456 + $0x3e8] sm:$0xff]
        %v2632 = vld [vmem:[%s2456 + $0x3f0] sm:$0xff]
        %v2633 = vld [vmem:[%s2456 + $0x3f8] sm:$0xff]
        %v2634 = vunpack.c.l.bf16 %v2506
        %v2635 = vunpack.c.h.bf16 %v2506
        %v2636 = vunpack.c.l.bf16 %v2507
        %v2637 = vunpack.c.h.bf16 %v2507
        %v2638 = vunpack.c.l.bf16 %v2508
        %v2639 = vunpack.c.h.bf16 %v2508
        %v2640 = vunpack.c.l.bf16 %v2509
        %v2641 = vunpack.c.h.bf16 %v2509
        %v2642 = vunpack.c.l.bf16 %v2510
        %v2643 = vunpack.c.h.bf16 %v2510
        %v2644 = vunpack.c.l.bf16 %v2511
        %v2645 = vunpack.c.h.bf16 %v2511
        %v2646 = vunpack.c.l.bf16 %v2512
        %v2647 = vunpack.c.h.bf16 %v2512
        %v2648 = vunpack.c.l.bf16 %v2513
        %v2649 = vunpack.c.h.bf16 %v2513
        %v2650 = vunpack.c.l.bf16 %v2514
        %v2651 = vunpack.c.h.bf16 %v2514
        %v2652 = vunpack.c.l.bf16 %v2515
        %v2653 = vunpack.c.h.bf16 %v2515
        %v2654 = vunpack.c.l.bf16 %v2516
        %v2655 = vunpack.c.h.bf16 %v2516
        %v2656 = vunpack.c.l.bf16 %v2517
        %v2657 = vunpack.c.h.bf16 %v2517
        %v2658 = vunpack.c.l.bf16 %v2518
        %v2659 = vunpack.c.h.bf16 %v2518
        %v2660 = vunpack.c.l.bf16 %v2519
        %v2661 = vunpack.c.h.bf16 %v2519
        %v2662 = vunpack.c.l.bf16 %v2520
        %v2663 = vunpack.c.h.bf16 %v2520
        %v2664 = vunpack.c.l.bf16 %v2521
        %v2665 = vunpack.c.h.bf16 %v2521
        %v2666 = vunpack.c.l.bf16 %v2522
        %v2667 = vunpack.c.h.bf16 %v2522
        %v2668 = vunpack.c.l.bf16 %v2523
        %v2669 = vunpack.c.h.bf16 %v2523
        %v2670 = vunpack.c.l.bf16 %v2524
        %v2671 = vunpack.c.h.bf16 %v2524
        %v2672 = vunpack.c.l.bf16 %v2525
        %v2673 = vunpack.c.h.bf16 %v2525
        %v2674 = vunpack.c.l.bf16 %v2526
        %v2675 = vunpack.c.h.bf16 %v2526
        %v2676 = vunpack.c.l.bf16 %v2527
        %v2677 = vunpack.c.h.bf16 %v2527
        %v2678 = vunpack.c.l.bf16 %v2528
        %v2679 = vunpack.c.h.bf16 %v2528
        %v2680 = vunpack.c.l.bf16 %v2529
        %v2681 = vunpack.c.h.bf16 %v2529
        %v2682 = vunpack.c.l.bf16 %v2530
        %v2683 = vunpack.c.h.bf16 %v2530
        %v2684 = vunpack.c.l.bf16 %v2531
        %v2685 = vunpack.c.h.bf16 %v2531
        %v2686 = vunpack.c.l.bf16 %v2532
        %v2687 = vunpack.c.h.bf16 %v2532
        %v2688 = vunpack.c.l.bf16 %v2533
        %v2689 = vunpack.c.h.bf16 %v2533
        %v2690 = vunpack.c.l.bf16 %v2534
        %v2691 = vunpack.c.h.bf16 %v2534
        %v2692 = vunpack.c.l.bf16 %v2535
        %v2693 = vunpack.c.h.bf16 %v2535
        %v2694 = vunpack.c.l.bf16 %v2536
        %v2695 = vunpack.c.h.bf16 %v2536
        %v2696 = vunpack.c.l.bf16 %v2537
        %v2697 = vunpack.c.h.bf16 %v2537
        %v2698 = vunpack.c.l.bf16 %v2538
        %v2699 = vunpack.c.h.bf16 %v2538
        %v2700 = vunpack.c.l.bf16 %v2539
        %v2701 = vunpack.c.h.bf16 %v2539
        %v2702 = vunpack.c.l.bf16 %v2540
        %v2703 = vunpack.c.h.bf16 %v2540
        %v2704 = vunpack.c.l.bf16 %v2541
        %v2705 = vunpack.c.h.bf16 %v2541
        %v2706 = vunpack.c.l.bf16 %v2542
        %v2707 = vunpack.c.h.bf16 %v2542
        %v2708 = vunpack.c.l.bf16 %v2543
        %v2709 = vunpack.c.h.bf16 %v2543
        %v2710 = vunpack.c.l.bf16 %v2544
        %v2711 = vunpack.c.h.bf16 %v2544
        %v2712 = vunpack.c.l.bf16 %v2545
        %v2713 = vunpack.c.h.bf16 %v2545
        %v2714 = vunpack.c.l.bf16 %v2546
        %v2715 = vunpack.c.h.bf16 %v2546
        %v2716 = vunpack.c.l.bf16 %v2547
        %v2717 = vunpack.c.h.bf16 %v2547
        %v2718 = vunpack.c.l.bf16 %v2548
        %v2719 = vunpack.c.h.bf16 %v2548
        %v2720 = vunpack.c.l.bf16 %v2549
        %v2721 = vunpack.c.h.bf16 %v2549
        %v2722 = vunpack.c.l.bf16 %v2550
        %v2723 = vunpack.c.h.bf16 %v2550
        %v2724 = vunpack.c.l.bf16 %v2551
        %v2725 = vunpack.c.h.bf16 %v2551
        %v2726 = vunpack.c.l.bf16 %v2552
        %v2727 = vunpack.c.h.bf16 %v2552
        %v2728 = vunpack.c.l.bf16 %v2553
        %v2729 = vunpack.c.h.bf16 %v2553
        %v2730 = vunpack.c.l.bf16 %v2554
        %v2731 = vunpack.c.h.bf16 %v2554
        %v2732 = vunpack.c.l.bf16 %v2555
        %v2733 = vunpack.c.h.bf16 %v2555
        %v2734 = vunpack.c.l.bf16 %v2556
        %v2735 = vunpack.c.h.bf16 %v2556
        %v2736 = vunpack.c.l.bf16 %v2557
        %v2737 = vunpack.c.h.bf16 %v2557
        %v2738 = vunpack.c.l.bf16 %v2558
        %v2739 = vunpack.c.h.bf16 %v2558
        %v2740 = vunpack.c.l.bf16 %v2559
        %v2741 = vunpack.c.h.bf16 %v2559
        %v2742 = vunpack.c.l.bf16 %v2560
        %v2743 = vunpack.c.h.bf16 %v2560
        %v2744 = vunpack.c.l.bf16 %v2561
        %v2745 = vunpack.c.h.bf16 %v2561
        %v2746 = vunpack.c.l.bf16 %v2562
        %v2747 = vunpack.c.h.bf16 %v2562
        %v2748 = vunpack.c.l.bf16 %v2563
        %v2749 = vunpack.c.h.bf16 %v2563
        %v2750 = vunpack.c.l.bf16 %v2564
        %v2751 = vunpack.c.h.bf16 %v2564
        %v2752 = vunpack.c.l.bf16 %v2565
        %v2753 = vunpack.c.h.bf16 %v2565
        %v2754 = vunpack.c.l.bf16 %v2566
        %v2755 = vunpack.c.h.bf16 %v2566
        %v2756 = vunpack.c.l.bf16 %v2567
        %v2757 = vunpack.c.h.bf16 %v2567
        %v2758 = vunpack.c.l.bf16 %v2568
        %v2759 = vunpack.c.h.bf16 %v2568
        %v2760 = vunpack.c.l.bf16 %v2569
        %v2761 = vunpack.c.h.bf16 %v2569
        %v2762 = vunpack.c.l.bf16 %v2570
        %v2763 = vunpack.c.h.bf16 %v2570
        %v2764 = vunpack.c.l.bf16 %v2571
        %v2765 = vunpack.c.h.bf16 %v2571
        %v2766 = vunpack.c.l.bf16 %v2572
        %v2767 = vunpack.c.h.bf16 %v2572
        %v2768 = vunpack.c.l.bf16 %v2573
        %v2769 = vunpack.c.h.bf16 %v2573
        %v2770 = vunpack.c.l.bf16 %v2574
        %v2771 = vunpack.c.h.bf16 %v2574
        %v2772 = vunpack.c.l.bf16 %v2575
        %v2773 = vunpack.c.h.bf16 %v2575
        %v2774 = vunpack.c.l.bf16 %v2576
        %v2775 = vunpack.c.h.bf16 %v2576
        %v2776 = vunpack.c.l.bf16 %v2577
        %v2777 = vunpack.c.h.bf16 %v2577
        %v2778 = vunpack.c.l.bf16 %v2578
        %v2779 = vunpack.c.h.bf16 %v2578
        %v2780 = vunpack.c.l.bf16 %v2579
        %v2781 = vunpack.c.h.bf16 %v2579
        %v2782 = vunpack.c.l.bf16 %v2580
        %v2783 = vunpack.c.h.bf16 %v2580
        %v2784 = vunpack.c.l.bf16 %v2581
        %v2785 = vunpack.c.h.bf16 %v2581
        %v2786 = vunpack.c.l.bf16 %v2582
        %v2787 = vunpack.c.h.bf16 %v2582
        %v2788 = vunpack.c.l.bf16 %v2583
        %v2789 = vunpack.c.h.bf16 %v2583
        %v2790 = vunpack.c.l.bf16 %v2584
        %v2791 = vunpack.c.h.bf16 %v2584
        %v2792 = vunpack.c.l.bf16 %v2585
        %v2793 = vunpack.c.h.bf16 %v2585
        %v2794 = vunpack.c.l.bf16 %v2586
        %v2795 = vunpack.c.h.bf16 %v2586
        %v2796 = vunpack.c.l.bf16 %v2587
        %v2797 = vunpack.c.h.bf16 %v2587
        %v2798 = vunpack.c.l.bf16 %v2588
        %v2799 = vunpack.c.h.bf16 %v2588
        %v2800 = vunpack.c.l.bf16 %v2589
        %v2801 = vunpack.c.h.bf16 %v2589
        %v2802 = vunpack.c.l.bf16 %v2590
        %v2803 = vunpack.c.h.bf16 %v2590
        %v2804 = vunpack.c.l.bf16 %v2591
        %v2805 = vunpack.c.h.bf16 %v2591
        %v2806 = vunpack.c.l.bf16 %v2592
        %v2807 = vunpack.c.h.bf16 %v2592
        %v2808 = vunpack.c.l.bf16 %v2593
        %v2809 = vunpack.c.h.bf16 %v2593
        %v2810 = vunpack.c.l.bf16 %v2594
        %v2811 = vunpack.c.h.bf16 %v2594
        %v2812 = vunpack.c.l.bf16 %v2595
        %v2813 = vunpack.c.h.bf16 %v2595
        %v2814 = vunpack.c.l.bf16 %v2596
        %v2815 = vunpack.c.h.bf16 %v2596
        %v2816 = vunpack.c.l.bf16 %v2597
        %v2817 = vunpack.c.h.bf16 %v2597
        %v2818 = vunpack.c.l.bf16 %v2598
        %v2819 = vunpack.c.h.bf16 %v2598
        %v2820 = vunpack.c.l.bf16 %v2599
        %v2821 = vunpack.c.h.bf16 %v2599
        %v2822 = vunpack.c.l.bf16 %v2600
        %v2823 = vunpack.c.h.bf16 %v2600
        %v2824 = vunpack.c.l.bf16 %v2601
        %v2825 = vunpack.c.h.bf16 %v2601
        %v2826 = vunpack.c.l.bf16 %v2602
        %v2827 = vunpack.c.h.bf16 %v2602
        %v2828 = vunpack.c.l.bf16 %v2603
        %v2829 = vunpack.c.h.bf16 %v2603
        %v2830 = vunpack.c.l.bf16 %v2604
        %v2831 = vunpack.c.h.bf16 %v2604
        %v2832 = vunpack.c.l.bf16 %v2605
        %v2833 = vunpack.c.h.bf16 %v2605
        %v2834 = vunpack.c.l.bf16 %v2606
        %v2835 = vunpack.c.h.bf16 %v2606
        %v2836 = vunpack.c.l.bf16 %v2607
        %v2837 = vunpack.c.h.bf16 %v2607
        %v2838 = vunpack.c.l.bf16 %v2608
        %v2839 = vunpack.c.h.bf16 %v2608
        %v2840 = vunpack.c.l.bf16 %v2609
        %v2841 = vunpack.c.h.bf16 %v2609
        %v2842 = vunpack.c.l.bf16 %v2610
        %v2843 = vunpack.c.h.bf16 %v2610
        %v2844 = vunpack.c.l.bf16 %v2611
        %v2845 = vunpack.c.h.bf16 %v2611
        %v2846 = vunpack.c.l.bf16 %v2612
        %v2847 = vunpack.c.h.bf16 %v2612
        %v2848 = vunpack.c.l.bf16 %v2613
        %v2849 = vunpack.c.h.bf16 %v2613
        %v2850 = vunpack.c.l.bf16 %v2614
        %v2851 = vunpack.c.h.bf16 %v2614
        %v2852 = vunpack.c.l.bf16 %v2615
        %v2853 = vunpack.c.h.bf16 %v2615
        %v2854 = vunpack.c.l.bf16 %v2616
        %v2855 = vunpack.c.h.bf16 %v2616
        %v2856 = vunpack.c.l.bf16 %v2617
        %v2857 = vunpack.c.h.bf16 %v2617
        %v2858 = vunpack.c.l.bf16 %v2618
        %v2859 = vunpack.c.h.bf16 %v2618
        %v2860 = vunpack.c.l.bf16 %v2619
        %v2861 = vunpack.c.h.bf16 %v2619
        %v2862 = vunpack.c.l.bf16 %v2620
        %v2863 = vunpack.c.h.bf16 %v2620
        %v2864 = vunpack.c.l.bf16 %v2621
        %v2865 = vunpack.c.h.bf16 %v2621
        %v2866 = vunpack.c.l.bf16 %v2622
        %v2867 = vunpack.c.h.bf16 %v2622
        %v2868 = vunpack.c.l.bf16 %v2623
        %v2869 = vunpack.c.h.bf16 %v2623
        %v2870 = vunpack.c.l.bf16 %v2624
        %v2871 = vunpack.c.h.bf16 %v2624
        %v2872 = vunpack.c.l.bf16 %v2625
        %v2873 = vunpack.c.h.bf16 %v2625
        %v2874 = vunpack.c.l.bf16 %v2626
        %v2875 = vunpack.c.h.bf16 %v2626
        %v2876 = vunpack.c.l.bf16 %v2627
        %v2877 = vunpack.c.h.bf16 %v2627
        %v2878 = vunpack.c.l.bf16 %v2628
        %v2879 = vunpack.c.h.bf16 %v2628
        %v2880 = vunpack.c.l.bf16 %v2629
        %v2881 = vunpack.c.h.bf16 %v2629
        %v2882 = vunpack.c.l.bf16 %v2630
        %v2883 = vunpack.c.h.bf16 %v2630
        %v2884 = vunpack.c.l.bf16 %v2631
        %v2885 = vunpack.c.h.bf16 %v2631
        %v2886 = vunpack.c.l.bf16 %v2632
        %v2887 = vunpack.c.h.bf16 %v2632
        %v2888 = vunpack.c.l.bf16 %v2633
        %v2889 = vunpack.c.h.bf16 %v2633
        %v2890 = vld [vmem:[%s2463] sm:$0xff]
        %v2891 = vld [vmem:[%s2463 + $0x8] sm:$0xff]
        %v2892 = vld [vmem:[%s2463 + $0x10] sm:$0xff]
        %v2893 = vld [vmem:[%s2463 + $0x18] sm:$0xff]
        %v2894 = vld [vmem:[%s2463 + $0x20] sm:$0xff]
        %v2895 = vld [vmem:[%s2463 + $0x28] sm:$0xff]
        %v2896 = vld [vmem:[%s2463 + $0x30] sm:$0xff]
        %v2897 = vld [vmem:[%s2463 + $0x38] sm:$0xff]
        %v2898 = vld [vmem:[%s2463 + $0x40] sm:$0xff]
        %v2899 = vld [vmem:[%s2463 + $0x48] sm:$0xff]
        %v2900 = vld [vmem:[%s2463 + $0x50] sm:$0xff]
        %v2901 = vld [vmem:[%s2463 + $0x58] sm:$0xff]
        %v2902 = vld [vmem:[%s2463 + $0x60] sm:$0xff]
        %v2903 = vld [vmem:[%s2463 + $0x68] sm:$0xff]
        %v2904 = vld [vmem:[%s2463 + $0x70] sm:$0xff]
        %v2905 = vld [vmem:[%s2463 + $0x78] sm:$0xff]
        %v2906 = vld [vmem:[%s2463 + $0x80] sm:$0xff]
        %v2907 = vld [vmem:[%s2463 + $0x88] sm:$0xff]
        %v2908 = vld [vmem:[%s2463 + $0x90] sm:$0xff]
        %v2909 = vld [vmem:[%s2463 + $0x98] sm:$0xff]
        %v2910 = vld [vmem:[%s2463 + $0xa0] sm:$0xff]
        %v2911 = vld [vmem:[%s2463 + $0xa8] sm:$0xff]
        %v2912 = vld [vmem:[%s2463 + $0xb0] sm:$0xff]
        %v2913 = vld [vmem:[%s2463 + $0xb8] sm:$0xff]
        %v2914 = vld [vmem:[%s2463 + $0xc0] sm:$0xff]
        %v2915 = vld [vmem:[%s2463 + $0xc8] sm:$0xff]
        %v2916 = vld [vmem:[%s2463 + $0xd0] sm:$0xff]
        %v2917 = vld [vmem:[%s2463 + $0xd8] sm:$0xff]
        %v2918 = vld [vmem:[%s2463 + $0xe0] sm:$0xff]
        %v2919 = vld [vmem:[%s2463 + $0xe8] sm:$0xff]
        %v2920 = vld [vmem:[%s2463 + $0xf0] sm:$0xff]
        %v2921 = vld [vmem:[%s2463 + $0xf8] sm:$0xff]
        %v2922 = vld [vmem:[%s2463 + $0x100] sm:$0xff]
        %v2923 = vld [vmem:[%s2463 + $0x108] sm:$0xff]
        %v2924 = vld [vmem:[%s2463 + $0x110] sm:$0xff]
        %v2925 = vld [vmem:[%s2463 + $0x118] sm:$0xff]
        %v2926 = vld [vmem:[%s2463 + $0x120] sm:$0xff]
        %v2927 = vld [vmem:[%s2463 + $0x128] sm:$0xff]
        %v2928 = vld [vmem:[%s2463 + $0x130] sm:$0xff]
        %v2929 = vld [vmem:[%s2463 + $0x138] sm:$0xff]
        %v2930 = vld [vmem:[%s2463 + $0x140] sm:$0xff]
        %v2931 = vld [vmem:[%s2463 + $0x148] sm:$0xff]
        %v2932 = vld [vmem:[%s2463 + $0x150] sm:$0xff]
        %v2933 = vld [vmem:[%s2463 + $0x158] sm:$0xff]
        %v2934 = vld [vmem:[%s2463 + $0x160] sm:$0xff]
        %v2935 = vld [vmem:[%s2463 + $0x168] sm:$0xff]
        %v2936 = vld [vmem:[%s2463 + $0x170] sm:$0xff]
        %v2937 = vld [vmem:[%s2463 + $0x178] sm:$0xff]
        %v2938 = vld [vmem:[%s2463 + $0x180] sm:$0xff]
        %v2939 = vld [vmem:[%s2463 + $0x188] sm:$0xff]
        %v2940 = vld [vmem:[%s2463 + $0x190] sm:$0xff]
        %v2941 = vld [vmem:[%s2463 + $0x198] sm:$0xff]
        %v2942 = vld [vmem:[%s2463 + $0x1a0] sm:$0xff]
        %v2943 = vld [vmem:[%s2463 + $0x1a8] sm:$0xff]
        %v2944 = vld [vmem:[%s2463 + $0x1b0] sm:$0xff]
        %v2945 = vld [vmem:[%s2463 + $0x1b8] sm:$0xff]
        %v2946 = vld [vmem:[%s2463 + $0x1c0] sm:$0xff]
        %v2947 = vld [vmem:[%s2463 + $0x1c8] sm:$0xff]
        %v2948 = vld [vmem:[%s2463 + $0x1d0] sm:$0xff]
        %v2949 = vld [vmem:[%s2463 + $0x1d8] sm:$0xff]
        %v2950 = vld [vmem:[%s2463 + $0x1e0] sm:$0xff]
        %v2951 = vld [vmem:[%s2463 + $0x1e8] sm:$0xff]
        %v2952 = vld [vmem:[%s2463 + $0x1f0] sm:$0xff]
        %v2953 = vld [vmem:[%s2463 + $0x1f8] sm:$0xff]
        %v2954 = vld [vmem:[%s2463 + $0x200] sm:$0xff]
        %v2955 = vld [vmem:[%s2463 + $0x208] sm:$0xff]
        %v2956 = vld [vmem:[%s2463 + $0x210] sm:$0xff]
        %v2957 = vld [vmem:[%s2463 + $0x218] sm:$0xff]
        %v2958 = vld [vmem:[%s2463 + $0x220] sm:$0xff]
        %v2959 = vld [vmem:[%s2463 + $0x228] sm:$0xff]
        %v2960 = vld [vmem:[%s2463 + $0x230] sm:$0xff]
        %v2961 = vld [vmem:[%s2463 + $0x238] sm:$0xff]
        %v2962 = vld [vmem:[%s2463 + $0x240] sm:$0xff]
        %v2963 = vld [vmem:[%s2463 + $0x248] sm:$0xff]
        %v2964 = vld [vmem:[%s2463 + $0x250] sm:$0xff]
        %v2965 = vld [vmem:[%s2463 + $0x258] sm:$0xff]
        %v2966 = vld [vmem:[%s2463 + $0x260] sm:$0xff]
        %v2967 = vld [vmem:[%s2463 + $0x268] sm:$0xff]
        %v2968 = vld [vmem:[%s2463 + $0x270] sm:$0xff]
        %v2969 = vld [vmem:[%s2463 + $0x278] sm:$0xff]
        %v2970 = vld [vmem:[%s2463 + $0x280] sm:$0xff]
        %v2971 = vld [vmem:[%s2463 + $0x288] sm:$0xff]
        %v2972 = vld [vmem:[%s2463 + $0x290] sm:$0xff]
        %v2973 = vld [vmem:[%s2463 + $0x298] sm:$0xff]
        %v2974 = vld [vmem:[%s2463 + $0x2a0] sm:$0xff]
        %v2975 = vld [vmem:[%s2463 + $0x2a8] sm:$0xff]
        %v2976 = vld [vmem:[%s2463 + $0x2b0] sm:$0xff]
        %v2977 = vld [vmem:[%s2463 + $0x2b8] sm:$0xff]
        %v2978 = vld [vmem:[%s2463 + $0x2c0] sm:$0xff]
        %v2979 = vld [vmem:[%s2463 + $0x2c8] sm:$0xff]
        %v2980 = vld [vmem:[%s2463 + $0x2d0] sm:$0xff]
        %v2981 = vld [vmem:[%s2463 + $0x2d8] sm:$0xff]
        %v2982 = vld [vmem:[%s2463 + $0x2e0] sm:$0xff]
        %v2983 = vld [vmem:[%s2463 + $0x2e8] sm:$0xff]
        %v2984 = vld [vmem:[%s2463 + $0x2f0] sm:$0xff]
        %v2985 = vld [vmem:[%s2463 + $0x2f8] sm:$0xff]
        %v2986 = vld [vmem:[%s2463 + $0x300] sm:$0xff]
        %v2987 = vld [vmem:[%s2463 + $0x308] sm:$0xff]
        %v2988 = vld [vmem:[%s2463 + $0x310] sm:$0xff]
        %v2989 = vld [vmem:[%s2463 + $0x318] sm:$0xff]
        %v2990 = vld [vmem:[%s2463 + $0x320] sm:$0xff]
        %v2991 = vld [vmem:[%s2463 + $0x328] sm:$0xff]
        %v2992 = vld [vmem:[%s2463 + $0x330] sm:$0xff]
        %v2993 = vld [vmem:[%s2463 + $0x338] sm:$0xff]
        %v2994 = vld [vmem:[%s2463 + $0x340] sm:$0xff]
        %v2995 = vld [vmem:[%s2463 + $0x348] sm:$0xff]
        %v2996 = vld [vmem:[%s2463 + $0x350] sm:$0xff]
        %v2997 = vld [vmem:[%s2463 + $0x358] sm:$0xff]
        %v2998 = vld [vmem:[%s2463 + $0x360] sm:$0xff]
        %v2999 = vld [vmem:[%s2463 + $0x368] sm:$0xff]
        %v3000 = vld [vmem:[%s2463 + $0x370] sm:$0xff]
        %v3001 = vld [vmem:[%s2463 + $0x378] sm:$0xff]
        %v3002 = vld [vmem:[%s2463 + $0x380] sm:$0xff]
        %v3003 = vld [vmem:[%s2463 + $0x388] sm:$0xff]
        %v3004 = vld [vmem:[%s2463 + $0x390] sm:$0xff]
        %v3005 = vld [vmem:[%s2463 + $0x398] sm:$0xff]
        %v3006 = vld [vmem:[%s2463 + $0x3a0] sm:$0xff]
        %v3007 = vld [vmem:[%s2463 + $0x3a8] sm:$0xff]
        %v3008 = vld [vmem:[%s2463 + $0x3b0] sm:$0xff]
        %v3009 = vld [vmem:[%s2463 + $0x3b8] sm:$0xff]
        %v3010 = vld [vmem:[%s2463 + $0x3c0] sm:$0xff]
        %v3011 = vld [vmem:[%s2463 + $0x3c8] sm:$0xff]
        %v3012 = vld [vmem:[%s2463 + $0x3d0] sm:$0xff]
        %v3013 = vld [vmem:[%s2463 + $0x3d8] sm:$0xff]
        %v3014 = vld [vmem:[%s2463 + $0x3e0] sm:$0xff]
        %v3015 = vld [vmem:[%s2463 + $0x3e8] sm:$0xff]
        %v3016 = vld [vmem:[%s2463 + $0x3f0] sm:$0xff]
        %v3017 = vld [vmem:[%s2463 + $0x3f8] sm:$0xff]
        %v3018 = vunpack.c.l.bf16 %v2890
        %v3019 = vunpack.c.h.bf16 %v2890
        %v3020 = vunpack.c.l.bf16 %v2891
        %v3021 = vunpack.c.h.bf16 %v2891
        %v3022 = vunpack.c.l.bf16 %v2892
        %v3023 = vunpack.c.h.bf16 %v2892
        %v3024 = vunpack.c.l.bf16 %v2893
        %v3025 = vunpack.c.h.bf16 %v2893
        %v3026 = vunpack.c.l.bf16 %v2894
        %v3027 = vunpack.c.h.bf16 %v2894
        %v3028 = vunpack.c.l.bf16 %v2895
        %v3029 = vunpack.c.h.bf16 %v2895
        %v3030 = vunpack.c.l.bf16 %v2896
        %v3031 = vunpack.c.h.bf16 %v2896
        %v3032 = vunpack.c.l.bf16 %v2897
        %v3033 = vunpack.c.h.bf16 %v2897
        %v3034 = vunpack.c.l.bf16 %v2898
        %v3035 = vunpack.c.h.bf16 %v2898
        %v3036 = vunpack.c.l.bf16 %v2899
        %v3037 = vunpack.c.h.bf16 %v2899
        %v3038 = vunpack.c.l.bf16 %v2900
        %v3039 = vunpack.c.h.bf16 %v2900
        %v3040 = vunpack.c.l.bf16 %v2901
        %v3041 = vunpack.c.h.bf16 %v2901
        %v3042 = vunpack.c.l.bf16 %v2902
        %v3043 = vunpack.c.h.bf16 %v2902
        %v3044 = vunpack.c.l.bf16 %v2903
        %v3045 = vunpack.c.h.bf16 %v2903
        %v3046 = vunpack.c.l.bf16 %v2904
        %v3047 = vunpack.c.h.bf16 %v2904
        %v3048 = vunpack.c.l.bf16 %v2905
        %v3049 = vunpack.c.h.bf16 %v2905
        %v3050 = vunpack.c.l.bf16 %v2906
        %v3051 = vunpack.c.h.bf16 %v2906
        %v3052 = vunpack.c.l.bf16 %v2907
        %v3053 = vunpack.c.h.bf16 %v2907
        %v3054 = vunpack.c.l.bf16 %v2908
        %v3055 = vunpack.c.h.bf16 %v2908
        %v3056 = vunpack.c.l.bf16 %v2909
        %v3057 = vunpack.c.h.bf16 %v2909
        %v3058 = vunpack.c.l.bf16 %v2910
        %v3059 = vunpack.c.h.bf16 %v2910
        %v3060 = vunpack.c.l.bf16 %v2911
        %v3061 = vunpack.c.h.bf16 %v2911
        %v3062 = vunpack.c.l.bf16 %v2912
        %v3063 = vunpack.c.h.bf16 %v2912
        %v3064 = vunpack.c.l.bf16 %v2913
        %v3065 = vunpack.c.h.bf16 %v2913
        %v3066 = vunpack.c.l.bf16 %v2914
        %v3067 = vunpack.c.h.bf16 %v2914
        %v3068 = vunpack.c.l.bf16 %v2915
        %v3069 = vunpack.c.h.bf16 %v2915
        %v3070 = vunpack.c.l.bf16 %v2916
        %v3071 = vunpack.c.h.bf16 %v2916
        %v3072 = vunpack.c.l.bf16 %v2917
        %v3073 = vunpack.c.h.bf16 %v2917
        %v3074 = vunpack.c.l.bf16 %v2918
        %v3075 = vunpack.c.h.bf16 %v2918
        %v3076 = vunpack.c.l.bf16 %v2919
        %v3077 = vunpack.c.h.bf16 %v2919
        %v3078 = vunpack.c.l.bf16 %v2920
        %v3079 = vunpack.c.h.bf16 %v2920
        %v3080 = vunpack.c.l.bf16 %v2921
        %v3081 = vunpack.c.h.bf16 %v2921
        %v3082 = vunpack.c.l.bf16 %v2922
        %v3083 = vunpack.c.h.bf16 %v2922
        %v3084 = vunpack.c.l.bf16 %v2923
        %v3085 = vunpack.c.h.bf16 %v2923
        %v3086 = vunpack.c.l.bf16 %v2924
        %v3087 = vunpack.c.h.bf16 %v2924
        %v3088 = vunpack.c.l.bf16 %v2925
        %v3089 = vunpack.c.h.bf16 %v2925
        %v3090 = vunpack.c.l.bf16 %v2926
        %v3091 = vunpack.c.h.bf16 %v2926
        %v3092 = vunpack.c.l.bf16 %v2927
        %v3093 = vunpack.c.h.bf16 %v2927
        %v3094 = vunpack.c.l.bf16 %v2928
        %v3095 = vunpack.c.h.bf16 %v2928
        %v3096 = vunpack.c.l.bf16 %v2929
        %v3097 = vunpack.c.h.bf16 %v2929
        %v3098 = vunpack.c.l.bf16 %v2930
        %v3099 = vunpack.c.h.bf16 %v2930
        %v3100 = vunpack.c.l.bf16 %v2931
        %v3101 = vunpack.c.h.bf16 %v2931
        %v3102 = vunpack.c.l.bf16 %v2932
        %v3103 = vunpack.c.h.bf16 %v2932
        %v3104 = vunpack.c.l.bf16 %v2933
        %v3105 = vunpack.c.h.bf16 %v2933
        %v3106 = vunpack.c.l.bf16 %v2934
        %v3107 = vunpack.c.h.bf16 %v2934
        %v3108 = vunpack.c.l.bf16 %v2935
        %v3109 = vunpack.c.h.bf16 %v2935
        %v3110 = vunpack.c.l.bf16 %v2936
        %v3111 = vunpack.c.h.bf16 %v2936
        %v3112 = vunpack.c.l.bf16 %v2937
        %v3113 = vunpack.c.h.bf16 %v2937
        %v3114 = vunpack.c.l.bf16 %v2938
        %v3115 = vunpack.c.h.bf16 %v2938
        %v3116 = vunpack.c.l.bf16 %v2939
        %v3117 = vunpack.c.h.bf16 %v2939
        %v3118 = vunpack.c.l.bf16 %v2940
        %v3119 = vunpack.c.h.bf16 %v2940
        %v3120 = vunpack.c.l.bf16 %v2941
        %v3121 = vunpack.c.h.bf16 %v2941
        %v3122 = vunpack.c.l.bf16 %v2942
        %v3123 = vunpack.c.h.bf16 %v2942
        %v3124 = vunpack.c.l.bf16 %v2943
        %v3125 = vunpack.c.h.bf16 %v2943
        %v3126 = vunpack.c.l.bf16 %v2944
        %v3127 = vunpack.c.h.bf16 %v2944
        %v3128 = vunpack.c.l.bf16 %v2945
        %v3129 = vunpack.c.h.bf16 %v2945
        %v3130 = vunpack.c.l.bf16 %v2946
        %v3131 = vunpack.c.h.bf16 %v2946
        %v3132 = vunpack.c.l.bf16 %v2947
        %v3133 = vunpack.c.h.bf16 %v2947
        %v3134 = vunpack.c.l.bf16 %v2948
        %v3135 = vunpack.c.h.bf16 %v2948
        %v3136 = vunpack.c.l.bf16 %v2949
        %v3137 = vunpack.c.h.bf16 %v2949
        %v3138 = vunpack.c.l.bf16 %v2950
        %v3139 = vunpack.c.h.bf16 %v2950
        %v3140 = vunpack.c.l.bf16 %v2951
        %v3141 = vunpack.c.h.bf16 %v2951
        %v3142 = vunpack.c.l.bf16 %v2952
        %v3143 = vunpack.c.h.bf16 %v2952
        %v3144 = vunpack.c.l.bf16 %v2953
        %v3145 = vunpack.c.h.bf16 %v2953
        %v3146 = vunpack.c.l.bf16 %v2954
        %v3147 = vunpack.c.h.bf16 %v2954
        %v3148 = vunpack.c.l.bf16 %v2955
        %v3149 = vunpack.c.h.bf16 %v2955
        %v3150 = vunpack.c.l.bf16 %v2956
        %v3151 = vunpack.c.h.bf16 %v2956
        %v3152 = vunpack.c.l.bf16 %v2957
        %v3153 = vunpack.c.h.bf16 %v2957
        %v3154 = vunpack.c.l.bf16 %v2958
        %v3155 = vunpack.c.h.bf16 %v2958
        %v3156 = vunpack.c.l.bf16 %v2959
        %v3157 = vunpack.c.h.bf16 %v2959
        %v3158 = vunpack.c.l.bf16 %v2960
        %v3159 = vunpack.c.h.bf16 %v2960
        %v3160 = vunpack.c.l.bf16 %v2961
        %v3161 = vunpack.c.h.bf16 %v2961
        %v3162 = vunpack.c.l.bf16 %v2962
        %v3163 = vunpack.c.h.bf16 %v2962
        %v3164 = vunpack.c.l.bf16 %v2963
        %v3165 = vunpack.c.h.bf16 %v2963
        %v3166 = vunpack.c.l.bf16 %v2964
        %v3167 = vunpack.c.h.bf16 %v2964
        %v3168 = vunpack.c.l.bf16 %v2965
        %v3169 = vunpack.c.h.bf16 %v2965
        %v3170 = vunpack.c.l.bf16 %v2966
        %v3171 = vunpack.c.h.bf16 %v2966
        %v3172 = vunpack.c.l.bf16 %v2967
        %v3173 = vunpack.c.h.bf16 %v2967
        %v3174 = vunpack.c.l.bf16 %v2968
        %v3175 = vunpack.c.h.bf16 %v2968
        %v3176 = vunpack.c.l.bf16 %v2969
        %v3177 = vunpack.c.h.bf16 %v2969
        %v3178 = vunpack.c.l.bf16 %v2970
        %v3179 = vunpack.c.h.bf16 %v2970
        %v3180 = vunpack.c.l.bf16 %v2971
        %v3181 = vunpack.c.h.bf16 %v2971
        %v3182 = vunpack.c.l.bf16 %v2972
        %v3183 = vunpack.c.h.bf16 %v2972
        %v3184 = vunpack.c.l.bf16 %v2973
        %v3185 = vunpack.c.h.bf16 %v2973
        %v3186 = vunpack.c.l.bf16 %v2974
        %v3187 = vunpack.c.h.bf16 %v2974
        %v3188 = vunpack.c.l.bf16 %v2975
        %v3189 = vunpack.c.h.bf16 %v2975
        %v3190 = vunpack.c.l.bf16 %v2976
        %v3191 = vunpack.c.h.bf16 %v2976
        %v3192 = vunpack.c.l.bf16 %v2977
        %v3193 = vunpack.c.h.bf16 %v2977
        %v3194 = vunpack.c.l.bf16 %v2978
        %v3195 = vunpack.c.h.bf16 %v2978
        %v3196 = vunpack.c.l.bf16 %v2979
        %v3197 = vunpack.c.h.bf16 %v2979
        %v3198 = vunpack.c.l.bf16 %v2980
        %v3199 = vunpack.c.h.bf16 %v2980
        %v3200 = vunpack.c.l.bf16 %v2981
        %v3201 = vunpack.c.h.bf16 %v2981
        %v3202 = vunpack.c.l.bf16 %v2982
        %v3203 = vunpack.c.h.bf16 %v2982
        %v3204 = vunpack.c.l.bf16 %v2983
        %v3205 = vunpack.c.h.bf16 %v2983
        %v3206 = vunpack.c.l.bf16 %v2984
        %v3207 = vunpack.c.h.bf16 %v2984
        %v3208 = vunpack.c.l.bf16 %v2985
        %v3209 = vunpack.c.h.bf16 %v2985
        %v3210 = vunpack.c.l.bf16 %v2986
        %v3211 = vunpack.c.h.bf16 %v2986
        %v3212 = vunpack.c.l.bf16 %v2987
        %v3213 = vunpack.c.h.bf16 %v2987
        %v3214 = vunpack.c.l.bf16 %v2988
        %v3215 = vunpack.c.h.bf16 %v2988
        %v3216 = vunpack.c.l.bf16 %v2989
        %v3217 = vunpack.c.h.bf16 %v2989
        %v3218 = vunpack.c.l.bf16 %v2990
        %v3219 = vunpack.c.h.bf16 %v2990
        %v3220 = vunpack.c.l.bf16 %v2991
        %v3221 = vunpack.c.h.bf16 %v2991
        %v3222 = vunpack.c.l.bf16 %v2992
        %v3223 = vunpack.c.h.bf16 %v2992
        %v3224 = vunpack.c.l.bf16 %v2993
        %v3225 = vunpack.c.h.bf16 %v2993
        %v3226 = vunpack.c.l.bf16 %v2994
        %v3227 = vunpack.c.h.bf16 %v2994
        %v3228 = vunpack.c.l.bf16 %v2995
        %v3229 = vunpack.c.h.bf16 %v2995
        %v3230 = vunpack.c.l.bf16 %v2996
        %v3231 = vunpack.c.h.bf16 %v2996
        %v3232 = vunpack.c.l.bf16 %v2997
        %v3233 = vunpack.c.h.bf16 %v2997
        %v3234 = vunpack.c.l.bf16 %v2998
        %v3235 = vunpack.c.h.bf16 %v2998
        %v3236 = vunpack.c.l.bf16 %v2999
        %v3237 = vunpack.c.h.bf16 %v2999
        %v3238 = vunpack.c.l.bf16 %v3000
        %v3239 = vunpack.c.h.bf16 %v3000
        %v3240 = vunpack.c.l.bf16 %v3001
        %v3241 = vunpack.c.h.bf16 %v3001
        %v3242 = vunpack.c.l.bf16 %v3002
        %v3243 = vunpack.c.h.bf16 %v3002
        %v3244 = vunpack.c.l.bf16 %v3003
        %v3245 = vunpack.c.h.bf16 %v3003
        %v3246 = vunpack.c.l.bf16 %v3004
        %v3247 = vunpack.c.h.bf16 %v3004
        %v3248 = vunpack.c.l.bf16 %v3005
        %v3249 = vunpack.c.h.bf16 %v3005
        %v3250 = vunpack.c.l.bf16 %v3006
        %v3251 = vunpack.c.h.bf16 %v3006
        %v3252 = vunpack.c.l.bf16 %v3007
        %v3253 = vunpack.c.h.bf16 %v3007
        %v3254 = vunpack.c.l.bf16 %v3008
        %v3255 = vunpack.c.h.bf16 %v3008
        %v3256 = vunpack.c.l.bf16 %v3009
        %v3257 = vunpack.c.h.bf16 %v3009
        %v3258 = vunpack.c.l.bf16 %v3010
        %v3259 = vunpack.c.h.bf16 %v3010
        %v3260 = vunpack.c.l.bf16 %v3011
        %v3261 = vunpack.c.h.bf16 %v3011
        %v3262 = vunpack.c.l.bf16 %v3012
        %v3263 = vunpack.c.h.bf16 %v3012
        %v3264 = vunpack.c.l.bf16 %v3013
        %v3265 = vunpack.c.h.bf16 %v3013
        %v3266 = vunpack.c.l.bf16 %v3014
        %v3267 = vunpack.c.h.bf16 %v3014
        %v3268 = vunpack.c.l.bf16 %v3015
        %v3269 = vunpack.c.h.bf16 %v3015
        %v3270 = vunpack.c.l.bf16 %v3016
        %v3271 = vunpack.c.h.bf16 %v3016
        %v3272 = vunpack.c.l.bf16 %v3017
        %v3273 = vunpack.c.h.bf16 %v3017
        %v3274 = vld [vmem:[%s3] sm:$0xff]
        %v3275 = vld [vmem:[%s3 + $0x8] sm:$0xff]
        %v3276 = vld [vmem:[%s3 + $0x10] sm:$0xff]
        %v3277 = vld [vmem:[%s3 + $0x18] sm:$0xff]
        %v3278 = vld [vmem:[%s3 + $0x20] sm:$0xff]
        %v3279 = vld [vmem:[%s3 + $0x28] sm:$0xff]
        %v3280 = vld [vmem:[%s3 + $0x30] sm:$0xff]
        %v3281 = vld [vmem:[%s3 + $0x38] sm:$0xff]
        %v3282 = vld [vmem:[%s3 + $0x40] sm:$0xff]
        %v3283 = vld [vmem:[%s3 + $0x48] sm:$0xff]
        %v3284 = vld [vmem:[%s3 + $0x50] sm:$0xff]
        %v3285 = vld [vmem:[%s3 + $0x58] sm:$0xff]
        %v3286 = vld [vmem:[%s3 + $0x60] sm:$0xff]
        %v3287 = vld [vmem:[%s3 + $0x68] sm:$0xff]
        %v3288 = vld [vmem:[%s3 + $0x70] sm:$0xff]
        %v3289 = vld [vmem:[%s3 + $0x78] sm:$0xff]
        %v3290 = vld [vmem:[%s3 + $0x80] sm:$0xff]
        %v3291 = vld [vmem:[%s3 + $0x88] sm:$0xff]
        %v3292 = vld [vmem:[%s3 + $0x90] sm:$0xff]
        %v3293 = vld [vmem:[%s3 + $0x98] sm:$0xff]
        %v3294 = vld [vmem:[%s3 + $0xa0] sm:$0xff]
        %v3295 = vld [vmem:[%s3 + $0xa8] sm:$0xff]
        %v3296 = vld [vmem:[%s3 + $0xb0] sm:$0xff]
        %v3297 = vld [vmem:[%s3 + $0xb8] sm:$0xff]
        %v3298 = vld [vmem:[%s3 + $0xc0] sm:$0xff]
        %v3299 = vld [vmem:[%s3 + $0xc8] sm:$0xff]
        %v3300 = vld [vmem:[%s3 + $0xd0] sm:$0xff]
        %v3301 = vld [vmem:[%s3 + $0xd8] sm:$0xff]
        %v3302 = vld [vmem:[%s3 + $0xe0] sm:$0xff]
        %v3303 = vld [vmem:[%s3 + $0xe8] sm:$0xff]
        %v3304 = vld [vmem:[%s3 + $0xf0] sm:$0xff]
        %v3305 = vld [vmem:[%s3 + $0xf8] sm:$0xff]
        %v3306 = vld [vmem:[%s3 + $0x100] sm:$0xff]
        %v3307 = vld [vmem:[%s3 + $0x108] sm:$0xff]
        %v3308 = vld [vmem:[%s3 + $0x110] sm:$0xff]
        %v3309 = vld [vmem:[%s3 + $0x118] sm:$0xff]
        %v3310 = vld [vmem:[%s3 + $0x120] sm:$0xff]
        %v3311 = vld [vmem:[%s3 + $0x128] sm:$0xff]
        %v3312 = vld [vmem:[%s3 + $0x130] sm:$0xff]
        %v3313 = vld [vmem:[%s3 + $0x138] sm:$0xff]
        %v3314 = vld [vmem:[%s3 + $0x140] sm:$0xff]
        %v3315 = vld [vmem:[%s3 + $0x148] sm:$0xff]
        %v3316 = vld [vmem:[%s3 + $0x150] sm:$0xff]
        %v3317 = vld [vmem:[%s3 + $0x158] sm:$0xff]
        %v3318 = vld [vmem:[%s3 + $0x160] sm:$0xff]
        %v3319 = vld [vmem:[%s3 + $0x168] sm:$0xff]
        %v3320 = vld [vmem:[%s3 + $0x170] sm:$0xff]
        %v3321 = vld [vmem:[%s3 + $0x178] sm:$0xff]
        %v3322 = vld [vmem:[%s3 + $0x180] sm:$0xff]
        %v3323 = vld [vmem:[%s3 + $0x188] sm:$0xff]
        %v3324 = vld [vmem:[%s3 + $0x190] sm:$0xff]
        %v3325 = vld [vmem:[%s3 + $0x198] sm:$0xff]
        %v3326 = vld [vmem:[%s3 + $0x1a0] sm:$0xff]
        %v3327 = vld [vmem:[%s3 + $0x1a8] sm:$0xff]
        %v3328 = vld [vmem:[%s3 + $0x1b0] sm:$0xff]
        %v3329 = vld [vmem:[%s3 + $0x1b8] sm:$0xff]
        %v3330 = vld [vmem:[%s3 + $0x1c0] sm:$0xff]
        %v3331 = vld [vmem:[%s3 + $0x1c8] sm:$0xff]
        %v3332 = vld [vmem:[%s3 + $0x1d0] sm:$0xff]
        %v3333 = vld [vmem:[%s3 + $0x1d8] sm:$0xff]
        %v3334 = vld [vmem:[%s3 + $0x1e0] sm:$0xff]
        %v3335 = vld [vmem:[%s3 + $0x1e8] sm:$0xff]
        %v3336 = vld [vmem:[%s3 + $0x1f0] sm:$0xff]
        %v3337 = vld [vmem:[%s3 + $0x1f8] sm:$0xff]
        %v3338 = vld [vmem:[%s3 + $0x200] sm:$0xff]
        %v3339 = vld [vmem:[%s3 + $0x208] sm:$0xff]
        %v3340 = vld [vmem:[%s3 + $0x210] sm:$0xff]
        %v3341 = vld [vmem:[%s3 + $0x218] sm:$0xff]
        %v3342 = vld [vmem:[%s3 + $0x220] sm:$0xff]
        %v3343 = vld [vmem:[%s3 + $0x228] sm:$0xff]
        %v3344 = vld [vmem:[%s3 + $0x230] sm:$0xff]
        %v3345 = vld [vmem:[%s3 + $0x238] sm:$0xff]
        %v3346 = vld [vmem:[%s3 + $0x240] sm:$0xff]
        %v3347 = vld [vmem:[%s3 + $0x248] sm:$0xff]
        %v3348 = vld [vmem:[%s3 + $0x250] sm:$0xff]
        %v3349 = vld [vmem:[%s3 + $0x258] sm:$0xff]
        %v3350 = vld [vmem:[%s3 + $0x260] sm:$0xff]
        %v3351 = vld [vmem:[%s3 + $0x268] sm:$0xff]
        %v3352 = vld [vmem:[%s3 + $0x270] sm:$0xff]
        %v3353 = vld [vmem:[%s3 + $0x278] sm:$0xff]
        %v3354 = vld [vmem:[%s3 + $0x280] sm:$0xff]
        %v3355 = vld [vmem:[%s3 + $0x288] sm:$0xff]
        %v3356 = vld [vmem:[%s3 + $0x290] sm:$0xff]
        %v3357 = vld [vmem:[%s3 + $0x298] sm:$0xff]
        %v3358 = vld [vmem:[%s3 + $0x2a0] sm:$0xff]
        %v3359 = vld [vmem:[%s3 + $0x2a8] sm:$0xff]
        %v3360 = vld [vmem:[%s3 + $0x2b0] sm:$0xff]
        %v3361 = vld [vmem:[%s3 + $0x2b8] sm:$0xff]
        %v3362 = vld [vmem:[%s3 + $0x2c0] sm:$0xff]
        %v3363 = vld [vmem:[%s3 + $0x2c8] sm:$0xff]
        %v3364 = vld [vmem:[%s3 + $0x2d0] sm:$0xff]
        %v3365 = vld [vmem:[%s3 + $0x2d8] sm:$0xff]
        %v3366 = vld [vmem:[%s3 + $0x2e0] sm:$0xff]
        %v3367 = vld [vmem:[%s3 + $0x2e8] sm:$0xff]
        %v3368 = vld [vmem:[%s3 + $0x2f0] sm:$0xff]
        %v3369 = vld [vmem:[%s3 + $0x2f8] sm:$0xff]
        %v3370 = vld [vmem:[%s3 + $0x300] sm:$0xff]
        %v3371 = vld [vmem:[%s3 + $0x308] sm:$0xff]
        %v3372 = vld [vmem:[%s3 + $0x310] sm:$0xff]
        %v3373 = vld [vmem:[%s3 + $0x318] sm:$0xff]
        %v3374 = vld [vmem:[%s3 + $0x320] sm:$0xff]
        %v3375 = vld [vmem:[%s3 + $0x328] sm:$0xff]
        %v3376 = vld [vmem:[%s3 + $0x330] sm:$0xff]
        %v3377 = vld [vmem:[%s3 + $0x338] sm:$0xff]
        %v3378 = vld [vmem:[%s3 + $0x340] sm:$0xff]
        %v3379 = vld [vmem:[%s3 + $0x348] sm:$0xff]
        %v3380 = vld [vmem:[%s3 + $0x350] sm:$0xff]
        %v3381 = vld [vmem:[%s3 + $0x358] sm:$0xff]
        %v3382 = vld [vmem:[%s3 + $0x360] sm:$0xff]
        %v3383 = vld [vmem:[%s3 + $0x368] sm:$0xff]
        %v3384 = vld [vmem:[%s3 + $0x370] sm:$0xff]
        %v3385 = vld [vmem:[%s3 + $0x378] sm:$0xff]
        %v3386 = vld [vmem:[%s3 + $0x380] sm:$0xff]
        %v3387 = vld [vmem:[%s3 + $0x388] sm:$0xff]
        %v3388 = vld [vmem:[%s3 + $0x390] sm:$0xff]
        %v3389 = vld [vmem:[%s3 + $0x398] sm:$0xff]
        %v3390 = vld [vmem:[%s3 + $0x3a0] sm:$0xff]
        %v3391 = vld [vmem:[%s3 + $0x3a8] sm:$0xff]
        %v3392 = vld [vmem:[%s3 + $0x3b0] sm:$0xff]
        %v3393 = vld [vmem:[%s3 + $0x3b8] sm:$0xff]
        %v3394 = vld [vmem:[%s3 + $0x3c0] sm:$0xff]
        %v3395 = vld [vmem:[%s3 + $0x3c8] sm:$0xff]
        %v3396 = vld [vmem:[%s3 + $0x3d0] sm:$0xff]
        %v3397 = vld [vmem:[%s3 + $0x3d8] sm:$0xff]
        %v3398 = vld [vmem:[%s3 + $0x3e0] sm:$0xff]
        %v3399 = vld [vmem:[%s3 + $0x3e8] sm:$0xff]
        %v3400 = vld [vmem:[%s3 + $0x3f0] sm:$0xff]
        %v3401 = vld [vmem:[%s3 + $0x3f8] sm:$0xff]
        %3403 = vset.pattern.permute.xlu0 0
        %3404 = vperm.xlu0 %3403, %v3274
        %v3405 = vpop.permute.xlu0 %3404
        %3408 = vset.pattern.permute.xlu0 0
        %3409 = vperm.xlu0 %3408, %v3275
        %v3410 = vpop.permute.xlu0 %3409
        %3413 = vset.pattern.permute.xlu0 0
        %3414 = vperm.xlu0 %3413, %v3276
        %v3415 = vpop.permute.xlu0 %3414
        %3418 = vset.pattern.permute.xlu0 0
        %3419 = vperm.xlu0 %3418, %v3277
        %v3420 = vpop.permute.xlu0 %3419
        %3423 = vset.pattern.permute.xlu0 0
        %3424 = vperm.xlu0 %3423, %v3278
        %v3425 = vpop.permute.xlu0 %3424
        %3428 = vset.pattern.permute.xlu0 0
        %3429 = vperm.xlu0 %3428, %v3279
        %v3430 = vpop.permute.xlu0 %3429
        %3433 = vset.pattern.permute.xlu0 0
        %3434 = vperm.xlu0 %3433, %v3280
        %v3435 = vpop.permute.xlu0 %3434
        %3438 = vset.pattern.permute.xlu0 0
        %3439 = vperm.xlu0 %3438, %v3281
        %v3440 = vpop.permute.xlu0 %3439
        %3443 = vset.pattern.permute.xlu0 0
        %3444 = vperm.xlu0 %3443, %v3282
        %v3445 = vpop.permute.xlu0 %3444
        %3448 = vset.pattern.permute.xlu0 0
        %3449 = vperm.xlu0 %3448, %v3283
        %v3450 = vpop.permute.xlu0 %3449
        %3453 = vset.pattern.permute.xlu0 0
        %3454 = vperm.xlu0 %3453, %v3284
        %v3455 = vpop.permute.xlu0 %3454
        %3458 = vset.pattern.permute.xlu0 0
        %3459 = vperm.xlu0 %3458, %v3285
        %v3460 = vpop.permute.xlu0 %3459
        %3463 = vset.pattern.permute.xlu0 0
        %3464 = vperm.xlu0 %3463, %v3286
        %v3465 = vpop.permute.xlu0 %3464
        %3468 = vset.pattern.permute.xlu0 0
        %3469 = vperm.xlu0 %3468, %v3287
        %v3470 = vpop.permute.xlu0 %3469
        %3473 = vset.pattern.permute.xlu0 0
        %3474 = vperm.xlu0 %3473, %v3288
        %v3475 = vpop.permute.xlu0 %3474
        %3478 = vset.pattern.permute.xlu0 0
        %3479 = vperm.xlu0 %3478, %v3289
        %v3480 = vpop.permute.xlu0 %3479
        %3483 = vset.pattern.permute.xlu0 0
        %3484 = vperm.xlu0 %3483, %v3290
        %v3485 = vpop.permute.xlu0 %3484
        %3488 = vset.pattern.permute.xlu0 0
        %3489 = vperm.xlu0 %3488, %v3291
        %v3490 = vpop.permute.xlu0 %3489
        %3493 = vset.pattern.permute.xlu0 0
        %3494 = vperm.xlu0 %3493, %v3292
        %v3495 = vpop.permute.xlu0 %3494
        %3498 = vset.pattern.permute.xlu0 0
        %3499 = vperm.xlu0 %3498, %v3293
        %v3500 = vpop.permute.xlu0 %3499
        %3503 = vset.pattern.permute.xlu0 0
        %3504 = vperm.xlu0 %3503, %v3294
        %v3505 = vpop.permute.xlu0 %3504
        %3508 = vset.pattern.permute.xlu0 0
        %3509 = vperm.xlu0 %3508, %v3295
        %v3510 = vpop.permute.xlu0 %3509
        %3513 = vset.pattern.permute.xlu0 0
        %3514 = vperm.xlu0 %3513, %v3296
        %v3515 = vpop.permute.xlu0 %3514
        %3518 = vset.pattern.permute.xlu0 0
        %3519 = vperm.xlu0 %3518, %v3297
        %v3520 = vpop.permute.xlu0 %3519
        %3523 = vset.pattern.permute.xlu0 0
        %3524 = vperm.xlu0 %3523, %v3298
        %v3525 = vpop.permute.xlu0 %3524
        %3528 = vset.pattern.permute.xlu0 0
        %3529 = vperm.xlu0 %3528, %v3299
        %v3530 = vpop.permute.xlu0 %3529
        %3533 = vset.pattern.permute.xlu0 0
        %3534 = vperm.xlu0 %3533, %v3300
        %v3535 = vpop.permute.xlu0 %3534
        %3538 = vset.pattern.permute.xlu0 0
        %3539 = vperm.xlu0 %3538, %v3301
        %v3540 = vpop.permute.xlu0 %3539
        %3543 = vset.pattern.permute.xlu0 0
        %3544 = vperm.xlu0 %3543, %v3302
        %v3545 = vpop.permute.xlu0 %3544
        %3548 = vset.pattern.permute.xlu0 0
        %3549 = vperm.xlu0 %3548, %v3303
        %v3550 = vpop.permute.xlu0 %3549
        %3553 = vset.pattern.permute.xlu0 0
        %3554 = vperm.xlu0 %3553, %v3304
        %v3555 = vpop.permute.xlu0 %3554
        %3558 = vset.pattern.permute.xlu0 0
        %3559 = vperm.xlu0 %3558, %v3305
        %v3560 = vpop.permute.xlu0 %3559
        %3563 = vset.pattern.permute.xlu0 0
        %3564 = vperm.xlu0 %3563, %v3306
        %v3565 = vpop.permute.xlu0 %3564
        %3568 = vset.pattern.permute.xlu0 0
        %3569 = vperm.xlu0 %3568, %v3307
        %v3570 = vpop.permute.xlu0 %3569
        %3573 = vset.pattern.permute.xlu0 0
        %3574 = vperm.xlu0 %3573, %v3308
        %v3575 = vpop.permute.xlu0 %3574
        %3578 = vset.pattern.permute.xlu0 0
        %3579 = vperm.xlu0 %3578, %v3309
        %v3580 = vpop.permute.xlu0 %3579
        %3583 = vset.pattern.permute.xlu0 0
        %3584 = vperm.xlu0 %3583, %v3310
        %v3585 = vpop.permute.xlu0 %3584
        %3588 = vset.pattern.permute.xlu0 0
        %3589 = vperm.xlu0 %3588, %v3311
        %v3590 = vpop.permute.xlu0 %3589
        %3593 = vset.pattern.permute.xlu0 0
        %3594 = vperm.xlu0 %3593, %v3312
        %v3595 = vpop.permute.xlu0 %3594
        %3598 = vset.pattern.permute.xlu0 0
        %3599 = vperm.xlu0 %3598, %v3313
        %v3600 = vpop.permute.xlu0 %3599
        %3603 = vset.pattern.permute.xlu0 0
        %3604 = vperm.xlu0 %3603, %v3314
        %v3605 = vpop.permute.xlu0 %3604
        %3608 = vset.pattern.permute.xlu0 0
        %3609 = vperm.xlu0 %3608, %v3315
        %v3610 = vpop.permute.xlu0 %3609
        %3613 = vset.pattern.permute.xlu0 0
        %3614 = vperm.xlu0 %3613, %v3316
        %v3615 = vpop.permute.xlu0 %3614
        %3618 = vset.pattern.permute.xlu0 0
        %3619 = vperm.xlu0 %3618, %v3317
        %v3620 = vpop.permute.xlu0 %3619
        %3623 = vset.pattern.permute.xlu0 0
        %3624 = vperm.xlu0 %3623, %v3318
        %v3625 = vpop.permute.xlu0 %3624
        %3628 = vset.pattern.permute.xlu0 0
        %3629 = vperm.xlu0 %3628, %v3319
        %v3630 = vpop.permute.xlu0 %3629
        %3633 = vset.pattern.permute.xlu0 0
        %3634 = vperm.xlu0 %3633, %v3320
        %v3635 = vpop.permute.xlu0 %3634
        %3638 = vset.pattern.permute.xlu0 0
        %3639 = vperm.xlu0 %3638, %v3321
        %v3640 = vpop.permute.xlu0 %3639
        %3643 = vset.pattern.permute.xlu0 0
        %3644 = vperm.xlu0 %3643, %v3322
        %v3645 = vpop.permute.xlu0 %3644
        %3648 = vset.pattern.permute.xlu0 0
        %3649 = vperm.xlu0 %3648, %v3323
        %v3650 = vpop.permute.xlu0 %3649
        %3653 = vset.pattern.permute.xlu0 0
        %3654 = vperm.xlu0 %3653, %v3324
        %v3655 = vpop.permute.xlu0 %3654
        %3658 = vset.pattern.permute.xlu0 0
        %3659 = vperm.xlu0 %3658, %v3325
        %v3660 = vpop.permute.xlu0 %3659
        %3663 = vset.pattern.permute.xlu0 0
        %3664 = vperm.xlu0 %3663, %v3326
        %v3665 = vpop.permute.xlu0 %3664
        %3668 = vset.pattern.permute.xlu0 0
        %3669 = vperm.xlu0 %3668, %v3327
        %v3670 = vpop.permute.xlu0 %3669
        %3673 = vset.pattern.permute.xlu0 0
        %3674 = vperm.xlu0 %3673, %v3328
        %v3675 = vpop.permute.xlu0 %3674
        %3678 = vset.pattern.permute.xlu0 0
        %3679 = vperm.xlu0 %3678, %v3329
        %v3680 = vpop.permute.xlu0 %3679
        %3683 = vset.pattern.permute.xlu0 0
        %3684 = vperm.xlu0 %3683, %v3330
        %v3685 = vpop.permute.xlu0 %3684
        %3688 = vset.pattern.permute.xlu0 0
        %3689 = vperm.xlu0 %3688, %v3331
        %v3690 = vpop.permute.xlu0 %3689
        %3693 = vset.pattern.permute.xlu0 0
        %3694 = vperm.xlu0 %3693, %v3332
        %v3695 = vpop.permute.xlu0 %3694
        %3698 = vset.pattern.permute.xlu0 0
        %3699 = vperm.xlu0 %3698, %v3333
        %v3700 = vpop.permute.xlu0 %3699
        %3703 = vset.pattern.permute.xlu0 0
        %3704 = vperm.xlu0 %3703, %v3334
        %v3705 = vpop.permute.xlu0 %3704
        %3708 = vset.pattern.permute.xlu0 0
        %3709 = vperm.xlu0 %3708, %v3335
        %v3710 = vpop.permute.xlu0 %3709
        %3713 = vset.pattern.permute.xlu0 0
        %3714 = vperm.xlu0 %3713, %v3336
        %v3715 = vpop.permute.xlu0 %3714
        %3718 = vset.pattern.permute.xlu0 0
        %3719 = vperm.xlu0 %3718, %v3337
        %v3720 = vpop.permute.xlu0 %3719
        %3723 = vset.pattern.permute.xlu0 0
        %3724 = vperm.xlu0 %3723, %v3338
        %v3725 = vpop.permute.xlu0 %3724
        %3728 = vset.pattern.permute.xlu0 0
        %3729 = vperm.xlu0 %3728, %v3339
        %v3730 = vpop.permute.xlu0 %3729
        %3733 = vset.pattern.permute.xlu0 0
        %3734 = vperm.xlu0 %3733, %v3340
        %v3735 = vpop.permute.xlu0 %3734
        %3738 = vset.pattern.permute.xlu0 0
        %3739 = vperm.xlu0 %3738, %v3341
        %v3740 = vpop.permute.xlu0 %3739
        %3743 = vset.pattern.permute.xlu0 0
        %3744 = vperm.xlu0 %3743, %v3342
        %v3745 = vpop.permute.xlu0 %3744
        %3748 = vset.pattern.permute.xlu0 0
        %3749 = vperm.xlu0 %3748, %v3343
        %v3750 = vpop.permute.xlu0 %3749
        %3753 = vset.pattern.permute.xlu0 0
        %3754 = vperm.xlu0 %3753, %v3344
        %v3755 = vpop.permute.xlu0 %3754
        %3758 = vset.pattern.permute.xlu0 0
        %3759 = vperm.xlu0 %3758, %v3345
        %v3760 = vpop.permute.xlu0 %3759
        %3763 = vset.pattern.permute.xlu0 0
        %3764 = vperm.xlu0 %3763, %v3346
        %v3765 = vpop.permute.xlu0 %3764
        %3768 = vset.pattern.permute.xlu0 0
        %3769 = vperm.xlu0 %3768, %v3347
        %v3770 = vpop.permute.xlu0 %3769
        %3773 = vset.pattern.permute.xlu0 0
        %3774 = vperm.xlu0 %3773, %v3348
        %v3775 = vpop.permute.xlu0 %3774
        %3778 = vset.pattern.permute.xlu0 0
        %3779 = vperm.xlu0 %3778, %v3349
        %v3780 = vpop.permute.xlu0 %3779
        %3783 = vset.pattern.permute.xlu0 0
        %3784 = vperm.xlu0 %3783, %v3350
        %v3785 = vpop.permute.xlu0 %3784
        %3788 = vset.pattern.permute.xlu0 0
        %3789 = vperm.xlu0 %3788, %v3351
        %v3790 = vpop.permute.xlu0 %3789
        %3793 = vset.pattern.permute.xlu0 0
        %3794 = vperm.xlu0 %3793, %v3352
        %v3795 = vpop.permute.xlu0 %3794
        %3798 = vset.pattern.permute.xlu0 0
        %3799 = vperm.xlu0 %3798, %v3353
        %v3800 = vpop.permute.xlu0 %3799
        %3803 = vset.pattern.permute.xlu0 0
        %3804 = vperm.xlu0 %3803, %v3354
        %v3805 = vpop.permute.xlu0 %3804
        %3808 = vset.pattern.permute.xlu0 0
        %3809 = vperm.xlu0 %3808, %v3355
        %v3810 = vpop.permute.xlu0 %3809
        %3813 = vset.pattern.permute.xlu0 0
        %3814 = vperm.xlu0 %3813, %v3356
        %v3815 = vpop.permute.xlu0 %3814
        %3818 = vset.pattern.permute.xlu0 0
        %3819 = vperm.xlu0 %3818, %v3357
        %v3820 = vpop.permute.xlu0 %3819
        %3823 = vset.pattern.permute.xlu0 0
        %3824 = vperm.xlu0 %3823, %v3358
        %v3825 = vpop.permute.xlu0 %3824
        %3828 = vset.pattern.permute.xlu0 0
        %3829 = vperm.xlu0 %3828, %v3359
        %v3830 = vpop.permute.xlu0 %3829
        %3833 = vset.pattern.permute.xlu0 0
        %3834 = vperm.xlu0 %3833, %v3360
        %v3835 = vpop.permute.xlu0 %3834
        %3838 = vset.pattern.permute.xlu0 0
        %3839 = vperm.xlu0 %3838, %v3361
        %v3840 = vpop.permute.xlu0 %3839
        %3843 = vset.pattern.permute.xlu0 0
        %3844 = vperm.xlu0 %3843, %v3362
        %v3845 = vpop.permute.xlu0 %3844
        %3848 = vset.pattern.permute.xlu0 0
        %3849 = vperm.xlu0 %3848, %v3363
        %v3850 = vpop.permute.xlu0 %3849
        %3853 = vset.pattern.permute.xlu0 0
        %3854 = vperm.xlu0 %3853, %v3364
        %v3855 = vpop.permute.xlu0 %3854
        %3858 = vset.pattern.permute.xlu0 0
        %3859 = vperm.xlu0 %3858, %v3365
        %v3860 = vpop.permute.xlu0 %3859
        %3863 = vset.pattern.permute.xlu0 0
        %3864 = vperm.xlu0 %3863, %v3366
        %v3865 = vpop.permute.xlu0 %3864
        %3868 = vset.pattern.permute.xlu0 0
        %3869 = vperm.xlu0 %3868, %v3367
        %v3870 = vpop.permute.xlu0 %3869
        %3873 = vset.pattern.permute.xlu0 0
        %3874 = vperm.xlu0 %3873, %v3368
        %v3875 = vpop.permute.xlu0 %3874
        %3878 = vset.pattern.permute.xlu0 0
        %3879 = vperm.xlu0 %3878, %v3369
        %v3880 = vpop.permute.xlu0 %3879
        %3883 = vset.pattern.permute.xlu0 0
        %3884 = vperm.xlu0 %3883, %v3370
        %v3885 = vpop.permute.xlu0 %3884
        %3888 = vset.pattern.permute.xlu0 0
        %3889 = vperm.xlu0 %3888, %v3371
        %v3890 = vpop.permute.xlu0 %3889
        %3893 = vset.pattern.permute.xlu0 0
        %3894 = vperm.xlu0 %3893, %v3372
        %v3895 = vpop.permute.xlu0 %3894
        %3898 = vset.pattern.permute.xlu0 0
        %3899 = vperm.xlu0 %3898, %v3373
        %v3900 = vpop.permute.xlu0 %3899
        %3903 = vset.pattern.permute.xlu0 0
        %3904 = vperm.xlu0 %3903, %v3374
        %v3905 = vpop.permute.xlu0 %3904
        %3908 = vset.pattern.permute.xlu0 0
        %3909 = vperm.xlu0 %3908, %v3375
        %v3910 = vpop.permute.xlu0 %3909
        %3913 = vset.pattern.permute.xlu0 0
        %3914 = vperm.xlu0 %3913, %v3376
        %v3915 = vpop.permute.xlu0 %3914
        %3918 = vset.pattern.permute.xlu0 0
        %3919 = vperm.xlu0 %3918, %v3377
        %v3920 = vpop.permute.xlu0 %3919
        %3923 = vset.pattern.permute.xlu0 0
        %3924 = vperm.xlu0 %3923, %v3378
        %v3925 = vpop.permute.xlu0 %3924
        %3928 = vset.pattern.permute.xlu0 0
        %3929 = vperm.xlu0 %3928, %v3379
        %v3930 = vpop.permute.xlu0 %3929
        %3933 = vset.pattern.permute.xlu0 0
        %3934 = vperm.xlu0 %3933, %v3380
        %v3935 = vpop.permute.xlu0 %3934
        %3938 = vset.pattern.permute.xlu0 0
        %3939 = vperm.xlu0 %3938, %v3381
        %v3940 = vpop.permute.xlu0 %3939
        %3943 = vset.pattern.permute.xlu0 0
        %3944 = vperm.xlu0 %3943, %v3382
        %v3945 = vpop.permute.xlu0 %3944
        %3948 = vset.pattern.permute.xlu0 0
        %3949 = vperm.xlu0 %3948, %v3383
        %v3950 = vpop.permute.xlu0 %3949
        %3953 = vset.pattern.permute.xlu0 0
        %3954 = vperm.xlu0 %3953, %v3384
        %v3955 = vpop.permute.xlu0 %3954
        %3958 = vset.pattern.permute.xlu0 0
        %3959 = vperm.xlu0 %3958, %v3385
        %v3960 = vpop.permute.xlu0 %3959
        %3963 = vset.pattern.permute.xlu0 0
        %3964 = vperm.xlu0 %3963, %v3386
        %v3965 = vpop.permute.xlu0 %3964
        %3968 = vset.pattern.permute.xlu0 0
        %3969 = vperm.xlu0 %3968, %v3387
        %v3970 = vpop.permute.xlu0 %3969
        %3973 = vset.pattern.permute.xlu0 0
        %3974 = vperm.xlu0 %3973, %v3388
        %v3975 = vpop.permute.xlu0 %3974
        %3978 = vset.pattern.permute.xlu0 0
        %3979 = vperm.xlu0 %3978, %v3389
        %v3980 = vpop.permute.xlu0 %3979
        %3983 = vset.pattern.permute.xlu0 0
        %3984 = vperm.xlu0 %3983, %v3390
        %v3985 = vpop.permute.xlu0 %3984
        %3988 = vset.pattern.permute.xlu0 0
        %3989 = vperm.xlu0 %3988, %v3391
        %v3990 = vpop.permute.xlu0 %3989
        %3993 = vset.pattern.permute.xlu0 0
        %3994 = vperm.xlu0 %3993, %v3392
        %v3995 = vpop.permute.xlu0 %3994
        %3998 = vset.pattern.permute.xlu0 0
        %3999 = vperm.xlu0 %3998, %v3393
        %v4000 = vpop.permute.xlu0 %3999
        %4003 = vset.pattern.permute.xlu0 0
        %4004 = vperm.xlu0 %4003, %v3394
        %v4005 = vpop.permute.xlu0 %4004
        %4008 = vset.pattern.permute.xlu0 0
        %4009 = vperm.xlu0 %4008, %v3395
        %v4010 = vpop.permute.xlu0 %4009
        %4013 = vset.pattern.permute.xlu0 0
        %4014 = vperm.xlu0 %4013, %v3396
        %v4015 = vpop.permute.xlu0 %4014
        %4018 = vset.pattern.permute.xlu0 0
        %4019 = vperm.xlu0 %4018, %v3397
        %v4020 = vpop.permute.xlu0 %4019
        %4023 = vset.pattern.permute.xlu0 0
        %4024 = vperm.xlu0 %4023, %v3398
        %v4025 = vpop.permute.xlu0 %4024
        %4028 = vset.pattern.permute.xlu0 0
        %4029 = vperm.xlu0 %4028, %v3399
        %v4030 = vpop.permute.xlu0 %4029
        %4033 = vset.pattern.permute.xlu0 0
        %4034 = vperm.xlu0 %4033, %v3400
        %v4035 = vpop.permute.xlu0 %4034
        %4038 = vset.pattern.permute.xlu0 0
        %4039 = vperm.xlu0 %4038, %v3401
        %v4040 = vpop.permute.xlu0 %4039
        %v4042 = vmul.f32 %v2634, %v3405
        %v4043 = vmul.f32 %v2635, %v3405
        %v4044 = vmul.f32 %v2636, %v3410
        %v4045 = vmul.f32 %v2637, %v3410
        %v4046 = vmul.f32 %v2638, %v3415
        %v4047 = vmul.f32 %v2639, %v3415
        %v4048 = vmul.f32 %v2640, %v3420
        %v4049 = vmul.f32 %v2641, %v3420
        %v4050 = vmul.f32 %v2642, %v3425
        %v4051 = vmul.f32 %v2643, %v3425
        %v4052 = vmul.f32 %v2644, %v3430
        %v4053 = vmul.f32 %v2645, %v3430
        %v4054 = vmul.f32 %v2646, %v3435
        %v4055 = vmul.f32 %v2647, %v3435
        %v4056 = vmul.f32 %v2648, %v3440
        %v4057 = vmul.f32 %v2649, %v3440
        %v4058 = vmul.f32 %v2650, %v3445
        %v4059 = vmul.f32 %v2651, %v3445
        %v4060 = vmul.f32 %v2652, %v3450
        %v4061 = vmul.f32 %v2653, %v3450
        %v4062 = vmul.f32 %v2654, %v3455
        %v4063 = vmul.f32 %v2655, %v3455
        %v4064 = vmul.f32 %v2656, %v3460
        %v4065 = vmul.f32 %v2657, %v3460
        %v4066 = vmul.f32 %v2658, %v3465
        %v4067 = vmul.f32 %v2659, %v3465
        %v4068 = vmul.f32 %v2660, %v3470
        %v4069 = vmul.f32 %v2661, %v3470
        %v4070 = vmul.f32 %v2662, %v3475
        %v4071 = vmul.f32 %v2663, %v3475
        %v4072 = vmul.f32 %v2664, %v3480
        %v4073 = vmul.f32 %v2665, %v3480
        %v4074 = vmul.f32 %v2666, %v3485
        %v4075 = vmul.f32 %v2667, %v3485
        %v4076 = vmul.f32 %v2668, %v3490
        %v4077 = vmul.f32 %v2669, %v3490
        %v4078 = vmul.f32 %v2670, %v3495
        %v4079 = vmul.f32 %v2671, %v3495
        %v4080 = vmul.f32 %v2672, %v3500
        %v4081 = vmul.f32 %v2673, %v3500
        %v4082 = vmul.f32 %v2674, %v3505
        %v4083 = vmul.f32 %v2675, %v3505
        %v4084 = vmul.f32 %v2676, %v3510
        %v4085 = vmul.f32 %v2677, %v3510
        %v4086 = vmul.f32 %v2678, %v3515
        %v4087 = vmul.f32 %v2679, %v3515
        %v4088 = vmul.f32 %v2680, %v3520
        %v4089 = vmul.f32 %v2681, %v3520
        %v4090 = vmul.f32 %v2682, %v3525
        %v4091 = vmul.f32 %v2683, %v3525
        %v4092 = vmul.f32 %v2684, %v3530
        %v4093 = vmul.f32 %v2685, %v3530
        %v4094 = vmul.f32 %v2686, %v3535
        %v4095 = vmul.f32 %v2687, %v3535
        %v4096 = vmul.f32 %v2688, %v3540
        %v4097 = vmul.f32 %v2689, %v3540
        %v4098 = vmul.f32 %v2690, %v3545
        %v4099 = vmul.f32 %v2691, %v3545
        %v4100 = vmul.f32 %v2692, %v3550
        %v4101 = vmul.f32 %v2693, %v3550
        %v4102 = vmul.f32 %v2694, %v3555
        %v4103 = vmul.f32 %v2695, %v3555
        %v4104 = vmul.f32 %v2696, %v3560
        %v4105 = vmul.f32 %v2697, %v3560
        %v4106 = vmul.f32 %v2698, %v3565
        %v4107 = vmul.f32 %v2699, %v3565
        %v4108 = vmul.f32 %v2700, %v3570
        %v4109 = vmul.f32 %v2701, %v3570
        %v4110 = vmul.f32 %v2702, %v3575
        %v4111 = vmul.f32 %v2703, %v3575
        %v4112 = vmul.f32 %v2704, %v3580
        %v4113 = vmul.f32 %v2705, %v3580
        %v4114 = vmul.f32 %v2706, %v3585
        %v4115 = vmul.f32 %v2707, %v3585
        %v4116 = vmul.f32 %v2708, %v3590
        %v4117 = vmul.f32 %v2709, %v3590
        %v4118 = vmul.f32 %v2710, %v3595
        %v4119 = vmul.f32 %v2711, %v3595
        %v4120 = vmul.f32 %v2712, %v3600
        %v4121 = vmul.f32 %v2713, %v3600
        %v4122 = vmul.f32 %v2714, %v3605
        %v4123 = vmul.f32 %v2715, %v3605
        %v4124 = vmul.f32 %v2716, %v3610
        %v4125 = vmul.f32 %v2717, %v3610
        %v4126 = vmul.f32 %v2718, %v3615
        %v4127 = vmul.f32 %v2719, %v3615
        %v4128 = vmul.f32 %v2720, %v3620
        %v4129 = vmul.f32 %v2721, %v3620
        %v4130 = vmul.f32 %v2722, %v3625
        %v4131 = vmul.f32 %v2723, %v3625
        %v4132 = vmul.f32 %v2724, %v3630
        %v4133 = vmul.f32 %v2725, %v3630
        %v4134 = vmul.f32 %v2726, %v3635
        %v4135 = vmul.f32 %v2727, %v3635
        %v4136 = vmul.f32 %v2728, %v3640
        %v4137 = vmul.f32 %v2729, %v3640
        %v4138 = vmul.f32 %v2730, %v3645
        %v4139 = vmul.f32 %v2731, %v3645
        %v4140 = vmul.f32 %v2732, %v3650
        %v4141 = vmul.f32 %v2733, %v3650
        %v4142 = vmul.f32 %v2734, %v3655
        %v4143 = vmul.f32 %v2735, %v3655
        %v4144 = vmul.f32 %v2736, %v3660
        %v4145 = vmul.f32 %v2737, %v3660
        %v4146 = vmul.f32 %v2738, %v3665
        %v4147 = vmul.f32 %v2739, %v3665
        %v4148 = vmul.f32 %v2740, %v3670
        %v4149 = vmul.f32 %v2741, %v3670
        %v4150 = vmul.f32 %v2742, %v3675
        %v4151 = vmul.f32 %v2743, %v3675
        %v4152 = vmul.f32 %v2744, %v3680
        %v4153 = vmul.f32 %v2745, %v3680
        %v4154 = vmul.f32 %v2746, %v3685
        %v4155 = vmul.f32 %v2747, %v3685
        %v4156 = vmul.f32 %v2748, %v3690
        %v4157 = vmul.f32 %v2749, %v3690
        %v4158 = vmul.f32 %v2750, %v3695
        %v4159 = vmul.f32 %v2751, %v3695
        %v4160 = vmul.f32 %v2752, %v3700
        %v4161 = vmul.f32 %v2753, %v3700
        %v4162 = vmul.f32 %v2754, %v3705
        %v4163 = vmul.f32 %v2755, %v3705
        %v4164 = vmul.f32 %v2756, %v3710
        %v4165 = vmul.f32 %v2757, %v3710
        %v4166 = vmul.f32 %v2758, %v3715
        %v4167 = vmul.f32 %v2759, %v3715
        %v4168 = vmul.f32 %v2760, %v3720
        %v4169 = vmul.f32 %v2761, %v3720
        %v4170 = vmul.f32 %v2762, %v3725
        %v4171 = vmul.f32 %v2763, %v3725
        %v4172 = vmul.f32 %v2764, %v3730
        %v4173 = vmul.f32 %v2765, %v3730
        %v4174 = vmul.f32 %v2766, %v3735
        %v4175 = vmul.f32 %v2767, %v3735
        %v4176 = vmul.f32 %v2768, %v3740
        %v4177 = vmul.f32 %v2769, %v3740
        %v4178 = vmul.f32 %v2770, %v3745
        %v4179 = vmul.f32 %v2771, %v3745
        %v4180 = vmul.f32 %v2772, %v3750
        %v4181 = vmul.f32 %v2773, %v3750
        %v4182 = vmul.f32 %v2774, %v3755
        %v4183 = vmul.f32 %v2775, %v3755
        %v4184 = vmul.f32 %v2776, %v3760
        %v4185 = vmul.f32 %v2777, %v3760
        %v4186 = vmul.f32 %v2778, %v3765
        %v4187 = vmul.f32 %v2779, %v3765
        %v4188 = vmul.f32 %v2780, %v3770
        %v4189 = vmul.f32 %v2781, %v3770
        %v4190 = vmul.f32 %v2782, %v3775
        %v4191 = vmul.f32 %v2783, %v3775
        %v4192 = vmul.f32 %v2784, %v3780
        %v4193 = vmul.f32 %v2785, %v3780
        %v4194 = vmul.f32 %v2786, %v3785
        %v4195 = vmul.f32 %v2787, %v3785
        %v4196 = vmul.f32 %v2788, %v3790
        %v4197 = vmul.f32 %v2789, %v3790
        %v4198 = vmul.f32 %v2790, %v3795
        %v4199 = vmul.f32 %v2791, %v3795
        %v4200 = vmul.f32 %v2792, %v3800
        %v4201 = vmul.f32 %v2793, %v3800
        %v4202 = vmul.f32 %v2794, %v3805
        %v4203 = vmul.f32 %v2795, %v3805
        %v4204 = vmul.f32 %v2796, %v3810
        %v4205 = vmul.f32 %v2797, %v3810
        %v4206 = vmul.f32 %v2798, %v3815
        %v4207 = vmul.f32 %v2799, %v3815
        %v4208 = vmul.f32 %v2800, %v3820
        %v4209 = vmul.f32 %v2801, %v3820
        %v4210 = vmul.f32 %v2802, %v3825
        %v4211 = vmul.f32 %v2803, %v3825
        %v4212 = vmul.f32 %v2804, %v3830
        %v4213 = vmul.f32 %v2805, %v3830
        %v4214 = vmul.f32 %v2806, %v3835
        %v4215 = vmul.f32 %v2807, %v3835
        %v4216 = vmul.f32 %v2808, %v3840
        %v4217 = vmul.f32 %v2809, %v3840
        %v4218 = vmul.f32 %v2810, %v3845
        %v4219 = vmul.f32 %v2811, %v3845
        %v4220 = vmul.f32 %v2812, %v3850
        %v4221 = vmul.f32 %v2813, %v3850
        %v4222 = vmul.f32 %v2814, %v3855
        %v4223 = vmul.f32 %v2815, %v3855
        %v4224 = vmul.f32 %v2816, %v3860
        %v4225 = vmul.f32 %v2817, %v3860
        %v4226 = vmul.f32 %v2818, %v3865
        %v4227 = vmul.f32 %v2819, %v3865
        %v4228 = vmul.f32 %v2820, %v3870
        %v4229 = vmul.f32 %v2821, %v3870
        %v4230 = vmul.f32 %v2822, %v3875
        %v4231 = vmul.f32 %v2823, %v3875
        %v4232 = vmul.f32 %v2824, %v3880
        %v4233 = vmul.f32 %v2825, %v3880
        %v4234 = vmul.f32 %v2826, %v3885
        %v4235 = vmul.f32 %v2827, %v3885
        %v4236 = vmul.f32 %v2828, %v3890
        %v4237 = vmul.f32 %v2829, %v3890
        %v4238 = vmul.f32 %v2830, %v3895
        %v4239 = vmul.f32 %v2831, %v3895
        %v4240 = vmul.f32 %v2832, %v3900
        %v4241 = vmul.f32 %v2833, %v3900
        %v4242 = vmul.f32 %v2834, %v3905
        %v4243 = vmul.f32 %v2835, %v3905
        %v4244 = vmul.f32 %v2836, %v3910
        %v4245 = vmul.f32 %v2837, %v3910
        %v4246 = vmul.f32 %v2838, %v3915
        %v4247 = vmul.f32 %v2839, %v3915
        %v4248 = vmul.f32 %v2840, %v3920
        %v4249 = vmul.f32 %v2841, %v3920
        %v4250 = vmul.f32 %v2842, %v3925
        %v4251 = vmul.f32 %v2843, %v3925
        %v4252 = vmul.f32 %v2844, %v3930
        %v4253 = vmul.f32 %v2845, %v3930
        %v4254 = vmul.f32 %v2846, %v3935
        %v4255 = vmul.f32 %v2847, %v3935
        %v4256 = vmul.f32 %v2848, %v3940
        %v4257 = vmul.f32 %v2849, %v3940
        %v4258 = vmul.f32 %v2850, %v3945
        %v4259 = vmul.f32 %v2851, %v3945
        %v4260 = vmul.f32 %v2852, %v3950
        %v4261 = vmul.f32 %v2853, %v3950
        %v4262 = vmul.f32 %v2854, %v3955
        %v4263 = vmul.f32 %v2855, %v3955
        %v4264 = vmul.f32 %v2856, %v3960
        %v4265 = vmul.f32 %v2857, %v3960
        %v4266 = vmul.f32 %v2858, %v3965
        %v4267 = vmul.f32 %v2859, %v3965
        %v4268 = vmul.f32 %v2860, %v3970
        %v4269 = vmul.f32 %v2861, %v3970
        %v4270 = vmul.f32 %v2862, %v3975
        %v4271 = vmul.f32 %v2863, %v3975
        %v4272 = vmul.f32 %v2864, %v3980
        %v4273 = vmul.f32 %v2865, %v3980
        %v4274 = vmul.f32 %v2866, %v3985
        %v4275 = vmul.f32 %v2867, %v3985
        %v4276 = vmul.f32 %v2868, %v3990
        %v4277 = vmul.f32 %v2869, %v3990
        %v4278 = vmul.f32 %v2870, %v3995
        %v4279 = vmul.f32 %v2871, %v3995
        %v4280 = vmul.f32 %v2872, %v4000
        %v4281 = vmul.f32 %v2873, %v4000
        %v4282 = vmul.f32 %v2874, %v4005
        %v4283 = vmul.f32 %v2875, %v4005
        %v4284 = vmul.f32 %v2876, %v4010
        %v4285 = vmul.f32 %v2877, %v4010
        %v4286 = vmul.f32 %v2878, %v4015
        %v4287 = vmul.f32 %v2879, %v4015
        %v4288 = vmul.f32 %v2880, %v4020
        %v4289 = vmul.f32 %v2881, %v4020
        %v4290 = vmul.f32 %v2882, %v4025
        %v4291 = vmul.f32 %v2883, %v4025
        %v4292 = vmul.f32 %v2884, %v4030
        %v4293 = vmul.f32 %v2885, %v4030
        %v4294 = vmul.f32 %v2886, %v4035
        %v4295 = vmul.f32 %v2887, %v4035
        %v4296 = vmul.f32 %v2888, %v4040
        %v4297 = vmul.f32 %v2889, %v4040
        %4298 = vset.pattern.permute.xlu0 1
        %4299 = vperm.xlu0 %4298, %v3274
        %v4300 = vpop.permute.xlu0 %4299
        %4302 = vset.pattern.permute.xlu0 1
        %4303 = vperm.xlu0 %4302, %v3275
        %v4304 = vpop.permute.xlu0 %4303
        %4306 = vset.pattern.permute.xlu0 1
        %4307 = vperm.xlu0 %4306, %v3276
        %v4308 = vpop.permute.xlu0 %4307
        %4310 = vset.pattern.permute.xlu0 1
        %4311 = vperm.xlu0 %4310, %v3277
        %v4312 = vpop.permute.xlu0 %4311
        %4314 = vset.pattern.permute.xlu0 1
        %4315 = vperm.xlu0 %4314, %v3278
        %v4316 = vpop.permute.xlu0 %4315
        %4318 = vset.pattern.permute.xlu0 1
        %4319 = vperm.xlu0 %4318, %v3279
        %v4320 = vpop.permute.xlu0 %4319
        %4322 = vset.pattern.permute.xlu0 1
        %4323 = vperm.xlu0 %4322, %v3280
        %v4324 = vpop.permute.xlu0 %4323
        %4326 = vset.pattern.permute.xlu0 1
        %4327 = vperm.xlu0 %4326, %v3281
        %v4328 = vpop.permute.xlu0 %4327
        %4330 = vset.pattern.permute.xlu0 1
        %4331 = vperm.xlu0 %4330, %v3282
        %v4332 = vpop.permute.xlu0 %4331
        %4334 = vset.pattern.permute.xlu0 1
        %4335 = vperm.xlu0 %4334, %v3283
        %v4336 = vpop.permute.xlu0 %4335
        %4338 = vset.pattern.permute.xlu0 1
        %4339 = vperm.xlu0 %4338, %v3284
        %v4340 = vpop.permute.xlu0 %4339
        %4342 = vset.pattern.permute.xlu0 1
        %4343 = vperm.xlu0 %4342, %v3285
        %v4344 = vpop.permute.xlu0 %4343
        %4346 = vset.pattern.permute.xlu0 1
        %4347 = vperm.xlu0 %4346, %v3286
        %v4348 = vpop.permute.xlu0 %4347
        %4350 = vset.pattern.permute.xlu0 1
        %4351 = vperm.xlu0 %4350, %v3287
        %v4352 = vpop.permute.xlu0 %4351
        %4354 = vset.pattern.permute.xlu0 1
        %4355 = vperm.xlu0 %4354, %v3288
        %v4356 = vpop.permute.xlu0 %4355
        %4358 = vset.pattern.permute.xlu0 1
        %4359 = vperm.xlu0 %4358, %v3289
        %v4360 = vpop.permute.xlu0 %4359
        %4362 = vset.pattern.permute.xlu0 1
        %4363 = vperm.xlu0 %4362, %v3290
        %v4364 = vpop.permute.xlu0 %4363
        %4366 = vset.pattern.permute.xlu0 1
        %4367 = vperm.xlu0 %4366, %v3291
        %v4368 = vpop.permute.xlu0 %4367
        %4370 = vset.pattern.permute.xlu0 1
        %4371 = vperm.xlu0 %4370, %v3292
        %v4372 = vpop.permute.xlu0 %4371
        %4374 = vset.pattern.permute.xlu0 1
        %4375 = vperm.xlu0 %4374, %v3293
        %v4376 = vpop.permute.xlu0 %4375
        %4378 = vset.pattern.permute.xlu0 1
        %4379 = vperm.xlu0 %4378, %v3294
        %v4380 = vpop.permute.xlu0 %4379
        %4382 = vset.pattern.permute.xlu0 1
        %4383 = vperm.xlu0 %4382, %v3295
        %v4384 = vpop.permute.xlu0 %4383
        %4386 = vset.pattern.permute.xlu0 1
        %4387 = vperm.xlu0 %4386, %v3296
        %v4388 = vpop.permute.xlu0 %4387
        %4390 = vset.pattern.permute.xlu0 1
        %4391 = vperm.xlu0 %4390, %v3297
        %v4392 = vpop.permute.xlu0 %4391
        %4394 = vset.pattern.permute.xlu0 1
        %4395 = vperm.xlu0 %4394, %v3298
        %v4396 = vpop.permute.xlu0 %4395
        %4398 = vset.pattern.permute.xlu0 1
        %4399 = vperm.xlu0 %4398, %v3299
        %v4400 = vpop.permute.xlu0 %4399
        %4402 = vset.pattern.permute.xlu0 1
        %4403 = vperm.xlu0 %4402, %v3300
        %v4404 = vpop.permute.xlu0 %4403
        %4406 = vset.pattern.permute.xlu0 1
        %4407 = vperm.xlu0 %4406, %v3301
        %v4408 = vpop.permute.xlu0 %4407
        %4410 = vset.pattern.permute.xlu0 1
        %4411 = vperm.xlu0 %4410, %v3302
        %v4412 = vpop.permute.xlu0 %4411
        %4414 = vset.pattern.permute.xlu0 1
        %4415 = vperm.xlu0 %4414, %v3303
        %v4416 = vpop.permute.xlu0 %4415
        %4418 = vset.pattern.permute.xlu0 1
        %4419 = vperm.xlu0 %4418, %v3304
        %v4420 = vpop.permute.xlu0 %4419
        %4422 = vset.pattern.permute.xlu0 1
        %4423 = vperm.xlu0 %4422, %v3305
        %v4424 = vpop.permute.xlu0 %4423
        %4426 = vset.pattern.permute.xlu0 1
        %4427 = vperm.xlu0 %4426, %v3306
        %v4428 = vpop.permute.xlu0 %4427
        %4430 = vset.pattern.permute.xlu0 1
        %4431 = vperm.xlu0 %4430, %v3307
        %v4432 = vpop.permute.xlu0 %4431
        %4434 = vset.pattern.permute.xlu0 1
        %4435 = vperm.xlu0 %4434, %v3308
        %v4436 = vpop.permute.xlu0 %4435
        %4438 = vset.pattern.permute.xlu0 1
        %4439 = vperm.xlu0 %4438, %v3309
        %v4440 = vpop.permute.xlu0 %4439
        %4442 = vset.pattern.permute.xlu0 1
        %4443 = vperm.xlu0 %4442, %v3310
        %v4444 = vpop.permute.xlu0 %4443
        %4446 = vset.pattern.permute.xlu0 1
        %4447 = vperm.xlu0 %4446, %v3311
        %v4448 = vpop.permute.xlu0 %4447
        %4450 = vset.pattern.permute.xlu0 1
        %4451 = vperm.xlu0 %4450, %v3312
        %v4452 = vpop.permute.xlu0 %4451
        %4454 = vset.pattern.permute.xlu0 1
        %4455 = vperm.xlu0 %4454, %v3313
        %v4456 = vpop.permute.xlu0 %4455
        %4458 = vset.pattern.permute.xlu0 1
        %4459 = vperm.xlu0 %4458, %v3314
        %v4460 = vpop.permute.xlu0 %4459
        %4462 = vset.pattern.permute.xlu0 1
        %4463 = vperm.xlu0 %4462, %v3315
        %v4464 = vpop.permute.xlu0 %4463
        %4466 = vset.pattern.permute.xlu0 1
        %4467 = vperm.xlu0 %4466, %v3316
        %v4468 = vpop.permute.xlu0 %4467
        %4470 = vset.pattern.permute.xlu0 1
        %4471 = vperm.xlu0 %4470, %v3317
        %v4472 = vpop.permute.xlu0 %4471
        %4474 = vset.pattern.permute.xlu0 1
        %4475 = vperm.xlu0 %4474, %v3318
        %v4476 = vpop.permute.xlu0 %4475
        %4478 = vset.pattern.permute.xlu0 1
        %4479 = vperm.xlu0 %4478, %v3319
        %v4480 = vpop.permute.xlu0 %4479
        %4482 = vset.pattern.permute.xlu0 1
        %4483 = vperm.xlu0 %4482, %v3320
        %v4484 = vpop.permute.xlu0 %4483
        %4486 = vset.pattern.permute.xlu0 1
        %4487 = vperm.xlu0 %4486, %v3321
        %v4488 = vpop.permute.xlu0 %4487
        %4490 = vset.pattern.permute.xlu0 1
        %4491 = vperm.xlu0 %4490, %v3322
        %v4492 = vpop.permute.xlu0 %4491
        %4494 = vset.pattern.permute.xlu0 1
        %4495 = vperm.xlu0 %4494, %v3323
        %v4496 = vpop.permute.xlu0 %4495
        %4498 = vset.pattern.permute.xlu0 1
        %4499 = vperm.xlu0 %4498, %v3324
        %v4500 = vpop.permute.xlu0 %4499
        %4502 = vset.pattern.permute.xlu0 1
        %4503 = vperm.xlu0 %4502, %v3325
        %v4504 = vpop.permute.xlu0 %4503
        %4506 = vset.pattern.permute.xlu0 1
        %4507 = vperm.xlu0 %4506, %v3326
        %v4508 = vpop.permute.xlu0 %4507
        %4510 = vset.pattern.permute.xlu0 1
        %4511 = vperm.xlu0 %4510, %v3327
        %v4512 = vpop.permute.xlu0 %4511
        %4514 = vset.pattern.permute.xlu0 1
        %4515 = vperm.xlu0 %4514, %v3328
        %v4516 = vpop.permute.xlu0 %4515
        %4518 = vset.pattern.permute.xlu0 1
        %4519 = vperm.xlu0 %4518, %v3329
        %v4520 = vpop.permute.xlu0 %4519
        %4522 = vset.pattern.permute.xlu0 1
        %4523 = vperm.xlu0 %4522, %v3330
        %v4524 = vpop.permute.xlu0 %4523
        %4526 = vset.pattern.permute.xlu0 1
        %4527 = vperm.xlu0 %4526, %v3331
        %v4528 = vpop.permute.xlu0 %4527
        %4530 = vset.pattern.permute.xlu0 1
        %4531 = vperm.xlu0 %4530, %v3332
        %v4532 = vpop.permute.xlu0 %4531
        %4534 = vset.pattern.permute.xlu0 1
        %4535 = vperm.xlu0 %4534, %v3333
        %v4536 = vpop.permute.xlu0 %4535
        %4538 = vset.pattern.permute.xlu0 1
        %4539 = vperm.xlu0 %4538, %v3334
        %v4540 = vpop.permute.xlu0 %4539
        %4542 = vset.pattern.permute.xlu0 1
        %4543 = vperm.xlu0 %4542, %v3335
        %v4544 = vpop.permute.xlu0 %4543
        %4546 = vset.pattern.permute.xlu0 1
        %4547 = vperm.xlu0 %4546, %v3336
        %v4548 = vpop.permute.xlu0 %4547
        %4550 = vset.pattern.permute.xlu0 1
        %4551 = vperm.xlu0 %4550, %v3337
        %v4552 = vpop.permute.xlu0 %4551
        %4554 = vset.pattern.permute.xlu0 1
        %4555 = vperm.xlu0 %4554, %v3338
        %v4556 = vpop.permute.xlu0 %4555
        %4558 = vset.pattern.permute.xlu0 1
        %4559 = vperm.xlu0 %4558, %v3339
        %v4560 = vpop.permute.xlu0 %4559
        %4562 = vset.pattern.permute.xlu0 1
        %4563 = vperm.xlu0 %4562, %v3340
        %v4564 = vpop.permute.xlu0 %4563
        %4566 = vset.pattern.permute.xlu0 1
        %4567 = vperm.xlu0 %4566, %v3341
        %v4568 = vpop.permute.xlu0 %4567
        %4570 = vset.pattern.permute.xlu0 1
        %4571 = vperm.xlu0 %4570, %v3342
        %v4572 = vpop.permute.xlu0 %4571
        %4574 = vset.pattern.permute.xlu0 1
        %4575 = vperm.xlu0 %4574, %v3343
        %v4576 = vpop.permute.xlu0 %4575
        %4578 = vset.pattern.permute.xlu0 1
        %4579 = vperm.xlu0 %4578, %v3344
        %v4580 = vpop.permute.xlu0 %4579
        %4582 = vset.pattern.permute.xlu0 1
        %4583 = vperm.xlu0 %4582, %v3345
        %v4584 = vpop.permute.xlu0 %4583
        %4586 = vset.pattern.permute.xlu0 1
        %4587 = vperm.xlu0 %4586, %v3346
        %v4588 = vpop.permute.xlu0 %4587
        %4590 = vset.pattern.permute.xlu0 1
        %4591 = vperm.xlu0 %4590, %v3347
        %v4592 = vpop.permute.xlu0 %4591
        %4594 = vset.pattern.permute.xlu0 1
        %4595 = vperm.xlu0 %4594, %v3348
        %v4596 = vpop.permute.xlu0 %4595
        %4598 = vset.pattern.permute.xlu0 1
        %4599 = vperm.xlu0 %4598, %v3349
        %v4600 = vpop.permute.xlu0 %4599
        %4602 = vset.pattern.permute.xlu0 1
        %4603 = vperm.xlu0 %4602, %v3350
        %v4604 = vpop.permute.xlu0 %4603
        %4606 = vset.pattern.permute.xlu0 1
        %4607 = vperm.xlu0 %4606, %v3351
        %v4608 = vpop.permute.xlu0 %4607
        %4610 = vset.pattern.permute.xlu0 1
        %4611 = vperm.xlu0 %4610, %v3352
        %v4612 = vpop.permute.xlu0 %4611
        %4614 = vset.pattern.permute.xlu0 1
        %4615 = vperm.xlu0 %4614, %v3353
        %v4616 = vpop.permute.xlu0 %4615
        %4618 = vset.pattern.permute.xlu0 1
        %4619 = vperm.xlu0 %4618, %v3354
        %v4620 = vpop.permute.xlu0 %4619
        %4622 = vset.pattern.permute.xlu0 1
        %4623 = vperm.xlu0 %4622, %v3355
        %v4624 = vpop.permute.xlu0 %4623
        %4626 = vset.pattern.permute.xlu0 1
        %4627 = vperm.xlu0 %4626, %v3356
        %v4628 = vpop.permute.xlu0 %4627
        %4630 = vset.pattern.permute.xlu0 1
        %4631 = vperm.xlu0 %4630, %v3357
        %v4632 = vpop.permute.xlu0 %4631
        %4634 = vset.pattern.permute.xlu0 1
        %4635 = vperm.xlu0 %4634, %v3358
        %v4636 = vpop.permute.xlu0 %4635
        %4638 = vset.pattern.permute.xlu0 1
        %4639 = vperm.xlu0 %4638, %v3359
        %v4640 = vpop.permute.xlu0 %4639
        %4642 = vset.pattern.permute.xlu0 1
        %4643 = vperm.xlu0 %4642, %v3360
        %v4644 = vpop.permute.xlu0 %4643
        %4646 = vset.pattern.permute.xlu0 1
        %4647 = vperm.xlu0 %4646, %v3361
        %v4648 = vpop.permute.xlu0 %4647
        %4650 = vset.pattern.permute.xlu0 1
        %4651 = vperm.xlu0 %4650, %v3362
        %v4652 = vpop.permute.xlu0 %4651
        %4654 = vset.pattern.permute.xlu0 1
        %4655 = vperm.xlu0 %4654, %v3363
        %v4656 = vpop.permute.xlu0 %4655
        %4658 = vset.pattern.permute.xlu0 1
        %4659 = vperm.xlu0 %4658, %v3364
        %v4660 = vpop.permute.xlu0 %4659
        %4662 = vset.pattern.permute.xlu0 1
        %4663 = vperm.xlu0 %4662, %v3365
        %v4664 = vpop.permute.xlu0 %4663
        %4666 = vset.pattern.permute.xlu0 1
        %4667 = vperm.xlu0 %4666, %v3366
        %v4668 = vpop.permute.xlu0 %4667
        %4670 = vset.pattern.permute.xlu0 1
        %4671 = vperm.xlu0 %4670, %v3367
        %v4672 = vpop.permute.xlu0 %4671
        %4674 = vset.pattern.permute.xlu0 1
        %4675 = vperm.xlu0 %4674, %v3368
        %v4676 = vpop.permute.xlu0 %4675
        %4678 = vset.pattern.permute.xlu0 1
        %4679 = vperm.xlu0 %4678, %v3369
        %v4680 = vpop.permute.xlu0 %4679
        %4682 = vset.pattern.permute.xlu0 1
        %4683 = vperm.xlu0 %4682, %v3370
        %v4684 = vpop.permute.xlu0 %4683
        %4686 = vset.pattern.permute.xlu0 1
        %4687 = vperm.xlu0 %4686, %v3371
        %v4688 = vpop.permute.xlu0 %4687
        %4690 = vset.pattern.permute.xlu0 1
        %4691 = vperm.xlu0 %4690, %v3372
        %v4692 = vpop.permute.xlu0 %4691
        %4694 = vset.pattern.permute.xlu0 1
        %4695 = vperm.xlu0 %4694, %v3373
        %v4696 = vpop.permute.xlu0 %4695
        %4698 = vset.pattern.permute.xlu0 1
        %4699 = vperm.xlu0 %4698, %v3374
        %v4700 = vpop.permute.xlu0 %4699
        %4702 = vset.pattern.permute.xlu0 1
        %4703 = vperm.xlu0 %4702, %v3375
        %v4704 = vpop.permute.xlu0 %4703
        %4706 = vset.pattern.permute.xlu0 1
        %4707 = vperm.xlu0 %4706, %v3376
        %v4708 = vpop.permute.xlu0 %4707
        %4710 = vset.pattern.permute.xlu0 1
        %4711 = vperm.xlu0 %4710, %v3377
        %v4712 = vpop.permute.xlu0 %4711
        %4714 = vset.pattern.permute.xlu0 1
        %4715 = vperm.xlu0 %4714, %v3378
        %v4716 = vpop.permute.xlu0 %4715
        %4718 = vset.pattern.permute.xlu0 1
        %4719 = vperm.xlu0 %4718, %v3379
        %v4720 = vpop.permute.xlu0 %4719
        %4722 = vset.pattern.permute.xlu0 1
        %4723 = vperm.xlu0 %4722, %v3380
        %v4724 = vpop.permute.xlu0 %4723
        %4726 = vset.pattern.permute.xlu0 1
        %4727 = vperm.xlu0 %4726, %v3381
        %v4728 = vpop.permute.xlu0 %4727
        %4730 = vset.pattern.permute.xlu0 1
        %4731 = vperm.xlu0 %4730, %v3382
        %v4732 = vpop.permute.xlu0 %4731
        %4734 = vset.pattern.permute.xlu0 1
        %4735 = vperm.xlu0 %4734, %v3383
        %v4736 = vpop.permute.xlu0 %4735
        %4738 = vset.pattern.permute.xlu0 1
        %4739 = vperm.xlu0 %4738, %v3384
        %v4740 = vpop.permute.xlu0 %4739
        %4742 = vset.pattern.permute.xlu0 1
        %4743 = vperm.xlu0 %4742, %v3385
        %v4744 = vpop.permute.xlu0 %4743
        %4746 = vset.pattern.permute.xlu0 1
        %4747 = vperm.xlu0 %4746, %v3386
        %v4748 = vpop.permute.xlu0 %4747
        %4750 = vset.pattern.permute.xlu0 1
        %4751 = vperm.xlu0 %4750, %v3387
        %v4752 = vpop.permute.xlu0 %4751
        %4754 = vset.pattern.permute.xlu0 1
        %4755 = vperm.xlu0 %4754, %v3388
        %v4756 = vpop.permute.xlu0 %4755
        %4758 = vset.pattern.permute.xlu0 1
        %4759 = vperm.xlu0 %4758, %v3389
        %v4760 = vpop.permute.xlu0 %4759
        %4762 = vset.pattern.permute.xlu0 1
        %4763 = vperm.xlu0 %4762, %v3390
        %v4764 = vpop.permute.xlu0 %4763
        %4766 = vset.pattern.permute.xlu0 1
        %4767 = vperm.xlu0 %4766, %v3391
        %v4768 = vpop.permute.xlu0 %4767
        %4770 = vset.pattern.permute.xlu0 1
        %4771 = vperm.xlu0 %4770, %v3392
        %v4772 = vpop.permute.xlu0 %4771
        %4774 = vset.pattern.permute.xlu0 1
        %4775 = vperm.xlu0 %4774, %v3393
        %v4776 = vpop.permute.xlu0 %4775
        %4778 = vset.pattern.permute.xlu0 1
        %4779 = vperm.xlu0 %4778, %v3394
        %v4780 = vpop.permute.xlu0 %4779
        %4782 = vset.pattern.permute.xlu0 1
        %4783 = vperm.xlu0 %4782, %v3395
        %v4784 = vpop.permute.xlu0 %4783
        %4786 = vset.pattern.permute.xlu0 1
        %4787 = vperm.xlu0 %4786, %v3396
        %v4788 = vpop.permute.xlu0 %4787
        %4790 = vset.pattern.permute.xlu0 1
        %4791 = vperm.xlu0 %4790, %v3397
        %v4792 = vpop.permute.xlu0 %4791
        %4794 = vset.pattern.permute.xlu0 1
        %4795 = vperm.xlu0 %4794, %v3398
        %v4796 = vpop.permute.xlu0 %4795
        %4798 = vset.pattern.permute.xlu0 1
        %4799 = vperm.xlu0 %4798, %v3399
        %v4800 = vpop.permute.xlu0 %4799
        %4802 = vset.pattern.permute.xlu0 1
        %4803 = vperm.xlu0 %4802, %v3400
        %v4804 = vpop.permute.xlu0 %4803
        %4806 = vset.pattern.permute.xlu0 1
        %4807 = vperm.xlu0 %4806, %v3401
        %v4808 = vpop.permute.xlu0 %4807
        %v4810 = vadd.f32 %v4042, %v4300
        %v4811 = vadd.f32 %v4043, %v4300
        %v4812 = vadd.f32 %v4044, %v4304
        %v4813 = vadd.f32 %v4045, %v4304
        %v4814 = vadd.f32 %v4046, %v4308
        %v4815 = vadd.f32 %v4047, %v4308
        %v4816 = vadd.f32 %v4048, %v4312
        %v4817 = vadd.f32 %v4049, %v4312
        %v4818 = vadd.f32 %v4050, %v4316
        %v4819 = vadd.f32 %v4051, %v4316
        %v4820 = vadd.f32 %v4052, %v4320
        %v4821 = vadd.f32 %v4053, %v4320
        %v4822 = vadd.f32 %v4054, %v4324
        %v4823 = vadd.f32 %v4055, %v4324
        %v4824 = vadd.f32 %v4056, %v4328
        %v4825 = vadd.f32 %v4057, %v4328
        %v4826 = vadd.f32 %v4058, %v4332
        %v4827 = vadd.f32 %v4059, %v4332
        %v4828 = vadd.f32 %v4060, %v4336
        %v4829 = vadd.f32 %v4061, %v4336
        %v4830 = vadd.f32 %v4062, %v4340
        %v4831 = vadd.f32 %v4063, %v4340
        %v4832 = vadd.f32 %v4064, %v4344
        %v4833 = vadd.f32 %v4065, %v4344
        %v4834 = vadd.f32 %v4066, %v4348
        %v4835 = vadd.f32 %v4067, %v4348
        %v4836 = vadd.f32 %v4068, %v4352
        %v4837 = vadd.f32 %v4069, %v4352
        %v4838 = vadd.f32 %v4070, %v4356
        %v4839 = vadd.f32 %v4071, %v4356
        %v4840 = vadd.f32 %v4072, %v4360
        %v4841 = vadd.f32 %v4073, %v4360
        %v4842 = vadd.f32 %v4074, %v4364
        %v4843 = vadd.f32 %v4075, %v4364
        %v4844 = vadd.f32 %v4076, %v4368
        %v4845 = vadd.f32 %v4077, %v4368
        %v4846 = vadd.f32 %v4078, %v4372
        %v4847 = vadd.f32 %v4079, %v4372
        %v4848 = vadd.f32 %v4080, %v4376
        %v4849 = vadd.f32 %v4081, %v4376
        %v4850 = vadd.f32 %v4082, %v4380
        %v4851 = vadd.f32 %v4083, %v4380
        %v4852 = vadd.f32 %v4084, %v4384
        %v4853 = vadd.f32 %v4085, %v4384
        %v4854 = vadd.f32 %v4086, %v4388
        %v4855 = vadd.f32 %v4087, %v4388
        %v4856 = vadd.f32 %v4088, %v4392
        %v4857 = vadd.f32 %v4089, %v4392
        %v4858 = vadd.f32 %v4090, %v4396
        %v4859 = vadd.f32 %v4091, %v4396
        %v4860 = vadd.f32 %v4092, %v4400
        %v4861 = vadd.f32 %v4093, %v4400
        %v4862 = vadd.f32 %v4094, %v4404
        %v4863 = vadd.f32 %v4095, %v4404
        %v4864 = vadd.f32 %v4096, %v4408
        %v4865 = vadd.f32 %v4097, %v4408
        %v4866 = vadd.f32 %v4098, %v4412
        %v4867 = vadd.f32 %v4099, %v4412
        %v4868 = vadd.f32 %v4100, %v4416
        %v4869 = vadd.f32 %v4101, %v4416
        %v4870 = vadd.f32 %v4102, %v4420
        %v4871 = vadd.f32 %v4103, %v4420
        %v4872 = vadd.f32 %v4104, %v4424
        %v4873 = vadd.f32 %v4105, %v4424
        %v4874 = vadd.f32 %v4106, %v4428
        %v4875 = vadd.f32 %v4107, %v4428
        %v4876 = vadd.f32 %v4108, %v4432
        %v4877 = vadd.f32 %v4109, %v4432
        %v4878 = vadd.f32 %v4110, %v4436
        %v4879 = vadd.f32 %v4111, %v4436
        %v4880 = vadd.f32 %v4112, %v4440
        %v4881 = vadd.f32 %v4113, %v4440
        %v4882 = vadd.f32 %v4114, %v4444
        %v4883 = vadd.f32 %v4115, %v4444
        %v4884 = vadd.f32 %v4116, %v4448
        %v4885 = vadd.f32 %v4117, %v4448
        %v4886 = vadd.f32 %v4118, %v4452
        %v4887 = vadd.f32 %v4119, %v4452
        %v4888 = vadd.f32 %v4120, %v4456
        %v4889 = vadd.f32 %v4121, %v4456
        %v4890 = vadd.f32 %v4122, %v4460
        %v4891 = vadd.f32 %v4123, %v4460
        %v4892 = vadd.f32 %v4124, %v4464
        %v4893 = vadd.f32 %v4125, %v4464
        %v4894 = vadd.f32 %v4126, %v4468
        %v4895 = vadd.f32 %v4127, %v4468
        %v4896 = vadd.f32 %v4128, %v4472
        %v4897 = vadd.f32 %v4129, %v4472
        %v4898 = vadd.f32 %v4130, %v4476
        %v4899 = vadd.f32 %v4131, %v4476
        %v4900 = vadd.f32 %v4132, %v4480
        %v4901 = vadd.f32 %v4133, %v4480
        %v4902 = vadd.f32 %v4134, %v4484
        %v4903 = vadd.f32 %v4135, %v4484
        %v4904 = vadd.f32 %v4136, %v4488
        %v4905 = vadd.f32 %v4137, %v4488
        %v4906 = vadd.f32 %v4138, %v4492
        %v4907 = vadd.f32 %v4139, %v4492
        %v4908 = vadd.f32 %v4140, %v4496
        %v4909 = vadd.f32 %v4141, %v4496
        %v4910 = vadd.f32 %v4142, %v4500
        %v4911 = vadd.f32 %v4143, %v4500
        %v4912 = vadd.f32 %v4144, %v4504
        %v4913 = vadd.f32 %v4145, %v4504
        %v4914 = vadd.f32 %v4146, %v4508
        %v4915 = vadd.f32 %v4147, %v4508
        %v4916 = vadd.f32 %v4148, %v4512
        %v4917 = vadd.f32 %v4149, %v4512
        %v4918 = vadd.f32 %v4150, %v4516
        %v4919 = vadd.f32 %v4151, %v4516
        %v4920 = vadd.f32 %v4152, %v4520
        %v4921 = vadd.f32 %v4153, %v4520
        %v4922 = vadd.f32 %v4154, %v4524
        %v4923 = vadd.f32 %v4155, %v4524
        %v4924 = vadd.f32 %v4156, %v4528
        %v4925 = vadd.f32 %v4157, %v4528
        %v4926 = vadd.f32 %v4158, %v4532
        %v4927 = vadd.f32 %v4159, %v4532
        %v4928 = vadd.f32 %v4160, %v4536
        %v4929 = vadd.f32 %v4161, %v4536
        %v4930 = vadd.f32 %v4162, %v4540
        %v4931 = vadd.f32 %v4163, %v4540
        %v4932 = vadd.f32 %v4164, %v4544
        %v4933 = vadd.f32 %v4165, %v4544
        %v4934 = vadd.f32 %v4166, %v4548
        %v4935 = vadd.f32 %v4167, %v4548
        %v4936 = vadd.f32 %v4168, %v4552
        %v4937 = vadd.f32 %v4169, %v4552
        %v4938 = vadd.f32 %v4170, %v4556
        %v4939 = vadd.f32 %v4171, %v4556
        %v4940 = vadd.f32 %v4172, %v4560
        %v4941 = vadd.f32 %v4173, %v4560
        %v4942 = vadd.f32 %v4174, %v4564
        %v4943 = vadd.f32 %v4175, %v4564
        %v4944 = vadd.f32 %v4176, %v4568
        %v4945 = vadd.f32 %v4177, %v4568
        %v4946 = vadd.f32 %v4178, %v4572
        %v4947 = vadd.f32 %v4179, %v4572
        %v4948 = vadd.f32 %v4180, %v4576
        %v4949 = vadd.f32 %v4181, %v4576
        %v4950 = vadd.f32 %v4182, %v4580
        %v4951 = vadd.f32 %v4183, %v4580
        %v4952 = vadd.f32 %v4184, %v4584
        %v4953 = vadd.f32 %v4185, %v4584
        %v4954 = vadd.f32 %v4186, %v4588
        %v4955 = vadd.f32 %v4187, %v4588
        %v4956 = vadd.f32 %v4188, %v4592
        %v4957 = vadd.f32 %v4189, %v4592
        %v4958 = vadd.f32 %v4190, %v4596
        %v4959 = vadd.f32 %v4191, %v4596
        %v4960 = vadd.f32 %v4192, %v4600
        %v4961 = vadd.f32 %v4193, %v4600
        %v4962 = vadd.f32 %v4194, %v4604
        %v4963 = vadd.f32 %v4195, %v4604
        %v4964 = vadd.f32 %v4196, %v4608
        %v4965 = vadd.f32 %v4197, %v4608
        %v4966 = vadd.f32 %v4198, %v4612
        %v4967 = vadd.f32 %v4199, %v4612
        %v4968 = vadd.f32 %v4200, %v4616
        %v4969 = vadd.f32 %v4201, %v4616
        %v4970 = vadd.f32 %v4202, %v4620
        %v4971 = vadd.f32 %v4203, %v4620
        %v4972 = vadd.f32 %v4204, %v4624
        %v4973 = vadd.f32 %v4205, %v4624
        %v4974 = vadd.f32 %v4206, %v4628
        %v4975 = vadd.f32 %v4207, %v4628
        %v4976 = vadd.f32 %v4208, %v4632
        %v4977 = vadd.f32 %v4209, %v4632
        %v4978 = vadd.f32 %v4210, %v4636
        %v4979 = vadd.f32 %v4211, %v4636
        %v4980 = vadd.f32 %v4212, %v4640
        %v4981 = vadd.f32 %v4213, %v4640
        %v4982 = vadd.f32 %v4214, %v4644
        %v4983 = vadd.f32 %v4215, %v4644
        %v4984 = vadd.f32 %v4216, %v4648
        %v4985 = vadd.f32 %v4217, %v4648
        %v4986 = vadd.f32 %v4218, %v4652
        %v4987 = vadd.f32 %v4219, %v4652
        %v4988 = vadd.f32 %v4220, %v4656
        %v4989 = vadd.f32 %v4221, %v4656
        %v4990 = vadd.f32 %v4222, %v4660
        %v4991 = vadd.f32 %v4223, %v4660
        %v4992 = vadd.f32 %v4224, %v4664
        %v4993 = vadd.f32 %v4225, %v4664
        %v4994 = vadd.f32 %v4226, %v4668
        %v4995 = vadd.f32 %v4227, %v4668
        %v4996 = vadd.f32 %v4228, %v4672
        %v4997 = vadd.f32 %v4229, %v4672
        %v4998 = vadd.f32 %v4230, %v4676
        %v4999 = vadd.f32 %v4231, %v4676
        %v5000 = vadd.f32 %v4232, %v4680
        %v5001 = vadd.f32 %v4233, %v4680
        %v5002 = vadd.f32 %v4234, %v4684
        %v5003 = vadd.f32 %v4235, %v4684
        %v5004 = vadd.f32 %v4236, %v4688
        %v5005 = vadd.f32 %v4237, %v4688
        %v5006 = vadd.f32 %v4238, %v4692
        %v5007 = vadd.f32 %v4239, %v4692
        %v5008 = vadd.f32 %v4240, %v4696
        %v5009 = vadd.f32 %v4241, %v4696
        %v5010 = vadd.f32 %v4242, %v4700
        %v5011 = vadd.f32 %v4243, %v4700
        %v5012 = vadd.f32 %v4244, %v4704
        %v5013 = vadd.f32 %v4245, %v4704
        %v5014 = vadd.f32 %v4246, %v4708
        %v5015 = vadd.f32 %v4247, %v4708
        %v5016 = vadd.f32 %v4248, %v4712
        %v5017 = vadd.f32 %v4249, %v4712
        %v5018 = vadd.f32 %v4250, %v4716
        %v5019 = vadd.f32 %v4251, %v4716
        %v5020 = vadd.f32 %v4252, %v4720
        %v5021 = vadd.f32 %v4253, %v4720
        %v5022 = vadd.f32 %v4254, %v4724
        %v5023 = vadd.f32 %v4255, %v4724
        %v5024 = vadd.f32 %v4256, %v4728
        %v5025 = vadd.f32 %v4257, %v4728
        %v5026 = vadd.f32 %v4258, %v4732
        %v5027 = vadd.f32 %v4259, %v4732
        %v5028 = vadd.f32 %v4260, %v4736
        %v5029 = vadd.f32 %v4261, %v4736
        %v5030 = vadd.f32 %v4262, %v4740
        %v5031 = vadd.f32 %v4263, %v4740
        %v5032 = vadd.f32 %v4264, %v4744
        %v5033 = vadd.f32 %v4265, %v4744
        %v5034 = vadd.f32 %v4266, %v4748
        %v5035 = vadd.f32 %v4267, %v4748
        %v5036 = vadd.f32 %v4268, %v4752
        %v5037 = vadd.f32 %v4269, %v4752
        %v5038 = vadd.f32 %v4270, %v4756
        %v5039 = vadd.f32 %v4271, %v4756
        %v5040 = vadd.f32 %v4272, %v4760
        %v5041 = vadd.f32 %v4273, %v4760
        %v5042 = vadd.f32 %v4274, %v4764
        %v5043 = vadd.f32 %v4275, %v4764
        %v5044 = vadd.f32 %v4276, %v4768
        %v5045 = vadd.f32 %v4277, %v4768
        %v5046 = vadd.f32 %v4278, %v4772
        %v5047 = vadd.f32 %v4279, %v4772
        %v5048 = vadd.f32 %v4280, %v4776
        %v5049 = vadd.f32 %v4281, %v4776
        %v5050 = vadd.f32 %v4282, %v4780
        %v5051 = vadd.f32 %v4283, %v4780
        %v5052 = vadd.f32 %v4284, %v4784
        %v5053 = vadd.f32 %v4285, %v4784
        %v5054 = vadd.f32 %v4286, %v4788
        %v5055 = vadd.f32 %v4287, %v4788
        %v5056 = vadd.f32 %v4288, %v4792
        %v5057 = vadd.f32 %v4289, %v4792
        %v5058 = vadd.f32 %v4290, %v4796
        %v5059 = vadd.f32 %v4291, %v4796
        %v5060 = vadd.f32 %v4292, %v4800
        %v5061 = vadd.f32 %v4293, %v4800
        %v5062 = vadd.f32 %v4294, %v4804
        %v5063 = vadd.f32 %v4295, %v4804
        %v5064 = vadd.f32 %v4296, %v4808
        %v5065 = vadd.f32 %v4297, %v4808
        %v5066 = vadd.f32 %v4810, %v3018
        %v5067 = vadd.f32 %v4811, %v3019
        %v5068 = vadd.f32 %v4812, %v3020
        %v5069 = vadd.f32 %v4813, %v3021
        %v5070 = vadd.f32 %v4814, %v3022
        %v5071 = vadd.f32 %v4815, %v3023
        %v5072 = vadd.f32 %v4816, %v3024
        %v5073 = vadd.f32 %v4817, %v3025
        %v5074 = vadd.f32 %v4818, %v3026
        %v5075 = vadd.f32 %v4819, %v3027
        %v5076 = vadd.f32 %v4820, %v3028
        %v5077 = vadd.f32 %v4821, %v3029
        %v5078 = vadd.f32 %v4822, %v3030
        %v5079 = vadd.f32 %v4823, %v3031
        %v5080 = vadd.f32 %v4824, %v3032
        %v5081 = vadd.f32 %v4825, %v3033
        %v5082 = vadd.f32 %v4826, %v3034
        %v5083 = vadd.f32 %v4827, %v3035
        %v5084 = vadd.f32 %v4828, %v3036
        %v5085 = vadd.f32 %v4829, %v3037
        %v5086 = vadd.f32 %v4830, %v3038
        %v5087 = vadd.f32 %v4831, %v3039
        %v5088 = vadd.f32 %v4832, %v3040
        %v5089 = vadd.f32 %v4833, %v3041
        %v5090 = vadd.f32 %v4834, %v3042
        %v5091 = vadd.f32 %v4835, %v3043
        %v5092 = vadd.f32 %v4836, %v3044
        %v5093 = vadd.f32 %v4837, %v3045
        %v5094 = vadd.f32 %v4838, %v3046
        %v5095 = vadd.f32 %v4839, %v3047
        %v5096 = vadd.f32 %v4840, %v3048
        %v5097 = vadd.f32 %v4841, %v3049
        %v5098 = vadd.f32 %v4842, %v3050
        %v5099 = vadd.f32 %v4843, %v3051
        %v5100 = vadd.f32 %v4844, %v3052
        %v5101 = vadd.f32 %v4845, %v3053
        %v5102 = vadd.f32 %v4846, %v3054
        %v5103 = vadd.f32 %v4847, %v3055
        %v5104 = vadd.f32 %v4848, %v3056
        %v5105 = vadd.f32 %v4849, %v3057
        %v5106 = vadd.f32 %v4850, %v3058
        %v5107 = vadd.f32 %v4851, %v3059
        %v5108 = vadd.f32 %v4852, %v3060
        %v5109 = vadd.f32 %v4853, %v3061
        %v5110 = vadd.f32 %v4854, %v3062
        %v5111 = vadd.f32 %v4855, %v3063
        %v5112 = vadd.f32 %v4856, %v3064
        %v5113 = vadd.f32 %v4857, %v3065
        %v5114 = vadd.f32 %v4858, %v3066
        %v5115 = vadd.f32 %v4859, %v3067
        %v5116 = vadd.f32 %v4860, %v3068
        %v5117 = vadd.f32 %v4861, %v3069
        %v5118 = vadd.f32 %v4862, %v3070
        %v5119 = vadd.f32 %v4863, %v3071
        %v5120 = vadd.f32 %v4864, %v3072
        %v5121 = vadd.f32 %v4865, %v3073
        %v5122 = vadd.f32 %v4866, %v3074
        %v5123 = vadd.f32 %v4867, %v3075
        %v5124 = vadd.f32 %v4868, %v3076
        %v5125 = vadd.f32 %v4869, %v3077
        %v5126 = vadd.f32 %v4870, %v3078
        %v5127 = vadd.f32 %v4871, %v3079
        %v5128 = vadd.f32 %v4872, %v3080
        %v5129 = vadd.f32 %v4873, %v3081
        %v5130 = vadd.f32 %v4874, %v3082
        %v5131 = vadd.f32 %v4875, %v3083
        %v5132 = vadd.f32 %v4876, %v3084
        %v5133 = vadd.f32 %v4877, %v3085
        %v5134 = vadd.f32 %v4878, %v3086
        %v5135 = vadd.f32 %v4879, %v3087
        %v5136 = vadd.f32 %v4880, %v3088
        %v5137 = vadd.f32 %v4881, %v3089
        %v5138 = vadd.f32 %v4882, %v3090
        %v5139 = vadd.f32 %v4883, %v3091
        %v5140 = vadd.f32 %v4884, %v3092
        %v5141 = vadd.f32 %v4885, %v3093
        %v5142 = vadd.f32 %v4886, %v3094
        %v5143 = vadd.f32 %v4887, %v3095
        %v5144 = vadd.f32 %v4888, %v3096
        %v5145 = vadd.f32 %v4889, %v3097
        %v5146 = vadd.f32 %v4890, %v3098
        %v5147 = vadd.f32 %v4891, %v3099
        %v5148 = vadd.f32 %v4892, %v3100
        %v5149 = vadd.f32 %v4893, %v3101
        %v5150 = vadd.f32 %v4894, %v3102
        %v5151 = vadd.f32 %v4895, %v3103
        %v5152 = vadd.f32 %v4896, %v3104
        %v5153 = vadd.f32 %v4897, %v3105
        %v5154 = vadd.f32 %v4898, %v3106
        %v5155 = vadd.f32 %v4899, %v3107
        %v5156 = vadd.f32 %v4900, %v3108
        %v5157 = vadd.f32 %v4901, %v3109
        %v5158 = vadd.f32 %v4902, %v3110
        %v5159 = vadd.f32 %v4903, %v3111
        %v5160 = vadd.f32 %v4904, %v3112
        %v5161 = vadd.f32 %v4905, %v3113
        %v5162 = vadd.f32 %v4906, %v3114
        %v5163 = vadd.f32 %v4907, %v3115
        %v5164 = vadd.f32 %v4908, %v3116
        %v5165 = vadd.f32 %v4909, %v3117
        %v5166 = vadd.f32 %v4910, %v3118
        %v5167 = vadd.f32 %v4911, %v3119
        %v5168 = vadd.f32 %v4912, %v3120
        %v5169 = vadd.f32 %v4913, %v3121
        %v5170 = vadd.f32 %v4914, %v3122
        %v5171 = vadd.f32 %v4915, %v3123
        %v5172 = vadd.f32 %v4916, %v3124
        %v5173 = vadd.f32 %v4917, %v3125
        %v5174 = vadd.f32 %v4918, %v3126
        %v5175 = vadd.f32 %v4919, %v3127
        %v5176 = vadd.f32 %v4920, %v3128
        %v5177 = vadd.f32 %v4921, %v3129
        %v5178 = vadd.f32 %v4922, %v3130
        %v5179 = vadd.f32 %v4923, %v3131
        %v5180 = vadd.f32 %v4924, %v3132
        %v5181 = vadd.f32 %v4925, %v3133
        %v5182 = vadd.f32 %v4926, %v3134
        %v5183 = vadd.f32 %v4927, %v3135
        %v5184 = vadd.f32 %v4928, %v3136
        %v5185 = vadd.f32 %v4929, %v3137
        %v5186 = vadd.f32 %v4930, %v3138
        %v5187 = vadd.f32 %v4931, %v3139
        %v5188 = vadd.f32 %v4932, %v3140
        %v5189 = vadd.f32 %v4933, %v3141
        %v5190 = vadd.f32 %v4934, %v3142
        %v5191 = vadd.f32 %v4935, %v3143
        %v5192 = vadd.f32 %v4936, %v3144
        %v5193 = vadd.f32 %v4937, %v3145
        %v5194 = vadd.f32 %v4938, %v3146
        %v5195 = vadd.f32 %v4939, %v3147
        %v5196 = vadd.f32 %v4940, %v3148
        %v5197 = vadd.f32 %v4941, %v3149
        %v5198 = vadd.f32 %v4942, %v3150
        %v5199 = vadd.f32 %v4943, %v3151
        %v5200 = vadd.f32 %v4944, %v3152
        %v5201 = vadd.f32 %v4945, %v3153
        %v5202 = vadd.f32 %v4946, %v3154
        %v5203 = vadd.f32 %v4947, %v3155
        %v5204 = vadd.f32 %v4948, %v3156
        %v5205 = vadd.f32 %v4949, %v3157
        %v5206 = vadd.f32 %v4950, %v3158
        %v5207 = vadd.f32 %v4951, %v3159
        %v5208 = vadd.f32 %v4952, %v3160
        %v5209 = vadd.f32 %v4953, %v3161
        %v5210 = vadd.f32 %v4954, %v3162
        %v5211 = vadd.f32 %v4955, %v3163
        %v5212 = vadd.f32 %v4956, %v3164
        %v5213 = vadd.f32 %v4957, %v3165
        %v5214 = vadd.f32 %v4958, %v3166
        %v5215 = vadd.f32 %v4959, %v3167
        %v5216 = vadd.f32 %v4960, %v3168
        %v5217 = vadd.f32 %v4961, %v3169
        %v5218 = vadd.f32 %v4962, %v3170
        %v5219 = vadd.f32 %v4963, %v3171
        %v5220 = vadd.f32 %v4964, %v3172
        %v5221 = vadd.f32 %v4965, %v3173
        %v5222 = vadd.f32 %v4966, %v3174
        %v5223 = vadd.f32 %v4967, %v3175
        %v5224 = vadd.f32 %v4968, %v3176
        %v5225 = vadd.f32 %v4969, %v3177
        %v5226 = vadd.f32 %v4970, %v3178
        %v5227 = vadd.f32 %v4971, %v3179
        %v5228 = vadd.f32 %v4972, %v3180
        %v5229 = vadd.f32 %v4973, %v3181
        %v5230 = vadd.f32 %v4974, %v3182
        %v5231 = vadd.f32 %v4975, %v3183
        %v5232 = vadd.f32 %v4976, %v3184
        %v5233 = vadd.f32 %v4977, %v3185
        %v5234 = vadd.f32 %v4978, %v3186
        %v5235 = vadd.f32 %v4979, %v3187
        %v5236 = vadd.f32 %v4980, %v3188
        %v5237 = vadd.f32 %v4981, %v3189
        %v5238 = vadd.f32 %v4982, %v3190
        %v5239 = vadd.f32 %v4983, %v3191
        %v5240 = vadd.f32 %v4984, %v3192
        %v5241 = vadd.f32 %v4985, %v3193
        %v5242 = vadd.f32 %v4986, %v3194
        %v5243 = vadd.f32 %v4987, %v3195
        %v5244 = vadd.f32 %v4988, %v3196
        %v5245 = vadd.f32 %v4989, %v3197
        %v5246 = vadd.f32 %v4990, %v3198
        %v5247 = vadd.f32 %v4991, %v3199
        %v5248 = vadd.f32 %v4992, %v3200
        %v5249 = vadd.f32 %v4993, %v3201
        %v5250 = vadd.f32 %v4994, %v3202
        %v5251 = vadd.f32 %v4995, %v3203
        %v5252 = vadd.f32 %v4996, %v3204
        %v5253 = vadd.f32 %v4997, %v3205
        %v5254 = vadd.f32 %v4998, %v3206
        %v5255 = vadd.f32 %v4999, %v3207
        %v5256 = vadd.f32 %v5000, %v3208
        %v5257 = vadd.f32 %v5001, %v3209
        %v5258 = vadd.f32 %v5002, %v3210
        %v5259 = vadd.f32 %v5003, %v3211
        %v5260 = vadd.f32 %v5004, %v3212
        %v5261 = vadd.f32 %v5005, %v3213
        %v5262 = vadd.f32 %v5006, %v3214
        %v5263 = vadd.f32 %v5007, %v3215
        %v5264 = vadd.f32 %v5008, %v3216
        %v5265 = vadd.f32 %v5009, %v3217
        %v5266 = vadd.f32 %v5010, %v3218
        %v5267 = vadd.f32 %v5011, %v3219
        %v5268 = vadd.f32 %v5012, %v3220
        %v5269 = vadd.f32 %v5013, %v3221
        %v5270 = vadd.f32 %v5014, %v3222
        %v5271 = vadd.f32 %v5015, %v3223
        %v5272 = vadd.f32 %v5016, %v3224
        %v5273 = vadd.f32 %v5017, %v3225
        %v5274 = vadd.f32 %v5018, %v3226
        %v5275 = vadd.f32 %v5019, %v3227
        %v5276 = vadd.f32 %v5020, %v3228
        %v5277 = vadd.f32 %v5021, %v3229
        %v5278 = vadd.f32 %v5022, %v3230
        %v5279 = vadd.f32 %v5023, %v3231
        %v5280 = vadd.f32 %v5024, %v3232
        %v5281 = vadd.f32 %v5025, %v3233
        %v5282 = vadd.f32 %v5026, %v3234
        %v5283 = vadd.f32 %v5027, %v3235
        %v5284 = vadd.f32 %v5028, %v3236
        %v5285 = vadd.f32 %v5029, %v3237
        %v5286 = vadd.f32 %v5030, %v3238
        %v5287 = vadd.f32 %v5031, %v3239
        %v5288 = vadd.f32 %v5032, %v3240
        %v5289 = vadd.f32 %v5033, %v3241
        %v5290 = vadd.f32 %v5034, %v3242
        %v5291 = vadd.f32 %v5035, %v3243
        %v5292 = vadd.f32 %v5036, %v3244
        %v5293 = vadd.f32 %v5037, %v3245
        %v5294 = vadd.f32 %v5038, %v3246
        %v5295 = vadd.f32 %v5039, %v3247
        %v5296 = vadd.f32 %v5040, %v3248
        %v5297 = vadd.f32 %v5041, %v3249
        %v5298 = vadd.f32 %v5042, %v3250
        %v5299 = vadd.f32 %v5043, %v3251
        %v5300 = vadd.f32 %v5044, %v3252
        %v5301 = vadd.f32 %v5045, %v3253
        %v5302 = vadd.f32 %v5046, %v3254
        %v5303 = vadd.f32 %v5047, %v3255
        %v5304 = vadd.f32 %v5048, %v3256
        %v5305 = vadd.f32 %v5049, %v3257
        %v5306 = vadd.f32 %v5050, %v3258
        %v5307 = vadd.f32 %v5051, %v3259
        %v5308 = vadd.f32 %v5052, %v3260
        %v5309 = vadd.f32 %v5053, %v3261
        %v5310 = vadd.f32 %v5054, %v3262
        %v5311 = vadd.f32 %v5055, %v3263
        %v5312 = vadd.f32 %v5056, %v3264
        %v5313 = vadd.f32 %v5057, %v3265
        %v5314 = vadd.f32 %v5058, %v3266
        %v5315 = vadd.f32 %v5059, %v3267
        %v5316 = vadd.f32 %v5060, %v3268
        %v5317 = vadd.f32 %v5061, %v3269
        %v5318 = vadd.f32 %v5062, %v3270
        %v5319 = vadd.f32 %v5063, %v3271
        %v5320 = vadd.f32 %v5064, %v3272
        %v5321 = vadd.f32 %v5065, %v3273
        %v5322 = vmax.f32 %v5066, 0.0
        %v5323 = vmax.f32 %v5067, 0.0
        %v5324 = vmax.f32 %v5068, 0.0
        %v5325 = vmax.f32 %v5069, 0.0
        %v5326 = vmax.f32 %v5070, 0.0
        %v5327 = vmax.f32 %v5071, 0.0
        %v5328 = vmax.f32 %v5072, 0.0
        %v5329 = vmax.f32 %v5073, 0.0
        %v5330 = vmax.f32 %v5074, 0.0
        %v5331 = vmax.f32 %v5075, 0.0
        %v5332 = vmax.f32 %v5076, 0.0
        %v5333 = vmax.f32 %v5077, 0.0
        %v5334 = vmax.f32 %v5078, 0.0
        %v5335 = vmax.f32 %v5079, 0.0
        %v5336 = vmax.f32 %v5080, 0.0
        %v5337 = vmax.f32 %v5081, 0.0
        %v5338 = vmax.f32 %v5082, 0.0
        %v5339 = vmax.f32 %v5083, 0.0
        %v5340 = vmax.f32 %v5084, 0.0
        %v5341 = vmax.f32 %v5085, 0.0
        %v5342 = vmax.f32 %v5086, 0.0
        %v5343 = vmax.f32 %v5087, 0.0
        %v5344 = vmax.f32 %v5088, 0.0
        %v5345 = vmax.f32 %v5089, 0.0
        %v5346 = vmax.f32 %v5090, 0.0
        %v5347 = vmax.f32 %v5091, 0.0
        %v5348 = vmax.f32 %v5092, 0.0
        %v5349 = vmax.f32 %v5093, 0.0
        %v5350 = vmax.f32 %v5094, 0.0
        %v5351 = vmax.f32 %v5095, 0.0
        %v5352 = vmax.f32 %v5096, 0.0
        %v5353 = vmax.f32 %v5097, 0.0
        %v5354 = vmax.f32 %v5098, 0.0
        %v5355 = vmax.f32 %v5099, 0.0
        %v5356 = vmax.f32 %v5100, 0.0
        %v5357 = vmax.f32 %v5101, 0.0
        %v5358 = vmax.f32 %v5102, 0.0
        %v5359 = vmax.f32 %v5103, 0.0
        %v5360 = vmax.f32 %v5104, 0.0
        %v5361 = vmax.f32 %v5105, 0.0
        %v5362 = vmax.f32 %v5106, 0.0
        %v5363 = vmax.f32 %v5107, 0.0
        %v5364 = vmax.f32 %v5108, 0.0
        %v5365 = vmax.f32 %v5109, 0.0
        %v5366 = vmax.f32 %v5110, 0.0
        %v5367 = vmax.f32 %v5111, 0.0
        %v5368 = vmax.f32 %v5112, 0.0
        %v5369 = vmax.f32 %v5113, 0.0
        %v5370 = vmax.f32 %v5114, 0.0
        %v5371 = vmax.f32 %v5115, 0.0
        %v5372 = vmax.f32 %v5116, 0.0
        %v5373 = vmax.f32 %v5117, 0.0
        %v5374 = vmax.f32 %v5118, 0.0
        %v5375 = vmax.f32 %v5119, 0.0
        %v5376 = vmax.f32 %v5120, 0.0
        %v5377 = vmax.f32 %v5121, 0.0
        %v5378 = vmax.f32 %v5122, 0.0
        %v5379 = vmax.f32 %v5123, 0.0
        %v5380 = vmax.f32 %v5124, 0.0
        %v5381 = vmax.f32 %v5125, 0.0
        %v5382 = vmax.f32 %v5126, 0.0
        %v5383 = vmax.f32 %v5127, 0.0
        %v5384 = vmax.f32 %v5128, 0.0
        %v5385 = vmax.f32 %v5129, 0.0
        %v5386 = vmax.f32 %v5130, 0.0
        %v5387 = vmax.f32 %v5131, 0.0
        %v5388 = vmax.f32 %v5132, 0.0
        %v5389 = vmax.f32 %v5133, 0.0
        %v5390 = vmax.f32 %v5134, 0.0
        %v5391 = vmax.f32 %v5135, 0.0
        %v5392 = vmax.f32 %v5136, 0.0
        %v5393 = vmax.f32 %v5137, 0.0
        %v5394 = vmax.f32 %v5138, 0.0
        %v5395 = vmax.f32 %v5139, 0.0
        %v5396 = vmax.f32 %v5140, 0.0
        %v5397 = vmax.f32 %v5141, 0.0
        %v5398 = vmax.f32 %v5142, 0.0
        %v5399 = vmax.f32 %v5143, 0.0
        %v5400 = vmax.f32 %v5144, 0.0
        %v5401 = vmax.f32 %v5145, 0.0
        %v5402 = vmax.f32 %v5146, 0.0
        %v5403 = vmax.f32 %v5147, 0.0
        %v5404 = vmax.f32 %v5148, 0.0
        %v5405 = vmax.f32 %v5149, 0.0
        %v5406 = vmax.f32 %v5150, 0.0
        %v5407 = vmax.f32 %v5151, 0.0
        %v5408 = vmax.f32 %v5152, 0.0
        %v5409 = vmax.f32 %v5153, 0.0
        %v5410 = vmax.f32 %v5154, 0.0
        %v5411 = vmax.f32 %v5155, 0.0
        %v5412 = vmax.f32 %v5156, 0.0
        %v5413 = vmax.f32 %v5157, 0.0
        %v5414 = vmax.f32 %v5158, 0.0
        %v5415 = vmax.f32 %v5159, 0.0
        %v5416 = vmax.f32 %v5160, 0.0
        %v5417 = vmax.f32 %v5161, 0.0
        %v5418 = vmax.f32 %v5162, 0.0
        %v5419 = vmax.f32 %v5163, 0.0
        %v5420 = vmax.f32 %v5164, 0.0
        %v5421 = vmax.f32 %v5165, 0.0
        %v5422 = vmax.f32 %v5166, 0.0
        %v5423 = vmax.f32 %v5167, 0.0
        %v5424 = vmax.f32 %v5168, 0.0
        %v5425 = vmax.f32 %v5169, 0.0
        %v5426 = vmax.f32 %v5170, 0.0
        %v5427 = vmax.f32 %v5171, 0.0
        %v5428 = vmax.f32 %v5172, 0.0
        %v5429 = vmax.f32 %v5173, 0.0
        %v5430 = vmax.f32 %v5174, 0.0
        %v5431 = vmax.f32 %v5175, 0.0
        %v5432 = vmax.f32 %v5176, 0.0
        %v5433 = vmax.f32 %v5177, 0.0
        %v5434 = vmax.f32 %v5178, 0.0
        %v5435 = vmax.f32 %v5179, 0.0
        %v5436 = vmax.f32 %v5180, 0.0
        %v5437 = vmax.f32 %v5181, 0.0
        %v5438 = vmax.f32 %v5182, 0.0
        %v5439 = vmax.f32 %v5183, 0.0
        %v5440 = vmax.f32 %v5184, 0.0
        %v5441 = vmax.f32 %v5185, 0.0
        %v5442 = vmax.f32 %v5186, 0.0
        %v5443 = vmax.f32 %v5187, 0.0
        %v5444 = vmax.f32 %v5188, 0.0
        %v5445 = vmax.f32 %v5189, 0.0
        %v5446 = vmax.f32 %v5190, 0.0
        %v5447 = vmax.f32 %v5191, 0.0
        %v5448 = vmax.f32 %v5192, 0.0
        %v5449 = vmax.f32 %v5193, 0.0
        %v5450 = vmax.f32 %v5194, 0.0
        %v5451 = vmax.f32 %v5195, 0.0
        %v5452 = vmax.f32 %v5196, 0.0
        %v5453 = vmax.f32 %v5197, 0.0
        %v5454 = vmax.f32 %v5198, 0.0
        %v5455 = vmax.f32 %v5199, 0.0
        %v5456 = vmax.f32 %v5200, 0.0
        %v5457 = vmax.f32 %v5201, 0.0
        %v5458 = vmax.f32 %v5202, 0.0
        %v5459 = vmax.f32 %v5203, 0.0
        %v5460 = vmax.f32 %v5204, 0.0
        %v5461 = vmax.f32 %v5205, 0.0
        %v5462 = vmax.f32 %v5206, 0.0
        %v5463 = vmax.f32 %v5207, 0.0
        %v5464 = vmax.f32 %v5208, 0.0
        %v5465 = vmax.f32 %v5209, 0.0
        %v5466 = vmax.f32 %v5210, 0.0
        %v5467 = vmax.f32 %v5211, 0.0
        %v5468 = vmax.f32 %v5212, 0.0
        %v5469 = vmax.f32 %v5213, 0.0
        %v5470 = vmax.f32 %v5214, 0.0
        %v5471 = vmax.f32 %v5215, 0.0
        %v5472 = vmax.f32 %v5216, 0.0
        %v5473 = vmax.f32 %v5217, 0.0
        %v5474 = vmax.f32 %v5218, 0.0
        %v5475 = vmax.f32 %v5219, 0.0
        %v5476 = vmax.f32 %v5220, 0.0
        %v5477 = vmax.f32 %v5221, 0.0
        %v5478 = vmax.f32 %v5222, 0.0
        %v5479 = vmax.f32 %v5223, 0.0
        %v5480 = vmax.f32 %v5224, 0.0
        %v5481 = vmax.f32 %v5225, 0.0
        %v5482 = vmax.f32 %v5226, 0.0
        %v5483 = vmax.f32 %v5227, 0.0
        %v5484 = vmax.f32 %v5228, 0.0
        %v5485 = vmax.f32 %v5229, 0.0
        %v5486 = vmax.f32 %v5230, 0.0
        %v5487 = vmax.f32 %v5231, 0.0
        %v5488 = vmax.f32 %v5232, 0.0
        %v5489 = vmax.f32 %v5233, 0.0
        %v5490 = vmax.f32 %v5234, 0.0
        %v5491 = vmax.f32 %v5235, 0.0
        %v5492 = vmax.f32 %v5236, 0.0
        %v5493 = vmax.f32 %v5237, 0.0
        %v5494 = vmax.f32 %v5238, 0.0
        %v5495 = vmax.f32 %v5239, 0.0
        %v5496 = vmax.f32 %v5240, 0.0
        %v5497 = vmax.f32 %v5241, 0.0
        %v5498 = vmax.f32 %v5242, 0.0
        %v5499 = vmax.f32 %v5243, 0.0
        %v5500 = vmax.f32 %v5244, 0.0
        %v5501 = vmax.f32 %v5245, 0.0
        %v5502 = vmax.f32 %v5246, 0.0
        %v5503 = vmax.f32 %v5247, 0.0
        %v5504 = vmax.f32 %v5248, 0.0
        %v5505 = vmax.f32 %v5249, 0.0
        %v5506 = vmax.f32 %v5250, 0.0
        %v5507 = vmax.f32 %v5251, 0.0
        %v5508 = vmax.f32 %v5252, 0.0
        %v5509 = vmax.f32 %v5253, 0.0
        %v5510 = vmax.f32 %v5254, 0.0
        %v5511 = vmax.f32 %v5255, 0.0
        %v5512 = vmax.f32 %v5256, 0.0
        %v5513 = vmax.f32 %v5257, 0.0
        %v5514 = vmax.f32 %v5258, 0.0
        %v5515 = vmax.f32 %v5259, 0.0
        %v5516 = vmax.f32 %v5260, 0.0
        %v5517 = vmax.f32 %v5261, 0.0
        %v5518 = vmax.f32 %v5262, 0.0
        %v5519 = vmax.f32 %v5263, 0.0
        %v5520 = vmax.f32 %v5264, 0.0
        %v5521 = vmax.f32 %v5265, 0.0
        %v5522 = vmax.f32 %v5266, 0.0
        %v5523 = vmax.f32 %v5267, 0.0
        %v5524 = vmax.f32 %v5268, 0.0
        %v5525 = vmax.f32 %v5269, 0.0
        %v5526 = vmax.f32 %v5270, 0.0
        %v5527 = vmax.f32 %v5271, 0.0
        %v5528 = vmax.f32 %v5272, 0.0
        %v5529 = vmax.f32 %v5273, 0.0
        %v5530 = vmax.f32 %v5274, 0.0
        %v5531 = vmax.f32 %v5275, 0.0
        %v5532 = vmax.f32 %v5276, 0.0
        %v5533 = vmax.f32 %v5277, 0.0
        %v5534 = vmax.f32 %v5278, 0.0
        %v5535 = vmax.f32 %v5279, 0.0
        %v5536 = vmax.f32 %v5280, 0.0
        %v5537 = vmax.f32 %v5281, 0.0
        %v5538 = vmax.f32 %v5282, 0.0
        %v5539 = vmax.f32 %v5283, 0.0
        %v5540 = vmax.f32 %v5284, 0.0
        %v5541 = vmax.f32 %v5285, 0.0
        %v5542 = vmax.f32 %v5286, 0.0
        %v5543 = vmax.f32 %v5287, 0.0
        %v5544 = vmax.f32 %v5288, 0.0
        %v5545 = vmax.f32 %v5289, 0.0
        %v5546 = vmax.f32 %v5290, 0.0
        %v5547 = vmax.f32 %v5291, 0.0
        %v5548 = vmax.f32 %v5292, 0.0
        %v5549 = vmax.f32 %v5293, 0.0
        %v5550 = vmax.f32 %v5294, 0.0
        %v5551 = vmax.f32 %v5295, 0.0
        %v5552 = vmax.f32 %v5296, 0.0
        %v5553 = vmax.f32 %v5297, 0.0
        %v5554 = vmax.f32 %v5298, 0.0
        %v5555 = vmax.f32 %v5299, 0.0
        %v5556 = vmax.f32 %v5300, 0.0
        %v5557 = vmax.f32 %v5301, 0.0
        %v5558 = vmax.f32 %v5302, 0.0
        %v5559 = vmax.f32 %v5303, 0.0
        %v5560 = vmax.f32 %v5304, 0.0
        %v5561 = vmax.f32 %v5305, 0.0
        %v5562 = vmax.f32 %v5306, 0.0
        %v5563 = vmax.f32 %v5307, 0.0
        %v5564 = vmax.f32 %v5308, 0.0
        %v5565 = vmax.f32 %v5309, 0.0
        %v5566 = vmax.f32 %v5310, 0.0
        %v5567 = vmax.f32 %v5311, 0.0
        %v5568 = vmax.f32 %v5312, 0.0
        %v5569 = vmax.f32 %v5313, 0.0
        %v5570 = vmax.f32 %v5314, 0.0
        %v5571 = vmax.f32 %v5315, 0.0
        %v5572 = vmax.f32 %v5316, 0.0
        %v5573 = vmax.f32 %v5317, 0.0
        %v5574 = vmax.f32 %v5318, 0.0
        %v5575 = vmax.f32 %v5319, 0.0
        %v5576 = vmax.f32 %v5320, 0.0
        %v5577 = vmax.f32 %v5321, 0.0
        %v5578 = vld [vmem:[%s2] sm:$0xff]
        %v5579 = vld [vmem:[%s2 + $0x8] sm:$0xff]
        %v5580 = vld [vmem:[%s2 + $0x10] sm:$0xff]
        %v5581 = vld [vmem:[%s2 + $0x18] sm:$0xff]
        %v5582 = vld [vmem:[%s2 + $0x20] sm:$0xff]
        %v5583 = vld [vmem:[%s2 + $0x28] sm:$0xff]
        %v5584 = vld [vmem:[%s2 + $0x30] sm:$0xff]
        %v5585 = vld [vmem:[%s2 + $0x38] sm:$0xff]
        %v5586 = vld [vmem:[%s2 + $0x40] sm:$0xff]
        %v5587 = vld [vmem:[%s2 + $0x48] sm:$0xff]
        %v5588 = vld [vmem:[%s2 + $0x50] sm:$0xff]
        %v5589 = vld [vmem:[%s2 + $0x58] sm:$0xff]
        %v5590 = vld [vmem:[%s2 + $0x60] sm:$0xff]
        %v5591 = vld [vmem:[%s2 + $0x68] sm:$0xff]
        %v5592 = vld [vmem:[%s2 + $0x70] sm:$0xff]
        %v5593 = vld [vmem:[%s2 + $0x78] sm:$0xff]
        %v5594 = vld [vmem:[%s2 + $0x80] sm:$0xff]
        %v5595 = vld [vmem:[%s2 + $0x88] sm:$0xff]
        %v5596 = vld [vmem:[%s2 + $0x90] sm:$0xff]
        %v5597 = vld [vmem:[%s2 + $0x98] sm:$0xff]
        %v5598 = vld [vmem:[%s2 + $0xa0] sm:$0xff]
        %v5599 = vld [vmem:[%s2 + $0xa8] sm:$0xff]
        %v5600 = vld [vmem:[%s2 + $0xb0] sm:$0xff]
        %v5601 = vld [vmem:[%s2 + $0xb8] sm:$0xff]
        %v5602 = vld [vmem:[%s2 + $0xc0] sm:$0xff]
        %v5603 = vld [vmem:[%s2 + $0xc8] sm:$0xff]
        %v5604 = vld [vmem:[%s2 + $0xd0] sm:$0xff]
        %v5605 = vld [vmem:[%s2 + $0xd8] sm:$0xff]
        %v5606 = vld [vmem:[%s2 + $0xe0] sm:$0xff]
        %v5607 = vld [vmem:[%s2 + $0xe8] sm:$0xff]
        %v5608 = vld [vmem:[%s2 + $0xf0] sm:$0xff]
        %v5609 = vld [vmem:[%s2 + $0xf8] sm:$0xff]
        %v5610 = vld [vmem:[%s2 + $0x100] sm:$0xff]
        %v5611 = vld [vmem:[%s2 + $0x108] sm:$0xff]
        %v5612 = vld [vmem:[%s2 + $0x110] sm:$0xff]
        %v5613 = vld [vmem:[%s2 + $0x118] sm:$0xff]
        %v5614 = vld [vmem:[%s2 + $0x120] sm:$0xff]
        %v5615 = vld [vmem:[%s2 + $0x128] sm:$0xff]
        %v5616 = vld [vmem:[%s2 + $0x130] sm:$0xff]
        %v5617 = vld [vmem:[%s2 + $0x138] sm:$0xff]
        %v5618 = vld [vmem:[%s2 + $0x140] sm:$0xff]
        %v5619 = vld [vmem:[%s2 + $0x148] sm:$0xff]
        %v5620 = vld [vmem:[%s2 + $0x150] sm:$0xff]
        %v5621 = vld [vmem:[%s2 + $0x158] sm:$0xff]
        %v5622 = vld [vmem:[%s2 + $0x160] sm:$0xff]
        %v5623 = vld [vmem:[%s2 + $0x168] sm:$0xff]
        %v5624 = vld [vmem:[%s2 + $0x170] sm:$0xff]
        %v5625 = vld [vmem:[%s2 + $0x178] sm:$0xff]
        %v5626 = vld [vmem:[%s2 + $0x180] sm:$0xff]
        %v5627 = vld [vmem:[%s2 + $0x188] sm:$0xff]
        %v5628 = vld [vmem:[%s2 + $0x190] sm:$0xff]
        %v5629 = vld [vmem:[%s2 + $0x198] sm:$0xff]
        %v5630 = vld [vmem:[%s2 + $0x1a0] sm:$0xff]
        %v5631 = vld [vmem:[%s2 + $0x1a8] sm:$0xff]
        %v5632 = vld [vmem:[%s2 + $0x1b0] sm:$0xff]
        %v5633 = vld [vmem:[%s2 + $0x1b8] sm:$0xff]
        %v5634 = vld [vmem:[%s2 + $0x1c0] sm:$0xff]
        %v5635 = vld [vmem:[%s2 + $0x1c8] sm:$0xff]
        %v5636 = vld [vmem:[%s2 + $0x1d0] sm:$0xff]
        %v5637 = vld [vmem:[%s2 + $0x1d8] sm:$0xff]
        %v5638 = vld [vmem:[%s2 + $0x1e0] sm:$0xff]
        %v5639 = vld [vmem:[%s2 + $0x1e8] sm:$0xff]
        %v5640 = vld [vmem:[%s2 + $0x1f0] sm:$0xff]
        %v5641 = vld [vmem:[%s2 + $0x1f8] sm:$0xff]
        %v5642 = vld [vmem:[%s2 + $0x200] sm:$0xff]
        %v5643 = vld [vmem:[%s2 + $0x208] sm:$0xff]
        %v5644 = vld [vmem:[%s2 + $0x210] sm:$0xff]
        %v5645 = vld [vmem:[%s2 + $0x218] sm:$0xff]
        %v5646 = vld [vmem:[%s2 + $0x220] sm:$0xff]
        %v5647 = vld [vmem:[%s2 + $0x228] sm:$0xff]
        %v5648 = vld [vmem:[%s2 + $0x230] sm:$0xff]
        %v5649 = vld [vmem:[%s2 + $0x238] sm:$0xff]
        %v5650 = vld [vmem:[%s2 + $0x240] sm:$0xff]
        %v5651 = vld [vmem:[%s2 + $0x248] sm:$0xff]
        %v5652 = vld [vmem:[%s2 + $0x250] sm:$0xff]
        %v5653 = vld [vmem:[%s2 + $0x258] sm:$0xff]
        %v5654 = vld [vmem:[%s2 + $0x260] sm:$0xff]
        %v5655 = vld [vmem:[%s2 + $0x268] sm:$0xff]
        %v5656 = vld [vmem:[%s2 + $0x270] sm:$0xff]
        %v5657 = vld [vmem:[%s2 + $0x278] sm:$0xff]
        %v5658 = vld [vmem:[%s2 + $0x280] sm:$0xff]
        %v5659 = vld [vmem:[%s2 + $0x288] sm:$0xff]
        %v5660 = vld [vmem:[%s2 + $0x290] sm:$0xff]
        %v5661 = vld [vmem:[%s2 + $0x298] sm:$0xff]
        %v5662 = vld [vmem:[%s2 + $0x2a0] sm:$0xff]
        %v5663 = vld [vmem:[%s2 + $0x2a8] sm:$0xff]
        %v5664 = vld [vmem:[%s2 + $0x2b0] sm:$0xff]
        %v5665 = vld [vmem:[%s2 + $0x2b8] sm:$0xff]
        %v5666 = vld [vmem:[%s2 + $0x2c0] sm:$0xff]
        %v5667 = vld [vmem:[%s2 + $0x2c8] sm:$0xff]
        %v5668 = vld [vmem:[%s2 + $0x2d0] sm:$0xff]
        %v5669 = vld [vmem:[%s2 + $0x2d8] sm:$0xff]
        %v5670 = vld [vmem:[%s2 + $0x2e0] sm:$0xff]
        %v5671 = vld [vmem:[%s2 + $0x2e8] sm:$0xff]
        %v5672 = vld [vmem:[%s2 + $0x2f0] sm:$0xff]
        %v5673 = vld [vmem:[%s2 + $0x2f8] sm:$0xff]
        %v5674 = vld [vmem:[%s2 + $0x300] sm:$0xff]
        %v5675 = vld [vmem:[%s2 + $0x308] sm:$0xff]
        %v5676 = vld [vmem:[%s2 + $0x310] sm:$0xff]
        %v5677 = vld [vmem:[%s2 + $0x318] sm:$0xff]
        %v5678 = vld [vmem:[%s2 + $0x320] sm:$0xff]
        %v5679 = vld [vmem:[%s2 + $0x328] sm:$0xff]
        %v5680 = vld [vmem:[%s2 + $0x330] sm:$0xff]
        %v5681 = vld [vmem:[%s2 + $0x338] sm:$0xff]
        %v5682 = vld [vmem:[%s2 + $0x340] sm:$0xff]
        %v5683 = vld [vmem:[%s2 + $0x348] sm:$0xff]
        %v5684 = vld [vmem:[%s2 + $0x350] sm:$0xff]
        %v5685 = vld [vmem:[%s2 + $0x358] sm:$0xff]
        %v5686 = vld [vmem:[%s2 + $0x360] sm:$0xff]
        %v5687 = vld [vmem:[%s2 + $0x368] sm:$0xff]
        %v5688 = vld [vmem:[%s2 + $0x370] sm:$0xff]
        %v5689 = vld [vmem:[%s2 + $0x378] sm:$0xff]
        %v5690 = vld [vmem:[%s2 + $0x380] sm:$0xff]
        %v5691 = vld [vmem:[%s2 + $0x388] sm:$0xff]
        %v5692 = vld [vmem:[%s2 + $0x390] sm:$0xff]
        %v5693 = vld [vmem:[%s2 + $0x398] sm:$0xff]
        %v5694 = vld [vmem:[%s2 + $0x3a0] sm:$0xff]
        %v5695 = vld [vmem:[%s2 + $0x3a8] sm:$0xff]
        %v5696 = vld [vmem:[%s2 + $0x3b0] sm:$0xff]
        %v5697 = vld [vmem:[%s2 + $0x3b8] sm:$0xff]
        %v5698 = vld [vmem:[%s2 + $0x3c0] sm:$0xff]
        %v5699 = vld [vmem:[%s2 + $0x3c8] sm:$0xff]
        %v5700 = vld [vmem:[%s2 + $0x3d0] sm:$0xff]
        %v5701 = vld [vmem:[%s2 + $0x3d8] sm:$0xff]
        %v5702 = vld [vmem:[%s2 + $0x3e0] sm:$0xff]
        %v5703 = vld [vmem:[%s2 + $0x3e8] sm:$0xff]
        %v5704 = vld [vmem:[%s2 + $0x3f0] sm:$0xff]
        %v5705 = vld [vmem:[%s2 + $0x3f8] sm:$0xff]
        %v5706 = vpack.c.bf16 %v5324, %v5322
        %v5707 = vpack.c.bf16 %v5325, %v5323
        %v5708 = vpack.c.bf16 %v5328, %v5326
        %v5709 = vpack.c.bf16 %v5329, %v5327
        %v5710 = vpack.c.bf16 %v5332, %v5330
        %v5711 = vpack.c.bf16 %v5333, %v5331
        %v5712 = vpack.c.bf16 %v5336, %v5334
        %v5713 = vpack.c.bf16 %v5337, %v5335
        %v5714 = vpack.c.bf16 %v5340, %v5338
        %v5715 = vpack.c.bf16 %v5341, %v5339
        %v5716 = vpack.c.bf16 %v5344, %v5342
        %v5717 = vpack.c.bf16 %v5345, %v5343
        %v5718 = vpack.c.bf16 %v5348, %v5346
        %v5719 = vpack.c.bf16 %v5349, %v5347
        %v5720 = vpack.c.bf16 %v5352, %v5350
        %v5721 = vpack.c.bf16 %v5353, %v5351
        %v5722 = vpack.c.bf16 %v5356, %v5354
        %v5723 = vpack.c.bf16 %v5357, %v5355
        %v5724 = vpack.c.bf16 %v5360, %v5358
        %v5725 = vpack.c.bf16 %v5361, %v5359
        %v5726 = vpack.c.bf16 %v5364, %v5362
        %v5727 = vpack.c.bf16 %v5365, %v5363
        %v5728 = vpack.c.bf16 %v5368, %v5366
        %v5729 = vpack.c.bf16 %v5369, %v5367
        %v5730 = vpack.c.bf16 %v5372, %v5370
        %v5731 = vpack.c.bf16 %v5373, %v5371
        %v5732 = vpack.c.bf16 %v5376, %v5374
        %v5733 = vpack.c.bf16 %v5377, %v5375
        %v5734 = vpack.c.bf16 %v5380, %v5378
        %v5735 = vpack.c.bf16 %v5381, %v5379
        %v5736 = vpack.c.bf16 %v5384, %v5382
        %v5737 = vpack.c.bf16 %v5385, %v5383
        %v5738 = vpack.c.bf16 %v5388, %v5386
        %v5739 = vpack.c.bf16 %v5389, %v5387
        %v5740 = vpack.c.bf16 %v5392, %v5390
        %v5741 = vpack.c.bf16 %v5393, %v5391
        %v5742 = vpack.c.bf16 %v5396, %v5394
        %v5743 = vpack.c.bf16 %v5397, %v5395
        %v5744 = vpack.c.bf16 %v5400, %v5398
        %v5745 = vpack.c.bf16 %v5401, %v5399
        %v5746 = vpack.c.bf16 %v5404, %v5402
        %v5747 = vpack.c.bf16 %v5405, %v5403
        %v5748 = vpack.c.bf16 %v5408, %v5406
        %v5749 = vpack.c.bf16 %v5409, %v5407
        %v5750 = vpack.c.bf16 %v5412, %v5410
        %v5751 = vpack.c.bf16 %v5413, %v5411
        %v5752 = vpack.c.bf16 %v5416, %v5414
        %v5753 = vpack.c.bf16 %v5417, %v5415
        %v5754 = vpack.c.bf16 %v5420, %v5418
        %v5755 = vpack.c.bf16 %v5421, %v5419
        %v5756 = vpack.c.bf16 %v5424, %v5422
        %v5757 = vpack.c.bf16 %v5425, %v5423
        %v5758 = vpack.c.bf16 %v5428, %v5426
        %v5759 = vpack.c.bf16 %v5429, %v5427
        %v5760 = vpack.c.bf16 %v5432, %v5430
        %v5761 = vpack.c.bf16 %v5433, %v5431
        %v5762 = vpack.c.bf16 %v5436, %v5434
        %v5763 = vpack.c.bf16 %v5437, %v5435
        %v5764 = vpack.c.bf16 %v5440, %v5438
        %v5765 = vpack.c.bf16 %v5441, %v5439
        %v5766 = vpack.c.bf16 %v5444, %v5442
        %v5767 = vpack.c.bf16 %v5445, %v5443
        %v5768 = vpack.c.bf16 %v5448, %v5446
        %v5769 = vpack.c.bf16 %v5449, %v5447
        %v5770 = vpack.c.bf16 %v5452, %v5450
        %v5771 = vpack.c.bf16 %v5453, %v5451
        %v5772 = vpack.c.bf16 %v5456, %v5454
        %v5773 = vpack.c.bf16 %v5457, %v5455
        %v5774 = vpack.c.bf16 %v5460, %v5458
        %v5775 = vpack.c.bf16 %v5461, %v5459
        %v5776 = vpack.c.bf16 %v5464, %v5462
        %v5777 = vpack.c.bf16 %v5465, %v5463
        %v5778 = vpack.c.bf16 %v5468, %v5466
        %v5779 = vpack.c.bf16 %v5469, %v5467
        %v5780 = vpack.c.bf16 %v5472, %v5470
        %v5781 = vpack.c.bf16 %v5473, %v5471
        %v5782 = vpack.c.bf16 %v5476, %v5474
        %v5783 = vpack.c.bf16 %v5477, %v5475
        %v5784 = vpack.c.bf16 %v5480, %v5478
        %v5785 = vpack.c.bf16 %v5481, %v5479
        %v5786 = vpack.c.bf16 %v5484, %v5482
        %v5787 = vpack.c.bf16 %v5485, %v5483
        %v5788 = vpack.c.bf16 %v5488, %v5486
        %v5789 = vpack.c.bf16 %v5489, %v5487
        %v5790 = vpack.c.bf16 %v5492, %v5490
        %v5791 = vpack.c.bf16 %v5493, %v5491
        %v5792 = vpack.c.bf16 %v5496, %v5494
        %v5793 = vpack.c.bf16 %v5497, %v5495
        %v5794 = vpack.c.bf16 %v5500, %v5498
        %v5795 = vpack.c.bf16 %v5501, %v5499
        %v5796 = vpack.c.bf16 %v5504, %v5502
        %v5797 = vpack.c.bf16 %v5505, %v5503
        %v5798 = vpack.c.bf16 %v5508, %v5506
        %v5799 = vpack.c.bf16 %v5509, %v5507
        %v5800 = vpack.c.bf16 %v5512, %v5510
        %v5801 = vpack.c.bf16 %v5513, %v5511
        %v5802 = vpack.c.bf16 %v5516, %v5514
        %v5803 = vpack.c.bf16 %v5517, %v5515
        %v5804 = vpack.c.bf16 %v5520, %v5518
        %v5805 = vpack.c.bf16 %v5521, %v5519
        %v5806 = vpack.c.bf16 %v5524, %v5522
        %v5807 = vpack.c.bf16 %v5525, %v5523
        %v5808 = vpack.c.bf16 %v5528, %v5526
        %v5809 = vpack.c.bf16 %v5529, %v5527
        %v5810 = vpack.c.bf16 %v5532, %v5530
        %v5811 = vpack.c.bf16 %v5533, %v5531
        %v5812 = vpack.c.bf16 %v5536, %v5534
        %v5813 = vpack.c.bf16 %v5537, %v5535
        %v5814 = vpack.c.bf16 %v5540, %v5538
        %v5815 = vpack.c.bf16 %v5541, %v5539
        %v5816 = vpack.c.bf16 %v5544, %v5542
        %v5817 = vpack.c.bf16 %v5545, %v5543
        %v5818 = vpack.c.bf16 %v5548, %v5546
        %v5819 = vpack.c.bf16 %v5549, %v5547
        %v5820 = vpack.c.bf16 %v5552, %v5550
        %v5821 = vpack.c.bf16 %v5553, %v5551
        %v5822 = vpack.c.bf16 %v5556, %v5554
        %v5823 = vpack.c.bf16 %v5557, %v5555
        %v5824 = vpack.c.bf16 %v5560, %v5558
        %v5825 = vpack.c.bf16 %v5561, %v5559
        %v5826 = vpack.c.bf16 %v5564, %v5562
        %v5827 = vpack.c.bf16 %v5565, %v5563
        %v5828 = vpack.c.bf16 %v5568, %v5566
        %v5829 = vpack.c.bf16 %v5569, %v5567
        %v5830 = vpack.c.bf16 %v5572, %v5570
        %v5831 = vpack.c.bf16 %v5573, %v5571
        %v5832 = vpack.c.bf16 %v5576, %v5574
        %v5833 = vpack.c.bf16 %v5577, %v5575
        %v5962 = vunpack.c.l.b16 %v5578
        %v5963 = vunpack.c.h.b16 %v5578
        %v5964 = vunpack.c.l.b16 %v5579
        %v5965 = vunpack.c.h.b16 %v5579
        %v5966 = vunpack.c.l.b16 %v5580
        %v5967 = vunpack.c.h.b16 %v5580
        %v5968 = vunpack.c.l.b16 %v5581
        %v5969 = vunpack.c.h.b16 %v5581
        %v5970 = vunpack.c.l.b16 %v5582
        %v5971 = vunpack.c.h.b16 %v5582
        %v5972 = vunpack.c.l.b16 %v5583
        %v5973 = vunpack.c.h.b16 %v5583
        %v5974 = vunpack.c.l.b16 %v5584
        %v5975 = vunpack.c.h.b16 %v5584
        %v5976 = vunpack.c.l.b16 %v5585
        %v5977 = vunpack.c.h.b16 %v5585
        %v5978 = vunpack.c.l.b16 %v5586
        %v5979 = vunpack.c.h.b16 %v5586
        %v5980 = vunpack.c.l.b16 %v5587
        %v5981 = vunpack.c.h.b16 %v5587
        %v5982 = vunpack.c.l.b16 %v5588
        %v5983 = vunpack.c.h.b16 %v5588
        %v5984 = vunpack.c.l.b16 %v5589
        %v5985 = vunpack.c.h.b16 %v5589
        %v5986 = vunpack.c.l.b16 %v5590
        %v5987 = vunpack.c.h.b16 %v5590
        %v5988 = vunpack.c.l.b16 %v5591
        %v5989 = vunpack.c.h.b16 %v5591
        %v5990 = vunpack.c.l.b16 %v5592
        %v5991 = vunpack.c.h.b16 %v5592
        %v5992 = vunpack.c.l.b16 %v5593
        %v5993 = vunpack.c.h.b16 %v5593
        %v5994 = vunpack.c.l.b16 %v5594
        %v5995 = vunpack.c.h.b16 %v5594
        %v5996 = vunpack.c.l.b16 %v5595
        %v5997 = vunpack.c.h.b16 %v5595
        %v5998 = vunpack.c.l.b16 %v5596
        %v5999 = vunpack.c.h.b16 %v5596
        %v6000 = vunpack.c.l.b16 %v5597
        %v6001 = vunpack.c.h.b16 %v5597
        %v6002 = vunpack.c.l.b16 %v5598
        %v6003 = vunpack.c.h.b16 %v5598
        %v6004 = vunpack.c.l.b16 %v5599
        %v6005 = vunpack.c.h.b16 %v5599
        %v6006 = vunpack.c.l.b16 %v5600
        %v6007 = vunpack.c.h.b16 %v5600
        %v6008 = vunpack.c.l.b16 %v5601
        %v6009 = vunpack.c.h.b16 %v5601
        %v6010 = vunpack.c.l.b16 %v5602
        %v6011 = vunpack.c.h.b16 %v5602
        %v6012 = vunpack.c.l.b16 %v5603
        %v6013 = vunpack.c.h.b16 %v5603
        %v6014 = vunpack.c.l.b16 %v5604
        %v6015 = vunpack.c.h.b16 %v5604
        %v6016 = vunpack.c.l.b16 %v5605
        %v6017 = vunpack.c.h.b16 %v5605
        %v6018 = vunpack.c.l.b16 %v5606
        %v6019 = vunpack.c.h.b16 %v5606
        %v6020 = vunpack.c.l.b16 %v5607
        %v6021 = vunpack.c.h.b16 %v5607
        %v6022 = vunpack.c.l.b16 %v5608
        %v6023 = vunpack.c.h.b16 %v5608
        %v6024 = vunpack.c.l.b16 %v5609
        %v6025 = vunpack.c.h.b16 %v5609
        %v6026 = vunpack.c.l.b16 %v5610
        %v6027 = vunpack.c.h.b16 %v5610
        %v6028 = vunpack.c.l.b16 %v5611
        %v6029 = vunpack.c.h.b16 %v5611
        %v6030 = vunpack.c.l.b16 %v5612
        %v6031 = vunpack.c.h.b16 %v5612
        %v6032 = vunpack.c.l.b16 %v5613
        %v6033 = vunpack.c.h.b16 %v5613
        %v6034 = vunpack.c.l.b16 %v5614
        %v6035 = vunpack.c.h.b16 %v5614
        %v6036 = vunpack.c.l.b16 %v5615
        %v6037 = vunpack.c.h.b16 %v5615
        %v6038 = vunpack.c.l.b16 %v5616
        %v6039 = vunpack.c.h.b16 %v5616
        %v6040 = vunpack.c.l.b16 %v5617
        %v6041 = vunpack.c.h.b16 %v5617
        %v6042 = vunpack.c.l.b16 %v5618
        %v6043 = vunpack.c.h.b16 %v5618
        %v6044 = vunpack.c.l.b16 %v5619
        %v6045 = vunpack.c.h.b16 %v5619
        %v6046 = vunpack.c.l.b16 %v5620
        %v6047 = vunpack.c.h.b16 %v5620
        %v6048 = vunpack.c.l.b16 %v5621
        %v6049 = vunpack.c.h.b16 %v5621
        %v6050 = vunpack.c.l.b16 %v5622
        %v6051 = vunpack.c.h.b16 %v5622
        %v6052 = vunpack.c.l.b16 %v5623
        %v6053 = vunpack.c.h.b16 %v5623
        %v6054 = vunpack.c.l.b16 %v5624
        %v6055 = vunpack.c.h.b16 %v5624
        %v6056 = vunpack.c.l.b16 %v5625
        %v6057 = vunpack.c.h.b16 %v5625
        %v6058 = vunpack.c.l.b16 %v5626
        %v6059 = vunpack.c.h.b16 %v5626
        %v6060 = vunpack.c.l.b16 %v5627
        %v6061 = vunpack.c.h.b16 %v5627
        %v6062 = vunpack.c.l.b16 %v5628
        %v6063 = vunpack.c.h.b16 %v5628
        %v6064 = vunpack.c.l.b16 %v5629
        %v6065 = vunpack.c.h.b16 %v5629
        %v6066 = vunpack.c.l.b16 %v5630
        %v6067 = vunpack.c.h.b16 %v5630
        %v6068 = vunpack.c.l.b16 %v5631
        %v6069 = vunpack.c.h.b16 %v5631
        %v6070 = vunpack.c.l.b16 %v5632
        %v6071 = vunpack.c.h.b16 %v5632
        %v6072 = vunpack.c.l.b16 %v5633
        %v6073 = vunpack.c.h.b16 %v5633
        %v6074 = vunpack.c.l.b16 %v5634
        %v6075 = vunpack.c.h.b16 %v5634
        %v6076 = vunpack.c.l.b16 %v5635
        %v6077 = vunpack.c.h.b16 %v5635
        %v6078 = vunpack.c.l.b16 %v5636
        %v6079 = vunpack.c.h.b16 %v5636
        %v6080 = vunpack.c.l.b16 %v5637
        %v6081 = vunpack.c.h.b16 %v5637
        %v6082 = vunpack.c.l.b16 %v5638
        %v6083 = vunpack.c.h.b16 %v5638
        %v6084 = vunpack.c.l.b16 %v5639
        %v6085 = vunpack.c.h.b16 %v5639
        %v6086 = vunpack.c.l.b16 %v5640
        %v6087 = vunpack.c.h.b16 %v5640
        %v6088 = vunpack.c.l.b16 %v5641
        %v6089 = vunpack.c.h.b16 %v5641
        %v6090 = vunpack.c.l.b16 %v5642
        %v6091 = vunpack.c.h.b16 %v5642
        %v6092 = vunpack.c.l.b16 %v5643
        %v6093 = vunpack.c.h.b16 %v5643
        %v6094 = vunpack.c.l.b16 %v5644
        %v6095 = vunpack.c.h.b16 %v5644
        %v6096 = vunpack.c.l.b16 %v5645
        %v6097 = vunpack.c.h.b16 %v5645
        %v6098 = vunpack.c.l.b16 %v5646
        %v6099 = vunpack.c.h.b16 %v5646
        %v6100 = vunpack.c.l.b16 %v5647
        %v6101 = vunpack.c.h.b16 %v5647
        %v6102 = vunpack.c.l.b16 %v5648
        %v6103 = vunpack.c.h.b16 %v5648
        %v6104 = vunpack.c.l.b16 %v5649
        %v6105 = vunpack.c.h.b16 %v5649
        %v6106 = vunpack.c.l.b16 %v5650
        %v6107 = vunpack.c.h.b16 %v5650
        %v6108 = vunpack.c.l.b16 %v5651
        %v6109 = vunpack.c.h.b16 %v5651
        %v6110 = vunpack.c.l.b16 %v5652
        %v6111 = vunpack.c.h.b16 %v5652
        %v6112 = vunpack.c.l.b16 %v5653
        %v6113 = vunpack.c.h.b16 %v5653
        %v6114 = vunpack.c.l.b16 %v5654
        %v6115 = vunpack.c.h.b16 %v5654
        %v6116 = vunpack.c.l.b16 %v5655
        %v6117 = vunpack.c.h.b16 %v5655
        %v6118 = vunpack.c.l.b16 %v5656
        %v6119 = vunpack.c.h.b16 %v5656
        %v6120 = vunpack.c.l.b16 %v5657
        %v6121 = vunpack.c.h.b16 %v5657
        %v6122 = vunpack.c.l.b16 %v5658
        %v6123 = vunpack.c.h.b16 %v5658
        %v6124 = vunpack.c.l.b16 %v5659
        %v6125 = vunpack.c.h.b16 %v5659
        %v6126 = vunpack.c.l.b16 %v5660
        %v6127 = vunpack.c.h.b16 %v5660
        %v6128 = vunpack.c.l.b16 %v5661
        %v6129 = vunpack.c.h.b16 %v5661
        %v6130 = vunpack.c.l.b16 %v5662
        %v6131 = vunpack.c.h.b16 %v5662
        %v6132 = vunpack.c.l.b16 %v5663
        %v6133 = vunpack.c.h.b16 %v5663
        %v6134 = vunpack.c.l.b16 %v5664
        %v6135 = vunpack.c.h.b16 %v5664
        %v6136 = vunpack.c.l.b16 %v5665
        %v6137 = vunpack.c.h.b16 %v5665
        %v6138 = vunpack.c.l.b16 %v5666
        %v6139 = vunpack.c.h.b16 %v5666
        %v6140 = vunpack.c.l.b16 %v5667
        %v6141 = vunpack.c.h.b16 %v5667
        %v6142 = vunpack.c.l.b16 %v5668
        %v6143 = vunpack.c.h.b16 %v5668
        %v6144 = vunpack.c.l.b16 %v5669
        %v6145 = vunpack.c.h.b16 %v5669
        %v6146 = vunpack.c.l.b16 %v5670
        %v6147 = vunpack.c.h.b16 %v5670
        %v6148 = vunpack.c.l.b16 %v5671
        %v6149 = vunpack.c.h.b16 %v5671
        %v6150 = vunpack.c.l.b16 %v5672
        %v6151 = vunpack.c.h.b16 %v5672
        %v6152 = vunpack.c.l.b16 %v5673
        %v6153 = vunpack.c.h.b16 %v5673
        %v6154 = vunpack.c.l.b16 %v5674
        %v6155 = vunpack.c.h.b16 %v5674
        %v6156 = vunpack.c.l.b16 %v5675
        %v6157 = vunpack.c.h.b16 %v5675
        %v6158 = vunpack.c.l.b16 %v5676
        %v6159 = vunpack.c.h.b16 %v5676
        %v6160 = vunpack.c.l.b16 %v5677
        %v6161 = vunpack.c.h.b16 %v5677
        %v6162 = vunpack.c.l.b16 %v5678
        %v6163 = vunpack.c.h.b16 %v5678
        %v6164 = vunpack.c.l.b16 %v5679
        %v6165 = vunpack.c.h.b16 %v5679
        %v6166 = vunpack.c.l.b16 %v5680
        %v6167 = vunpack.c.h.b16 %v5680
        %v6168 = vunpack.c.l.b16 %v5681
        %v6169 = vunpack.c.h.b16 %v5681
        %v6170 = vunpack.c.l.b16 %v5682
        %v6171 = vunpack.c.h.b16 %v5682
        %v6172 = vunpack.c.l.b16 %v5683
        %v6173 = vunpack.c.h.b16 %v5683
        %v6174 = vunpack.c.l.b16 %v5684
        %v6175 = vunpack.c.h.b16 %v5684
        %v6176 = vunpack.c.l.b16 %v5685
        %v6177 = vunpack.c.h.b16 %v5685
        %v6178 = vunpack.c.l.b16 %v5686
        %v6179 = vunpack.c.h.b16 %v5686
        %v6180 = vunpack.c.l.b16 %v5687
        %v6181 = vunpack.c.h.b16 %v5687
        %v6182 = vunpack.c.l.b16 %v5688
        %v6183 = vunpack.c.h.b16 %v5688
        %v6184 = vunpack.c.l.b16 %v5689
        %v6185 = vunpack.c.h.b16 %v5689
        %v6186 = vunpack.c.l.b16 %v5690
        %v6187 = vunpack.c.h.b16 %v5690
        %v6188 = vunpack.c.l.b16 %v5691
        %v6189 = vunpack.c.h.b16 %v5691
        %v6190 = vunpack.c.l.b16 %v5692
        %v6191 = vunpack.c.h.b16 %v5692
        %v6192 = vunpack.c.l.b16 %v5693
        %v6193 = vunpack.c.h.b16 %v5693
        %v6194 = vunpack.c.l.b16 %v5694
        %v6195 = vunpack.c.h.b16 %v5694
        %v6196 = vunpack.c.l.b16 %v5695
        %v6197 = vunpack.c.h.b16 %v5695
        %v6198 = vunpack.c.l.b16 %v5696
        %v6199 = vunpack.c.h.b16 %v5696
        %v6200 = vunpack.c.l.b16 %v5697
        %v6201 = vunpack.c.h.b16 %v5697
        %v6202 = vunpack.c.l.b16 %v5698
        %v6203 = vunpack.c.h.b16 %v5698
        %v6204 = vunpack.c.l.b16 %v5699
        %v6205 = vunpack.c.h.b16 %v5699
        %v6206 = vunpack.c.l.b16 %v5700
        %v6207 = vunpack.c.h.b16 %v5700
        %v6208 = vunpack.c.l.b16 %v5701
        %v6209 = vunpack.c.h.b16 %v5701
        %v6210 = vunpack.c.l.b16 %v5702
        %v6211 = vunpack.c.h.b16 %v5702
        %v6212 = vunpack.c.l.b16 %v5703
        %v6213 = vunpack.c.h.b16 %v5703
        %v6214 = vunpack.c.l.b16 %v5704
        %v6215 = vunpack.c.h.b16 %v5704
        %v6216 = vunpack.c.l.b16 %v5705
        %v6217 = vunpack.c.h.b16 %v5705
        %v6218 = vpack.c.b16 %v5970, %v5962
        %v6219 = vpack.c.b16 %v5971, %v5963
        %v6220 = vpack.c.b16 %v5972, %v5964
        %v6221 = vpack.c.b16 %v5973, %v5965
        %v6222 = vpack.c.b16 %v5974, %v5966
        %v6223 = vpack.c.b16 %v5975, %v5967
        %v6224 = vpack.c.b16 %v5976, %v5968
        %v6225 = vpack.c.b16 %v5977, %v5969
        %v6226 = vpack.c.b16 %v5986, %v5978
        %v6227 = vpack.c.b16 %v5987, %v5979
        %v6228 = vpack.c.b16 %v5988, %v5980
        %v6229 = vpack.c.b16 %v5989, %v5981
        %v6230 = vpack.c.b16 %v5990, %v5982
        %v6231 = vpack.c.b16 %v5991, %v5983
        %v6232 = vpack.c.b16 %v5992, %v5984
        %v6233 = vpack.c.b16 %v5993, %v5985
        %v6234 = vpack.c.b16 %v6002, %v5994
        %v6235 = vpack.c.b16 %v6003, %v5995
        %v6236 = vpack.c.b16 %v6004, %v5996
        %v6237 = vpack.c.b16 %v6005, %v5997
        %v6238 = vpack.c.b16 %v6006, %v5998
        %v6239 = vpack.c.b16 %v6007, %v5999
        %v6240 = vpack.c.b16 %v6008, %v6000
        %v6241 = vpack.c.b16 %v6009, %v6001
        %v6242 = vpack.c.b16 %v6018, %v6010
        %v6243 = vpack.c.b16 %v6019, %v6011
        %v6244 = vpack.c.b16 %v6020, %v6012
        %v6245 = vpack.c.b16 %v6021, %v6013
        %v6246 = vpack.c.b16 %v6022, %v6014
        %v6247 = vpack.c.b16 %v6023, %v6015
        %v6248 = vpack.c.b16 %v6024, %v6016
        %v6249 = vpack.c.b16 %v6025, %v6017
        %v6250 = vpack.c.b16 %v6034, %v6026
        %v6251 = vpack.c.b16 %v6035, %v6027
        %v6252 = vpack.c.b16 %v6036, %v6028
        %v6253 = vpack.c.b16 %v6037, %v6029
        %v6254 = vpack.c.b16 %v6038, %v6030
        %v6255 = vpack.c.b16 %v6039, %v6031
        %v6256 = vpack.c.b16 %v6040, %v6032
        %v6257 = vpack.c.b16 %v6041, %v6033
        %v6258 = vpack.c.b16 %v6050, %v6042
        %v6259 = vpack.c.b16 %v6051, %v6043
        %v6260 = vpack.c.b16 %v6052, %v6044
        %v6261 = vpack.c.b16 %v6053, %v6045
        %v6262 = vpack.c.b16 %v6054, %v6046
        %v6263 = vpack.c.b16 %v6055, %v6047
        %v6264 = vpack.c.b16 %v6056, %v6048
        %v6265 = vpack.c.b16 %v6057, %v6049
        %v6266 = vpack.c.b16 %v6066, %v6058
        %v6267 = vpack.c.b16 %v6067, %v6059
        %v6268 = vpack.c.b16 %v6068, %v6060
        %v6269 = vpack.c.b16 %v6069, %v6061
        %v6270 = vpack.c.b16 %v6070, %v6062
        %v6271 = vpack.c.b16 %v6071, %v6063
        %v6272 = vpack.c.b16 %v6072, %v6064
        %v6273 = vpack.c.b16 %v6073, %v6065
        %v6274 = vpack.c.b16 %v6082, %v6074
        %v6275 = vpack.c.b16 %v6083, %v6075
        %v6276 = vpack.c.b16 %v6084, %v6076
        %v6277 = vpack.c.b16 %v6085, %v6077
        %v6278 = vpack.c.b16 %v6086, %v6078
        %v6279 = vpack.c.b16 %v6087, %v6079
        %v6280 = vpack.c.b16 %v6088, %v6080
        %v6281 = vpack.c.b16 %v6089, %v6081
        %v6282 = vpack.c.b16 %v6098, %v6090
        %v6283 = vpack.c.b16 %v6099, %v6091
        %v6284 = vpack.c.b16 %v6100, %v6092
        %v6285 = vpack.c.b16 %v6101, %v6093
        %v6286 = vpack.c.b16 %v6102, %v6094
        %v6287 = vpack.c.b16 %v6103, %v6095
        %v6288 = vpack.c.b16 %v6104, %v6096
        %v6289 = vpack.c.b16 %v6105, %v6097
        %v6290 = vpack.c.b16 %v6114, %v6106
        %v6291 = vpack.c.b16 %v6115, %v6107
        %v6292 = vpack.c.b16 %v6116, %v6108
        %v6293 = vpack.c.b16 %v6117, %v6109
        %v6294 = vpack.c.b16 %v6118, %v6110
        %v6295 = vpack.c.b16 %v6119, %v6111
        %v6296 = vpack.c.b16 %v6120, %v6112
        %v6297 = vpack.c.b16 %v6121, %v6113
        %v6298 = vpack.c.b16 %v6130, %v6122
        %v6299 = vpack.c.b16 %v6131, %v6123
        %v6300 = vpack.c.b16 %v6132, %v6124
        %v6301 = vpack.c.b16 %v6133, %v6125
        %v6302 = vpack.c.b16 %v6134, %v6126
        %v6303 = vpack.c.b16 %v6135, %v6127
        %v6304 = vpack.c.b16 %v6136, %v6128
        %v6305 = vpack.c.b16 %v6137, %v6129
        %v6306 = vpack.c.b16 %v6146, %v6138
        %v6307 = vpack.c.b16 %v6147, %v6139
        %v6308 = vpack.c.b16 %v6148, %v6140
        %v6309 = vpack.c.b16 %v6149, %v6141
        %v6310 = vpack.c.b16 %v6150, %v6142
        %v6311 = vpack.c.b16 %v6151, %v6143
        %v6312 = vpack.c.b16 %v6152, %v6144
        %v6313 = vpack.c.b16 %v6153, %v6145
        %v6314 = vpack.c.b16 %v6162, %v6154
        %v6315 = vpack.c.b16 %v6163, %v6155
        %v6316 = vpack.c.b16 %v6164, %v6156
        %v6317 = vpack.c.b16 %v6165, %v6157
        %v6318 = vpack.c.b16 %v6166, %v6158
        %v6319 = vpack.c.b16 %v6167, %v6159
        %v6320 = vpack.c.b16 %v6168, %v6160
        %v6321 = vpack.c.b16 %v6169, %v6161
        %v6322 = vpack.c.b16 %v6178, %v6170
        %v6323 = vpack.c.b16 %v6179, %v6171
        %v6324 = vpack.c.b16 %v6180, %v6172
        %v6325 = vpack.c.b16 %v6181, %v6173
        %v6326 = vpack.c.b16 %v6182, %v6174
        %v6327 = vpack.c.b16 %v6183, %v6175
        %v6328 = vpack.c.b16 %v6184, %v6176
        %v6329 = vpack.c.b16 %v6185, %v6177
        %v6330 = vpack.c.b16 %v6194, %v6186
        %v6331 = vpack.c.b16 %v6195, %v6187
        %v6332 = vpack.c.b16 %v6196, %v6188
        %v6333 = vpack.c.b16 %v6197, %v6189
        %v6334 = vpack.c.b16 %v6198, %v6190
        %v6335 = vpack.c.b16 %v6199, %v6191
        %v6336 = vpack.c.b16 %v6200, %v6192
        %v6337 = vpack.c.b16 %v6201, %v6193
        %v6338 = vpack.c.b16 %v6210, %v6202
        %v6339 = vpack.c.b16 %v6211, %v6203
        %v6340 = vpack.c.b16 %v6212, %v6204
        %v6341 = vpack.c.b16 %v6213, %v6205
        %v6342 = vpack.c.b16 %v6214, %v6206
        %v6343 = vpack.c.b16 %v6215, %v6207
        %v6344 = vpack.c.b16 %v6216, %v6208
        %v6345 = vpack.c.b16 %v6217, %v6209
        %6474 = vmatprep.subr.bf16.mxu0 %v5721
        %6475 = vmatpush1.bf16.msra.mxu0 %v5720
        %6476 = vmatprep.subr.bf16.mxu0 %v5719
        %6477 = vmatpush1.bf16.msra.mxu0 %v5718
        %6478 = vmatprep.subr.bf16.mxu0 %v5717
        %6479 = vmatpush1.bf16.msra.mxu0 %v5716
        %6480 = vmatprep.subr.bf16.mxu0 %v5715
        %6481 = vmatpush1.bf16.msra.mxu0 %v5714
        %6482 = vmatprep.subr.bf16.mxu0 %v5713
        %6483 = vmatpush1.bf16.msra.mxu0 %v5712
        %6484 = vmatprep.subr.bf16.mxu0 %v5711
        %6485 = vmatpush1.bf16.msra.mxu0 %v5710
        %6486 = vmatprep.subr.bf16.mxu0 %v5709
        %6487 = vmatpush1.bf16.msra.mxu0 %v5708
        %6488 = vmatprep.subr.bf16.mxu0 %v5707
        %6489 = vmatpush1.bf16.msra.mxu0 %v5706
        %6490 = vmatprep.subr.bf16.mxu0 %v5737
        %6491 = vmatpush2.bf16.msra.mxu0 %v5736
        %6492 = vmatprep.subr.bf16.mxu0 %v5735
        %6493 = vmatpush2.bf16.msra.mxu0 %v5734
        %6494 = vmatprep.subr.bf16.mxu0 %v5733
        %6495 = vmatpush2.bf16.msra.mxu0 %v5732
        %6496 = vmatprep.subr.bf16.mxu0 %v5731
        %6497 = vmatpush2.bf16.msra.mxu0 %v5730
        %6498 = vmatprep.subr.bf16.mxu0 %v5729
        %6499 = vmatpush2.bf16.msra.mxu0 %v5728
        %6500 = vmatprep.subr.bf16.mxu0 %v5727
        %6501 = vmatpush2.bf16.msra.mxu0 %v5726
        %6502 = vmatprep.subr.bf16.mxu0 %v5725
        %6503 = vmatpush2.bf16.msra.mxu0 %v5724
        %6504 = vmatprep.subr.bf16.mxu0 %v5723
        %6505 = vmatpush2.bf16.msra.mxu0 %v5722
        %6506 = vmatprep.mubr.bf16.mxu0 %v6219
        %6507 = vmatmul.mubr.bf16.gmra.mxu0 %v6218
        %v6508 = vpop.f32.mrf.mxu0
        %v6509 = vadd.f32 0.0, %v6508
        %v6510 = vpop.f32.mrf.mxu0
        %v6511 = vadd.f32 0.0, %v6510
        %v6512 = vpop.f32.mrf.mxu0
        %v6513 = vadd.f32 0.0, %v6512
        %v6514 = vpop.f32.mrf.mxu0
        %v6515 = vadd.f32 0.0, %v6514
        %6516 = vmatprep.mubr.bf16.mxu0 %v6227
        %6517 = vmatmul.mubr.bf16.gmra.mxu0 %v6226
        %v6518 = vpop.f32.mrf.mxu0
        %v6519 = vadd.f32 0.0, %v6518
        %v6520 = vpop.f32.mrf.mxu0
        %v6521 = vadd.f32 0.0, %v6520
        %v6522 = vpop.f32.mrf.mxu0
        %v6523 = vadd.f32 0.0, %v6522
        %v6524 = vpop.f32.mrf.mxu0
        %v6525 = vadd.f32 0.0, %v6524
        %6526 = vmatprep.mubr.bf16.mxu0 %v6235
        %6527 = vmatmul.mubr.bf16.gmra.mxu0 %v6234
        %v6528 = vpop.f32.mrf.mxu0
        %v6529 = vadd.f32 0.0, %v6528
        %v6530 = vpop.f32.mrf.mxu0
        %v6531 = vadd.f32 0.0, %v6530
        %v6532 = vpop.f32.mrf.mxu0
        %v6533 = vadd.f32 0.0, %v6532
        %v6534 = vpop.f32.mrf.mxu0
        %v6535 = vadd.f32 0.0, %v6534
        %6536 = vmatprep.mubr.bf16.mxu0 %v6243
        %6537 = vmatmul.mubr.bf16.gmra.mxu0 %v6242
        %v6538 = vpop.f32.mrf.mxu0
        %v6539 = vadd.f32 0.0, %v6538
        %v6540 = vpop.f32.mrf.mxu0
        %v6541 = vadd.f32 0.0, %v6540
        %v6542 = vpop.f32.mrf.mxu0
        %v6543 = vadd.f32 0.0, %v6542
        %v6544 = vpop.f32.mrf.mxu0
        %v6545 = vadd.f32 0.0, %v6544
        %6546 = vmatprep.mubr.bf16.mxu0 %v6251
        %6547 = vmatmul.mubr.bf16.gmra.mxu0 %v6250
        %v6548 = vpop.f32.mrf.mxu0
        %v6549 = vadd.f32 0.0, %v6548
        %v6550 = vpop.f32.mrf.mxu0
        %v6551 = vadd.f32 0.0, %v6550
        %v6552 = vpop.f32.mrf.mxu0
        %v6553 = vadd.f32 0.0, %v6552
        %v6554 = vpop.f32.mrf.mxu0
        %v6555 = vadd.f32 0.0, %v6554
        %6556 = vmatprep.mubr.bf16.mxu0 %v6259
        %6557 = vmatmul.mubr.bf16.gmra.mxu0 %v6258
        %v6558 = vpop.f32.mrf.mxu0
        %v6559 = vadd.f32 0.0, %v6558
        %v6560 = vpop.f32.mrf.mxu0
        %v6561 = vadd.f32 0.0, %v6560
        %v6562 = vpop.f32.mrf.mxu0
        %v6563 = vadd.f32 0.0, %v6562
        %v6564 = vpop.f32.mrf.mxu0
        %v6565 = vadd.f32 0.0, %v6564
        %6566 = vmatprep.mubr.bf16.mxu0 %v6267
        %6567 = vmatmul.mubr.bf16.gmra.mxu0 %v6266
        %v6568 = vpop.f32.mrf.mxu0
        %v6569 = vadd.f32 0.0, %v6568
        %v6570 = vpop.f32.mrf.mxu0
        %v6571 = vadd.f32 0.0, %v6570
        %v6572 = vpop.f32.mrf.mxu0
        %v6573 = vadd.f32 0.0, %v6572
        %v6574 = vpop.f32.mrf.mxu0
        %v6575 = vadd.f32 0.0, %v6574
        %6576 = vmatprep.mubr.bf16.mxu0 %v6275
        %6577 = vmatmul.mubr.bf16.gmra.mxu0 %v6274
        %v6578 = vpop.f32.mrf.mxu0
        %v6579 = vadd.f32 0.0, %v6578
        %v6580 = vpop.f32.mrf.mxu0
        %v6581 = vadd.f32 0.0, %v6580
        %v6582 = vpop.f32.mrf.mxu0
        %v6583 = vadd.f32 0.0, %v6582
        %v6584 = vpop.f32.mrf.mxu0
        %v6585 = vadd.f32 0.0, %v6584
        %6586 = vmatprep.mubr.bf16.mxu0 %v6283
        %6587 = vmatmul.mubr.bf16.gmra.mxu0 %v6282
        %v6588 = vpop.f32.mrf.mxu0
        %v6589 = vadd.f32 0.0, %v6588
        %v6590 = vpop.f32.mrf.mxu0
        %v6591 = vadd.f32 0.0, %v6590
        %v6592 = vpop.f32.mrf.mxu0
        %v6593 = vadd.f32 0.0, %v6592
        %v6594 = vpop.f32.mrf.mxu0
        %v6595 = vadd.f32 0.0, %v6594
        %6596 = vmatprep.mubr.bf16.mxu0 %v6291
        %6597 = vmatmul.mubr.bf16.gmra.mxu0 %v6290
        %v6598 = vpop.f32.mrf.mxu0
        %v6599 = vadd.f32 0.0, %v6598
        %v6600 = vpop.f32.mrf.mxu0
        %v6601 = vadd.f32 0.0, %v6600
        %v6602 = vpop.f32.mrf.mxu0
        %v6603 = vadd.f32 0.0, %v6602
        %v6604 = vpop.f32.mrf.mxu0
        %v6605 = vadd.f32 0.0, %v6604
        %6606 = vmatprep.mubr.bf16.mxu0 %v6299
        %6607 = vmatmul.mubr.bf16.gmra.mxu0 %v6298
        %v6608 = vpop.f32.mrf.mxu0
        %v6609 = vadd.f32 0.0, %v6608
        %v6610 = vpop.f32.mrf.mxu0
        %v6611 = vadd.f32 0.0, %v6610
        %v6612 = vpop.f32.mrf.mxu0
        %v6613 = vadd.f32 0.0, %v6612
        %v6614 = vpop.f32.mrf.mxu0
        %v6615 = vadd.f32 0.0, %v6614
        %6616 = vmatprep.mubr.bf16.mxu0 %v6307
        %6617 = vmatmul.mubr.bf16.gmra.mxu0 %v6306
        %v6618 = vpop.f32.mrf.mxu0
        %v6619 = vadd.f32 0.0, %v6618
        %v6620 = vpop.f32.mrf.mxu0
        %v6621 = vadd.f32 0.0, %v6620
        %v6622 = vpop.f32.mrf.mxu0
        %v6623 = vadd.f32 0.0, %v6622
        %v6624 = vpop.f32.mrf.mxu0
        %v6625 = vadd.f32 0.0, %v6624
        %6626 = vmatprep.mubr.bf16.mxu0 %v6315
        %6627 = vmatmul.mubr.bf16.gmra.mxu0 %v6314
        %v6628 = vpop.f32.mrf.mxu0
        %v6629 = vadd.f32 0.0, %v6628
        %v6630 = vpop.f32.mrf.mxu0
        %v6631 = vadd.f32 0.0, %v6630
        %v6632 = vpop.f32.mrf.mxu0
        %v6633 = vadd.f32 0.0, %v6632
        %v6634 = vpop.f32.mrf.mxu0
        %v6635 = vadd.f32 0.0, %v6634
        %6636 = vmatprep.mubr.bf16.mxu0 %v6323
        %6637 = vmatmul.mubr.bf16.gmra.mxu0 %v6322
        %v6638 = vpop.f32.mrf.mxu0
        %v6639 = vadd.f32 0.0, %v6638
        %v6640 = vpop.f32.mrf.mxu0
        %v6641 = vadd.f32 0.0, %v6640
        %v6642 = vpop.f32.mrf.mxu0
        %v6643 = vadd.f32 0.0, %v6642
        %v6644 = vpop.f32.mrf.mxu0
        %v6645 = vadd.f32 0.0, %v6644
        %6646 = vmatprep.mubr.bf16.mxu0 %v6331
        %6647 = vmatmul.mubr.bf16.gmra.mxu0 %v6330
        %v6648 = vpop.f32.mrf.mxu0
        %v6649 = vadd.f32 0.0, %v6648
        %v6650 = vpop.f32.mrf.mxu0
        %v6651 = vadd.f32 0.0, %v6650
        %v6652 = vpop.f32.mrf.mxu0
        %v6653 = vadd.f32 0.0, %v6652
        %v6654 = vpop.f32.mrf.mxu0
        %v6655 = vadd.f32 0.0, %v6654
        %6656 = vmatprep.mubr.bf16.mxu0 %v6339
        %6657 = vmatmul.mubr.bf16.gmra.mxu0 %v6338
        %v6658 = vpop.f32.mrf.mxu0
        %v6659 = vadd.f32 0.0, %v6658
        %v6660 = vpop.f32.mrf.mxu0
        %v6661 = vadd.f32 0.0, %v6660
        %v6662 = vpop.f32.mrf.mxu0
        %v6663 = vadd.f32 0.0, %v6662
        %v6664 = vpop.f32.mrf.mxu0
        %v6665 = vadd.f32 0.0, %v6664
        %6666 = vdwg.mxu0
        %6667 = vmatprep.subr.bf16.mxu0 %v5753
        %6668 = vmatpush1.bf16.msra.mxu0 %v5752
        %6669 = vmatprep.subr.bf16.mxu0 %v5751
        %6670 = vmatpush1.bf16.msra.mxu0 %v5750
        %6671 = vmatprep.subr.bf16.mxu0 %v5749
        %6672 = vmatpush1.bf16.msra.mxu0 %v5748
        %6673 = vmatprep.subr.bf16.mxu0 %v5747
        %6674 = vmatpush1.bf16.msra.mxu0 %v5746
        %6675 = vmatprep.subr.bf16.mxu0 %v5745
        %6676 = vmatpush1.bf16.msra.mxu0 %v5744
        %6677 = vmatprep.subr.bf16.mxu0 %v5743
        %6678 = vmatpush1.bf16.msra.mxu0 %v5742
        %6679 = vmatprep.subr.bf16.mxu0 %v5741
        %6680 = vmatpush1.bf16.msra.mxu0 %v5740
        %6681 = vmatprep.subr.bf16.mxu0 %v5739
        %6682 = vmatpush1.bf16.msra.mxu0 %v5738
        %6683 = vmatprep.subr.bf16.mxu0 %v5769
        %6684 = vmatpush2.bf16.msra.mxu0 %v5768
        %6685 = vmatprep.subr.bf16.mxu0 %v5767
        %6686 = vmatpush2.bf16.msra.mxu0 %v5766
        %6687 = vmatprep.subr.bf16.mxu0 %v5765
        %6688 = vmatpush2.bf16.msra.mxu0 %v5764
        %6689 = vmatprep.subr.bf16.mxu0 %v5763
        %6690 = vmatpush2.bf16.msra.mxu0 %v5762
        %6691 = vmatprep.subr.bf16.mxu0 %v5761
        %6692 = vmatpush2.bf16.msra.mxu0 %v5760
        %6693 = vmatprep.subr.bf16.mxu0 %v5759
        %6694 = vmatpush2.bf16.msra.mxu0 %v5758
        %6695 = vmatprep.subr.bf16.mxu0 %v5757
        %6696 = vmatpush2.bf16.msra.mxu0 %v5756
        %6697 = vmatprep.subr.bf16.mxu0 %v5755
        %6698 = vmatpush2.bf16.msra.mxu0 %v5754
        %6699 = vmatprep.mubr.bf16.mxu0 %v6221
        %6700 = vmatmul.mubr.bf16.gmra.mxu0 %v6220
        %v6701 = vpop.f32.mrf.mxu0
        %v6702 = vadd.f32 %v6509, %v6701
        %v6703 = vpop.f32.mrf.mxu0
        %v6704 = vadd.f32 %v6511, %v6703
        %v6705 = vpop.f32.mrf.mxu0
        %v6706 = vadd.f32 %v6513, %v6705
        %v6707 = vpop.f32.mrf.mxu0
        %v6708 = vadd.f32 %v6515, %v6707
        %6709 = vmatprep.mubr.bf16.mxu0 %v6229
        %6710 = vmatmul.mubr.bf16.gmra.mxu0 %v6228
        %v6711 = vpop.f32.mrf.mxu0
        %v6712 = vadd.f32 %v6519, %v6711
        %v6713 = vpop.f32.mrf.mxu0
        %v6714 = vadd.f32 %v6521, %v6713
        %v6715 = vpop.f32.mrf.mxu0
        %v6716 = vadd.f32 %v6523, %v6715
        %v6717 = vpop.f32.mrf.mxu0
        %v6718 = vadd.f32 %v6525, %v6717
        %6719 = vmatprep.mubr.bf16.mxu0 %v6237
        %6720 = vmatmul.mubr.bf16.gmra.mxu0 %v6236
        %v6721 = vpop.f32.mrf.mxu0
        %v6722 = vadd.f32 %v6529, %v6721
        %v6723 = vpop.f32.mrf.mxu0
        %v6724 = vadd.f32 %v6531, %v6723
        %v6725 = vpop.f32.mrf.mxu0
        %v6726 = vadd.f32 %v6533, %v6725
        %v6727 = vpop.f32.mrf.mxu0
        %v6728 = vadd.f32 %v6535, %v6727
        %6729 = vmatprep.mubr.bf16.mxu0 %v6245
        %6730 = vmatmul.mubr.bf16.gmra.mxu0 %v6244
        %v6731 = vpop.f32.mrf.mxu0
        %v6732 = vadd.f32 %v6539, %v6731
        %v6733 = vpop.f32.mrf.mxu0
        %v6734 = vadd.f32 %v6541, %v6733
        %v6735 = vpop.f32.mrf.mxu0
        %v6736 = vadd.f32 %v6543, %v6735
        %v6737 = vpop.f32.mrf.mxu0
        %v6738 = vadd.f32 %v6545, %v6737
        %6739 = vmatprep.mubr.bf16.mxu0 %v6253
        %6740 = vmatmul.mubr.bf16.gmra.mxu0 %v6252
        %v6741 = vpop.f32.mrf.mxu0
        %v6742 = vadd.f32 %v6549, %v6741
        %v6743 = vpop.f32.mrf.mxu0
        %v6744 = vadd.f32 %v6551, %v6743
        %v6745 = vpop.f32.mrf.mxu0
        %v6746 = vadd.f32 %v6553, %v6745
        %v6747 = vpop.f32.mrf.mxu0
        %v6748 = vadd.f32 %v6555, %v6747
        %6749 = vmatprep.mubr.bf16.mxu0 %v6261
        %6750 = vmatmul.mubr.bf16.gmra.mxu0 %v6260
        %v6751 = vpop.f32.mrf.mxu0
        %v6752 = vadd.f32 %v6559, %v6751
        %v6753 = vpop.f32.mrf.mxu0
        %v6754 = vadd.f32 %v6561, %v6753
        %v6755 = vpop.f32.mrf.mxu0
        %v6756 = vadd.f32 %v6563, %v6755
        %v6757 = vpop.f32.mrf.mxu0
        %v6758 = vadd.f32 %v6565, %v6757
        %6759 = vmatprep.mubr.bf16.mxu0 %v6269
        %6760 = vmatmul.mubr.bf16.gmra.mxu0 %v6268
        %v6761 = vpop.f32.mrf.mxu0
        %v6762 = vadd.f32 %v6569, %v6761
        %v6763 = vpop.f32.mrf.mxu0
        %v6764 = vadd.f32 %v6571, %v6763
        %v6765 = vpop.f32.mrf.mxu0
        %v6766 = vadd.f32 %v6573, %v6765
        %v6767 = vpop.f32.mrf.mxu0
        %v6768 = vadd.f32 %v6575, %v6767
        %6769 = vmatprep.mubr.bf16.mxu0 %v6277
        %6770 = vmatmul.mubr.bf16.gmra.mxu0 %v6276
        %v6771 = vpop.f32.mrf.mxu0
        %v6772 = vadd.f32 %v6579, %v6771
        %v6773 = vpop.f32.mrf.mxu0
        %v6774 = vadd.f32 %v6581, %v6773
        %v6775 = vpop.f32.mrf.mxu0
        %v6776 = vadd.f32 %v6583, %v6775
        %v6777 = vpop.f32.mrf.mxu0
        %v6778 = vadd.f32 %v6585, %v6777
        %6779 = vmatprep.mubr.bf16.mxu0 %v6285
        %6780 = vmatmul.mubr.bf16.gmra.mxu0 %v6284
        %v6781 = vpop.f32.mrf.mxu0
        %v6782 = vadd.f32 %v6589, %v6781
        %v6783 = vpop.f32.mrf.mxu0
        %v6784 = vadd.f32 %v6591, %v6783
        %v6785 = vpop.f32.mrf.mxu0
        %v6786 = vadd.f32 %v6593, %v6785
        %v6787 = vpop.f32.mrf.mxu0
        %v6788 = vadd.f32 %v6595, %v6787
        %6789 = vmatprep.mubr.bf16.mxu0 %v6293
        %6790 = vmatmul.mubr.bf16.gmra.mxu0 %v6292
        %v6791 = vpop.f32.mrf.mxu0
        %v6792 = vadd.f32 %v6599, %v6791
        %v6793 = vpop.f32.mrf.mxu0
        %v6794 = vadd.f32 %v6601, %v6793
        %v6795 = vpop.f32.mrf.mxu0
        %v6796 = vadd.f32 %v6603, %v6795
        %v6797 = vpop.f32.mrf.mxu0
        %v6798 = vadd.f32 %v6605, %v6797
        %6799 = vmatprep.mubr.bf16.mxu0 %v6301
        %6800 = vmatmul.mubr.bf16.gmra.mxu0 %v6300
        %v6801 = vpop.f32.mrf.mxu0
        %v6802 = vadd.f32 %v6609, %v6801
        %v6803 = vpop.f32.mrf.mxu0
        %v6804 = vadd.f32 %v6611, %v6803
        %v6805 = vpop.f32.mrf.mxu0
        %v6806 = vadd.f32 %v6613, %v6805
        %v6807 = vpop.f32.mrf.mxu0
        %v6808 = vadd.f32 %v6615, %v6807
        %6809 = vmatprep.mubr.bf16.mxu0 %v6309
        %6810 = vmatmul.mubr.bf16.gmra.mxu0 %v6308
        %v6811 = vpop.f32.mrf.mxu0
        %v6812 = vadd.f32 %v6619, %v6811
        %v6813 = vpop.f32.mrf.mxu0
        %v6814 = vadd.f32 %v6621, %v6813
        %v6815 = vpop.f32.mrf.mxu0
        %v6816 = vadd.f32 %v6623, %v6815
        %v6817 = vpop.f32.mrf.mxu0
        %v6818 = vadd.f32 %v6625, %v6817
        %6819 = vmatprep.mubr.bf16.mxu0 %v6317
        %6820 = vmatmul.mubr.bf16.gmra.mxu0 %v6316
        %v6821 = vpop.f32.mrf.mxu0
        %v6822 = vadd.f32 %v6629, %v6821
        %v6823 = vpop.f32.mrf.mxu0
        %v6824 = vadd.f32 %v6631, %v6823
        %v6825 = vpop.f32.mrf.mxu0
        %v6826 = vadd.f32 %v6633, %v6825
        %v6827 = vpop.f32.mrf.mxu0
        %v6828 = vadd.f32 %v6635, %v6827
        %6829 = vmatprep.mubr.bf16.mxu0 %v6325
        %6830 = vmatmul.mubr.bf16.gmra.mxu0 %v6324
        %v6831 = vpop.f32.mrf.mxu0
        %v6832 = vadd.f32 %v6639, %v6831
        %v6833 = vpop.f32.mrf.mxu0
        %v6834 = vadd.f32 %v6641, %v6833
        %v6835 = vpop.f32.mrf.mxu0
        %v6836 = vadd.f32 %v6643, %v6835
        %v6837 = vpop.f32.mrf.mxu0
        %v6838 = vadd.f32 %v6645, %v6837
        %6839 = vmatprep.mubr.bf16.mxu0 %v6333
        %6840 = vmatmul.mubr.bf16.gmra.mxu0 %v6332
        %v6841 = vpop.f32.mrf.mxu0
        %v6842 = vadd.f32 %v6649, %v6841
        %v6843 = vpop.f32.mrf.mxu0
        %v6844 = vadd.f32 %v6651, %v6843
        %v6845 = vpop.f32.mrf.mxu0
        %v6846 = vadd.f32 %v6653, %v6845
        %v6847 = vpop.f32.mrf.mxu0
        %v6848 = vadd.f32 %v6655, %v6847
        %6849 = vmatprep.mubr.bf16.mxu0 %v6341
        %6850 = vmatmul.mubr.bf16.gmra.mxu0 %v6340
        %v6851 = vpop.f32.mrf.mxu0
        %v6852 = vadd.f32 %v6659, %v6851
        %v6853 = vpop.f32.mrf.mxu0
        %v6854 = vadd.f32 %v6661, %v6853
        %v6855 = vpop.f32.mrf.mxu0
        %v6856 = vadd.f32 %v6663, %v6855
        %v6857 = vpop.f32.mrf.mxu0
        %v6858 = vadd.f32 %v6665, %v6857
        %6859 = vdwg.mxu0
        %6860 = vmatprep.subr.bf16.mxu0 %v5785
        %6861 = vmatpush1.bf16.msra.mxu0 %v5784
        %6862 = vmatprep.subr.bf16.mxu0 %v5783
        %6863 = vmatpush1.bf16.msra.mxu0 %v5782
        %6864 = vmatprep.subr.bf16.mxu0 %v5781
        %6865 = vmatpush1.bf16.msra.mxu0 %v5780
        %6866 = vmatprep.subr.bf16.mxu0 %v5779
        %6867 = vmatpush1.bf16.msra.mxu0 %v5778
        %6868 = vmatprep.subr.bf16.mxu0 %v5777
        %6869 = vmatpush1.bf16.msra.mxu0 %v5776
        %6870 = vmatprep.subr.bf16.mxu0 %v5775
        %6871 = vmatpush1.bf16.msra.mxu0 %v5774
        %6872 = vmatprep.subr.bf16.mxu0 %v5773
        %6873 = vmatpush1.bf16.msra.mxu0 %v5772
        %6874 = vmatprep.subr.bf16.mxu0 %v5771
        %6875 = vmatpush1.bf16.msra.mxu0 %v5770
        %6876 = vmatprep.subr.bf16.mxu0 %v5801
        %6877 = vmatpush2.bf16.msra.mxu0 %v5800
        %6878 = vmatprep.subr.bf16.mxu0 %v5799
        %6879 = vmatpush2.bf16.msra.mxu0 %v5798
        %6880 = vmatprep.subr.bf16.mxu0 %v5797
        %6881 = vmatpush2.bf16.msra.mxu0 %v5796
        %6882 = vmatprep.subr.bf16.mxu0 %v5795
        %6883 = vmatpush2.bf16.msra.mxu0 %v5794
        %6884 = vmatprep.subr.bf16.mxu0 %v5793
        %6885 = vmatpush2.bf16.msra.mxu0 %v5792
        %6886 = vmatprep.subr.bf16.mxu0 %v5791
        %6887 = vmatpush2.bf16.msra.mxu0 %v5790
        %6888 = vmatprep.subr.bf16.mxu0 %v5789
        %6889 = vmatpush2.bf16.msra.mxu0 %v5788
        %6890 = vmatprep.subr.bf16.mxu0 %v5787
        %6891 = vmatpush2.bf16.msra.mxu0 %v5786
        %6892 = vmatprep.mubr.bf16.mxu0 %v6223
        %6893 = vmatmul.mubr.bf16.gmra.mxu0 %v6222
        %v6894 = vpop.f32.mrf.mxu0
        %v6895 = vadd.f32 %v6702, %v6894
        %v6896 = vpop.f32.mrf.mxu0
        %v6897 = vadd.f32 %v6704, %v6896
        %v6898 = vpop.f32.mrf.mxu0
        %v6899 = vadd.f32 %v6706, %v6898
        %v6900 = vpop.f32.mrf.mxu0
        %v6901 = vadd.f32 %v6708, %v6900
        %6902 = vmatprep.mubr.bf16.mxu0 %v6231
        %6903 = vmatmul.mubr.bf16.gmra.mxu0 %v6230
        %v6904 = vpop.f32.mrf.mxu0
        %v6905 = vadd.f32 %v6712, %v6904
        %v6906 = vpop.f32.mrf.mxu0
        %v6907 = vadd.f32 %v6714, %v6906
        %v6908 = vpop.f32.mrf.mxu0
        %v6909 = vadd.f32 %v6716, %v6908
        %v6910 = vpop.f32.mrf.mxu0
        %v6911 = vadd.f32 %v6718, %v6910
        %6912 = vmatprep.mubr.bf16.mxu0 %v6239
        %6913 = vmatmul.mubr.bf16.gmra.mxu0 %v6238
        %v6914 = vpop.f32.mrf.mxu0
        %v6915 = vadd.f32 %v6722, %v6914
        %v6916 = vpop.f32.mrf.mxu0
        %v6917 = vadd.f32 %v6724, %v6916
        %v6918 = vpop.f32.mrf.mxu0
        %v6919 = vadd.f32 %v6726, %v6918
        %v6920 = vpop.f32.mrf.mxu0
        %v6921 = vadd.f32 %v6728, %v6920
        %6922 = vmatprep.mubr.bf16.mxu0 %v6247
        %6923 = vmatmul.mubr.bf16.gmra.mxu0 %v6246
        %v6924 = vpop.f32.mrf.mxu0
        %v6925 = vadd.f32 %v6732, %v6924
        %v6926 = vpop.f32.mrf.mxu0
        %v6927 = vadd.f32 %v6734, %v6926
        %v6928 = vpop.f32.mrf.mxu0
        %v6929 = vadd.f32 %v6736, %v6928
        %v6930 = vpop.f32.mrf.mxu0
        %v6931 = vadd.f32 %v6738, %v6930
        %6932 = vmatprep.mubr.bf16.mxu0 %v6255
        %6933 = vmatmul.mubr.bf16.gmra.mxu0 %v6254
        %v6934 = vpop.f32.mrf.mxu0
        %v6935 = vadd.f32 %v6742, %v6934
        %v6936 = vpop.f32.mrf.mxu0
        %v6937 = vadd.f32 %v6744, %v6936
        %v6938 = vpop.f32.mrf.mxu0
        %v6939 = vadd.f32 %v6746, %v6938
        %v6940 = vpop.f32.mrf.mxu0
        %v6941 = vadd.f32 %v6748, %v6940
        %6942 = vmatprep.mubr.bf16.mxu0 %v6263
        %6943 = vmatmul.mubr.bf16.gmra.mxu0 %v6262
        %v6944 = vpop.f32.mrf.mxu0
        %v6945 = vadd.f32 %v6752, %v6944
        %v6946 = vpop.f32.mrf.mxu0
        %v6947 = vadd.f32 %v6754, %v6946
        %v6948 = vpop.f32.mrf.mxu0
        %v6949 = vadd.f32 %v6756, %v6948
        %v6950 = vpop.f32.mrf.mxu0
        %v6951 = vadd.f32 %v6758, %v6950
        %6952 = vmatprep.mubr.bf16.mxu0 %v6271
        %6953 = vmatmul.mubr.bf16.gmra.mxu0 %v6270
        %v6954 = vpop.f32.mrf.mxu0
        %v6955 = vadd.f32 %v6762, %v6954
        %v6956 = vpop.f32.mrf.mxu0
        %v6957 = vadd.f32 %v6764, %v6956
        %v6958 = vpop.f32.mrf.mxu0
        %v6959 = vadd.f32 %v6766, %v6958
        %v6960 = vpop.f32.mrf.mxu0
        %v6961 = vadd.f32 %v6768, %v6960
        %6962 = vmatprep.mubr.bf16.mxu0 %v6279
        %6963 = vmatmul.mubr.bf16.gmra.mxu0 %v6278
        %v6964 = vpop.f32.mrf.mxu0
        %v6965 = vadd.f32 %v6772, %v6964
        %v6966 = vpop.f32.mrf.mxu0
        %v6967 = vadd.f32 %v6774, %v6966
        %v6968 = vpop.f32.mrf.mxu0
        %v6969 = vadd.f32 %v6776, %v6968
        %v6970 = vpop.f32.mrf.mxu0
        %v6971 = vadd.f32 %v6778, %v6970
        %6972 = vmatprep.mubr.bf16.mxu0 %v6287
        %6973 = vmatmul.mubr.bf16.gmra.mxu0 %v6286
        %v6974 = vpop.f32.mrf.mxu0
        %v6975 = vadd.f32 %v6782, %v6974
        %v6976 = vpop.f32.mrf.mxu0
        %v6977 = vadd.f32 %v6784, %v6976
        %v6978 = vpop.f32.mrf.mxu0
        %v6979 = vadd.f32 %v6786, %v6978
        %v6980 = vpop.f32.mrf.mxu0
        %v6981 = vadd.f32 %v6788, %v6980
        %6982 = vmatprep.mubr.bf16.mxu0 %v6295
        %6983 = vmatmul.mubr.bf16.gmra.mxu0 %v6294
        %v6984 = vpop.f32.mrf.mxu0
        %v6985 = vadd.f32 %v6792, %v6984
        %v6986 = vpop.f32.mrf.mxu0
        %v6987 = vadd.f32 %v6794, %v6986
        %v6988 = vpop.f32.mrf.mxu0
        %v6989 = vadd.f32 %v6796, %v6988
        %v6990 = vpop.f32.mrf.mxu0
        %v6991 = vadd.f32 %v6798, %v6990
        %6992 = vmatprep.mubr.bf16.mxu0 %v6303
        %6993 = vmatmul.mubr.bf16.gmra.mxu0 %v6302
        %v6994 = vpop.f32.mrf.mxu0
        %v6995 = vadd.f32 %v6802, %v6994
        %v6996 = vpop.f32.mrf.mxu0
        %v6997 = vadd.f32 %v6804, %v6996
        %v6998 = vpop.f32.mrf.mxu0
        %v6999 = vadd.f32 %v6806, %v6998
        %v7000 = vpop.f32.mrf.mxu0
        %v7001 = vadd.f32 %v6808, %v7000
        %7002 = vmatprep.mubr.bf16.mxu0 %v6311
        %7003 = vmatmul.mubr.bf16.gmra.mxu0 %v6310
        %v7004 = vpop.f32.mrf.mxu0
        %v7005 = vadd.f32 %v6812, %v7004
        %v7006 = vpop.f32.mrf.mxu0
        %v7007 = vadd.f32 %v6814, %v7006
        %v7008 = vpop.f32.mrf.mxu0
        %v7009 = vadd.f32 %v6816, %v7008
        %v7010 = vpop.f32.mrf.mxu0
        %v7011 = vadd.f32 %v6818, %v7010
        %7012 = vmatprep.mubr.bf16.mxu0 %v6319
        %7013 = vmatmul.mubr.bf16.gmra.mxu0 %v6318
        %v7014 = vpop.f32.mrf.mxu0
        %v7015 = vadd.f32 %v6822, %v7014
        %v7016 = vpop.f32.mrf.mxu0
        %v7017 = vadd.f32 %v6824, %v7016
        %v7018 = vpop.f32.mrf.mxu0
        %v7019 = vadd.f32 %v6826, %v7018
        %v7020 = vpop.f32.mrf.mxu0
        %v7021 = vadd.f32 %v6828, %v7020
        %7022 = vmatprep.mubr.bf16.mxu0 %v6327
        %7023 = vmatmul.mubr.bf16.gmra.mxu0 %v6326
        %v7024 = vpop.f32.mrf.mxu0
        %v7025 = vadd.f32 %v6832, %v7024
        %v7026 = vpop.f32.mrf.mxu0
        %v7027 = vadd.f32 %v6834, %v7026
        %v7028 = vpop.f32.mrf.mxu0
        %v7029 = vadd.f32 %v6836, %v7028
        %v7030 = vpop.f32.mrf.mxu0
        %v7031 = vadd.f32 %v6838, %v7030
        %7032 = vmatprep.mubr.bf16.mxu0 %v6335
        %7033 = vmatmul.mubr.bf16.gmra.mxu0 %v6334
        %v7034 = vpop.f32.mrf.mxu0
        %v7035 = vadd.f32 %v6842, %v7034
        %v7036 = vpop.f32.mrf.mxu0
        %v7037 = vadd.f32 %v6844, %v7036
        %v7038 = vpop.f32.mrf.mxu0
        %v7039 = vadd.f32 %v6846, %v7038
        %v7040 = vpop.f32.mrf.mxu0
        %v7041 = vadd.f32 %v6848, %v7040
        %7042 = vmatprep.mubr.bf16.mxu0 %v6343
        %7043 = vmatmul.mubr.bf16.gmra.mxu0 %v6342
        %v7044 = vpop.f32.mrf.mxu0
        %v7045 = vadd.f32 %v6852, %v7044
        %v7046 = vpop.f32.mrf.mxu0
        %v7047 = vadd.f32 %v6854, %v7046
        %v7048 = vpop.f32.mrf.mxu0
        %v7049 = vadd.f32 %v6856, %v7048
        %v7050 = vpop.f32.mrf.mxu0
        %v7051 = vadd.f32 %v6858, %v7050
        %7052 = vdwg.mxu0
        %7053 = vmatprep.subr.bf16.mxu0 %v5817
        %7054 = vmatpush1.bf16.msra.mxu0 %v5816
        %7055 = vmatprep.subr.bf16.mxu0 %v5815
        %7056 = vmatpush1.bf16.msra.mxu0 %v5814
        %7057 = vmatprep.subr.bf16.mxu0 %v5813
        %7058 = vmatpush1.bf16.msra.mxu0 %v5812
        %7059 = vmatprep.subr.bf16.mxu0 %v5811
        %7060 = vmatpush1.bf16.msra.mxu0 %v5810
        %7061 = vmatprep.subr.bf16.mxu0 %v5809
        %7062 = vmatpush1.bf16.msra.mxu0 %v5808
        %7063 = vmatprep.subr.bf16.mxu0 %v5807
        %7064 = vmatpush1.bf16.msra.mxu0 %v5806
        %7065 = vmatprep.subr.bf16.mxu0 %v5805
        %7066 = vmatpush1.bf16.msra.mxu0 %v5804
        %7067 = vmatprep.subr.bf16.mxu0 %v5803
        %7068 = vmatpush1.bf16.msra.mxu0 %v5802
        %7069 = vmatprep.subr.bf16.mxu0 %v5833
        %7070 = vmatpush2.bf16.msra.mxu0 %v5832
        %7071 = vmatprep.subr.bf16.mxu0 %v5831
        %7072 = vmatpush2.bf16.msra.mxu0 %v5830
        %7073 = vmatprep.subr.bf16.mxu0 %v5829
        %7074 = vmatpush2.bf16.msra.mxu0 %v5828
        %7075 = vmatprep.subr.bf16.mxu0 %v5827
        %7076 = vmatpush2.bf16.msra.mxu0 %v5826
        %7077 = vmatprep.subr.bf16.mxu0 %v5825
        %7078 = vmatpush2.bf16.msra.mxu0 %v5824
        %7079 = vmatprep.subr.bf16.mxu0 %v5823
        %7080 = vmatpush2.bf16.msra.mxu0 %v5822
        %7081 = vmatprep.subr.bf16.mxu0 %v5821
        %7082 = vmatpush2.bf16.msra.mxu0 %v5820
        %7083 = vmatprep.subr.bf16.mxu0 %v5819
        %7084 = vmatpush2.bf16.msra.mxu0 %v5818
        %7085 = vmatprep.mubr.bf16.mxu0 %v6225
        %7086 = vmatmul.mubr.bf16.gmra.mxu0 %v6224
        %v7087 = vpop.f32.mrf.mxu0
        %v7088 = vadd.f32 %v6895, %v7087
        %v7089 = vpop.f32.mrf.mxu0
        %v7090 = vadd.f32 %v6897, %v7089
        %v7091 = vpop.f32.mrf.mxu0
        %v7092 = vadd.f32 %v6899, %v7091
        %v7093 = vpop.f32.mrf.mxu0
        %v7094 = vadd.f32 %v6901, %v7093
        %7095 = vmatprep.mubr.bf16.mxu0 %v6233
        %7096 = vmatmul.mubr.bf16.gmra.mxu0 %v6232
        %v7097 = vpop.f32.mrf.mxu0
        %v7098 = vadd.f32 %v6905, %v7097
        %v7099 = vpop.f32.mrf.mxu0
        %v7100 = vadd.f32 %v6907, %v7099
        %v7101 = vpop.f32.mrf.mxu0
        %v7102 = vadd.f32 %v6909, %v7101
        %v7103 = vpop.f32.mrf.mxu0
        %v7104 = vadd.f32 %v6911, %v7103
        %7105 = vmatprep.mubr.bf16.mxu0 %v6241
        %7106 = vmatmul.mubr.bf16.gmra.mxu0 %v6240
        %v7107 = vpop.f32.mrf.mxu0
        %v7108 = vadd.f32 %v6915, %v7107
        %v7109 = vpop.f32.mrf.mxu0
        %v7110 = vadd.f32 %v6917, %v7109
        %v7111 = vpop.f32.mrf.mxu0
        %v7112 = vadd.f32 %v6919, %v7111
        %v7113 = vpop.f32.mrf.mxu0
        %v7114 = vadd.f32 %v6921, %v7113
        %7115 = vmatprep.mubr.bf16.mxu0 %v6249
        %7116 = vmatmul.mubr.bf16.gmra.mxu0 %v6248
        %v7117 = vpop.f32.mrf.mxu0
        %v7118 = vadd.f32 %v6925, %v7117
        %v7119 = vpop.f32.mrf.mxu0
        %v7120 = vadd.f32 %v6927, %v7119
        %v7121 = vpop.f32.mrf.mxu0
        %v7122 = vadd.f32 %v6929, %v7121
        %v7123 = vpop.f32.mrf.mxu0
        %v7124 = vadd.f32 %v6931, %v7123
        %7125 = vmatprep.mubr.bf16.mxu0 %v6257
        %7126 = vmatmul.mubr.bf16.gmra.mxu0 %v6256
        %v7127 = vpop.f32.mrf.mxu0
        %v7128 = vadd.f32 %v6935, %v7127
        %v7129 = vpop.f32.mrf.mxu0
        %v7130 = vadd.f32 %v6937, %v7129
        %v7131 = vpop.f32.mrf.mxu0
        %v7132 = vadd.f32 %v6939, %v7131
        %v7133 = vpop.f32.mrf.mxu0
        %v7134 = vadd.f32 %v6941, %v7133
        %7135 = vmatprep.mubr.bf16.mxu0 %v6265
        %7136 = vmatmul.mubr.bf16.gmra.mxu0 %v6264
        %v7137 = vpop.f32.mrf.mxu0
        %v7138 = vadd.f32 %v6945, %v7137
        %v7139 = vpop.f32.mrf.mxu0
        %v7140 = vadd.f32 %v6947, %v7139
        %v7141 = vpop.f32.mrf.mxu0
        %v7142 = vadd.f32 %v6949, %v7141
        %v7143 = vpop.f32.mrf.mxu0
        %v7144 = vadd.f32 %v6951, %v7143
        %7145 = vmatprep.mubr.bf16.mxu0 %v6273
        %7146 = vmatmul.mubr.bf16.gmra.mxu0 %v6272
        %v7147 = vpop.f32.mrf.mxu0
        %v7148 = vadd.f32 %v6955, %v7147
        %v7149 = vpop.f32.mrf.mxu0
        %v7150 = vadd.f32 %v6957, %v7149
        %v7151 = vpop.f32.mrf.mxu0
        %v7152 = vadd.f32 %v6959, %v7151
        %v7153 = vpop.f32.mrf.mxu0
        %v7154 = vadd.f32 %v6961, %v7153
        %7155 = vmatprep.mubr.bf16.mxu0 %v6281
        %7156 = vmatmul.mubr.bf16.gmra.mxu0 %v6280
        %v7157 = vpop.f32.mrf.mxu0
        %v7158 = vadd.f32 %v6965, %v7157
        %v7159 = vpop.f32.mrf.mxu0
        %v7160 = vadd.f32 %v6967, %v7159
        %v7161 = vpop.f32.mrf.mxu0
        %v7162 = vadd.f32 %v6969, %v7161
        %v7163 = vpop.f32.mrf.mxu0
        %v7164 = vadd.f32 %v6971, %v7163
        %7165 = vmatprep.mubr.bf16.mxu0 %v6289
        %7166 = vmatmul.mubr.bf16.gmra.mxu0 %v6288
        %v7167 = vpop.f32.mrf.mxu0
        %v7168 = vadd.f32 %v6975, %v7167
        %v7169 = vpop.f32.mrf.mxu0
        %v7170 = vadd.f32 %v6977, %v7169
        %v7171 = vpop.f32.mrf.mxu0
        %v7172 = vadd.f32 %v6979, %v7171
        %v7173 = vpop.f32.mrf.mxu0
        %v7174 = vadd.f32 %v6981, %v7173
        %7175 = vmatprep.mubr.bf16.mxu0 %v6297
        %7176 = vmatmul.mubr.bf16.gmra.mxu0 %v6296
        %v7177 = vpop.f32.mrf.mxu0
        %v7178 = vadd.f32 %v6985, %v7177
        %v7179 = vpop.f32.mrf.mxu0
        %v7180 = vadd.f32 %v6987, %v7179
        %v7181 = vpop.f32.mrf.mxu0
        %v7182 = vadd.f32 %v6989, %v7181
        %v7183 = vpop.f32.mrf.mxu0
        %v7184 = vadd.f32 %v6991, %v7183
        %7185 = vmatprep.mubr.bf16.mxu0 %v6305
        %7186 = vmatmul.mubr.bf16.gmra.mxu0 %v6304
        %v7187 = vpop.f32.mrf.mxu0
        %v7188 = vadd.f32 %v6995, %v7187
        %v7189 = vpop.f32.mrf.mxu0
        %v7190 = vadd.f32 %v6997, %v7189
        %v7191 = vpop.f32.mrf.mxu0
        %v7192 = vadd.f32 %v6999, %v7191
        %v7193 = vpop.f32.mrf.mxu0
        %v7194 = vadd.f32 %v7001, %v7193
        %7195 = vmatprep.mubr.bf16.mxu0 %v6313
        %7196 = vmatmul.mubr.bf16.gmra.mxu0 %v6312
        %v7197 = vpop.f32.mrf.mxu0
        %v7198 = vadd.f32 %v7005, %v7197
        %v7199 = vpop.f32.mrf.mxu0
        %v7200 = vadd.f32 %v7007, %v7199
        %v7201 = vpop.f32.mrf.mxu0
        %v7202 = vadd.f32 %v7009, %v7201
        %v7203 = vpop.f32.mrf.mxu0
        %v7204 = vadd.f32 %v7011, %v7203
        %7205 = vmatprep.mubr.bf16.mxu0 %v6321
        %7206 = vmatmul.mubr.bf16.gmra.mxu0 %v6320
        %v7207 = vpop.f32.mrf.mxu0
        %v7208 = vadd.f32 %v7015, %v7207
        %v7209 = vpop.f32.mrf.mxu0
        %v7210 = vadd.f32 %v7017, %v7209
        %v7211 = vpop.f32.mrf.mxu0
        %v7212 = vadd.f32 %v7019, %v7211
        %v7213 = vpop.f32.mrf.mxu0
        %v7214 = vadd.f32 %v7021, %v7213
        %7215 = vmatprep.mubr.bf16.mxu0 %v6329
        %7216 = vmatmul.mubr.bf16.gmra.mxu0 %v6328
        %v7217 = vpop.f32.mrf.mxu0
        %v7218 = vadd.f32 %v7025, %v7217
        %v7219 = vpop.f32.mrf.mxu0
        %v7220 = vadd.f32 %v7027, %v7219
        %v7221 = vpop.f32.mrf.mxu0
        %v7222 = vadd.f32 %v7029, %v7221
        %v7223 = vpop.f32.mrf.mxu0
        %v7224 = vadd.f32 %v7031, %v7223
        %7225 = vmatprep.mubr.bf16.mxu0 %v6337
        %7226 = vmatmul.mubr.bf16.gmra.mxu0 %v6336
        %v7227 = vpop.f32.mrf.mxu0
        %v7228 = vadd.f32 %v7035, %v7227
        %v7229 = vpop.f32.mrf.mxu0
        %v7230 = vadd.f32 %v7037, %v7229
        %v7231 = vpop.f32.mrf.mxu0
        %v7232 = vadd.f32 %v7039, %v7231
        %v7233 = vpop.f32.mrf.mxu0
        %v7234 = vadd.f32 %v7041, %v7233
        %7235 = vmatprep.mubr.bf16.mxu0 %v6345
        %7236 = vmatmul.mubr.bf16.gmra.mxu0 %v6344
        %v7237 = vpop.f32.mrf.mxu0
        %v7238 = vadd.f32 %v7045, %v7237
        %v7239 = vpop.f32.mrf.mxu0
        %v7240 = vadd.f32 %v7047, %v7239
        %v7241 = vpop.f32.mrf.mxu0
        %v7242 = vadd.f32 %v7049, %v7241
        %v7243 = vpop.f32.mrf.mxu0
        %v7244 = vadd.f32 %v7051, %v7243
        %7245 = vdwg.mxu0
        %v7246 = vld [vmem:[%s4] sm:$0xff]
        %v7247 = vld [vmem:[%s4 + $0x8] sm:$0xff]
        %v7248 = vld [vmem:[%s4 + $0x10] sm:$0xff]
        %v7249 = vld [vmem:[%s4 + $0x18] sm:$0xff]
        %v7250 = vld [vmem:[%s4 + $0x20] sm:$0xff]
        %v7251 = vld [vmem:[%s4 + $0x28] sm:$0xff]
        %v7252 = vld [vmem:[%s4 + $0x30] sm:$0xff]
        %v7253 = vld [vmem:[%s4 + $0x38] sm:$0xff]
        %v7254 = vld [vmem:[%s4 + $0x40] sm:$0xff]
        %v7255 = vld [vmem:[%s4 + $0x48] sm:$0xff]
        %v7256 = vld [vmem:[%s4 + $0x50] sm:$0xff]
        %v7257 = vld [vmem:[%s4 + $0x58] sm:$0xff]
        %v7258 = vld [vmem:[%s4 + $0x60] sm:$0xff]
        %v7259 = vld [vmem:[%s4 + $0x68] sm:$0xff]
        %v7260 = vld [vmem:[%s4 + $0x70] sm:$0xff]
        %v7261 = vld [vmem:[%s4 + $0x78] sm:$0xff]
        %v7262 = vld [vmem:[%s4 + $0x80] sm:$0xff]
        %v7263 = vld [vmem:[%s4 + $0x88] sm:$0xff]
        %v7264 = vld [vmem:[%s4 + $0x90] sm:$0xff]
        %v7265 = vld [vmem:[%s4 + $0x98] sm:$0xff]
        %v7266 = vld [vmem:[%s4 + $0xa0] sm:$0xff]
        %v7267 = vld [vmem:[%s4 + $0xa8] sm:$0xff]
        %v7268 = vld [vmem:[%s4 + $0xb0] sm:$0xff]
        %v7269 = vld [vmem:[%s4 + $0xb8] sm:$0xff]
        %v7270 = vld [vmem:[%s4 + $0xc0] sm:$0xff]
        %v7271 = vld [vmem:[%s4 + $0xc8] sm:$0xff]
        %v7272 = vld [vmem:[%s4 + $0xd0] sm:$0xff]
        %v7273 = vld [vmem:[%s4 + $0xd8] sm:$0xff]
        %v7274 = vld [vmem:[%s4 + $0xe0] sm:$0xff]
        %v7275 = vld [vmem:[%s4 + $0xe8] sm:$0xff]
        %v7276 = vld [vmem:[%s4 + $0xf0] sm:$0xff]
        %v7277 = vld [vmem:[%s4 + $0xf8] sm:$0xff]
        %7279 = vset.pattern.permute.xlu0 0
        %7280 = vperm.xlu0 %7279, %v7246
        %v7281 = vpop.permute.xlu0 %7280
        %7284 = vset.pattern.permute.xlu0 0
        %7285 = vperm.xlu0 %7284, %v7247
        %v7286 = vpop.permute.xlu0 %7285
        %7289 = vset.pattern.permute.xlu0 0
        %7290 = vperm.xlu0 %7289, %v7248
        %v7291 = vpop.permute.xlu0 %7290
        %7294 = vset.pattern.permute.xlu0 0
        %7295 = vperm.xlu0 %7294, %v7249
        %v7296 = vpop.permute.xlu0 %7295
        %7299 = vset.pattern.permute.xlu0 0
        %7300 = vperm.xlu0 %7299, %v7250
        %v7301 = vpop.permute.xlu0 %7300
        %7304 = vset.pattern.permute.xlu0 0
        %7305 = vperm.xlu0 %7304, %v7251
        %v7306 = vpop.permute.xlu0 %7305
        %7309 = vset.pattern.permute.xlu0 0
        %7310 = vperm.xlu0 %7309, %v7252
        %v7311 = vpop.permute.xlu0 %7310
        %7314 = vset.pattern.permute.xlu0 0
        %7315 = vperm.xlu0 %7314, %v7253
        %v7316 = vpop.permute.xlu0 %7315
        %7319 = vset.pattern.permute.xlu0 0
        %7320 = vperm.xlu0 %7319, %v7254
        %v7321 = vpop.permute.xlu0 %7320
        %7324 = vset.pattern.permute.xlu0 0
        %7325 = vperm.xlu0 %7324, %v7255
        %v7326 = vpop.permute.xlu0 %7325
        %7329 = vset.pattern.permute.xlu0 0
        %7330 = vperm.xlu0 %7329, %v7256
        %v7331 = vpop.permute.xlu0 %7330
        %7334 = vset.pattern.permute.xlu0 0
        %7335 = vperm.xlu0 %7334, %v7257
        %v7336 = vpop.permute.xlu0 %7335
        %7339 = vset.pattern.permute.xlu0 0
        %7340 = vperm.xlu0 %7339, %v7258
        %v7341 = vpop.permute.xlu0 %7340
        %7344 = vset.pattern.permute.xlu0 0
        %7345 = vperm.xlu0 %7344, %v7259
        %v7346 = vpop.permute.xlu0 %7345
        %7349 = vset.pattern.permute.xlu0 0
        %7350 = vperm.xlu0 %7349, %v7260
        %v7351 = vpop.permute.xlu0 %7350
        %7354 = vset.pattern.permute.xlu0 0
        %7355 = vperm.xlu0 %7354, %v7261
        %v7356 = vpop.permute.xlu0 %7355
        %7359 = vset.pattern.permute.xlu0 0
        %7360 = vperm.xlu0 %7359, %v7262
        %v7361 = vpop.permute.xlu0 %7360
        %7364 = vset.pattern.permute.xlu0 0
        %7365 = vperm.xlu0 %7364, %v7263
        %v7366 = vpop.permute.xlu0 %7365
        %7369 = vset.pattern.permute.xlu0 0
        %7370 = vperm.xlu0 %7369, %v7264
        %v7371 = vpop.permute.xlu0 %7370
        %7374 = vset.pattern.permute.xlu0 0
        %7375 = vperm.xlu0 %7374, %v7265
        %v7376 = vpop.permute.xlu0 %7375
        %7379 = vset.pattern.permute.xlu0 0
        %7380 = vperm.xlu0 %7379, %v7266
        %v7381 = vpop.permute.xlu0 %7380
        %7384 = vset.pattern.permute.xlu0 0
        %7385 = vperm.xlu0 %7384, %v7267
        %v7386 = vpop.permute.xlu0 %7385
        %7389 = vset.pattern.permute.xlu0 0
        %7390 = vperm.xlu0 %7389, %v7268
        %v7391 = vpop.permute.xlu0 %7390
        %7394 = vset.pattern.permute.xlu0 0
        %7395 = vperm.xlu0 %7394, %v7269
        %v7396 = vpop.permute.xlu0 %7395
        %7399 = vset.pattern.permute.xlu0 0
        %7400 = vperm.xlu0 %7399, %v7270
        %v7401 = vpop.permute.xlu0 %7400
        %7404 = vset.pattern.permute.xlu0 0
        %7405 = vperm.xlu0 %7404, %v7271
        %v7406 = vpop.permute.xlu0 %7405
        %7409 = vset.pattern.permute.xlu0 0
        %7410 = vperm.xlu0 %7409, %v7272
        %v7411 = vpop.permute.xlu0 %7410
        %7414 = vset.pattern.permute.xlu0 0
        %7415 = vperm.xlu0 %7414, %v7273
        %v7416 = vpop.permute.xlu0 %7415
        %7419 = vset.pattern.permute.xlu0 0
        %7420 = vperm.xlu0 %7419, %v7274
        %v7421 = vpop.permute.xlu0 %7420
        %7424 = vset.pattern.permute.xlu0 0
        %7425 = vperm.xlu0 %7424, %v7275
        %v7426 = vpop.permute.xlu0 %7425
        %7429 = vset.pattern.permute.xlu0 0
        %7430 = vperm.xlu0 %7429, %v7276
        %v7431 = vpop.permute.xlu0 %7430
        %7434 = vset.pattern.permute.xlu0 0
        %7435 = vperm.xlu0 %7434, %v7277
        %v7436 = vpop.permute.xlu0 %7435
        %v7438 = vmul.f32 %v7088, %v7281
        %v7439 = vmul.f32 %v7090, %v7281
        %v7440 = vmul.f32 %v7092, %v7286
        %v7441 = vmul.f32 %v7094, %v7286
        %v7442 = vmul.f32 %v7098, %v7291
        %v7443 = vmul.f32 %v7100, %v7291
        %v7444 = vmul.f32 %v7102, %v7296
        %v7445 = vmul.f32 %v7104, %v7296
        %v7446 = vmul.f32 %v7108, %v7301
        %v7447 = vmul.f32 %v7110, %v7301
        %v7448 = vmul.f32 %v7112, %v7306
        %v7449 = vmul.f32 %v7114, %v7306
        %v7450 = vmul.f32 %v7118, %v7311
        %v7451 = vmul.f32 %v7120, %v7311
        %v7452 = vmul.f32 %v7122, %v7316
        %v7453 = vmul.f32 %v7124, %v7316
        %v7454 = vmul.f32 %v7128, %v7321
        %v7455 = vmul.f32 %v7130, %v7321
        %v7456 = vmul.f32 %v7132, %v7326
        %v7457 = vmul.f32 %v7134, %v7326
        %v7458 = vmul.f32 %v7138, %v7331
        %v7459 = vmul.f32 %v7140, %v7331
        %v7460 = vmul.f32 %v7142, %v7336
        %v7461 = vmul.f32 %v7144, %v7336
        %v7462 = vmul.f32 %v7148, %v7341
        %v7463 = vmul.f32 %v7150, %v7341
        %v7464 = vmul.f32 %v7152, %v7346
        %v7465 = vmul.f32 %v7154, %v7346
        %v7466 = vmul.f32 %v7158, %v7351
        %v7467 = vmul.f32 %v7160, %v7351
        %v7468 = vmul.f32 %v7162, %v7356
        %v7469 = vmul.f32 %v7164, %v7356
        %v7470 = vmul.f32 %v7168, %v7361
        %v7471 = vmul.f32 %v7170, %v7361
        %v7472 = vmul.f32 %v7172, %v7366
        %v7473 = vmul.f32 %v7174, %v7366
        %v7474 = vmul.f32 %v7178, %v7371
        %v7475 = vmul.f32 %v7180, %v7371
        %v7476 = vmul.f32 %v7182, %v7376
        %v7477 = vmul.f32 %v7184, %v7376
        %v7478 = vmul.f32 %v7188, %v7381
        %v7479 = vmul.f32 %v7190, %v7381
        %v7480 = vmul.f32 %v7192, %v7386
        %v7481 = vmul.f32 %v7194, %v7386
        %v7482 = vmul.f32 %v7198, %v7391
        %v7483 = vmul.f32 %v7200, %v7391
        %v7484 = vmul.f32 %v7202, %v7396
        %v7485 = vmul.f32 %v7204, %v7396
        %v7486 = vmul.f32 %v7208, %v7401
        %v7487 = vmul.f32 %v7210, %v7401
        %v7488 = vmul.f32 %v7212, %v7406
        %v7489 = vmul.f32 %v7214, %v7406
        %v7490 = vmul.f32 %v7218, %v7411
        %v7491 = vmul.f32 %v7220, %v7411
        %v7492 = vmul.f32 %v7222, %v7416
        %v7493 = vmul.f32 %v7224, %v7416
        %v7494 = vmul.f32 %v7228, %v7421
        %v7495 = vmul.f32 %v7230, %v7421
        %v7496 = vmul.f32 %v7232, %v7426
        %v7497 = vmul.f32 %v7234, %v7426
        %v7498 = vmul.f32 %v7238, %v7431
        %v7499 = vmul.f32 %v7240, %v7431
        %v7500 = vmul.f32 %v7242, %v7436
        %v7501 = vmul.f32 %v7244, %v7436
        %7502 = vset.pattern.permute.xlu0 1
        %7503 = vperm.xlu0 %7502, %v7246
        %v7504 = vpop.permute.xlu0 %7503
        %7506 = vset.pattern.permute.xlu0 1
        %7507 = vperm.xlu0 %7506, %v7247
        %v7508 = vpop.permute.xlu0 %7507
        %7510 = vset.pattern.permute.xlu0 1
        %7511 = vperm.xlu0 %7510, %v7248
        %v7512 = vpop.permute.xlu0 %7511
        %7514 = vset.pattern.permute.xlu0 1
        %7515 = vperm.xlu0 %7514, %v7249
        %v7516 = vpop.permute.xlu0 %7515
        %7518 = vset.pattern.permute.xlu0 1
        %7519 = vperm.xlu0 %7518, %v7250
        %v7520 = vpop.permute.xlu0 %7519
        %7522 = vset.pattern.permute.xlu0 1
        %7523 = vperm.xlu0 %7522, %v7251
        %v7524 = vpop.permute.xlu0 %7523
        %7526 = vset.pattern.permute.xlu0 1
        %7527 = vperm.xlu0 %7526, %v7252
        %v7528 = vpop.permute.xlu0 %7527
        %7530 = vset.pattern.permute.xlu0 1
        %7531 = vperm.xlu0 %7530, %v7253
        %v7532 = vpop.permute.xlu0 %7531
        %7534 = vset.pattern.permute.xlu0 1
        %7535 = vperm.xlu0 %7534, %v7254
        %v7536 = vpop.permute.xlu0 %7535
        %7538 = vset.pattern.permute.xlu0 1
        %7539 = vperm.xlu0 %7538, %v7255
        %v7540 = vpop.permute.xlu0 %7539
        %7542 = vset.pattern.permute.xlu0 1
        %7543 = vperm.xlu0 %7542, %v7256
        %v7544 = vpop.permute.xlu0 %7543
        %7546 = vset.pattern.permute.xlu0 1
        %7547 = vperm.xlu0 %7546, %v7257
        %v7548 = vpop.permute.xlu0 %7547
        %7550 = vset.pattern.permute.xlu0 1
        %7551 = vperm.xlu0 %7550, %v7258
        %v7552 = vpop.permute.xlu0 %7551
        %7554 = vset.pattern.permute.xlu0 1
        %7555 = vperm.xlu0 %7554, %v7259
        %v7556 = vpop.permute.xlu0 %7555
        %7558 = vset.pattern.permute.xlu0 1
        %7559 = vperm.xlu0 %7558, %v7260
        %v7560 = vpop.permute.xlu0 %7559
        %7562 = vset.pattern.permute.xlu0 1
        %7563 = vperm.xlu0 %7562, %v7261
        %v7564 = vpop.permute.xlu0 %7563
        %7566 = vset.pattern.permute.xlu0 1
        %7567 = vperm.xlu0 %7566, %v7262
        %v7568 = vpop.permute.xlu0 %7567
        %7570 = vset.pattern.permute.xlu0 1
        %7571 = vperm.xlu0 %7570, %v7263
        %v7572 = vpop.permute.xlu0 %7571
        %7574 = vset.pattern.permute.xlu0 1
        %7575 = vperm.xlu0 %7574, %v7264
        %v7576 = vpop.permute.xlu0 %7575
        %7578 = vset.pattern.permute.xlu0 1
        %7579 = vperm.xlu0 %7578, %v7265
        %v7580 = vpop.permute.xlu0 %7579
        %7582 = vset.pattern.permute.xlu0 1
        %7583 = vperm.xlu0 %7582, %v7266
        %v7584 = vpop.permute.xlu0 %7583
        %7586 = vset.pattern.permute.xlu0 1
        %7587 = vperm.xlu0 %7586, %v7267
        %v7588 = vpop.permute.xlu0 %7587
        %7590 = vset.pattern.permute.xlu0 1
        %7591 = vperm.xlu0 %7590, %v7268
        %v7592 = vpop.permute.xlu0 %7591
        %7594 = vset.pattern.permute.xlu0 1
        %7595 = vperm.xlu0 %7594, %v7269
        %v7596 = vpop.permute.xlu0 %7595
        %7598 = vset.pattern.permute.xlu0 1
        %7599 = vperm.xlu0 %7598, %v7270
        %v7600 = vpop.permute.xlu0 %7599
        %7602 = vset.pattern.permute.xlu0 1
        %7603 = vperm.xlu0 %7602, %v7271
        %v7604 = vpop.permute.xlu0 %7603
        %7606 = vset.pattern.permute.xlu0 1
        %7607 = vperm.xlu0 %7606, %v7272
        %v7608 = vpop.permute.xlu0 %7607
        %7610 = vset.pattern.permute.xlu0 1
        %7611 = vperm.xlu0 %7610, %v7273
        %v7612 = vpop.permute.xlu0 %7611
        %7614 = vset.pattern.permute.xlu0 1
        %7615 = vperm.xlu0 %7614, %v7274
        %v7616 = vpop.permute.xlu0 %7615
        %7618 = vset.pattern.permute.xlu0 1
        %7619 = vperm.xlu0 %7618, %v7275
        %v7620 = vpop.permute.xlu0 %7619
        %7622 = vset.pattern.permute.xlu0 1
        %7623 = vperm.xlu0 %7622, %v7276
        %v7624 = vpop.permute.xlu0 %7623
        %7626 = vset.pattern.permute.xlu0 1
        %7627 = vperm.xlu0 %7626, %v7277
        %v7628 = vpop.permute.xlu0 %7627
        %v7630 = vadd.f32 %v7438, %v7504
        %v7631 = vadd.f32 %v7439, %v7504
        %v7632 = vadd.f32 %v7440, %v7508
        %v7633 = vadd.f32 %v7441, %v7508
        %v7634 = vadd.f32 %v7442, %v7512
        %v7635 = vadd.f32 %v7443, %v7512
        %v7636 = vadd.f32 %v7444, %v7516
        %v7637 = vadd.f32 %v7445, %v7516
        %v7638 = vadd.f32 %v7446, %v7520
        %v7639 = vadd.f32 %v7447, %v7520
        %v7640 = vadd.f32 %v7448, %v7524
        %v7641 = vadd.f32 %v7449, %v7524
        %v7642 = vadd.f32 %v7450, %v7528
        %v7643 = vadd.f32 %v7451, %v7528
        %v7644 = vadd.f32 %v7452, %v7532
        %v7645 = vadd.f32 %v7453, %v7532
        %v7646 = vadd.f32 %v7454, %v7536
        %v7647 = vadd.f32 %v7455, %v7536
        %v7648 = vadd.f32 %v7456, %v7540
        %v7649 = vadd.f32 %v7457, %v7540
        %v7650 = vadd.f32 %v7458, %v7544
        %v7651 = vadd.f32 %v7459, %v7544
        %v7652 = vadd.f32 %v7460, %v7548
        %v7653 = vadd.f32 %v7461, %v7548
        %v7654 = vadd.f32 %v7462, %v7552
        %v7655 = vadd.f32 %v7463, %v7552
        %v7656 = vadd.f32 %v7464, %v7556
        %v7657 = vadd.f32 %v7465, %v7556
        %v7658 = vadd.f32 %v7466, %v7560
        %v7659 = vadd.f32 %v7467, %v7560
        %v7660 = vadd.f32 %v7468, %v7564
        %v7661 = vadd.f32 %v7469, %v7564
        %v7662 = vadd.f32 %v7470, %v7568
        %v7663 = vadd.f32 %v7471, %v7568
        %v7664 = vadd.f32 %v7472, %v7572
        %v7665 = vadd.f32 %v7473, %v7572
        %v7666 = vadd.f32 %v7474, %v7576
        %v7667 = vadd.f32 %v7475, %v7576
        %v7668 = vadd.f32 %v7476, %v7580
        %v7669 = vadd.f32 %v7477, %v7580
        %v7670 = vadd.f32 %v7478, %v7584
        %v7671 = vadd.f32 %v7479, %v7584
        %v7672 = vadd.f32 %v7480, %v7588
        %v7673 = vadd.f32 %v7481, %v7588
        %v7674 = vadd.f32 %v7482, %v7592
        %v7675 = vadd.f32 %v7483, %v7592
        %v7676 = vadd.f32 %v7484, %v7596
        %v7677 = vadd.f32 %v7485, %v7596
        %v7678 = vadd.f32 %v7486, %v7600
        %v7679 = vadd.f32 %v7487, %v7600
        %v7680 = vadd.f32 %v7488, %v7604
        %v7681 = vadd.f32 %v7489, %v7604
        %v7682 = vadd.f32 %v7490, %v7608
        %v7683 = vadd.f32 %v7491, %v7608
        %v7684 = vadd.f32 %v7492, %v7612
        %v7685 = vadd.f32 %v7493, %v7612
        %v7686 = vadd.f32 %v7494, %v7616
        %v7687 = vadd.f32 %v7495, %v7616
        %v7688 = vadd.f32 %v7496, %v7620
        %v7689 = vadd.f32 %v7497, %v7620
        %v7690 = vadd.f32 %v7498, %v7624
        %v7691 = vadd.f32 %v7499, %v7624
        %v7692 = vadd.f32 %v7500, %v7628
        %v7693 = vadd.f32 %v7501, %v7628
        %7694 = vst [vmem:[%s2490] sm:$0xff] %v7630
        %7695 = vst [vmem:[%s2490 + $0x8] sm:$0xff] %v7631
        %7696 = vst [vmem:[%s2490 + $0x10] sm:$0xff] %v7632
        %7697 = vst [vmem:[%s2490 + $0x18] sm:$0xff] %v7633
        %7698 = vst [vmem:[%s2490 + $0x20] sm:$0xff] %v7634
        %7699 = vst [vmem:[%s2490 + $0x28] sm:$0xff] %v7635
        %7700 = vst [vmem:[%s2490 + $0x30] sm:$0xff] %v7636
        %7701 = vst [vmem:[%s2490 + $0x38] sm:$0xff] %v7637
        %7702 = vst [vmem:[%s2490 + $0x40] sm:$0xff] %v7638
        %7703 = vst [vmem:[%s2490 + $0x48] sm:$0xff] %v7639
        %7704 = vst [vmem:[%s2490 + $0x50] sm:$0xff] %v7640
        %7705 = vst [vmem:[%s2490 + $0x58] sm:$0xff] %v7641
        %7706 = vst [vmem:[%s2490 + $0x60] sm:$0xff] %v7642
        %7707 = vst [vmem:[%s2490 + $0x68] sm:$0xff] %v7643
        %7708 = vst [vmem:[%s2490 + $0x70] sm:$0xff] %v7644
        %7709 = vst [vmem:[%s2490 + $0x78] sm:$0xff] %v7645
        %7710 = vst [vmem:[%s2490 + $0x80] sm:$0xff] %v7646
        %7711 = vst [vmem:[%s2490 + $0x88] sm:$0xff] %v7647
        %7712 = vst [vmem:[%s2490 + $0x90] sm:$0xff] %v7648
        %7713 = vst [vmem:[%s2490 + $0x98] sm:$0xff] %v7649
        %7714 = vst [vmem:[%s2490 + $0xa0] sm:$0xff] %v7650
        %7715 = vst [vmem:[%s2490 + $0xa8] sm:$0xff] %v7651
        %7716 = vst [vmem:[%s2490 + $0xb0] sm:$0xff] %v7652
        %7717 = vst [vmem:[%s2490 + $0xb8] sm:$0xff] %v7653
        %7718 = vst [vmem:[%s2490 + $0xc0] sm:$0xff] %v7654
        %7719 = vst [vmem:[%s2490 + $0xc8] sm:$0xff] %v7655
        %7720 = vst [vmem:[%s2490 + $0xd0] sm:$0xff] %v7656
        %7721 = vst [vmem:[%s2490 + $0xd8] sm:$0xff] %v7657
        %7722 = vst [vmem:[%s2490 + $0xe0] sm:$0xff] %v7658
        %7723 = vst [vmem:[%s2490 + $0xe8] sm:$0xff] %v7659
        %7724 = vst [vmem:[%s2490 + $0xf0] sm:$0xff] %v7660
        %7725 = vst [vmem:[%s2490 + $0xf8] sm:$0xff] %v7661
        %7726 = vst [vmem:[%s2490 + $0x100] sm:$0xff] %v7662
        %7727 = vst [vmem:[%s2490 + $0x108] sm:$0xff] %v7663
        %7728 = vst [vmem:[%s2490 + $0x110] sm:$0xff] %v7664
        %7729 = vst [vmem:[%s2490 + $0x118] sm:$0xff] %v7665
        %7730 = vst [vmem:[%s2490 + $0x120] sm:$0xff] %v7666
        %7731 = vst [vmem:[%s2490 + $0x128] sm:$0xff] %v7667
        %7732 = vst [vmem:[%s2490 + $0x130] sm:$0xff] %v7668
        %7733 = vst [vmem:[%s2490 + $0x138] sm:$0xff] %v7669
        %7734 = vst [vmem:[%s2490 + $0x140] sm:$0xff] %v7670
        %7735 = vst [vmem:[%s2490 + $0x148] sm:$0xff] %v7671
        %7736 = vst [vmem:[%s2490 + $0x150] sm:$0xff] %v7672
        %7737 = vst [vmem:[%s2490 + $0x158] sm:$0xff] %v7673
        %7738 = vst [vmem:[%s2490 + $0x160] sm:$0xff] %v7674
        %7739 = vst [vmem:[%s2490 + $0x168] sm:$0xff] %v7675
        %7740 = vst [vmem:[%s2490 + $0x170] sm:$0xff] %v7676
        %7741 = vst [vmem:[%s2490 + $0x178] sm:$0xff] %v7677
        %7742 = vst [vmem:[%s2490 + $0x180] sm:$0xff] %v7678
        %7743 = vst [vmem:[%s2490 + $0x188] sm:$0xff] %v7679
        %7744 = vst [vmem:[%s2490 + $0x190] sm:$0xff] %v7680
        %7745 = vst [vmem:[%s2490 + $0x198] sm:$0xff] %v7681
        %7746 = vst [vmem:[%s2490 + $0x1a0] sm:$0xff] %v7682
        %7747 = vst [vmem:[%s2490 + $0x1a8] sm:$0xff] %v7683
        %7748 = vst [vmem:[%s2490 + $0x1b0] sm:$0xff] %v7684
        %7749 = vst [vmem:[%s2490 + $0x1b8] sm:$0xff] %v7685
        %7750 = vst [vmem:[%s2490 + $0x1c0] sm:$0xff] %v7686
        %7751 = vst [vmem:[%s2490 + $0x1c8] sm:$0xff] %v7687
        %7752 = vst [vmem:[%s2490 + $0x1d0] sm:$0xff] %v7688
        %7753 = vst [vmem:[%s2490 + $0x1d8] sm:$0xff] %v7689
        %7754 = vst [vmem:[%s2490 + $0x1e0] sm:$0xff] %v7690
        %7755 = vst [vmem:[%s2490 + $0x1e8] sm:$0xff] %v7691
        %7756 = vst [vmem:[%s2490 + $0x1f0] sm:$0xff] %v7692
        %7757 = vst [vmem:[%s2490 + $0x1f8] sm:$0xff] %v7693
        %s7758 = sand.u32 %s157, 1
        %s7759 = sand.u32 %s157, 1
        %s7760 = smul.addr %s7759, 512
        %s7761 = scalar_lea.vmem [#allocation4], %s7760
        // Predicated region
        $region145: #{fused_bn_add_relu_conv_bn.1} parent=135 // pred_check
          %p7762 = pneg %p167
        $region146: #{fused_bn_add_relu_conv_bn.1} parent=135 // pred_check_branch
          %7764 = sbr.rel (%p7762) target = $region148
        $region147: #{fused_bn_add_relu_conv_bn.1} parent=135 // pred_region
          %s7765 = smul.u32 2, %s21
          %s7766 = ssub.s32 7, %s7765
          %p7767 = scmp.lt.s32.totalorder %s7766, 2
          %s7768 = scalar_select %p7767, %s7766, 2
          %s7769 = smul.u32 4096, %s7768
          %p7770 = scmp.ne.s32.totalorder 0, %s7769
          %s7771 = smul.addr %s20, 224
          %s7772 = sadd.s32 %s7765, %s7771
          %s7773 = smul.addr %s7772, 8
          %s7774 = scalar_lea.vmem %s5, %s7773
          %s7775 = smul.u32 %s7768, 8
          // Predicated region
          $region149: #{fused_bn_add_relu_conv_bn.1} parent=147 // pred_check
            %p7776 = pneg %p7770
          $region150: #{fused_bn_add_relu_conv_bn.1} parent=147 // pred_check_branch
            %7778 = sbr.rel (%p7776) target = $region152
          $region151: #{fused_bn_add_relu_conv_bn.1} parent=147 // pred_region
            %p7779 = scmp.lt.u32.totalorder %s7775, 8
            %p7780 = pneg %p7779
            // Predicated region
            $region153: #{fused_bn_add_relu_conv_bn.1} parent=151 // pred_check
              _
            $region154: #{fused_bn_add_relu_conv_bn.1} parent=151 // pred_check_branch
              %7782 = sbr.rel (%p7779) target = $region156
            $region155: #{fused_bn_add_relu_conv_bn.1} parent=151 // pred_region
              %s7860 = sand.u32 %s7775, 7
              %p7861 = scmp.eq.s32.totalorder %s7860, 0
              // Predicated region
              $region168: #{fused_bn_add_relu_conv_bn.1} parent=155 // pred_check
                %p7862 = pneg %p7861
              $region169: #{fused_bn_add_relu_conv_bn.1} parent=155 // pred_check_branch
                %7864 = sbr.rel (%p7862) target = $region171
              $region170: #{fused_bn_add_relu_conv_bn.1} parent=155 // pred_region
                %s7865 = sshrl.u32 %s7775, 3
                %s7866 = sshrl.u32 %s7865, 1
                // While loop
                $region172: #{fused_bn_add_relu_conv_bn.1} parent=170 // loop_pre_header
                  _
                $region173: #{fused_bn_add_relu_conv_bn.1} parent=170 // loop_header
                  %s7870 = sphi 0, %s7872
                  %p7871 = scmp.ge.s32.totalorder %s7870, %s7866
                  %s7875 = sphi 0, %s8008
                  %s7876 = sphi %s7761, %s8011
                  %s7877 = sphi %s7774, %s8012
                $region174: #{fused_bn_add_relu_conv_bn.1} parent=170 // loop_header_branch
                  %7874 = sbr.rel (%p7871) target = $region178
                $region175: #{fused_bn_add_relu_conv_bn.1} parent=170 // loop_body
                  %v7878 = vld [vmem:[%s7876] sm:$0xff]
                  %7879 = vst [vmem:[%s7877] sm:$0xff] %v7878
                  %v7880 = vld [vmem:[%s7876 + $0x8] sm:$0xff]
                  %7881 = vst [vmem:[%s7877 + $0x8] sm:$0xff] %v7880
                  %v7882 = vld [vmem:[%s7876 + $0x10] sm:$0xff]
                  %7883 = vst [vmem:[%s7877 + $0x38] sm:$0xff] %v7882
                  %v7884 = vld [vmem:[%s7876 + $0x18] sm:$0xff]
                  %7885 = vst [vmem:[%s7877 + $0x40] sm:$0xff] %v7884
                  %v7886 = vld [vmem:[%s7876 + $0x20] sm:$0xff]
                  %7887 = vst [vmem:[%s7877 + $0x70] sm:$0xff] %v7886
                  %v7888 = vld [vmem:[%s7876 + $0x28] sm:$0xff]
                  %7889 = vst [vmem:[%s7877 + $0x78] sm:$0xff] %v7888
                  %v7890 = vld [vmem:[%s7876 + $0x30] sm:$0xff]
                  %7891 = vst [vmem:[%s7877 + $0xa8] sm:$0xff] %v7890
                  %v7892 = vld [vmem:[%s7876 + $0x38] sm:$0xff]
                  %7893 = vst [vmem:[%s7877 + $0xb0] sm:$0xff] %v7892
                  %v7894 = vld [vmem:[%s7876 + $0x40] sm:$0xff]
                  %7895 = vst [vmem:[%s7877 + $0xe0] sm:$0xff] %v7894
                  %v7896 = vld [vmem:[%s7876 + $0x48] sm:$0xff]
                  %7897 = vst [vmem:[%s7877 + $0xe8] sm:$0xff] %v7896
                  %v7898 = vld [vmem:[%s7876 + $0x50] sm:$0xff]
                  %7899 = vst [vmem:[%s7877 + $0x118] sm:$0xff] %v7898
                  %v7900 = vld [vmem:[%s7876 + $0x58] sm:$0xff]
                  %7901 = vst [vmem:[%s7877 + $0x120] sm:$0xff] %v7900
                  %v7902 = vld [vmem:[%s7876 + $0x60] sm:$0xff]
                  %7903 = vst [vmem:[%s7877 + $0x150] sm:$0xff] %v7902
                  %v7904 = vld [vmem:[%s7876 + $0x68] sm:$0xff]
                  %7905 = vst [vmem:[%s7877 + $0x158] sm:$0xff] %v7904
                  %v7906 = vld [vmem:[%s7876 + $0x70] sm:$0xff]
                  %7907 = vst [vmem:[%s7877 + $0x188] sm:$0xff] %v7906
                  %v7908 = vld [vmem:[%s7876 + $0x78] sm:$0xff]
                  %7909 = vst [vmem:[%s7877 + $0x190] sm:$0xff] %v7908
                  %v7910 = vld [vmem:[%s7876 + $0x80] sm:$0xff]
                  %7911 = vst [vmem:[%s7877 + $0x1c0] sm:$0xff] %v7910
                  %v7912 = vld [vmem:[%s7876 + $0x88] sm:$0xff]
                  %7913 = vst [vmem:[%s7877 + $0x1c8] sm:$0xff] %v7912
                  %v7914 = vld [vmem:[%s7876 + $0x90] sm:$0xff]
                  %7915 = vst [vmem:[%s7877 + $0x1f8] sm:$0xff] %v7914
                  %v7916 = vld [vmem:[%s7876 + $0x98] sm:$0xff]
                  %7917 = vst [vmem:[%s7877 + $0x200] sm:$0xff] %v7916
                  %v7918 = vld [vmem:[%s7876 + $0xa0] sm:$0xff]
                  %7919 = vst [vmem:[%s7877 + $0x230] sm:$0xff] %v7918
                  %v7920 = vld [vmem:[%s7876 + $0xa8] sm:$0xff]
                  %7921 = vst [vmem:[%s7877 + $0x238] sm:$0xff] %v7920
                  %v7922 = vld [vmem:[%s7876 + $0xb0] sm:$0xff]
                  %7923 = vst [vmem:[%s7877 + $0x268] sm:$0xff] %v7922
                  %v7924 = vld [vmem:[%s7876 + $0xb8] sm:$0xff]
                  %7925 = vst [vmem:[%s7877 + $0x270] sm:$0xff] %v7924
                  %v7926 = vld [vmem:[%s7876 + $0xc0] sm:$0xff]
                  %7927 = vst [vmem:[%s7877 + $0x2a0] sm:$0xff] %v7926
                  %v7928 = vld [vmem:[%s7876 + $0xc8] sm:$0xff]
                  %7929 = vst [vmem:[%s7877 + $0x2a8] sm:$0xff] %v7928
                  %v7930 = vld [vmem:[%s7876 + $0xd0] sm:$0xff]
                  %7931 = vst [vmem:[%s7877 + $0x2d8] sm:$0xff] %v7930
                  %v7932 = vld [vmem:[%s7876 + $0xd8] sm:$0xff]
                  %7933 = vst [vmem:[%s7877 + $0x2e0] sm:$0xff] %v7932
                  %v7934 = vld [vmem:[%s7876 + $0xe0] sm:$0xff]
                  %7935 = vst [vmem:[%s7877 + $0x310] sm:$0xff] %v7934
                  %v7936 = vld [vmem:[%s7876 + $0xe8] sm:$0xff]
                  %7937 = vst [vmem:[%s7877 + $0x318] sm:$0xff] %v7936
                  %v7938 = vld [vmem:[%s7876 + $0xf0] sm:$0xff]
                  %7939 = vst [vmem:[%s7877 + $0x348] sm:$0xff] %v7938
                  %v7940 = vld [vmem:[%s7876 + $0xf8] sm:$0xff]
                  %7941 = vst [vmem:[%s7877 + $0x350] sm:$0xff] %v7940
                  %v7942 = vld [vmem:[%s7876 + $0x100] sm:$0xff]
                  %7943 = vst [vmem:[%s7877 + $0x380] sm:$0xff] %v7942
                  %v7944 = vld [vmem:[%s7876 + $0x108] sm:$0xff]
                  %7945 = vst [vmem:[%s7877 + $0x388] sm:$0xff] %v7944
                  %v7946 = vld [vmem:[%s7876 + $0x110] sm:$0xff]
                  %7947 = vst [vmem:[%s7877 + $0x3b8] sm:$0xff] %v7946
                  %v7948 = vld [vmem:[%s7876 + $0x118] sm:$0xff]
                  %7949 = vst [vmem:[%s7877 + $0x3c0] sm:$0xff] %v7948
                  %v7950 = vld [vmem:[%s7876 + $0x120] sm:$0xff]
                  %7951 = vst [vmem:[%s7877 + $0x3f0] sm:$0xff] %v7950
                  %v7952 = vld [vmem:[%s7876 + $0x128] sm:$0xff]
                  %7953 = vst [vmem:[%s7877 + $0x3f8] sm:$0xff] %v7952
                  %v7954 = vld [vmem:[%s7876 + $0x130] sm:$0xff]
                  %7955 = vst [vmem:[%s7877 + $0x428] sm:$0xff] %v7954
                  %v7956 = vld [vmem:[%s7876 + $0x138] sm:$0xff]
                  %7957 = vst [vmem:[%s7877 + $0x430] sm:$0xff] %v7956
                  %v7958 = vld [vmem:[%s7876 + $0x140] sm:$0xff]
                  %7959 = vst [vmem:[%s7877 + $0x460] sm:$0xff] %v7958
                  %v7960 = vld [vmem:[%s7876 + $0x148] sm:$0xff]
                  %7961 = vst [vmem:[%s7877 + $0x468] sm:$0xff] %v7960
                  %v7962 = vld [vmem:[%s7876 + $0x150] sm:$0xff]
                  %7963 = vst [vmem:[%s7877 + $0x498] sm:$0xff] %v7962
                  %v7964 = vld [vmem:[%s7876 + $0x158] sm:$0xff]
                  %7965 = vst [vmem:[%s7877 + $0x4a0] sm:$0xff] %v7964
                  %v7966 = vld [vmem:[%s7876 + $0x160] sm:$0xff]
                  %7967 = vst [vmem:[%s7877 + $0x4d0] sm:$0xff] %v7966
                  %v7968 = vld [vmem:[%s7876 + $0x168] sm:$0xff]
                  %7969 = vst [vmem:[%s7877 + $0x4d8] sm:$0xff] %v7968
                  %v7970 = vld [vmem:[%s7876 + $0x170] sm:$0xff]
                  %7971 = vst [vmem:[%s7877 + $0x508] sm:$0xff] %v7970
                  %v7972 = vld [vmem:[%s7876 + $0x178] sm:$0xff]
                  %7973 = vst [vmem:[%s7877 + $0x510] sm:$0xff] %v7972
                  %v7974 = vld [vmem:[%s7876 + $0x180] sm:$0xff]
                  %7975 = vst [vmem:[%s7877 + $0x540] sm:$0xff] %v7974
                  %v7976 = vld [vmem:[%s7876 + $0x188] sm:$0xff]
                  %7977 = vst [vmem:[%s7877 + $0x548] sm:$0xff] %v7976
                  %v7978 = vld [vmem:[%s7876 + $0x190] sm:$0xff]
                  %7979 = vst [vmem:[%s7877 + $0x578] sm:$0xff] %v7978
                  %v7980 = vld [vmem:[%s7876 + $0x198] sm:$0xff]
                  %7981 = vst [vmem:[%s7877 + $0x580] sm:$0xff] %v7980
                  %v7982 = vld [vmem:[%s7876 + $0x1a0] sm:$0xff]
                  %7983 = vst [vmem:[%s7877 + $0x5b0] sm:$0xff] %v7982
                  %v7984 = vld [vmem:[%s7876 + $0x1a8] sm:$0xff]
                  %7985 = vst [vmem:[%s7877 + $0x5b8] sm:$0xff] %v7984
                  %v7986 = vld [vmem:[%s7876 + $0x1b0] sm:$0xff]
                  %7987 = vst [vmem:[%s7877 + $0x5e8] sm:$0xff] %v7986
                  %v7988 = vld [vmem:[%s7876 + $0x1b8] sm:$0xff]
                  %7989 = vst [vmem:[%s7877 + $0x5f0] sm:$0xff] %v7988
                  %v7990 = vld [vmem:[%s7876 + $0x1c0] sm:$0xff]
                  %7991 = vst [vmem:[%s7877 + $0x620] sm:$0xff] %v7990
                  %v7992 = vld [vmem:[%s7876 + $0x1c8] sm:$0xff]
                  %7993 = vst [vmem:[%s7877 + $0x628] sm:$0xff] %v7992
                  %v7994 = vld [vmem:[%s7876 + $0x1d0] sm:$0xff]
                  %7995 = vst [vmem:[%s7877 + $0x658] sm:$0xff] %v7994
                  %v7996 = vld [vmem:[%s7876 + $0x1d8] sm:$0xff]
                  %7997 = vst [vmem:[%s7877 + $0x660] sm:$0xff] %v7996
                  %v7998 = vld [vmem:[%s7876 + $0x1e0] sm:$0xff]
                  %7999 = vst [vmem:[%s7877 + $0x690] sm:$0xff] %v7998
                  %v8000 = vld [vmem:[%s7876 + $0x1e8] sm:$0xff]
                  %8001 = vst [vmem:[%s7877 + $0x698] sm:$0xff] %v8000
                  %v8002 = vld [vmem:[%s7876 + $0x1f0] sm:$0xff]
                  %8003 = vst [vmem:[%s7877 + $0x6c8] sm:$0xff] %v8002
                  %v8004 = vld [vmem:[%s7876 + $0x1f8] sm:$0xff]
                  %8005 = vst [vmem:[%s7877 + $0x6d0] sm:$0xff] %v8004
                  %s8006 = sadd.s32 1, %s7875
                  %p8007 = scmp.ge.s32.totalorder %s8006, %s7866
                  %s8008 = scalar_select %p8007, 0, %s8006
                  %s8009 = smul.u32 %s8008, 16
                  %s8010 = smul.u32 %s8008, 16
                  %s8011 = scalar_lea.vmem %s7761, %s8009 [#allocation4]
                  %s8012 = scalar_lea.vmem %s7774, %s8010
                $region176: #{fused_bn_add_relu_conv_bn.1} parent=170 // loop_footer
                  %s7872 = sadd.s32 %s7870, 1
                $region177: #{fused_bn_add_relu_conv_bn.1} parent=170 // loop_footer_branch
                  %7869 = sbr.rel target = $region173
                $region178: #{fused_bn_add_relu_conv_bn.1} parent=170 // loop_exit
                  _
                %s8013 = sshrl.u32 %s7865, 1
                %s8014 = sand.u32 %s7865, 1
                %s8015 = smul.u32 %s8013, 2
                %s8016 = smul.u32 128, %s8015
                %s8017 = sshra.s32 %s8016, 4
                %s8018 = scalar_lea.vmem %s7761, %s8017 [#allocation4]
                %s8019 = smul.u32 128, %s8015
                %s8020 = sshra.s32 %s8019, 4
                %s8021 = scalar_lea.vmem %s7774, %s8020
                // While loop
                $region179: #{fused_bn_add_relu_conv_bn.1} parent=170 // loop_pre_header
                  _
                $region180: #{fused_bn_add_relu_conv_bn.1} parent=170 // loop_header
                  %s8025 = sphi 0, %s8027
                  %p8026 = scmp.ge.s32.totalorder %s8025, %s8014
                  %s8030 = sphi 0, %s8099
                  %s8031 = sphi %s8018, %s8102
                  %s8032 = sphi %s8021, %s8103
                $region181: #{fused_bn_add_relu_conv_bn.1} parent=170 // loop_header_branch
                  %8029 = sbr.rel (%p8026) target = $region185
                $region182: #{fused_bn_add_relu_conv_bn.1} parent=170 // loop_body
                  %v8033 = vld [vmem:[%s8031] sm:$0xff]
                  %8034 = vst [vmem:[%s8032] sm:$0xff] %v8033
                  %v8035 = vld [vmem:[%s8031 + $0x10] sm:$0xff]
                  %8036 = vst [vmem:[%s8032 + $0x38] sm:$0xff] %v8035
                  %v8037 = vld [vmem:[%s8031 + $0x20] sm:$0xff]
                  %8038 = vst [vmem:[%s8032 + $0x70] sm:$0xff] %v8037
                  %v8039 = vld [vmem:[%s8031 + $0x30] sm:$0xff]
                  %8040 = vst [vmem:[%s8032 + $0xa8] sm:$0xff] %v8039
                  %v8041 = vld [vmem:[%s8031 + $0x40] sm:$0xff]
                  %8042 = vst [vmem:[%s8032 + $0xe0] sm:$0xff] %v8041
                  %v8043 = vld [vmem:[%s8031 + $0x50] sm:$0xff]
                  %8044 = vst [vmem:[%s8032 + $0x118] sm:$0xff] %v8043
                  %v8045 = vld [vmem:[%s8031 + $0x60] sm:$0xff]
                  %8046 = vst [vmem:[%s8032 + $0x150] sm:$0xff] %v8045
                  %v8047 = vld [vmem:[%s8031 + $0x70] sm:$0xff]
                  %8048 = vst [vmem:[%s8032 + $0x188] sm:$0xff] %v8047
                  %v8049 = vld [vmem:[%s8031 + $0x80] sm:$0xff]
                  %8050 = vst [vmem:[%s8032 + $0x1c0] sm:$0xff] %v8049
                  %v8051 = vld [vmem:[%s8031 + $0x90] sm:$0xff]
                  %8052 = vst [vmem:[%s8032 + $0x1f8] sm:$0xff] %v8051
                  %v8053 = vld [vmem:[%s8031 + $0xa0] sm:$0xff]
                  %8054 = vst [vmem:[%s8032 + $0x230] sm:$0xff] %v8053
                  %v8055 = vld [vmem:[%s8031 + $0xb0] sm:$0xff]
                  %8056 = vst [vmem:[%s8032 + $0x268] sm:$0xff] %v8055
                  %v8057 = vld [vmem:[%s8031 + $0xc0] sm:$0xff]
                  %8058 = vst [vmem:[%s8032 + $0x2a0] sm:$0xff] %v8057
                  %v8059 = vld [vmem:[%s8031 + $0xd0] sm:$0xff]
                  %8060 = vst [vmem:[%s8032 + $0x2d8] sm:$0xff] %v8059
                  %v8061 = vld [vmem:[%s8031 + $0xe0] sm:$0xff]
                  %8062 = vst [vmem:[%s8032 + $0x310] sm:$0xff] %v8061
                  %v8063 = vld [vmem:[%s8031 + $0xf0] sm:$0xff]
                  %8064 = vst [vmem:[%s8032 + $0x348] sm:$0xff] %v8063
                  %v8065 = vld [vmem:[%s8031 + $0x100] sm:$0xff]
                  %8066 = vst [vmem:[%s8032 + $0x380] sm:$0xff] %v8065
                  %v8067 = vld [vmem:[%s8031 + $0x110] sm:$0xff]
                  %8068 = vst [vmem:[%s8032 + $0x3b8] sm:$0xff] %v8067
                  %v8069 = vld [vmem:[%s8031 + $0x120] sm:$0xff]
                  %8070 = vst [vmem:[%s8032 + $0x3f0] sm:$0xff] %v8069
                  %v8071 = vld [vmem:[%s8031 + $0x130] sm:$0xff]
                  %8072 = vst [vmem:[%s8032 + $0x428] sm:$0xff] %v8071
                  %v8073 = vld [vmem:[%s8031 + $0x140] sm:$0xff]
                  %8074 = vst [vmem:[%s8032 + $0x460] sm:$0xff] %v8073
                  %v8075 = vld [vmem:[%s8031 + $0x150] sm:$0xff]
                  %8076 = vst [vmem:[%s8032 + $0x498] sm:$0xff] %v8075
                  %v8077 = vld [vmem:[%s8031 + $0x160] sm:$0xff]
                  %8078 = vst [vmem:[%s8032 + $0x4d0] sm:$0xff] %v8077
                  %v8079 = vld [vmem:[%s8031 + $0x170] sm:$0xff]
                  %8080 = vst [vmem:[%s8032 + $0x508] sm:$0xff] %v8079
                  %v8081 = vld [vmem:[%s8031 + $0x180] sm:$0xff]
                  %8082 = vst [vmem:[%s8032 + $0x540] sm:$0xff] %v8081
                  %v8083 = vld [vmem:[%s8031 + $0x190] sm:$0xff]
                  %8084 = vst [vmem:[%s8032 + $0x578] sm:$0xff] %v8083
                  %v8085 = vld [vmem:[%s8031 + $0x1a0] sm:$0xff]
                  %8086 = vst [vmem:[%s8032 + $0x5b0] sm:$0xff] %v8085
                  %v8087 = vld [vmem:[%s8031 + $0x1b0] sm:$0xff]
                  %8088 = vst [vmem:[%s8032 + $0x5e8] sm:$0xff] %v8087
                  %v8089 = vld [vmem:[%s8031 + $0x1c0] sm:$0xff]
                  %8090 = vst [vmem:[%s8032 + $0x620] sm:$0xff] %v8089
                  %v8091 = vld [vmem:[%s8031 + $0x1d0] sm:$0xff]
                  %8092 = vst [vmem:[%s8032 + $0x658] sm:$0xff] %v8091
                  %v8093 = vld [vmem:[%s8031 + $0x1e0] sm:$0xff]
                  %8094 = vst [vmem:[%s8032 + $0x690] sm:$0xff] %v8093
                  %v8095 = vld [vmem:[%s8031 + $0x1f0] sm:$0xff]
                  %8096 = vst [vmem:[%s8032 + $0x6c8] sm:$0xff] %v8095
                  %s8097 = sadd.s32 1, %s8030
                  %p8098 = scmp.ge.s32.totalorder %s8097, %s8014
                  %s8099 = scalar_select %p8098, 0, %s8097
                  %s8100 = smul.u32 %s8099, 8
                  %s8101 = smul.u32 %s8099, 8
                  %s8102 = scalar_lea.vmem %s8018, %s8100 [#allocation4]
                  %s8103 = scalar_lea.vmem %s8021, %s8101
                $region183: #{fused_bn_add_relu_conv_bn.1} parent=170 // loop_footer
                  %s8027 = sadd.s32 %s8025, 1
                $region184: #{fused_bn_add_relu_conv_bn.1} parent=170 // loop_footer_branch
                  %8024 = sbr.rel target = $region180
                $region185: #{fused_bn_add_relu_conv_bn.1} parent=170 // loop_exit
                  _
              $region171: #{fused_bn_add_relu_conv_bn.1} parent=155 // pred_fallthru
                _
              %p8104 = pneg %p7861
              // Predicated region
              $region186: #{fused_bn_add_relu_conv_bn.1} parent=155 // pred_check
                _
              $region187: #{fused_bn_add_relu_conv_bn.1} parent=155 // pred_check_branch
                %8106 = sbr.rel (%p7861) target = $region189
              $region188: #{fused_bn_add_relu_conv_bn.1} parent=155 // pred_region
                %s8107 = sand.u32 %s7775, 7
                %s8108 = ssub.s32 %s7775, %s8107
                %s8109 = scalar_lea.vmem %s7761, %s8108 [#allocation4]
                %s8110 = ssub.s32 %s7775, %s8107
                %s8111 = scalar_lea.vmem %s7774, %s8110
                %s8112 = sshrl.u32 %s7775, 3
                %s8113 = sshrl.u32 %s8112, 1
                // While loop
                $region190: #{fused_bn_add_relu_conv_bn.1} parent=188 // loop_pre_header
                  _
                $region191: #{fused_bn_add_relu_conv_bn.1} parent=188 // loop_header
                  %s8117 = sphi 0, %s8119
                  %p8118 = scmp.ge.s32.totalorder %s8117, %s8113
                  %s8122 = sphi 0, %s8255
                  %s8123 = sphi %s7761, %s8258
                  %s8124 = sphi %s7774, %s8259
                $region192: #{fused_bn_add_relu_conv_bn.1} parent=188 // loop_header_branch
                  %8121 = sbr.rel (%p8118) target = $region196
                $region193: #{fused_bn_add_relu_conv_bn.1} parent=188 // loop_body
                  %v8125 = vld [vmem:[%s8123] sm:$0xff]
                  %8126 = vst [vmem:[%s8124] sm:$0xff] %v8125
                  %v8127 = vld [vmem:[%s8123 + $0x8] sm:$0xff]
                  %8128 = vst [vmem:[%s8124 + $0x8] sm:$0xff] %v8127
                  %v8129 = vld [vmem:[%s8123 + $0x10] sm:$0xff]
                  %8130 = vst [vmem:[%s8124 + $0x38] sm:$0xff] %v8129
                  %v8131 = vld [vmem:[%s8123 + $0x18] sm:$0xff]
                  %8132 = vst [vmem:[%s8124 + $0x40] sm:$0xff] %v8131
                  %v8133 = vld [vmem:[%s8123 + $0x20] sm:$0xff]
                  %8134 = vst [vmem:[%s8124 + $0x70] sm:$0xff] %v8133
                  %v8135 = vld [vmem:[%s8123 + $0x28] sm:$0xff]
                  %8136 = vst [vmem:[%s8124 + $0x78] sm:$0xff] %v8135
                  %v8137 = vld [vmem:[%s8123 + $0x30] sm:$0xff]
                  %8138 = vst [vmem:[%s8124 + $0xa8] sm:$0xff] %v8137
                  %v8139 = vld [vmem:[%s8123 + $0x38] sm:$0xff]
                  %8140 = vst [vmem:[%s8124 + $0xb0] sm:$0xff] %v8139
                  %v8141 = vld [vmem:[%s8123 + $0x40] sm:$0xff]
                  %8142 = vst [vmem:[%s8124 + $0xe0] sm:$0xff] %v8141
                  %v8143 = vld [vmem:[%s8123 + $0x48] sm:$0xff]
                  %8144 = vst [vmem:[%s8124 + $0xe8] sm:$0xff] %v8143
                  %v8145 = vld [vmem:[%s8123 + $0x50] sm:$0xff]
                  %8146 = vst [vmem:[%s8124 + $0x118] sm:$0xff] %v8145
                  %v8147 = vld [vmem:[%s8123 + $0x58] sm:$0xff]
                  %8148 = vst [vmem:[%s8124 + $0x120] sm:$0xff] %v8147
                  %v8149 = vld [vmem:[%s8123 + $0x60] sm:$0xff]
                  %8150 = vst [vmem:[%s8124 + $0x150] sm:$0xff] %v8149
                  %v8151 = vld [vmem:[%s8123 + $0x68] sm:$0xff]
                  %8152 = vst [vmem:[%s8124 + $0x158] sm:$0xff] %v8151
                  %v8153 = vld [vmem:[%s8123 + $0x70] sm:$0xff]
                  %8154 = vst [vmem:[%s8124 + $0x188] sm:$0xff] %v8153
                  %v8155 = vld [vmem:[%s8123 + $0x78] sm:$0xff]
                  %8156 = vst [vmem:[%s8124 + $0x190] sm:$0xff] %v8155
                  %v8157 = vld [vmem:[%s8123 + $0x80] sm:$0xff]
                  %8158 = vst [vmem:[%s8124 + $0x1c0] sm:$0xff] %v8157
                  %v8159 = vld [vmem:[%s8123 + $0x88] sm:$0xff]
                  %8160 = vst [vmem:[%s8124 + $0x1c8] sm:$0xff] %v8159
                  %v8161 = vld [vmem:[%s8123 + $0x90] sm:$0xff]
                  %8162 = vst [vmem:[%s8124 + $0x1f8] sm:$0xff] %v8161
                  %v8163 = vld [vmem:[%s8123 + $0x98] sm:$0xff]
                  %8164 = vst [vmem:[%s8124 + $0x200] sm:$0xff] %v8163
                  %v8165 = vld [vmem:[%s8123 + $0xa0] sm:$0xff]
                  %8166 = vst [vmem:[%s8124 + $0x230] sm:$0xff] %v8165
                  %v8167 = vld [vmem:[%s8123 + $0xa8] sm:$0xff]
                  %8168 = vst [vmem:[%s8124 + $0x238] sm:$0xff] %v8167
                  %v8169 = vld [vmem:[%s8123 + $0xb0] sm:$0xff]
                  %8170 = vst [vmem:[%s8124 + $0x268] sm:$0xff] %v8169
                  %v8171 = vld [vmem:[%s8123 + $0xb8] sm:$0xff]
                  %8172 = vst [vmem:[%s8124 + $0x270] sm:$0xff] %v8171
                  %v8173 = vld [vmem:[%s8123 + $0xc0] sm:$0xff]
                  %8174 = vst [vmem:[%s8124 + $0x2a0] sm:$0xff] %v8173
                  %v8175 = vld [vmem:[%s8123 + $0xc8] sm:$0xff]
                  %8176 = vst [vmem:[%s8124 + $0x2a8] sm:$0xff] %v8175
                  %v8177 = vld [vmem:[%s8123 + $0xd0] sm:$0xff]
                  %8178 = vst [vmem:[%s8124 + $0x2d8] sm:$0xff] %v8177
                  %v8179 = vld [vmem:[%s8123 + $0xd8] sm:$0xff]
                  %8180 = vst [vmem:[%s8124 + $0x2e0] sm:$0xff] %v8179
                  %v8181 = vld [vmem:[%s8123 + $0xe0] sm:$0xff]
                  %8182 = vst [vmem:[%s8124 + $0x310] sm:$0xff] %v8181
                  %v8183 = vld [vmem:[%s8123 + $0xe8] sm:$0xff]
                  %8184 = vst [vmem:[%s8124 + $0x318] sm:$0xff] %v8183
                  %v8185 = vld [vmem:[%s8123 + $0xf0] sm:$0xff]
                  %8186 = vst [vmem:[%s8124 + $0x348] sm:$0xff] %v8185
                  %v8187 = vld [vmem:[%s8123 + $0xf8] sm:$0xff]
                  %8188 = vst [vmem:[%s8124 + $0x350] sm:$0xff] %v8187
                  %v8189 = vld [vmem:[%s8123 + $0x100] sm:$0xff]
                  %8190 = vst [vmem:[%s8124 + $0x380] sm:$0xff] %v8189
                  %v8191 = vld [vmem:[%s8123 + $0x108] sm:$0xff]
                  %8192 = vst [vmem:[%s8124 + $0x388] sm:$0xff] %v8191
                  %v8193 = vld [vmem:[%s8123 + $0x110] sm:$0xff]
                  %8194 = vst [vmem:[%s8124 + $0x3b8] sm:$0xff] %v8193
                  %v8195 = vld [vmem:[%s8123 + $0x118] sm:$0xff]
                  %8196 = vst [vmem:[%s8124 + $0x3c0] sm:$0xff] %v8195
                  %v8197 = vld [vmem:[%s8123 + $0x120] sm:$0xff]
                  %8198 = vst [vmem:[%s8124 + $0x3f0] sm:$0xff] %v8197
                  %v8199 = vld [vmem:[%s8123 + $0x128] sm:$0xff]
                  %8200 = vst [vmem:[%s8124 + $0x3f8] sm:$0xff] %v8199
                  %v8201 = vld [vmem:[%s8123 + $0x130] sm:$0xff]
                  %8202 = vst [vmem:[%s8124 + $0x428] sm:$0xff] %v8201
                  %v8203 = vld [vmem:[%s8123 + $0x138] sm:$0xff]
                  %8204 = vst [vmem:[%s8124 + $0x430] sm:$0xff] %v8203
                  %v8205 = vld [vmem:[%s8123 + $0x140] sm:$0xff]
                  %8206 = vst [vmem:[%s8124 + $0x460] sm:$0xff] %v8205
                  %v8207 = vld [vmem:[%s8123 + $0x148] sm:$0xff]
                  %8208 = vst [vmem:[%s8124 + $0x468] sm:$0xff] %v8207
                  %v8209 = vld [vmem:[%s8123 + $0x150] sm:$0xff]
                  %8210 = vst [vmem:[%s8124 + $0x498] sm:$0xff] %v8209
                  %v8211 = vld [vmem:[%s8123 + $0x158] sm:$0xff]
                  %8212 = vst [vmem:[%s8124 + $0x4a0] sm:$0xff] %v8211
                  %v8213 = vld [vmem:[%s8123 + $0x160] sm:$0xff]
                  %8214 = vst [vmem:[%s8124 + $0x4d0] sm:$0xff] %v8213
                  %v8215 = vld [vmem:[%s8123 + $0x168] sm:$0xff]
                  %8216 = vst [vmem:[%s8124 + $0x4d8] sm:$0xff] %v8215
                  %v8217 = vld [vmem:[%s8123 + $0x170] sm:$0xff]
                  %8218 = vst [vmem:[%s8124 + $0x508] sm:$0xff] %v8217
                  %v8219 = vld [vmem:[%s8123 + $0x178] sm:$0xff]
                  %8220 = vst [vmem:[%s8124 + $0x510] sm:$0xff] %v8219
                  %v8221 = vld [vmem:[%s8123 + $0x180] sm:$0xff]
                  %8222 = vst [vmem:[%s8124 + $0x540] sm:$0xff] %v8221
                  %v8223 = vld [vmem:[%s8123 + $0x188] sm:$0xff]
                  %8224 = vst [vmem:[%s8124 + $0x548] sm:$0xff] %v8223
                  %v8225 = vld [vmem:[%s8123 + $0x190] sm:$0xff]
                  %8226 = vst [vmem:[%s8124 + $0x578] sm:$0xff] %v8225
                  %v8227 = vld [vmem:[%s8123 + $0x198] sm:$0xff]
                  %8228 = vst [vmem:[%s8124 + $0x580] sm:$0xff] %v8227
                  %v8229 = vld [vmem:[%s8123 + $0x1a0] sm:$0xff]
                  %8230 = vst [vmem:[%s8124 + $0x5b0] sm:$0xff] %v8229
                  %v8231 = vld [vmem:[%s8123 + $0x1a8] sm:$0xff]
                  %8232 = vst [vmem:[%s8124 + $0x5b8] sm:$0xff] %v8231
                  %v8233 = vld [vmem:[%s8123 + $0x1b0] sm:$0xff]
                  %8234 = vst [vmem:[%s8124 + $0x5e8] sm:$0xff] %v8233
                  %v8235 = vld [vmem:[%s8123 + $0x1b8] sm:$0xff]
                  %8236 = vst [vmem:[%s8124 + $0x5f0] sm:$0xff] %v8235
                  %v8237 = vld [vmem:[%s8123 + $0x1c0] sm:$0xff]
                  %8238 = vst [vmem:[%s8124 + $0x620] sm:$0xff] %v8237
                  %v8239 = vld [vmem:[%s8123 + $0x1c8] sm:$0xff]
                  %8240 = vst [vmem:[%s8124 + $0x628] sm:$0xff] %v8239
                  %v8241 = vld [vmem:[%s8123 + $0x1d0] sm:$0xff]
                  %8242 = vst [vmem:[%s8124 + $0x658] sm:$0xff] %v8241
                  %v8243 = vld [vmem:[%s8123 + $0x1d8] sm:$0xff]
                  %8244 = vst [vmem:[%s8124 + $0x660] sm:$0xff] %v8243
                  %v8245 = vld [vmem:[%s8123 + $0x1e0] sm:$0xff]
                  %8246 = vst [vmem:[%s8124 + $0x690] sm:$0xff] %v8245
                  %v8247 = vld [vmem:[%s8123 + $0x1e8] sm:$0xff]
                  %8248 = vst [vmem:[%s8124 + $0x698] sm:$0xff] %v8247
                  %v8249 = vld [vmem:[%s8123 + $0x1f0] sm:$0xff]
                  %8250 = vst [vmem:[%s8124 + $0x6c8] sm:$0xff] %v8249
                  %v8251 = vld [vmem:[%s8123 + $0x1f8] sm:$0xff]
                  %8252 = vst [vmem:[%s8124 + $0x6d0] sm:$0xff] %v8251
                  %s8253 = sadd.s32 1, %s8122
                  %p8254 = scmp.ge.s32.totalorder %s8253, %s8113
                  %s8255 = scalar_select %p8254, 0, %s8253
                  %s8256 = smul.u32 %s8255, 16
                  %s8257 = smul.u32 %s8255, 16
                  %s8258 = scalar_lea.vmem %s7761, %s8256 [#allocation4]
                  %s8259 = scalar_lea.vmem %s7774, %s8257
                $region194: #{fused_bn_add_relu_conv_bn.1} parent=188 // loop_footer
                  %s8119 = sadd.s32 %s8117, 1
                $region195: #{fused_bn_add_relu_conv_bn.1} parent=188 // loop_footer_branch
                  %8116 = sbr.rel target = $region191
                $region196: #{fused_bn_add_relu_conv_bn.1} parent=188 // loop_exit
                  _
                %s8260 = sshrl.u32 %s8112, 1
                %s8261 = sand.u32 %s8112, 1
                %s8262 = smul.u32 %s8260, 2
                %s8263 = smul.u32 128, %s8262
                %s8264 = sshra.s32 %s8263, 4
                %s8265 = scalar_lea.vmem %s7761, %s8264 [#allocation4]
                %s8266 = smul.u32 128, %s8262
                %s8267 = sshra.s32 %s8266, 4
                %s8268 = scalar_lea.vmem %s7774, %s8267
                // While loop
                $region197: #{fused_bn_add_relu_conv_bn.1} parent=188 // loop_pre_header
                  _
                $region198: #{fused_bn_add_relu_conv_bn.1} parent=188 // loop_header
                  %s8272 = sphi 0, %s8274
                  %p8273 = scmp.ge.s32.totalorder %s8272, %s8261
                  %s8277 = sphi 0, %s8346
                  %s8278 = sphi %s8265, %s8349
                  %s8279 = sphi %s8268, %s8350
                $region199: #{fused_bn_add_relu_conv_bn.1} parent=188 // loop_header_branch
                  %8276 = sbr.rel (%p8273) target = $region203
                $region200: #{fused_bn_add_relu_conv_bn.1} parent=188 // loop_body
                  %v8280 = vld [vmem:[%s8278] sm:$0xff]
                  %8281 = vst [vmem:[%s8279] sm:$0xff] %v8280
                  %v8282 = vld [vmem:[%s8278 + $0x10] sm:$0xff]
                  %8283 = vst [vmem:[%s8279 + $0x38] sm:$0xff] %v8282
                  %v8284 = vld [vmem:[%s8278 + $0x20] sm:$0xff]
                  %8285 = vst [vmem:[%s8279 + $0x70] sm:$0xff] %v8284
                  %v8286 = vld [vmem:[%s8278 + $0x30] sm:$0xff]
                  %8287 = vst [vmem:[%s8279 + $0xa8] sm:$0xff] %v8286
                  %v8288 = vld [vmem:[%s8278 + $0x40] sm:$0xff]
                  %8289 = vst [vmem:[%s8279 + $0xe0] sm:$0xff] %v8288
                  %v8290 = vld [vmem:[%s8278 + $0x50] sm:$0xff]
                  %8291 = vst [vmem:[%s8279 + $0x118] sm:$0xff] %v8290
                  %v8292 = vld [vmem:[%s8278 + $0x60] sm:$0xff]
                  %8293 = vst [vmem:[%s8279 + $0x150] sm:$0xff] %v8292
                  %v8294 = vld [vmem:[%s8278 + $0x70] sm:$0xff]
                  %8295 = vst [vmem:[%s8279 + $0x188] sm:$0xff] %v8294
                  %v8296 = vld [vmem:[%s8278 + $0x80] sm:$0xff]
                  %8297 = vst [vmem:[%s8279 + $0x1c0] sm:$0xff] %v8296
                  %v8298 = vld [vmem:[%s8278 + $0x90] sm:$0xff]
                  %8299 = vst [vmem:[%s8279 + $0x1f8] sm:$0xff] %v8298
                  %v8300 = vld [vmem:[%s8278 + $0xa0] sm:$0xff]
                  %8301 = vst [vmem:[%s8279 + $0x230] sm:$0xff] %v8300
                  %v8302 = vld [vmem:[%s8278 + $0xb0] sm:$0xff]
                  %8303 = vst [vmem:[%s8279 + $0x268] sm:$0xff] %v8302
                  %v8304 = vld [vmem:[%s8278 + $0xc0] sm:$0xff]
                  %8305 = vst [vmem:[%s8279 + $0x2a0] sm:$0xff] %v8304
                  %v8306 = vld [vmem:[%s8278 + $0xd0] sm:$0xff]
                  %8307 = vst [vmem:[%s8279 + $0x2d8] sm:$0xff] %v8306
                  %v8308 = vld [vmem:[%s8278 + $0xe0] sm:$0xff]
                  %8309 = vst [vmem:[%s8279 + $0x310] sm:$0xff] %v8308
                  %v8310 = vld [vmem:[%s8278 + $0xf0] sm:$0xff]
                  %8311 = vst [vmem:[%s8279 + $0x348] sm:$0xff] %v8310
                  %v8312 = vld [vmem:[%s8278 + $0x100] sm:$0xff]
                  %8313 = vst [vmem:[%s8279 + $0x380] sm:$0xff] %v8312
                  %v8314 = vld [vmem:[%s8278 + $0x110] sm:$0xff]
                  %8315 = vst [vmem:[%s8279 + $0x3b8] sm:$0xff] %v8314
                  %v8316 = vld [vmem:[%s8278 + $0x120] sm:$0xff]
                  %8317 = vst [vmem:[%s8279 + $0x3f0] sm:$0xff] %v8316
                  %v8318 = vld [vmem:[%s8278 + $0x130] sm:$0xff]
                  %8319 = vst [vmem:[%s8279 + $0x428] sm:$0xff] %v8318
                  %v8320 = vld [vmem:[%s8278 + $0x140] sm:$0xff]
                  %8321 = vst [vmem:[%s8279 + $0x460] sm:$0xff] %v8320
                  %v8322 = vld [vmem:[%s8278 + $0x150] sm:$0xff]
                  %8323 = vst [vmem:[%s8279 + $0x498] sm:$0xff] %v8322
                  %v8324 = vld [vmem:[%s8278 + $0x160] sm:$0xff]
                  %8325 = vst [vmem:[%s8279 + $0x4d0] sm:$0xff] %v8324
                  %v8326 = vld [vmem:[%s8278 + $0x170] sm:$0xff]
                  %8327 = vst [vmem:[%s8279 + $0x508] sm:$0xff] %v8326
                  %v8328 = vld [vmem:[%s8278 + $0x180] sm:$0xff]
                  %8329 = vst [vmem:[%s8279 + $0x540] sm:$0xff] %v8328
                  %v8330 = vld [vmem:[%s8278 + $0x190] sm:$0xff]
                  %8331 = vst [vmem:[%s8279 + $0x578] sm:$0xff] %v8330
                  %v8332 = vld [vmem:[%s8278 + $0x1a0] sm:$0xff]
                  %8333 = vst [vmem:[%s8279 + $0x5b0] sm:$0xff] %v8332
                  %v8334 = vld [vmem:[%s8278 + $0x1b0] sm:$0xff]
                  %8335 = vst [vmem:[%s8279 + $0x5e8] sm:$0xff] %v8334
                  %v8336 = vld [vmem:[%s8278 + $0x1c0] sm:$0xff]
                  %8337 = vst [vmem:[%s8279 + $0x620] sm:$0xff] %v8336
                  %v8338 = vld [vmem:[%s8278 + $0x1d0] sm:$0xff]
                  %8339 = vst [vmem:[%s8279 + $0x658] sm:$0xff] %v8338
                  %v8340 = vld [vmem:[%s8278 + $0x1e0] sm:$0xff]
                  %8341 = vst [vmem:[%s8279 + $0x690] sm:$0xff] %v8340
                  %v8342 = vld [vmem:[%s8278 + $0x1f0] sm:$0xff]
                  %8343 = vst [vmem:[%s8279 + $0x6c8] sm:$0xff] %v8342
                  %s8344 = sadd.s32 1, %s8277
                  %p8345 = scmp.ge.s32.totalorder %s8344, %s8261
                  %s8346 = scalar_select %p8345, 0, %s8344
                  %s8347 = smul.u32 %s8346, 8
                  %s8348 = smul.u32 %s8346, 8
                  %s8349 = scalar_lea.vmem %s8265, %s8347 [#allocation4]
                  %s8350 = scalar_lea.vmem %s8268, %s8348
                $region201: #{fused_bn_add_relu_conv_bn.1} parent=188 // loop_footer
                  %s8274 = sadd.s32 %s8272, 1
                $region202: #{fused_bn_add_relu_conv_bn.1} parent=188 // loop_footer_branch
                  %8271 = sbr.rel target = $region198
                $region203: #{fused_bn_add_relu_conv_bn.1} parent=188 // loop_exit
                  _
                %s8351 = sshll.u32 1, %s8107
                %s8352 = ssub.s32 %s8351, 1
                loop: start=0, step=1, limit=1
                $region204: #{fused_bn_add_relu_conv_bn.1} parent=188 // loop_pre_header
                  _
                $region205: #{fused_bn_add_relu_conv_bn.1} parent=188 // loop_header
                  %s8354 = sphi 0, %s8358
                  %p8355 = scmp.ge.s32.totalorder %s8354, 1
                  %s8359 = sphi %s8109, %s8109
                  %s8360 = sphi %s8111, %s8111
                $region206: #{fused_bn_add_relu_conv_bn.1} parent=188 // loop_header_branch
                  %8357 = sbr.rel (%p8355) target = $region210
                $region207: #{fused_bn_add_relu_conv_bn.1} parent=188 // loop_body
                  %v8361 = vld [vmem:[%s8359] sm:%s8352]
                  %8362 = vst [vmem:[%s8360] sm:%s8352] %v8361
                  %v8363 = vld [vmem:[%s8359 + $0x10] sm:%s8352]
                  %8364 = vst [vmem:[%s8360 + $0x38] sm:%s8352] %v8363
                  %v8365 = vld [vmem:[%s8359 + $0x20] sm:%s8352]
                  %8366 = vst [vmem:[%s8360 + $0x70] sm:%s8352] %v8365
                  %v8367 = vld [vmem:[%s8359 + $0x30] sm:%s8352]
                  %8368 = vst [vmem:[%s8360 + $0xa8] sm:%s8352] %v8367
                  %v8369 = vld [vmem:[%s8359 + $0x40] sm:%s8352]
                  %8370 = vst [vmem:[%s8360 + $0xe0] sm:%s8352] %v8369
                  %v8371 = vld [vmem:[%s8359 + $0x50] sm:%s8352]
                  %8372 = vst [vmem:[%s8360 + $0x118] sm:%s8352] %v8371
                  %v8373 = vld [vmem:[%s8359 + $0x60] sm:%s8352]
                  %8374 = vst [vmem:[%s8360 + $0x150] sm:%s8352] %v8373
                  %v8375 = vld [vmem:[%s8359 + $0x70] sm:%s8352]
                  %8376 = vst [vmem:[%s8360 + $0x188] sm:%s8352] %v8375
                  %v8377 = vld [vmem:[%s8359 + $0x80] sm:%s8352]
                  %8378 = vst [vmem:[%s8360 + $0x1c0] sm:%s8352] %v8377
                  %v8379 = vld [vmem:[%s8359 + $0x90] sm:%s8352]
                  %8380 = vst [vmem:[%s8360 + $0x1f8] sm:%s8352] %v8379
                  %v8381 = vld [vmem:[%s8359 + $0xa0] sm:%s8352]
                  %8382 = vst [vmem:[%s8360 + $0x230] sm:%s8352] %v8381
                  %v8383 = vld [vmem:[%s8359 + $0xb0] sm:%s8352]
                  %8384 = vst [vmem:[%s8360 + $0x268] sm:%s8352] %v8383
                  %v8385 = vld [vmem:[%s8359 + $0xc0] sm:%s8352]
                  %8386 = vst [vmem:[%s8360 + $0x2a0] sm:%s8352] %v8385
                  %v8387 = vld [vmem:[%s8359 + $0xd0] sm:%s8352]
                  %8388 = vst [vmem:[%s8360 + $0x2d8] sm:%s8352] %v8387
                  %v8389 = vld [vmem:[%s8359 + $0xe0] sm:%s8352]
                  %8390 = vst [vmem:[%s8360 + $0x310] sm:%s8352] %v8389
                  %v8391 = vld [vmem:[%s8359 + $0xf0] sm:%s8352]
                  %8392 = vst [vmem:[%s8360 + $0x348] sm:%s8352] %v8391
                  %v8393 = vld [vmem:[%s8359 + $0x100] sm:%s8352]
                  %8394 = vst [vmem:[%s8360 + $0x380] sm:%s8352] %v8393
                  %v8395 = vld [vmem:[%s8359 + $0x110] sm:%s8352]
                  %8396 = vst [vmem:[%s8360 + $0x3b8] sm:%s8352] %v8395
                  %v8397 = vld [vmem:[%s8359 + $0x120] sm:%s8352]
                  %8398 = vst [vmem:[%s8360 + $0x3f0] sm:%s8352] %v8397
                  %v8399 = vld [vmem:[%s8359 + $0x130] sm:%s8352]
                  %8400 = vst [vmem:[%s8360 + $0x428] sm:%s8352] %v8399
                  %v8401 = vld [vmem:[%s8359 + $0x140] sm:%s8352]
                  %8402 = vst [vmem:[%s8360 + $0x460] sm:%s8352] %v8401
                  %v8403 = vld [vmem:[%s8359 + $0x150] sm:%s8352]
                  %8404 = vst [vmem:[%s8360 + $0x498] sm:%s8352] %v8403
                  %v8405 = vld [vmem:[%s8359 + $0x160] sm:%s8352]
                  %8406 = vst [vmem:[%s8360 + $0x4d0] sm:%s8352] %v8405
                  %v8407 = vld [vmem:[%s8359 + $0x170] sm:%s8352]
                  %8408 = vst [vmem:[%s8360 + $0x508] sm:%s8352] %v8407
                  %v8409 = vld [vmem:[%s8359 + $0x180] sm:%s8352]
                  %8410 = vst [vmem:[%s8360 + $0x540] sm:%s8352] %v8409
                  %v8411 = vld [vmem:[%s8359 + $0x190] sm:%s8352]
                  %8412 = vst [vmem:[%s8360 + $0x578] sm:%s8352] %v8411
                  %v8413 = vld [vmem:[%s8359 + $0x1a0] sm:%s8352]
                  %8414 = vst [vmem:[%s8360 + $0x5b0] sm:%s8352] %v8413
                  %v8415 = vld [vmem:[%s8359 + $0x1b0] sm:%s8352]
                  %8416 = vst [vmem:[%s8360 + $0x5e8] sm:%s8352] %v8415
                  %v8417 = vld [vmem:[%s8359 + $0x1c0] sm:%s8352]
                  %8418 = vst [vmem:[%s8360 + $0x620] sm:%s8352] %v8417
                  %v8419 = vld [vmem:[%s8359 + $0x1d0] sm:%s8352]
                  %8420 = vst [vmem:[%s8360 + $0x658] sm:%s8352] %v8419
                  %v8421 = vld [vmem:[%s8359 + $0x1e0] sm:%s8352]
                  %8422 = vst [vmem:[%s8360 + $0x690] sm:%s8352] %v8421
                  %v8423 = vld [vmem:[%s8359 + $0x1f0] sm:%s8352]
                  %8424 = vst [vmem:[%s8360 + $0x6c8] sm:%s8352] %v8423
                $region208: #{fused_bn_add_relu_conv_bn.1} parent=188 // loop_footer
                  %s8358 = sadd.s32 1, %s8354
                $region209: #{fused_bn_add_relu_conv_bn.1} parent=188 // loop_footer_branch
                  %8353 = sbr.rel target = $region205
                $region210: #{fused_bn_add_relu_conv_bn.1} parent=188 // loop_exit
                  _
              $region189: #{fused_bn_add_relu_conv_bn.1} parent=155 // pred_fallthru
                _
            $region156: #{fused_bn_add_relu_conv_bn.1} parent=151 // pred_fallthru
              _
            // Predicated region
            $region157: #{fused_bn_add_relu_conv_bn.1} parent=151 // pred_check
              %p7783 = pneg %p7779
            $region158: #{fused_bn_add_relu_conv_bn.1} parent=151 // pred_check_branch
              %7785 = sbr.rel (%p7783) target = $region160
            $region159: #{fused_bn_add_relu_conv_bn.1} parent=151 // pred_region
              %s7786 = sshll.u32 1, %s7775
              %s7787 = ssub.s32 %s7786, 1
              loop: start=0, step=1, limit=1
              $region161: #{fused_bn_add_relu_conv_bn.1} parent=159 // loop_pre_header
                _
              $region162: #{fused_bn_add_relu_conv_bn.1} parent=159 // loop_header
                %s7789 = sphi 0, %s7793
                %p7790 = scmp.ge.s32.totalorder %s7789, 1
                %s7794 = sphi %s7761, %s7761
                %s7795 = sphi %s7774, %s7774
              $region163: #{fused_bn_add_relu_conv_bn.1} parent=159 // loop_header_branch
                %7792 = sbr.rel (%p7790) target = $region167
              $region164: #{fused_bn_add_relu_conv_bn.1} parent=159 // loop_body
                %v7796 = vld [vmem:[%s7794] sm:%s7787]
                %7797 = vst [vmem:[%s7795] sm:%s7787] %v7796
                %v7798 = vld [vmem:[%s7794 + $0x10] sm:%s7787]
                %7799 = vst [vmem:[%s7795 + $0x38] sm:%s7787] %v7798
                %v7800 = vld [vmem:[%s7794 + $0x20] sm:%s7787]
                %7801 = vst [vmem:[%s7795 + $0x70] sm:%s7787] %v7800
                %v7802 = vld [vmem:[%s7794 + $0x30] sm:%s7787]
                %7803 = vst [vmem:[%s7795 + $0xa8] sm:%s7787] %v7802
                %v7804 = vld [vmem:[%s7794 + $0x40] sm:%s7787]
                %7805 = vst [vmem:[%s7795 + $0xe0] sm:%s7787] %v7804
                %v7806 = vld [vmem:[%s7794 + $0x50] sm:%s7787]
                %7807 = vst [vmem:[%s7795 + $0x118] sm:%s7787] %v7806
                %v7808 = vld [vmem:[%s7794 + $0x60] sm:%s7787]
                %7809 = vst [vmem:[%s7795 + $0x150] sm:%s7787] %v7808
                %v7810 = vld [vmem:[%s7794 + $0x70] sm:%s7787]
                %7811 = vst [vmem:[%s7795 + $0x188] sm:%s7787] %v7810
                %v7812 = vld [vmem:[%s7794 + $0x80] sm:%s7787]
                %7813 = vst [vmem:[%s7795 + $0x1c0] sm:%s7787] %v7812
                %v7814 = vld [vmem:[%s7794 + $0x90] sm:%s7787]
                %7815 = vst [vmem:[%s7795 + $0x1f8] sm:%s7787] %v7814
                %v7816 = vld [vmem:[%s7794 + $0xa0] sm:%s7787]
                %7817 = vst [vmem:[%s7795 + $0x230] sm:%s7787] %v7816
                %v7818 = vld [vmem:[%s7794 + $0xb0] sm:%s7787]
                %7819 = vst [vmem:[%s7795 + $0x268] sm:%s7787] %v7818
                %v7820 = vld [vmem:[%s7794 + $0xc0] sm:%s7787]
                %7821 = vst [vmem:[%s7795 + $0x2a0] sm:%s7787] %v7820
                %v7822 = vld [vmem:[%s7794 + $0xd0] sm:%s7787]
                %7823 = vst [vmem:[%s7795 + $0x2d8] sm:%s7787] %v7822
                %v7824 = vld [vmem:[%s7794 + $0xe0] sm:%s7787]
                %7825 = vst [vmem:[%s7795 + $0x310] sm:%s7787] %v7824
                %v7826 = vld [vmem:[%s7794 + $0xf0] sm:%s7787]
                %7827 = vst [vmem:[%s7795 + $0x348] sm:%s7787] %v7826
                %v7828 = vld [vmem:[%s7794 + $0x100] sm:%s7787]
                %7829 = vst [vmem:[%s7795 + $0x380] sm:%s7787] %v7828
                %v7830 = vld [vmem:[%s7794 + $0x110] sm:%s7787]
                %7831 = vst [vmem:[%s7795 + $0x3b8] sm:%s7787] %v7830
                %v7832 = vld [vmem:[%s7794 + $0x120] sm:%s7787]
                %7833 = vst [vmem:[%s7795 + $0x3f0] sm:%s7787] %v7832
                %v7834 = vld [vmem:[%s7794 + $0x130] sm:%s7787]
                %7835 = vst [vmem:[%s7795 + $0x428] sm:%s7787] %v7834
                %v7836 = vld [vmem:[%s7794 + $0x140] sm:%s7787]
                %7837 = vst [vmem:[%s7795 + $0x460] sm:%s7787] %v7836
                %v7838 = vld [vmem:[%s7794 + $0x150] sm:%s7787]
                %7839 = vst [vmem:[%s7795 + $0x498] sm:%s7787] %v7838
                %v7840 = vld [vmem:[%s7794 + $0x160] sm:%s7787]
                %7841 = vst [vmem:[%s7795 + $0x4d0] sm:%s7787] %v7840
                %v7842 = vld [vmem:[%s7794 + $0x170] sm:%s7787]
                %7843 = vst [vmem:[%s7795 + $0x508] sm:%s7787] %v7842
                %v7844 = vld [vmem:[%s7794 + $0x180] sm:%s7787]
                %7845 = vst [vmem:[%s7795 + $0x540] sm:%s7787] %v7844
                %v7846 = vld [vmem:[%s7794 + $0x190] sm:%s7787]
                %7847 = vst [vmem:[%s7795 + $0x578] sm:%s7787] %v7846
                %v7848 = vld [vmem:[%s7794 + $0x1a0] sm:%s7787]
                %7849 = vst [vmem:[%s7795 + $0x5b0] sm:%s7787] %v7848
                %v7850 = vld [vmem:[%s7794 + $0x1b0] sm:%s7787]
                %7851 = vst [vmem:[%s7795 + $0x5e8] sm:%s7787] %v7850
                %v7852 = vld [vmem:[%s7794 + $0x1c0] sm:%s7787]
                %7853 = vst [vmem:[%s7795 + $0x620] sm:%s7787] %v7852
                %v7854 = vld [vmem:[%s7794 + $0x1d0] sm:%s7787]
                %7855 = vst [vmem:[%s7795 + $0x658] sm:%s7787] %v7854
                %v7856 = vld [vmem:[%s7794 + $0x1e0] sm:%s7787]
                %7857 = vst [vmem:[%s7795 + $0x690] sm:%s7787] %v7856
                %v7858 = vld [vmem:[%s7794 + $0x1f0] sm:%s7787]
                %7859 = vst [vmem:[%s7795 + $0x6c8] sm:%s7787] %v7858
              $region165: #{fused_bn_add_relu_conv_bn.1} parent=159 // loop_footer
                %s7793 = sadd.s32 1, %s7789
              $region166: #{fused_bn_add_relu_conv_bn.1} parent=159 // loop_footer_branch
                %7788 = sbr.rel target = $region162
              $region167: #{fused_bn_add_relu_conv_bn.1} parent=159 // loop_exit
                _
            $region160: #{fused_bn_add_relu_conv_bn.1} parent=151 // pred_fallthru
              _
          $region152: #{fused_bn_add_relu_conv_bn.1} parent=147 // pred_fallthru
            _
          %8425 = vnop
        $region148: #{fused_bn_add_relu_conv_bn.1} parent=135 // pred_fallthru
          _
      $region136: #{fused_bn_add_relu_conv_bn.1} parent=5 // pred_fallthru
        _
      %p8426 = scmp.le.s32.totalorder 2, %s11
      // Predicated region
      $region211: #{fused_bn_add_relu_conv_bn.1} parent=5 // pred_check
        %p8427 = pneg %p8426
      $region212: #{fused_bn_add_relu_conv_bn.1} parent=5 // pred_check_branch
        %8429 = sbr.rel (%p8427) target = $region214
      $region213: #{fused_bn_add_relu_conv_bn.1} parent=5 // pred_region
        %s8430 = ssub.s32 %s11, 2
        // Predicated region
        $region215: #{fused_bn_add_relu_conv_bn.1} parent=213 // pred_check
          %p8431 = pneg %p173
        $region216: #{fused_bn_add_relu_conv_bn.1} parent=213 // pred_check_branch
          %8433 = sbr.rel (%p8431) target = $region218
        $region217: #{fused_bn_add_relu_conv_bn.1} parent=213 // pred_region
          %s8434 = sand.u32 %s158, 1
          %s8435 = sand.u32 %s158, 1
          %s8436 = smul.addr %s8435, 512
          %s8437 = scalar_lea.vmem [#allocation4], %s8436
        $region218: #{fused_bn_add_relu_conv_bn.1} parent=213 // pred_fallthru
          _
      $region214: #{fused_bn_add_relu_conv_bn.1} parent=5 // pred_fallthru
        _
    $region6: #{fused_bn_add_relu_conv_bn.1} parent=1 // loop_footer
      %s15 = sadd.s32 1, %s11
    $region7: #{fused_bn_add_relu_conv_bn.1} parent=1 // loop_footer_branch
      %10 = sbr.rel target = $region3
    $region8: #{fused_bn_add_relu_conv_bn.1} parent=1 // loop_exit
      _

</llo_original>
